<compile_context>
chip_gen: v5e
topology: v5e:2x2
jax: 0.10.0
libtpu: 0.0.40
codegen_flags: <defaults>
</compile_context>

<pallas_src>
import numpy as np
import jax
import jax.numpy as jnp
from jax import lax
from jax.experimental import pallas as pl
from jax.experimental.pallas import tpu as pltpu

IMG_SHAPE = (1, 108, 16)            # from the PyTorch module
OUT_DIM = int(np.prod(IMG_SHAPE))   # 1728
OUT_PAD = 1792                      # 14 * 128 : lane-dense padded output width
TN = 896                            # N-tile of the final layer (multiple of 128)
N_TILES = OUT_PAD // TN             # 2 sequential grid steps
LATENT = 100
DIMS = [LATENT, 128, 256, 512, 1024, OUT_DIM]
LRELU_SLOPE = 0.2
BN_EPS = 0.8                        # nn.BatchNorm1d(out_feat, 0.8) -> eps=0.8


def _generator_kernel(z_ref,
                      w1, b1,
                      w2, b2, g2, be2,
                      w3, b3, g3, be3,
                      w4, b4, g4, be4,
                      w5, b5,
                      out_ref, h_ref):
    j = pl.program_id(0)

    # Layers 1-4 are computed once (first grid step) into a persistent VMEM
    # scratch; subsequent steps only consume it for their w5 N-tile.
    @pl.when(j == 0)
    def _():
        def linear(x, w_ref, b_ref):
            return jnp.dot(x.astype(jnp.bfloat16), w_ref[...],
                           preferred_element_type=jnp.float32) + b_ref[...]

        def lrelu(x):
            return jnp.maximum(x, LRELU_SLOPE * x)

        def batchnorm(x, g_ref, be_ref):
            # training-mode BN: biased batch statistics over the batch axis
            mean = jnp.mean(x, axis=0, keepdims=True)
            xc = x - mean
            var = jnp.mean(xc * xc, axis=0, keepdims=True)
            return xc * lax.rsqrt(var + BN_EPS) * g_ref[...] + be_ref[...]

        x = z_ref[...].astype(jnp.float32)
        h = lrelu(linear(x, w1, b1))                      # block(100, 128, normalize=False)
        h = lrelu(batchnorm(linear(h, w2, b2), g2, be2))  # block(128, 256)
        h = lrelu(batchnorm(linear(h, w3, b3), g3, be3))  # block(256, 512)
        h = lrelu(batchnorm(linear(h, w4, b4), g4, be4))  # block(512, 1024)
        h_ref[...] = h.astype(jnp.bfloat16)

    # Per-tile: Linear(1024, TN) slice of the final layer + Tanh, lane-dense store.
    out_ref[...] = jnp.tanh(
        jnp.dot(h_ref[...], w5[...], preferred_element_type=jnp.float32)
        + b5[...])


def init_params(key):
    """Deterministic fp32 parameter init (shapes from Generator.__init__)."""
    params = {}
    keys = jax.random.split(key, 2 * (len(DIMS) - 1))
    for i in range(len(DIMS) - 1):
        fan_in, fan_out = DIMS[i], DIMS[i + 1]
        bound = 1.0 / np.sqrt(fan_in)  # PyTorch nn.Linear default-ish scale
        w = jax.random.uniform(keys[2 * i], (fan_in, fan_out), jnp.float32,
                               minval=-bound, maxval=bound)
        b = jax.random.uniform(keys[2 * i + 1], (1, fan_out), jnp.float32,
                               minval=-bound, maxval=bound)
        params[f"w{i + 1}"] = w
        params[f"b{i + 1}"] = b
    # BatchNorm affine params (PyTorch default init: weight=1, bias=0)
    for i, n in zip((2, 3, 4), (256, 512, 1024)):
        params[f"g{i}"] = jnp.ones((1, n), jnp.float32)
        params[f"be{i}"] = jnp.zeros((1, n), jnp.float32)
    return params


def pack_params(params):
    """Kernel-ready params: bf16 weights, final layer padded to OUT_PAD lanes.

    Call ONCE (outside the per-step path); the result is reused across forwards.
    """
    kp = {}
    for i in range(1, 6):
        kp[f"w{i}"] = params[f"w{i}"].astype(jnp.bfloat16)
        kp[f"b{i}"] = params[f"b{i}"]                      # biases stay fp32
    for i in (2, 3, 4):
        kp[f"g{i}"] = params[f"g{i}"]
        kp[f"be{i}"] = params[f"be{i}"]
    pad = OUT_PAD - OUT_DIM
    kp["w5"] = jnp.pad(kp["w5"], ((0, 0), (0, pad)))
    kp["b5"] = jnp.pad(kp["b5"], ((0, 0), (0, pad)))
    return jax.tree_util.tree_map(jnp.asarray, kp)


def generator_forward(z, kp):
    """Forward pass. `kp` must be the pre-packed params from pack_params()."""
    B = z.shape[0]

    const = lambda j: (0, 0)   # weight/bias blocks: same index every step -> DMA'd once
    tile = lambda j: (0, j)    # final-layer weight / bias / output: tiled over N

    in_specs = [
        pl.BlockSpec((B, LATENT), const),
        pl.BlockSpec((DIMS[0], DIMS[1]), const), pl.BlockSpec((1, DIMS[1]), const),
        pl.BlockSpec((DIMS[1], DIMS[2]), const), pl.BlockSpec((1, DIMS[2]), const),
        pl.BlockSpec((1, DIMS[2]), const), pl.BlockSpec((1, DIMS[2]), const),
        pl.BlockSpec((DIMS[2], DIMS[3]), const), pl.BlockSpec((1, DIMS[3]), const),
        pl.BlockSpec((1, DIMS[3]), const), pl.BlockSpec((1, DIMS[3]), const),
        pl.BlockSpec((DIMS[3], DIMS[4]), const), pl.BlockSpec((1, DIMS[4]), const),
        pl.BlockSpec((1, DIMS[4]), const), pl.BlockSpec((1, DIMS[4]), const),
        pl.BlockSpec((DIMS[4], TN), tile),
        pl.BlockSpec((1, TN), tile),
    ]
    out_specs = pl.BlockSpec((B, TN), tile)

    matmul_terms = (DIMS[0] * DIMS[1] + DIMS[1] * DIMS[2] + DIMS[2] * DIMS[3]
                    + DIMS[3] * DIMS[4] + DIMS[4] * OUT_PAD)
    weight_bytes = 2 * matmul_terms                      # bf16 weights
    aux_bytes = 4 * (B * LATENT + B * OUT_PAD
                     + DIMS[1] + 3 * (DIMS[2] + DIMS[3] + DIMS[4]) + OUT_PAD)
    cost = pl.CostEstimate(flops=int(2 * B * matmul_terms),
                           transcendentals=int(B * OUT_PAD),
                           bytes_accessed=int(weight_bytes + aux_bytes))

    flat = pl.pallas_call(
        _generator_kernel,
        out_shape=jax.ShapeDtypeStruct((B, OUT_PAD), jnp.float32),
        grid_spec=pltpu.PrefetchScalarGridSpec(
            num_scalar_prefetch=0,
            grid=(N_TILES,),
            in_specs=in_specs,
            out_specs=out_specs,
            scratch_shapes=[pltpu.VMEM((B, DIMS[4]), jnp.bfloat16)],
        ),
        compiler_params=pltpu.CompilerParams(
            # sequential: the h-scratch produced at j==0 must be visible to all steps
            dimension_semantics=("arbitrary",),
            vmem_limit_bytes=32 * 1024 * 1024,
        ),
        cost_estimate=cost,
    )(z,
      kp["w1"], kp["b1"],
      kp["w2"], kp["b2"], kp["g2"], kp["be2"],
      kp["w3"], kp["b3"], kp["g3"], kp["be3"],
      kp["w4"], kp["b4"], kp["g4"], kp["be4"],
      kp["w5"], kp["b5"])
    return flat[:, :OUT_DIM].reshape(B, *IMG_SHAPE)


def generator_reference(z, params):
    """Pure-JAX fp32 reference (PyTorch semantics) for validation."""
    def lrelu(x):
        return jnp.where(x > 0, x, LRELU_SLOPE * x)

    def bn(x, g, be):
        m = jnp.mean(x, axis=0, keepdims=True)
        v = jnp.mean((x - m) ** 2, axis=0, keepdims=True)
        return (x - m) / jnp.sqrt(v + BN_EPS) * g + be

    h = lrelu(z @ params["w1"] + params["b1"])
    h = lrelu(bn(h @ params["w2"] + params["b2"], params["g2"], params["be2"]))
    h = lrelu(bn(h @ params["w3"] + params["b3"], params["g3"], params["be3"]))
    h = lrelu(bn(h @ params["w4"] + params["b4"], params["g4"], params["be4"]))
    out = jnp.tanh(h @ params["w5"] + params["b5"])
    return out.reshape(z.shape[0], *IMG_SHAPE)


if __name__ == "__main__":
    key = jax.random.PRNGKey(0)
    k_param, k_z = jax.random.split(key)
    params = init_params(k_param)

    # Pre-pack (cast/pad) once — NOT per forward call.
    kp = jax.tree_util.tree_map(jax.block_until_ready, pack_params(params))

    B = 8
    z = jax.random.normal(k_z, (B, LATENT), jnp.float32)

    fwd = jax.jit(generator_forward)
    img = jax.block_until_ready(fwd(z, kp))
    assert img.shape == (B, *IMG_SHAPE), img.shape

    ref = jax.block_until_ready(generator_reference(z, params))
    # bf16 weights/activations in the matmuls -> relaxed tolerance vs fp32 reference
    np.testing.assert_allclose(np.asarray(img), np.asarray(ref), atol=5e-2, rtol=5e-2)

    print("KERNEL_OK")
</pallas_src>

<mosaic_0001>
module attributes {stable_mosaic.version = 11 : i64} {
  func.func @_generator_kernel(%arg0: i32, %arg1: memref<8x100xf32, #tpu.memory_space<vmem>>, %arg2: memref<100x128xbf16, #tpu.memory_space<vmem>>, %arg3: memref<1x128xf32, #tpu.memory_space<vmem>>, %arg4: memref<128x256xbf16, #tpu.memory_space<vmem>>, %arg5: memref<1x256xf32, #tpu.memory_space<vmem>>, %arg6: memref<1x256xf32, #tpu.memory_space<vmem>>, %arg7: memref<1x256xf32, #tpu.memory_space<vmem>>, %arg8: memref<256x512xbf16, #tpu.memory_space<vmem>>, %arg9: memref<1x512xf32, #tpu.memory_space<vmem>>, %arg10: memref<1x512xf32, #tpu.memory_space<vmem>>, %arg11: memref<1x512xf32, #tpu.memory_space<vmem>>, %arg12: memref<512x1024xbf16, #tpu.memory_space<vmem>>, %arg13: memref<1x1024xf32, #tpu.memory_space<vmem>>, %arg14: memref<1x1024xf32, #tpu.memory_space<vmem>>, %arg15: memref<1x1024xf32, #tpu.memory_space<vmem>>, %arg16: memref<1024x896xbf16, #tpu.memory_space<vmem>>, %arg17: memref<1x896xf32, #tpu.memory_space<vmem>>, %arg18: memref<8x896xf32, #tpu.memory_space<vmem>>, %arg19: memref<8x1024xbf16, #tpu.memory_space<vmem>>) attributes {dimension_semantics = [#tpu.dimension_semantics<arbitrary>], iteration_bounds = array<i64: 2>, scalar_prefetch = 0 : i64, scratch_operands = 1 : i64, tpu.core_type = #tpu.core_type<tc>, window_params = [{pipeline_mode = #tpu.pipeline_mode<synchronous>, transform_indices = @transform_0, window_bounds = array<i64: 8, 100>}, {pipeline_mode = #tpu.pipeline_mode<synchronous>, transform_indices = @transform_1, window_bounds = array<i64: 100, 128>}, {pipeline_mode = #tpu.pipeline_mode<synchronous>, transform_indices = @transform_2, window_bounds = array<i64: 1, 128>}, {pipeline_mode = #tpu.pipeline_mode<synchronous>, transform_indices = @transform_3, window_bounds = array<i64: 128, 256>}, {pipeline_mode = #tpu.pipeline_mode<synchronous>, transform_indices = @transform_4, window_bounds = array<i64: 1, 256>}, {pipeline_mode = #tpu.pipeline_mode<synchronous>, transform_indices = @transform_5, window_bounds = array<i64: 1, 256>}, {pipeline_mode = #tpu.pipeline_mode<synchronous>, transform_indices = @transform_6, window_bounds = array<i64: 1, 256>}, {pipeline_mode = #tpu.pipeline_mode<synchronous>, transform_indices = @transform_7, window_bounds = array<i64: 256, 512>}, {pipeline_mode = #tpu.pipeline_mode<synchronous>, transform_indices = @transform_8, window_bounds = array<i64: 1, 512>}, {pipeline_mode = #tpu.pipeline_mode<synchronous>, transform_indices = @transform_9, window_bounds = array<i64: 1, 512>}, {pipeline_mode = #tpu.pipeline_mode<synchronous>, transform_indices = @transform_10, window_bounds = array<i64: 1, 512>}, {pipeline_mode = #tpu.pipeline_mode<synchronous>, transform_indices = @transform_11, window_bounds = array<i64: 512, 1024>}, {pipeline_mode = #tpu.pipeline_mode<synchronous>, transform_indices = @transform_12, window_bounds = array<i64: 1, 1024>}, {pipeline_mode = #tpu.pipeline_mode<synchronous>, transform_indices = @transform_13, window_bounds = array<i64: 1, 1024>}, {pipeline_mode = #tpu.pipeline_mode<synchronous>, transform_indices = @transform_14, window_bounds = array<i64: 1, 1024>}, {transform_indices = @transform_15, window_bounds = array<i64: 1024, 896>}, {transform_indices = @transform_16, window_bounds = array<i64: 1, 896>}, {transform_indices = @transform_17, window_bounds = array<i64: 8, 896>}]} {
    %c0_i32 = arith.constant 0 : i32
    %0 = arith.cmpi eq, %arg0, %c0_i32 : i32
    %1 = arith.extui %0 : i1 to i32
    %c0_i32_0 = arith.constant 0 : i32
    %2 = arith.cmpi ne, %1, %c0_i32_0 : i32
    scf.if %2 {
      %c0_8 = arith.constant 0 : index
      %c0_9 = arith.constant 0 : index
      %11 = vector.load %arg1[%c0_8, %c0_9] : memref<8x100xf32, #tpu.memory_space<vmem>>, vector<8x100xf32>
      %12 = arith.truncf %11 : vector<8x100xf32> to vector<8x100xbf16>
      %c0_10 = arith.constant 0 : index
      %c0_11 = arith.constant 0 : index
      %13 = vector.load %arg2[%c0_10, %c0_11] : memref<100x128xbf16, #tpu.memory_space<vmem>>, vector<100x128xbf16>
      %cst_12 = arith.constant dense<0.000000e+00> : vector<8x128xf32>
      %14 = tpu.matmul %12, %13, %cst_12 {dimension_numbers = #tpu.dot_dimension_numbers<[1], [0], [0], [1], [0, 0, 1, 1], [], []>} : vector<8x100xbf16>, vector<100x128xbf16>, vector<8x128xf32> -> vector<8x128xf32>
      %c0_13 = arith.constant 0 : index
      %c0_14 = arith.constant 0 : index
      %15 = vector.load %arg3[%c0_13, %c0_14] : memref<1x128xf32, #tpu.memory_space<vmem>>, vector<1x128xf32>
      %16 = vector.broadcast %15 : vector<1x128xf32> to vector<8x128xf32>
      %17 = arith.addf %14, %16 : vector<8x128xf32>
      %cst_15 = arith.constant 2.000000e-01 : f32
      %18 = vector.broadcast %cst_15 : f32 to vector<8x128xf32>
      %19 = arith.mulf %18, %17 : vector<8x128xf32>
      %20 = arith.maximumf %17, %19 : vector<8x128xf32>
      %21 = arith.truncf %20 : vector<8x128xf32> to vector<8x128xbf16>
      %c0_16 = arith.constant 0 : index
      %c0_17 = arith.constant 0 : index
      %22 = vector.load %arg4[%c0_16, %c0_17] : memref<128x256xbf16, #tpu.memory_space<vmem>>, vector<128x256xbf16>
      %cst_18 = arith.constant dense<0.000000e+00> : vector<8x256xf32>
      %23 = tpu.matmul %21, %22, %cst_18 {dimension_numbers = #tpu.dot_dimension_numbers<[1], [0], [0], [1], [0, 0, 1, 1], [], []>} : vector<8x128xbf16>, vector<128x256xbf16>, vector<8x256xf32> -> vector<8x256xf32>
      %c0_19 = arith.constant 0 : index
      %c0_20 = arith.constant 0 : index
      %24 = vector.load %arg5[%c0_19, %c0_20] : memref<1x256xf32, #tpu.memory_space<vmem>>, vector<1x256xf32>
      %25 = vector.broadcast %24 : vector<1x256xf32> to vector<8x256xf32>
      %26 = arith.addf %23, %25 : vector<8x256xf32>
      %cst_21 = arith.constant dense<0.000000e+00> : vector<256xf32>
      %27 = vector.multi_reduction <add>, %26, %cst_21 [0] : vector<8x256xf32> to vector<256xf32>
      %28 = vector.shape_cast %27 : vector<256xf32> to vector<1x256xf32>
      %cst_22 = arith.constant 8.000000e+00 : f32
      %29 = vector.broadcast %cst_22 : f32 to vector<1x256xf32>
      %30 = arith.divf %28, %29 : vector<1x256xf32>
      %31 = vector.broadcast %30 : vector<1x256xf32> to vector<8x256xf32>
      %32 = arith.subf %26, %31 : vector<8x256xf32>
      %33 = arith.mulf %32, %32 : vector<8x256xf32>
      %cst_23 = arith.constant dense<0.000000e+00> : vector<256xf32>
      %34 = vector.multi_reduction <add>, %33, %cst_23 [0] : vector<8x256xf32> to vector<256xf32>
      %35 = vector.shape_cast %34 : vector<256xf32> to vector<1x256xf32>
      %cst_24 = arith.constant 8.000000e+00 : f32
      %36 = vector.broadcast %cst_24 : f32 to vector<1x256xf32>
      %37 = arith.divf %35, %36 : vector<1x256xf32>
      %cst_25 = arith.constant 8.000000e-01 : f32
      %38 = vector.broadcast %cst_25 : f32 to vector<1x256xf32>
      %39 = arith.addf %37, %38 : vector<1x256xf32>
      %40 = math.rsqrt %39 : vector<1x256xf32>
      %41 = vector.broadcast %40 : vector<1x256xf32> to vector<8x256xf32>
      %42 = arith.mulf %32, %41 : vector<8x256xf32>
      %c0_26 = arith.constant 0 : index
      %c0_27 = arith.constant 0 : index
      %43 = vector.load %arg6[%c0_26, %c0_27] : memref<1x256xf32, #tpu.memory_space<vmem>>, vector<1x256xf32>
      %44 = vector.broadcast %43 : vector<1x256xf32> to vector<8x256xf32>
      %45 = arith.mulf %42, %44 : vector<8x256xf32>
      %c0_28 = arith.constant 0 : index
      %c0_29 = arith.constant 0 : index
      %46 = vector.load %arg7[%c0_28, %c0_29] : memref<1x256xf32, #tpu.memory_space<vmem>>, vector<1x256xf32>
      %47 = vector.broadcast %46 : vector<1x256xf32> to vector<8x256xf32>
      %48 = arith.addf %45, %47 : vector<8x256xf32>
      %cst_30 = arith.constant 2.000000e-01 : f32
      %49 = vector.broadcast %cst_30 : f32 to vector<8x256xf32>
      %50 = arith.mulf %49, %48 : vector<8x256xf32>
      %51 = arith.maximumf %48, %50 : vector<8x256xf32>
      %52 = arith.truncf %51 : vector<8x256xf32> to vector<8x256xbf16>
      %c0_31 = arith.constant 0 : index
      %c0_32 = arith.constant 0 : index
      %53 = vector.load %arg8[%c0_31, %c0_32] : memref<256x512xbf16, #tpu.memory_space<vmem>>, vector<256x512xbf16>
      %cst_33 = arith.constant dense<0.000000e+00> : vector<8x512xf32>
      %54 = tpu.matmul %52, %53, %cst_33 {dimension_numbers = #tpu.dot_dimension_numbers<[1], [0], [0], [1], [0, 0, 1, 1], [], []>} : vector<8x256xbf16>, vector<256x512xbf16>, vector<8x512xf32> -> vector<8x512xf32>
      %c0_34 = arith.constant 0 : index
      %c0_35 = arith.constant 0 : index
      %55 = vector.load %arg9[%c0_34, %c0_35] : memref<1x512xf32, #tpu.memory_space<vmem>>, vector<1x512xf32>
      %56 = vector.broadcast %55 : vector<1x512xf32> to vector<8x512xf32>
      %57 = arith.addf %54, %56 : vector<8x512xf32>
      %cst_36 = arith.constant dense<0.000000e+00> : vector<512xf32>
      %58 = vector.multi_reduction <add>, %57, %cst_36 [0] : vector<8x512xf32> to vector<512xf32>
      %59 = vector.shape_cast %58 : vector<512xf32> to vector<1x512xf32>
      %cst_37 = arith.constant 8.000000e+00 : f32
      %60 = vector.broadcast %cst_37 : f32 to vector<1x512xf32>
      %61 = arith.divf %59, %60 : vector<1x512xf32>
      %62 = vector.broadcast %61 : vector<1x512xf32> to vector<8x512xf32>
      %63 = arith.subf %57, %62 : vector<8x512xf32>
      %64 = arith.mulf %63, %63 : vector<8x512xf32>
      %cst_38 = arith.constant dense<0.000000e+00> : vector<512xf32>
      %65 = vector.multi_reduction <add>, %64, %cst_38 [0] : vector<8x512xf32> to vector<512xf32>
      %66 = vector.shape_cast %65 : vector<512xf32> to vector<1x512xf32>
      %cst_39 = arith.constant 8.000000e+00 : f32
      %67 = vector.broadcast %cst_39 : f32 to vector<1x512xf32>
      %68 = arith.divf %66, %67 : vector<1x512xf32>
      %cst_40 = arith.constant 8.000000e-01 : f32
      %69 = vector.broadcast %cst_40 : f32 to vector<1x512xf32>
      %70 = arith.addf %68, %69 : vector<1x512xf32>
      %71 = math.rsqrt %70 : vector<1x512xf32>
      %72 = vector.broadcast %71 : vector<1x512xf32> to vector<8x512xf32>
      %73 = arith.mulf %63, %72 : vector<8x512xf32>
      %c0_41 = arith.constant 0 : index
      %c0_42 = arith.constant 0 : index
      %74 = vector.load %arg10[%c0_41, %c0_42] : memref<1x512xf32, #tpu.memory_space<vmem>>, vector<1x512xf32>
      %75 = vector.broadcast %74 : vector<1x512xf32> to vector<8x512xf32>
      %76 = arith.mulf %73, %75 : vector<8x512xf32>
      %c0_43 = arith.constant 0 : index
      %c0_44 = arith.constant 0 : index
      %77 = vector.load %arg11[%c0_43, %c0_44] : memref<1x512xf32, #tpu.memory_space<vmem>>, vector<1x512xf32>
      %78 = vector.broadcast %77 : vector<1x512xf32> to vector<8x512xf32>
      %79 = arith.addf %76, %78 : vector<8x512xf32>
      %cst_45 = arith.constant 2.000000e-01 : f32
      %80 = vector.broadcast %cst_45 : f32 to vector<8x512xf32>
      %81 = arith.mulf %80, %79 : vector<8x512xf32>
      %82 = arith.maximumf %79, %81 : vector<8x512xf32>
      %83 = arith.truncf %82 : vector<8x512xf32> to vector<8x512xbf16>
      %c0_46 = arith.constant 0 : index
      %c0_47 = arith.constant 0 : index
      %84 = vector.load %arg12[%c0_46, %c0_47] : memref<512x1024xbf16, #tpu.memory_space<vmem>>, vector<512x1024xbf16>
      %cst_48 = arith.constant dense<0.000000e+00> : vector<8x1024xf32>
      %85 = tpu.matmul %83, %84, %cst_48 {dimension_numbers = #tpu.dot_dimension_numbers<[1], [0], [0], [1], [0, 0, 1, 1], [], []>} : vector<8x512xbf16>, vector<512x1024xbf16>, vector<8x1024xf32> -> vector<8x1024xf32>
      %c0_49 = arith.constant 0 : index
      %c0_50 = arith.constant 0 : index
      %86 = vector.load %arg13[%c0_49, %c0_50] : memref<1x1024xf32, #tpu.memory_space<vmem>>, vector<1x1024xf32>
      %87 = vector.broadcast %86 : vector<1x1024xf32> to vector<8x1024xf32>
      %88 = arith.addf %85, %87 : vector<8x1024xf32>
      %cst_51 = arith.constant dense<0.000000e+00> : vector<1024xf32>
      %89 = vector.multi_reduction <add>, %88, %cst_51 [0] : vector<8x1024xf32> to vector<1024xf32>
      %90 = vector.shape_cast %89 : vector<1024xf32> to vector<1x1024xf32>
      %cst_52 = arith.constant 8.000000e+00 : f32
      %91 = vector.broadcast %cst_52 : f32 to vector<1x1024xf32>
      %92 = arith.divf %90, %91 : vector<1x1024xf32>
      %93 = vector.broadcast %92 : vector<1x1024xf32> to vector<8x1024xf32>
      %94 = arith.subf %88, %93 : vector<8x1024xf32>
      %95 = arith.mulf %94, %94 : vector<8x1024xf32>
      %cst_53 = arith.constant dense<0.000000e+00> : vector<1024xf32>
      %96 = vector.multi_reduction <add>, %95, %cst_53 [0] : vector<8x1024xf32> to vector<1024xf32>
      %97 = vector.shape_cast %96 : vector<1024xf32> to vector<1x1024xf32>
      %cst_54 = arith.constant 8.000000e+00 : f32
      %98 = vector.broadcast %cst_54 : f32 to vector<1x1024xf32>
      %99 = arith.divf %97, %98 : vector<1x1024xf32>
      %cst_55 = arith.constant 8.000000e-01 : f32
      %100 = vector.broadcast %cst_55 : f32 to vector<1x1024xf32>
      %101 = arith.addf %99, %100 : vector<1x1024xf32>
      %102 = math.rsqrt %101 : vector<1x1024xf32>
      %103 = vector.broadcast %102 : vector<1x1024xf32> to vector<8x1024xf32>
      %104 = arith.mulf %94, %103 : vector<8x1024xf32>
      %c0_56 = arith.constant 0 : index
      %c0_57 = arith.constant 0 : index
      %105 = vector.load %arg14[%c0_56, %c0_57] : memref<1x1024xf32, #tpu.memory_space<vmem>>, vector<1x1024xf32>
      %106 = vector.broadcast %105 : vector<1x1024xf32> to vector<8x1024xf32>
      %107 = arith.mulf %104, %106 : vector<8x1024xf32>
      %c0_58 = arith.constant 0 : index
      %c0_59 = arith.constant 0 : index
      %108 = vector.load %arg15[%c0_58, %c0_59] : memref<1x1024xf32, #tpu.memory_space<vmem>>, vector<1x1024xf32>
      %109 = vector.broadcast %108 : vector<1x1024xf32> to vector<8x1024xf32>
      %110 = arith.addf %107, %109 : vector<8x1024xf32>
      %cst_60 = arith.constant 2.000000e-01 : f32
      %111 = vector.broadcast %cst_60 : f32 to vector<8x1024xf32>
      %112 = arith.mulf %111, %110 : vector<8x1024xf32>
      %113 = arith.maximumf %110, %112 : vector<8x1024xf32>
      %114 = arith.truncf %113 : vector<8x1024xf32> to vector<8x1024xbf16>
      %c0_61 = arith.constant 0 : index
      %c0_62 = arith.constant 0 : index
      %115 = vector.load %arg19[%c0_61, %c0_62] : memref<8x1024xbf16, #tpu.memory_space<vmem>>, vector<8x1024xbf16>
      tpu.vector_store %arg19[%c0_61, %c0_62], %114 {strides = array<i32>} : memref<8x1024xbf16, #tpu.memory_space<vmem>>, vector<8x1024xbf16>,
    } else {
    }
    %c0 = arith.constant 0 : index
    %c0_1 = arith.constant 0 : index
    %3 = vector.load %arg19[%c0, %c0_1] : memref<8x1024xbf16, #tpu.memory_space<vmem>>, vector<8x1024xbf16>
    %c0_2 = arith.constant 0 : index
    %c0_3 = arith.constant 0 : index
    %4 = vector.load %arg16[%c0_2, %c0_3] : memref<1024x896xbf16, #tpu.memory_space<vmem>>, vector<1024x896xbf16>
    %cst = arith.constant dense<0.000000e+00> : vector<8x896xf32>
    %5 = tpu.matmul %3, %4, %cst {dimension_numbers = #tpu.dot_dimension_numbers<[1], [0], [0], [1], [0, 0, 1, 1], [], []>} : vector<8x1024xbf16>, vector<1024x896xbf16>, vector<8x896xf32> -> vector<8x896xf32>
    %c0_4 = arith.constant 0 : index
    %c0_5 = arith.constant 0 : index
    %6 = vector.load %arg17[%c0_4, %c0_5] : memref<1x896xf32, #tpu.memory_space<vmem>>, vector<1x896xf32>
    %7 = vector.broadcast %6 : vector<1x896xf32> to vector<8x896xf32>
    %8 = arith.addf %5, %7 : vector<8x896xf32>
    %9 = math.tanh %8 : vector<8x896xf32>
    %c0_6 = arith.constant 0 : index
    %c0_7 = arith.constant 0 : index
    %10 = vector.load %arg18[%c0_6, %c0_7] : memref<8x896xf32, #tpu.memory_space<vmem>>, vector<8x896xf32>
    tpu.vector_store %arg18[%c0_6, %c0_7], %9 {strides = array<i32>} : memref<8x896xf32, #tpu.memory_space<vmem>>, vector<8x896xf32>,
    return
  }
  func.func @transform_0(%arg0: i32) -> (i32, i32) {
    %c0_i32 = arith.constant 0 : i32
    %c0_i32_0 = arith.constant 0 : i32
    %c0_i32_1 = arith.constant 0 : i32
    return %c0_i32, %c0_i32_0 : i32, i32
  }
  func.func @transform_1(%arg0: i32) -> (i32, i32) {
    %c0_i32 = arith.constant 0 : i32
    %c0_i32_0 = arith.constant 0 : i32
    %c0_i32_1 = arith.constant 0 : i32
    return %c0_i32, %c0_i32_0 : i32, i32
  }
  func.func @transform_2(%arg0: i32) -> (i32, i32) {
    %c0_i32 = arith.constant 0 : i32
    %c0_i32_0 = arith.constant 0 : i32
    %c0_i32_1 = arith.constant 0 : i32
    return %c0_i32, %c0_i32_0 : i32, i32
  }
  func.func @transform_3(%arg0: i32) -> (i32, i32) {
    %c0_i32 = arith.constant 0 : i32
    %c0_i32_0 = arith.constant 0 : i32
    %c0_i32_1 = arith.constant 0 : i32
    return %c0_i32, %c0_i32_0 : i32, i32
  }
  func.func @transform_4(%arg0: i32) -> (i32, i32) {
    %c0_i32 = arith.constant 0 : i32
    %c0_i32_0 = arith.constant 0 : i32
    %c0_i32_1 = arith.constant 0 : i32
    return %c0_i32, %c0_i32_0 : i32, i32
  }
  func.func @transform_5(%arg0: i32) -> (i32, i32) {
    %c0_i32 = arith.constant 0 : i32
    %c0_i32_0 = arith.constant 0 : i32
    %c0_i32_1 = arith.constant 0 : i32
    return %c0_i32, %c0_i32_0 : i32, i32
  }
  func.func @transform_6(%arg0: i32) -> (i32, i32) {
    %c0_i32 = arith.constant 0 : i32
    %c0_i32_0 = arith.constant 0 : i32
    %c0_i32_1 = arith.constant 0 : i32
    return %c0_i32, %c0_i32_0 : i32, i32
  }
  func.func @transform_7(%arg0: i32) -> (i32, i32) {
    %c0_i32 = arith.constant 0 : i32
    %c0_i32_0 = arith.constant 0 : i32
    %c0_i32_1 = arith.constant 0 : i32
    return %c0_i32, %c0_i32_0 : i32, i32
  }
  func.func @transform_8(%arg0: i32) -> (i32, i32) {
    %c0_i32 = arith.constant 0 : i32
    %c0_i32_0 = arith.constant 0 : i32
    %c0_i32_1 = arith.constant 0 : i32
    return %c0_i32, %c0_i32_0 : i32, i32
  }
  func.func @transform_9(%arg0: i32) -> (i32, i32) {
    %c0_i32 = arith.constant 0 : i32
    %c0_i32_0 = arith.constant 0 : i32
    %c0_i32_1 = arith.constant 0 : i32
    return %c0_i32, %c0_i32_0 : i32, i32
  }
  func.func @transform_10(%arg0: i32) -> (i32, i32) {
    %c0_i32 = arith.constant 0 : i32
    %c0_i32_0 = arith.constant 0 : i32
    %c0_i32_1 = arith.constant 0 : i32
    return %c0_i32, %c0_i32_0 : i32, i32
  }
  func.func @transform_11(%arg0: i32) -> (i32, i32) {
    %c0_i32 = arith.constant 0 : i32
    %c0_i32_0 = arith.constant 0 : i32
    %c0_i32_1 = arith.constant 0 : i32
    return %c0_i32, %c0_i32_0 : i32, i32
  }
  func.func @transform_12(%arg0: i32) -> (i32, i32) {
    %c0_i32 = arith.constant 0 : i32
    %c0_i32_0 = arith.constant 0 : i32
    %c0_i32_1 = arith.constant 0 : i32
    return %c0_i32, %c0_i32_0 : i32, i32
  }
  func.func @transform_13(%arg0: i32) -> (i32, i32) {
    %c0_i32 = arith.constant 0 : i32
    %c0_i32_0 = arith.constant 0 : i32
    %c0_i32_1 = arith.constant 0 : i32
    return %c0_i32, %c0_i32_0 : i32, i32
  }
  func.func @transform_14(%arg0: i32) -> (i32, i32) {
    %c0_i32 = arith.constant 0 : i32
    %c0_i32_0 = arith.constant 0 : i32
    %c0_i32_1 = arith.constant 0 : i32
    return %c0_i32, %c0_i32_0 : i32, i32
  }
  func.func @transform_15(%arg0: i32) -> (i32, i32) {
    %c0_i32 = arith.constant 0 : i32
    %c0_i32_0 = arith.constant 0 : i32
    return %c0_i32, %arg0 : i32, i32
  }
  func.func @transform_16(%arg0: i32) -> (i32, i32) {
    %c0_i32 = arith.constant 0 : i32
    %c0_i32_0 = arith.constant 0 : i32
    return %c0_i32, %arg0 : i32, i32
  }
  func.func @transform_17(%arg0: i32) -> (i32, i32) {
    %c0_i32 = arith.constant 0 : i32
    %c0_i32_0 = arith.constant 0 : i32
    return %c0_i32, %arg0 : i32, i32
  }
}

</mosaic_0001>

<llo_original>
// kernel: generator_forward.1
$region0: #{generator_forward.1}
  #allocation0 [shape = 'u32[]', space=smem, size = 0x4, offset = 0x4, fixed_abs, tag = 'smem constant byte address 0x4 - core index']
  #allocation1 [shape = 'u32[72,128]{1,0:T(1,128)}', space=vmem, size = 0x9000, scoped, tag = 'internal scratch']
  #allocation2 [shape = 'bf16[8,1024]{1,0:T(8,128)(2,1)}', space=vmem, size = 0x4000, scoped, tag = 'scratch operand']
  %s0 = inlined_call_operand.hbm [shape: f32[8,100], index: 0, kind: input, shape index: {}]
  %s1 = inlined_call_operand.hbm [shape: bf16[100,128], index: 1, kind: input, shape index: {}]
  %s2 = inlined_call_operand.hbm [shape: f32[1,128], index: 2, kind: input, shape index: {}]
  %s3 = inlined_call_operand.hbm [shape: bf16[128,256], index: 3, kind: input, shape index: {}]
  %s4 = inlined_call_operand.hbm [shape: f32[1,256], index: 4, kind: input, shape index: {}]
  %s5 = inlined_call_operand.hbm [shape: f32[1,256], index: 5, kind: input, shape index: {}]
  %s6 = inlined_call_operand.hbm [shape: f32[1,256], index: 6, kind: input, shape index: {}]
  %s7 = inlined_call_operand.hbm [shape: bf16[256,512], index: 7, kind: input, shape index: {}]
  %s8 = inlined_call_operand.hbm [shape: f32[1,512], index: 8, kind: input, shape index: {}]
  %s9 = inlined_call_operand.hbm [shape: f32[1,512], index: 9, kind: input, shape index: {}]
  %s10 = inlined_call_operand.hbm [shape: f32[1,512], index: 10, kind: input, shape index: {}]
  %s11 = inlined_call_operand.hbm [shape: bf16[512,1024], index: 11, kind: input, shape index: {}]
  %s12 = inlined_call_operand.hbm [shape: f32[1,1024], index: 12, kind: input, shape index: {}]
  %s13 = inlined_call_operand.hbm [shape: f32[1,1024], index: 13, kind: input, shape index: {}]
  %s14 = inlined_call_operand.hbm [shape: f32[1,1024], index: 14, kind: input, shape index: {}]
  %s15 = inlined_call_operand.hbm [shape: bf16[1024,1792], index: 15, kind: input, shape index: {}]
  %s16 = inlined_call_operand.hbm [shape: f32[1,1792], index: 16, kind: input, shape index: {}]
  %s17 = inlined_call_operand.vmem [shape: f32[8,1792], index: 17, kind: output, shape index: {}]
  %s18 = sld [smem:[#allocation0]]
  $region173: #{generator_forward.1} parent=0
    _
  %s20 = ssub.s32 1, %s18
  %s21 = scalar_select 0, %s20, %s18
  $region1: #{generator_forward.1} parent=0
    #allocation3 [shape = 'u8[4096]{0}', space=vmem, size = 0x1000, scoped, tag = 'input window, operand 0, single buffered']
    #allocation4 [shape = 's32[2]{0}', space=sflag, size = 0x8, scoped, tag = 'scoped memory for generator_forward.1']
    #allocation5 [shape = 'u8[26624]{0}', space=vmem, size = 0x6800, scoped, tag = 'input window, operand 1, single buffered']
    #allocation6 [shape = 's32[1]{0}', space=sflag, size = 0x4, scoped, tag = 'scoped memory for generator_forward.1']
    #allocation7 [shape = 'u8[512]{0}', space=vmem, size = 0x400, scoped, tag = 'input window, operand 2, single buffered']
    #allocation8 [shape = 'u8[65536]{0}', space=vmem, size = 0x10000, scoped, tag = 'input window, operand 3, single buffered']
    #allocation9 [shape = 's32[1]{0}', space=sflag, size = 0x4, scoped, tag = 'scoped memory for generator_forward.1']
    #allocation10 [shape = 'u8[1024]{0}', space=vmem, size = 0x400, scoped, tag = 'input window, operand 4, single buffered']
    #allocation11 [shape = 'u8[1024]{0}', space=vmem, size = 0x400, scoped, tag = 'input window, operand 5, single buffered']
    #allocation12 [shape = 's32[1]{0}', space=sflag, size = 0x4, scoped, tag = 'scoped memory for generator_forward.1']
    #allocation13 [shape = 'u8[1024]{0}', space=vmem, size = 0x400, scoped, tag = 'input window, operand 6, single buffered']
    #allocation14 [shape = 'u8[262144]{0}', space=vmem, size = 0x40000, scoped, tag = 'input window, operand 7, single buffered']
    #allocation15 [shape = 's32[1]{0}', space=sflag, size = 0x4, scoped, tag = 'scoped memory for generator_forward.1']
    #allocation16 [shape = 'u8[2048]{0}', space=vmem, size = 0x800, scoped, tag = 'input window, operand 8, single buffered']
    #allocation17 [shape = 'u8[2048]{0}', space=vmem, size = 0x800, scoped, tag = 'input window, operand 9, single buffered']
    #allocation18 [shape = 's32[1]{0}', space=sflag, size = 0x4, scoped, tag = 'scoped memory for generator_forward.1']
    #allocation19 [shape = 'u8[2048]{0}', space=vmem, size = 0x800, scoped, tag = 'input window, operand 10, single buffered']
    #allocation20 [shape = 'u8[1048576]{0}', space=vmem, size = 0x100000, scoped, tag = 'input window, operand 11, single buffered']
    #allocation21 [shape = 's32[1]{0}', space=sflag, size = 0x4, scoped, tag = 'scoped memory for generator_forward.1']
    #allocation22 [shape = 'u8[4096]{0}', space=vmem, size = 0x1000, scoped, tag = 'input window, operand 12, single buffered']
    #allocation23 [shape = 'u8[4096]{0}', space=vmem, size = 0x1000, scoped, tag = 'input window, operand 13, single buffered']
    #allocation24 [shape = 's32[1]{0}', space=sflag, size = 0x4, scoped, tag = 'scoped memory for generator_forward.1']
    #allocation25 [shape = 'u8[4096]{0}', space=vmem, size = 0x1000, scoped, tag = 'input window, operand 14, single buffered']
    #allocation26 [shape = 'u8[3670016]{0}', space=vmem, size = 0x380000, scoped, tag = 'input window, operand 15']
    #allocation27 [shape = 's32[2]{0}', space=sflag, size = 0x8, scoped, tag = 'scoped memory for generator_forward.1']
    #allocation28 [shape = 'u8[7168]{0}', space=vmem, size = 0x1c00, scoped, tag = 'input window, operand 16']
    %22 = vsyncpa [#allocation4], 0
    %23 = vsyncpa [#allocation6], 0
    %24 = vsyncpa [#allocation9], 0
    %25 = vsyncpa [#allocation12], 0
    %26 = vsyncpa [#allocation15], 0
    %27 = vsyncpa [#allocation18], 0
    %28 = vsyncpa [#allocation21], 0
    %29 = vsyncpa [#allocation24], 0
    %30 = vsyncpa [#allocation27], 0
    %s31 = scalar_lea.sflag [#allocation27], 1
    %32 = vsyncpa %s31, 0
    loop: start=0, step=1, limit=4
    $region2: #{generator_forward.1} parent=1 // loop_pre_header
      _
    $region3: #{generator_forward.1} parent=1 // loop_header
      %s34 = sphi 0, %s38
      %p35 = scmp.ge.s32.totalorder %s34, 4
      %s42 = sphi 0, %s42
      %s44 = sphi 0, %s42
      %s45 = sphi 0, %s44
      %s59 = sphi 0, %s45
      %s63 = sphi 0, %s63
      %s65 = sphi 0, %s63
      %s66 = sphi 0, %s65
      %s80 = sphi 0, %s66
      %s84 = sphi 0, %s84
      %s86 = sphi 0, %s84
      %s87 = sphi 0, %s86
      %s101 = sphi 0, %s87
      %s105 = sphi 0, %s105
      %s107 = sphi 0, %s105
      %s108 = sphi 0, %s107
      %s122 = sphi 0, %s108
      %s126 = sphi 0, %s126
      %s128 = sphi 0, %s126
      %s129 = sphi 0, %s128
      %s143 = sphi 0, %s129
      %s147 = sphi 0, %s147
      %s149 = sphi 0, %s147
      %s150 = sphi 0, %s149
      %s164 = sphi 0, %s150
      %s168 = sphi 0, %s168
      %s170 = sphi 0, %s168
      %s171 = sphi 0, %s170
      %s185 = sphi 0, %s171
      %s189 = sphi 0, %s189
      %s191 = sphi 0, %s189
      %s192 = sphi 0, %s191
      %s206 = sphi 0, %s192
      %s210 = sphi 0, %s210
      %s212 = sphi 0, %s210
      %s213 = sphi 0, %s212
      %s227 = sphi 0, %s213
      %s231 = sphi 0, %s231
      %s233 = sphi 0, %s231
      %s234 = sphi 0, %s233
      %s248 = sphi 0, %s234
      %s252 = sphi 0, %s252
      %s254 = sphi 0, %s252
      %s255 = sphi 0, %s254
      %s269 = sphi 0, %s255
      %s273 = sphi 0, %s273
      %s275 = sphi 0, %s273
      %s276 = sphi 0, %s275
      %s290 = sphi 0, %s276
      %s294 = sphi 0, %s294
      %s296 = sphi 0, %s294
      %s297 = sphi 0, %s296
      %s311 = sphi 0, %s297
      %s315 = sphi 0, %s315
      %s317 = sphi 0, %s315
      %s318 = sphi 0, %s317
      %s332 = sphi 0, %s318
      %s336 = sphi 0, %s336
      %s338 = sphi 0, %s336
      %s339 = sphi 0, %s338
      %s353 = sphi 0, %s339
      %s359 = sphi 0, %s361
      %s362 = sphi 0, %s359
      %s363 = sphi 0, %s362
      %s379 = sphi 0, %s363
      %s385 = sphi 0, %s387
      %s388 = sphi 0, %s385
      %s389 = sphi 0, %s388
      %s405 = sphi 0, %s389
      %s411 = sphi 0, %s413
      %s414 = sphi 0, %s411
      %s415 = sphi 0, %s414
      %s431 = sphi 0, %s415
    $region4: #{generator_forward.1} parent=1 // loop_header_branch
      %37 = sbr.rel (%p35) target = $region8
    $region5: #{generator_forward.1} parent=1 // loop_body
      %s39 = ssub.s32 %s34, 1
      %s40 = ssub.s32 %s34, 2
      %s41 = sadd.s32 %s34, 1
      %s43 = sadd.s32 %s42, 1
      %p46 = scmp.eq.s32.totalorder %s34, 1
      %p47 = scmp.ne.s32.totalorder %s42, %s44
      %p48 = scmp.eq.s32.totalorder %s34, 0
      %p49 = por %p47, %p48
      %p50 = scmp.ne.s32.totalorder %s42, %s44
      %p51 = scmp.eq.s32.totalorder %s39, 1
      %p52 = por %p50, %p51
      %p53 = scmp.ne.s32.totalorder %s44, %s45
      %p54 = scmp.eq.s32.totalorder %s39, 0
      %p55 = por %p53, %p54
      %p56 = scmp.ne.s32.totalorder %s44, %s45
      %p57 = scmp.eq.s32.totalorder %s40, 1
      %p58 = por %p56, %p57
      %p60 = scmp.ne.s32.totalorder %s45, %s59
      %p61 = scmp.eq.s32.totalorder %s40, 0
      %p62 = por %p60, %p61
      %s64 = sadd.s32 %s63, 1
      %p67 = scmp.eq.s32.totalorder %s34, 1
      %p68 = scmp.ne.s32.totalorder %s63, %s65
      %p69 = scmp.eq.s32.totalorder %s34, 0
      %p70 = por %p68, %p69
      %p71 = scmp.ne.s32.totalorder %s63, %s65
      %p72 = scmp.eq.s32.totalorder %s39, 1
      %p73 = por %p71, %p72
      %p74 = scmp.ne.s32.totalorder %s65, %s66
      %p75 = scmp.eq.s32.totalorder %s39, 0
      %p76 = por %p74, %p75
      %p77 = scmp.ne.s32.totalorder %s65, %s66
      %p78 = scmp.eq.s32.totalorder %s40, 1
      %p79 = por %p77, %p78
      %p81 = scmp.ne.s32.totalorder %s66, %s80
      %p82 = scmp.eq.s32.totalorder %s40, 0
      %p83 = por %p81, %p82
      %s85 = sadd.s32 %s84, 1
      %p88 = scmp.eq.s32.totalorder %s34, 1
      %p89 = scmp.ne.s32.totalorder %s84, %s86
      %p90 = scmp.eq.s32.totalorder %s34, 0
      %p91 = por %p89, %p90
      %p92 = scmp.ne.s32.totalorder %s84, %s86
      %p93 = scmp.eq.s32.totalorder %s39, 1
      %p94 = por %p92, %p93
      %p95 = scmp.ne.s32.totalorder %s86, %s87
      %p96 = scmp.eq.s32.totalorder %s39, 0
      %p97 = por %p95, %p96
      %p98 = scmp.ne.s32.totalorder %s86, %s87
      %p99 = scmp.eq.s32.totalorder %s40, 1
      %p100 = por %p98, %p99
      %p102 = scmp.ne.s32.totalorder %s87, %s101
      %p103 = scmp.eq.s32.totalorder %s40, 0
      %p104 = por %p102, %p103
      %s106 = sadd.s32 %s105, 1
      %p109 = scmp.eq.s32.totalorder %s34, 1
      %p110 = scmp.ne.s32.totalorder %s105, %s107
      %p111 = scmp.eq.s32.totalorder %s34, 0
      %p112 = por %p110, %p111
      %p113 = scmp.ne.s32.totalorder %s105, %s107
      %p114 = scmp.eq.s32.totalorder %s39, 1
      %p115 = por %p113, %p114
      %p116 = scmp.ne.s32.totalorder %s107, %s108
      %p117 = scmp.eq.s32.totalorder %s39, 0
      %p118 = por %p116, %p117
      %p119 = scmp.ne.s32.totalorder %s107, %s108
      %p120 = scmp.eq.s32.totalorder %s40, 1
      %p121 = por %p119, %p120
      %p123 = scmp.ne.s32.totalorder %s108, %s122
      %p124 = scmp.eq.s32.totalorder %s40, 0
      %p125 = por %p123, %p124
      %s127 = sadd.s32 %s126, 1
      %p130 = scmp.eq.s32.totalorder %s34, 1
      %p131 = scmp.ne.s32.totalorder %s126, %s128
      %p132 = scmp.eq.s32.totalorder %s34, 0
      %p133 = por %p131, %p132
      %p134 = scmp.ne.s32.totalorder %s126, %s128
      %p135 = scmp.eq.s32.totalorder %s39, 1
      %p136 = por %p134, %p135
      %p137 = scmp.ne.s32.totalorder %s128, %s129
      %p138 = scmp.eq.s32.totalorder %s39, 0
      %p139 = por %p137, %p138
      %p140 = scmp.ne.s32.totalorder %s128, %s129
      %p141 = scmp.eq.s32.totalorder %s40, 1
      %p142 = por %p140, %p141
      %p144 = scmp.ne.s32.totalorder %s129, %s143
      %p145 = scmp.eq.s32.totalorder %s40, 0
      %p146 = por %p144, %p145
      %s148 = sadd.s32 %s147, 1
      %p151 = scmp.eq.s32.totalorder %s34, 1
      %p152 = scmp.ne.s32.totalorder %s147, %s149
      %p153 = scmp.eq.s32.totalorder %s34, 0
      %p154 = por %p152, %p153
      %p155 = scmp.ne.s32.totalorder %s147, %s149
      %p156 = scmp.eq.s32.totalorder %s39, 1
      %p157 = por %p155, %p156
      %p158 = scmp.ne.s32.totalorder %s149, %s150
      %p159 = scmp.eq.s32.totalorder %s39, 0
      %p160 = por %p158, %p159
      %p161 = scmp.ne.s32.totalorder %s149, %s150
      %p162 = scmp.eq.s32.totalorder %s40, 1
      %p163 = por %p161, %p162
      %p165 = scmp.ne.s32.totalorder %s150, %s164
      %p166 = scmp.eq.s32.totalorder %s40, 0
      %p167 = por %p165, %p166
      %s169 = sadd.s32 %s168, 1
      %p172 = scmp.eq.s32.totalorder %s34, 1
      %p173 = scmp.ne.s32.totalorder %s168, %s170
      %p174 = scmp.eq.s32.totalorder %s34, 0
      %p175 = por %p173, %p174
      %p176 = scmp.ne.s32.totalorder %s168, %s170
      %p177 = scmp.eq.s32.totalorder %s39, 1
      %p178 = por %p176, %p177
      %p179 = scmp.ne.s32.totalorder %s170, %s171
      %p180 = scmp.eq.s32.totalorder %s39, 0
      %p181 = por %p179, %p180
      %p182 = scmp.ne.s32.totalorder %s170, %s171
      %p183 = scmp.eq.s32.totalorder %s40, 1
      %p184 = por %p182, %p183
      %p186 = scmp.ne.s32.totalorder %s171, %s185
      %p187 = scmp.eq.s32.totalorder %s40, 0
      %p188 = por %p186, %p187
      %s190 = sadd.s32 %s189, 1
      %p193 = scmp.eq.s32.totalorder %s34, 1
      %p194 = scmp.ne.s32.totalorder %s189, %s191
      %p195 = scmp.eq.s32.totalorder %s34, 0
      %p196 = por %p194, %p195
      %p197 = scmp.ne.s32.totalorder %s189, %s191
      %p198 = scmp.eq.s32.totalorder %s39, 1
      %p199 = por %p197, %p198
      %p200 = scmp.ne.s32.totalorder %s191, %s192
      %p201 = scmp.eq.s32.totalorder %s39, 0
      %p202 = por %p200, %p201
      %p203 = scmp.ne.s32.totalorder %s191, %s192
      %p204 = scmp.eq.s32.totalorder %s40, 1
      %p205 = por %p203, %p204
      %p207 = scmp.ne.s32.totalorder %s192, %s206
      %p208 = scmp.eq.s32.totalorder %s40, 0
      %p209 = por %p207, %p208
      %s211 = sadd.s32 %s210, 1
      %p214 = scmp.eq.s32.totalorder %s34, 1
      %p215 = scmp.ne.s32.totalorder %s210, %s212
      %p216 = scmp.eq.s32.totalorder %s34, 0
      %p217 = por %p215, %p216
      %p218 = scmp.ne.s32.totalorder %s210, %s212
      %p219 = scmp.eq.s32.totalorder %s39, 1
      %p220 = por %p218, %p219
      %p221 = scmp.ne.s32.totalorder %s212, %s213
      %p222 = scmp.eq.s32.totalorder %s39, 0
      %p223 = por %p221, %p222
      %p224 = scmp.ne.s32.totalorder %s212, %s213
      %p225 = scmp.eq.s32.totalorder %s40, 1
      %p226 = por %p224, %p225
      %p228 = scmp.ne.s32.totalorder %s213, %s227
      %p229 = scmp.eq.s32.totalorder %s40, 0
      %p230 = por %p228, %p229
      %s232 = sadd.s32 %s231, 1
      %p235 = scmp.eq.s32.totalorder %s34, 1
      %p236 = scmp.ne.s32.totalorder %s231, %s233
      %p237 = scmp.eq.s32.totalorder %s34, 0
      %p238 = por %p236, %p237
      %p239 = scmp.ne.s32.totalorder %s231, %s233
      %p240 = scmp.eq.s32.totalorder %s39, 1
      %p241 = por %p239, %p240
      %p242 = scmp.ne.s32.totalorder %s233, %s234
      %p243 = scmp.eq.s32.totalorder %s39, 0
      %p244 = por %p242, %p243
      %p245 = scmp.ne.s32.totalorder %s233, %s234
      %p246 = scmp.eq.s32.totalorder %s40, 1
      %p247 = por %p245, %p246
      %p249 = scmp.ne.s32.totalorder %s234, %s248
      %p250 = scmp.eq.s32.totalorder %s40, 0
      %p251 = por %p249, %p250
      %s253 = sadd.s32 %s252, 1
      %p256 = scmp.eq.s32.totalorder %s34, 1
      %p257 = scmp.ne.s32.totalorder %s252, %s254
      %p258 = scmp.eq.s32.totalorder %s34, 0
      %p259 = por %p257, %p258
      %p260 = scmp.ne.s32.totalorder %s252, %s254
      %p261 = scmp.eq.s32.totalorder %s39, 1
      %p262 = por %p260, %p261
      %p263 = scmp.ne.s32.totalorder %s254, %s255
      %p264 = scmp.eq.s32.totalorder %s39, 0
      %p265 = por %p263, %p264
      %p266 = scmp.ne.s32.totalorder %s254, %s255
      %p267 = scmp.eq.s32.totalorder %s40, 1
      %p268 = por %p266, %p267
      %p270 = scmp.ne.s32.totalorder %s255, %s269
      %p271 = scmp.eq.s32.totalorder %s40, 0
      %p272 = por %p270, %p271
      %s274 = sadd.s32 %s273, 1
      %p277 = scmp.eq.s32.totalorder %s34, 1
      %p278 = scmp.ne.s32.totalorder %s273, %s275
      %p279 = scmp.eq.s32.totalorder %s34, 0
      %p280 = por %p278, %p279
      %p281 = scmp.ne.s32.totalorder %s273, %s275
      %p282 = scmp.eq.s32.totalorder %s39, 1
      %p283 = por %p281, %p282
      %p284 = scmp.ne.s32.totalorder %s275, %s276
      %p285 = scmp.eq.s32.totalorder %s39, 0
      %p286 = por %p284, %p285
      %p287 = scmp.ne.s32.totalorder %s275, %s276
      %p288 = scmp.eq.s32.totalorder %s40, 1
      %p289 = por %p287, %p288
      %p291 = scmp.ne.s32.totalorder %s276, %s290
      %p292 = scmp.eq.s32.totalorder %s40, 0
      %p293 = por %p291, %p292
      %s295 = sadd.s32 %s294, 1
      %p298 = scmp.eq.s32.totalorder %s34, 1
      %p299 = scmp.ne.s32.totalorder %s294, %s296
      %p300 = scmp.eq.s32.totalorder %s34, 0
      %p301 = por %p299, %p300
      %p302 = scmp.ne.s32.totalorder %s294, %s296
      %p303 = scmp.eq.s32.totalorder %s39, 1
      %p304 = por %p302, %p303
      %p305 = scmp.ne.s32.totalorder %s296, %s297
      %p306 = scmp.eq.s32.totalorder %s39, 0
      %p307 = por %p305, %p306
      %p308 = scmp.ne.s32.totalorder %s296, %s297
      %p309 = scmp.eq.s32.totalorder %s40, 1
      %p310 = por %p308, %p309
      %p312 = scmp.ne.s32.totalorder %s297, %s311
      %p313 = scmp.eq.s32.totalorder %s40, 0
      %p314 = por %p312, %p313
      %s316 = sadd.s32 %s315, 1
      %p319 = scmp.eq.s32.totalorder %s34, 1
      %p320 = scmp.ne.s32.totalorder %s315, %s317
      %p321 = scmp.eq.s32.totalorder %s34, 0
      %p322 = por %p320, %p321
      %p323 = scmp.ne.s32.totalorder %s315, %s317
      %p324 = scmp.eq.s32.totalorder %s39, 1
      %p325 = por %p323, %p324
      %p326 = scmp.ne.s32.totalorder %s317, %s318
      %p327 = scmp.eq.s32.totalorder %s39, 0
      %p328 = por %p326, %p327
      %p329 = scmp.ne.s32.totalorder %s317, %s318
      %p330 = scmp.eq.s32.totalorder %s40, 1
      %p331 = por %p329, %p330
      %p333 = scmp.ne.s32.totalorder %s318, %s332
      %p334 = scmp.eq.s32.totalorder %s40, 0
      %p335 = por %p333, %p334
      %s337 = sadd.s32 %s336, 1
      %p340 = scmp.eq.s32.totalorder %s34, 1
      %p341 = scmp.ne.s32.totalorder %s336, %s338
      %p342 = scmp.eq.s32.totalorder %s34, 0
      %p343 = por %p341, %p342
      %p344 = scmp.ne.s32.totalorder %s336, %s338
      %p345 = scmp.eq.s32.totalorder %s39, 1
      %p346 = por %p344, %p345
      %p347 = scmp.ne.s32.totalorder %s338, %s339
      %p348 = scmp.eq.s32.totalorder %s39, 0
      %p349 = por %p347, %p348
      %p350 = scmp.ne.s32.totalorder %s338, %s339
      %p351 = scmp.eq.s32.totalorder %s40, 1
      %p352 = por %p350, %p351
      %p354 = scmp.ne.s32.totalorder %s339, %s353
      %p355 = scmp.eq.s32.totalorder %s40, 0
      %p356 = por %p354, %p355
      %s357 = ssub.s32 %s34, %s41
      %p358 = scmp.eq.s32.totalorder %s357, 0
      %s360 = sadd.s32 %s359, 1
      %s361 = scalar_select %p358, %s359, %s360
      %p364 = pneg %p358
      %p365 = scmp.eq.s32.totalorder %s34, 1
      %p366 = por %p364, %p365
      %p367 = scmp.ne.s32.totalorder %s359, %s362
      %p368 = scmp.eq.s32.totalorder %s34, 0
      %p369 = por %p367, %p368
      %p370 = scmp.ne.s32.totalorder %s359, %s362
      %p371 = scmp.eq.s32.totalorder %s39, 1
      %p372 = por %p370, %p371
      %p373 = scmp.ne.s32.totalorder %s362, %s363
      %p374 = scmp.eq.s32.totalorder %s39, 0
      %p375 = por %p373, %p374
      %p376 = scmp.ne.s32.totalorder %s362, %s363
      %p377 = scmp.eq.s32.totalorder %s40, 1
      %p378 = por %p376, %p377
      %p380 = scmp.ne.s32.totalorder %s363, %s379
      %p381 = scmp.eq.s32.totalorder %s40, 0
      %p382 = por %p380, %p381
      %s383 = ssub.s32 %s34, %s41
      %p384 = scmp.eq.s32.totalorder %s383, 0
      %s386 = sadd.s32 %s385, 1
      %s387 = scalar_select %p384, %s385, %s386
      %p390 = pneg %p384
      %p391 = scmp.eq.s32.totalorder %s34, 1
      %p392 = por %p390, %p391
      %p393 = scmp.ne.s32.totalorder %s385, %s388
      %p394 = scmp.eq.s32.totalorder %s34, 0
      %p395 = por %p393, %p394
      %p396 = scmp.ne.s32.totalorder %s385, %s388
      %p397 = scmp.eq.s32.totalorder %s39, 1
      %p398 = por %p396, %p397
      %p399 = scmp.ne.s32.totalorder %s388, %s389
      %p400 = scmp.eq.s32.totalorder %s39, 0
      %p401 = por %p399, %p400
      %p402 = scmp.ne.s32.totalorder %s388, %s389
      %p403 = scmp.eq.s32.totalorder %s40, 1
      %p404 = por %p402, %p403
      %p406 = scmp.ne.s32.totalorder %s389, %s405
      %p407 = scmp.eq.s32.totalorder %s40, 0
      %p408 = por %p406, %p407
      %s409 = ssub.s32 %s34, %s41
      %p410 = scmp.eq.s32.totalorder %s409, 0
      %s412 = sadd.s32 %s411, 1
      %s413 = scalar_select %p410, %s411, %s412
      %p416 = pneg %p410
      %p417 = scmp.eq.s32.totalorder %s34, 1
      %p418 = por %p416, %p417
      %p419 = scmp.ne.s32.totalorder %s411, %s414
      %p420 = scmp.eq.s32.totalorder %s34, 0
      %p421 = por %p419, %p420
      %p422 = scmp.ne.s32.totalorder %s411, %s414
      %p423 = scmp.eq.s32.totalorder %s39, 1
      %p424 = por %p422, %p423
      %p425 = scmp.ne.s32.totalorder %s414, %s415
      %p426 = scmp.eq.s32.totalorder %s39, 0
      %p427 = por %p425, %p426
      %p428 = scmp.ne.s32.totalorder %s414, %s415
      %p429 = scmp.eq.s32.totalorder %s40, 1
      %p430 = por %p428, %p429
      %p432 = scmp.ne.s32.totalorder %s415, %s431
      %p433 = scmp.eq.s32.totalorder %s40, 0
      %p434 = por %p432, %p433
      %p435 = scmp.le.s32.totalorder 1, %s34
      %p436 = scmp.lt.s32.totalorder %s34, 3
      %p437 = pnand %p435, %p436
      %p438 = pneg %p437
      // Predicated region
      $region9: #{generator_forward.1} parent=5 // pred_check
        _
      $region10: #{generator_forward.1} parent=5 // pred_check_branch
        %440 = sbr.rel (%p437) target = $region12
      $region11: #{generator_forward.1} parent=5 // pred_region
        %s441 = ssub.s32 %s34, 1
        // Predicated region
        $region13: #{generator_forward.1} parent=11 // pred_check
          %p442 = pneg %p55
        $region14: #{generator_forward.1} parent=11 // pred_check_branch
          %444 = sbr.rel (%p442) target = $region16
        $region15: #{generator_forward.1} parent=11 // pred_region
          %446 = vsyncadd [#allocation4], 0
          %s448 = sshll.u32 %s0, 4
          %s449 = int_to_ptr.hbm [resolvable:$true] %s448
          %s450 = sshll.u32 [#allocation3], 4
          %s451 = int_to_ptr.vmem [resolvable:$true] %s450
          %453 = dma.hbm_to_vmem [thread:$0]  %s449, 128, %s451, [#allocation4]
        $region16: #{generator_forward.1} parent=11 // pred_fallthru
          _
        // Predicated region
        $region17: #{generator_forward.1} parent=11 // pred_check
          %p454 = pneg %p76
        $region18: #{generator_forward.1} parent=11 // pred_check_branch
          %456 = sbr.rel (%p454) target = $region20
        $region19: #{generator_forward.1} parent=11 // pred_region
          %458 = vsyncadd [#allocation6], 0
          %s459 = sshll.u32 %s1, 4
          %s460 = int_to_ptr.hbm [resolvable:$true] %s459
          %s461 = sshll.u32 [#allocation5], 4
          %s462 = int_to_ptr.vmem [resolvable:$true] %s461
          %467 = dma.hbm_to_vmem [thread:$0]  %s460, 832, %s462, [#allocation6], 64, 64, 4
        $region20: #{generator_forward.1} parent=11 // pred_fallthru
          _
        // Predicated region
        $region21: #{generator_forward.1} parent=11 // pred_check
          %p468 = pneg %p97
        $region22: #{generator_forward.1} parent=11 // pred_check_branch
          %470 = sbr.rel (%p468) target = $region24
        $region23: #{generator_forward.1} parent=11 // pred_region
          %472 = vsyncadd [#allocation6], 0
          %s474 = sshll.u32 %s2, 4
          %s475 = int_to_ptr.hbm [resolvable:$true] %s474
          %s476 = sshll.u32 [#allocation7], 4
          %s477 = int_to_ptr.vmem [resolvable:$true] %s476
          %479 = dma.hbm_to_vmem [thread:$0]  %s475, 16, %s477, [#allocation6]
        $region24: #{generator_forward.1} parent=11 // pred_fallthru
          _
        // Predicated region
        $region25: #{generator_forward.1} parent=11 // pred_check
          %p480 = pneg %p118
        $region26: #{generator_forward.1} parent=11 // pred_check_branch
          %482 = sbr.rel (%p480) target = $region28
        $region27: #{generator_forward.1} parent=11 // pred_region
          %484 = vsyncadd [#allocation9], 0
          %s485 = sshll.u32 %s3, 4
          %s486 = int_to_ptr.hbm [resolvable:$true] %s485
          %s487 = sshll.u32 [#allocation8], 4
          %s488 = int_to_ptr.vmem [resolvable:$true] %s487
          %493 = dma.hbm_to_vmem [thread:$0]  %s486, 2048, %s488, [#allocation9], 128, 128, 8
        $region28: #{generator_forward.1} parent=11 // pred_fallthru
          _
        // Predicated region
        $region29: #{generator_forward.1} parent=11 // pred_check
          %p494 = pneg %p139
        $region30: #{generator_forward.1} parent=11 // pred_check_branch
          %496 = sbr.rel (%p494) target = $region32
        $region31: #{generator_forward.1} parent=11 // pred_region
          %498 = vsyncadd [#allocation9], 0
          %s500 = sshll.u32 %s4, 4
          %s501 = int_to_ptr.hbm [resolvable:$true] %s500
          %s502 = sshll.u32 [#allocation10], 4
          %s503 = int_to_ptr.vmem [resolvable:$true] %s502
          %505 = dma.hbm_to_vmem [thread:$0]  %s501, 32, %s503, [#allocation9]
        $region32: #{generator_forward.1} parent=11 // pred_fallthru
          _
        // Predicated region
        $region33: #{generator_forward.1} parent=11 // pred_check
          %p506 = pneg %p160
        $region34: #{generator_forward.1} parent=11 // pred_check_branch
          %508 = sbr.rel (%p506) target = $region36
        $region35: #{generator_forward.1} parent=11 // pred_region
          %510 = vsyncadd [#allocation12], 0
          %s512 = sshll.u32 %s5, 4
          %s513 = int_to_ptr.hbm [resolvable:$true] %s512
          %s514 = sshll.u32 [#allocation11], 4
          %s515 = int_to_ptr.vmem [resolvable:$true] %s514
          %517 = dma.hbm_to_vmem [thread:$0]  %s513, 32, %s515, [#allocation12]
        $region36: #{generator_forward.1} parent=11 // pred_fallthru
          _
        // Predicated region
        $region37: #{generator_forward.1} parent=11 // pred_check
          %p518 = pneg %p181
        $region38: #{generator_forward.1} parent=11 // pred_check_branch
          %520 = sbr.rel (%p518) target = $region40
        $region39: #{generator_forward.1} parent=11 // pred_region
          %522 = vsyncadd [#allocation12], 0
          %s524 = sshll.u32 %s6, 4
          %s525 = int_to_ptr.hbm [resolvable:$true] %s524
          %s526 = sshll.u32 [#allocation13], 4
          %s527 = int_to_ptr.vmem [resolvable:$true] %s526
          %529 = dma.hbm_to_vmem [thread:$0]  %s525, 32, %s527, [#allocation12]
        $region40: #{generator_forward.1} parent=11 // pred_fallthru
          _
        // Predicated region
        $region41: #{generator_forward.1} parent=11 // pred_check
          %p530 = pneg %p202
        $region42: #{generator_forward.1} parent=11 // pred_check_branch
          %532 = sbr.rel (%p530) target = $region44
        $region43: #{generator_forward.1} parent=11 // pred_region
          %534 = vsyncadd [#allocation15], 0
          %s535 = sshll.u32 %s7, 4
          %s536 = int_to_ptr.hbm [resolvable:$true] %s535
          %s537 = sshll.u32 [#allocation14], 4
          %s538 = int_to_ptr.vmem [resolvable:$true] %s537
          %543 = dma.hbm_to_vmem [thread:$0]  %s536, 8192, %s538, [#allocation15], 256, 256, 16
        $region44: #{generator_forward.1} parent=11 // pred_fallthru
          _
        // Predicated region
        $region45: #{generator_forward.1} parent=11 // pred_check
          %p544 = pneg %p223
        $region46: #{generator_forward.1} parent=11 // pred_check_branch
          %546 = sbr.rel (%p544) target = $region48
        $region47: #{generator_forward.1} parent=11 // pred_region
          %548 = vsyncadd [#allocation15], 0
          %s550 = sshll.u32 %s8, 4
          %s551 = int_to_ptr.hbm [resolvable:$true] %s550
          %s552 = sshll.u32 [#allocation16], 4
          %s553 = int_to_ptr.vmem [resolvable:$true] %s552
          %555 = dma.hbm_to_vmem [thread:$0]  %s551, 64, %s553, [#allocation15]
        $region48: #{generator_forward.1} parent=11 // pred_fallthru
          _
        // Predicated region
        $region49: #{generator_forward.1} parent=11 // pred_check
          %p556 = pneg %p244
        $region50: #{generator_forward.1} parent=11 // pred_check_branch
          %558 = sbr.rel (%p556) target = $region52
        $region51: #{generator_forward.1} parent=11 // pred_region
          %560 = vsyncadd [#allocation18], 0
          %s562 = sshll.u32 %s9, 4
          %s563 = int_to_ptr.hbm [resolvable:$true] %s562
          %s564 = sshll.u32 [#allocation17], 4
          %s565 = int_to_ptr.vmem [resolvable:$true] %s564
          %567 = dma.hbm_to_vmem [thread:$0]  %s563, 64, %s565, [#allocation18]
        $region52: #{generator_forward.1} parent=11 // pred_fallthru
          _
        // Predicated region
        $region53: #{generator_forward.1} parent=11 // pred_check
          %p568 = pneg %p265
        $region54: #{generator_forward.1} parent=11 // pred_check_branch
          %570 = sbr.rel (%p568) target = $region56
        $region55: #{generator_forward.1} parent=11 // pred_region
          %572 = vsyncadd [#allocation18], 0
          %s574 = sshll.u32 %s10, 4
          %s575 = int_to_ptr.hbm [resolvable:$true] %s574
          %s576 = sshll.u32 [#allocation19], 4
          %s577 = int_to_ptr.vmem [resolvable:$true] %s576
          %579 = dma.hbm_to_vmem [thread:$0]  %s575, 64, %s577, [#allocation18]
        $region56: #{generator_forward.1} parent=11 // pred_fallthru
          _
        // Predicated region
        $region57: #{generator_forward.1} parent=11 // pred_check
          %p580 = pneg %p286
        $region58: #{generator_forward.1} parent=11 // pred_check_branch
          %582 = sbr.rel (%p580) target = $region60
        $region59: #{generator_forward.1} parent=11 // pred_region
          %584 = vsyncadd [#allocation21], 0
          %s585 = sshll.u32 %s11, 4
          %s586 = int_to_ptr.hbm [resolvable:$true] %s585
          %s587 = sshll.u32 [#allocation20], 4
          %s588 = int_to_ptr.vmem [resolvable:$true] %s587
          %593 = dma.hbm_to_vmem [thread:$0]  %s586, 32768, %s588, [#allocation21], 512, 512, 32
        $region60: #{generator_forward.1} parent=11 // pred_fallthru
          _
        // Predicated region
        $region61: #{generator_forward.1} parent=11 // pred_check
          %p594 = pneg %p307
        $region62: #{generator_forward.1} parent=11 // pred_check_branch
          %596 = sbr.rel (%p594) target = $region64
        $region63: #{generator_forward.1} parent=11 // pred_region
          %598 = vsyncadd [#allocation21], 0
          %s600 = sshll.u32 %s12, 4
          %s601 = int_to_ptr.hbm [resolvable:$true] %s600
          %s602 = sshll.u32 [#allocation22], 4
          %s603 = int_to_ptr.vmem [resolvable:$true] %s602
          %605 = dma.hbm_to_vmem [thread:$0]  %s601, 128, %s603, [#allocation21]
        $region64: #{generator_forward.1} parent=11 // pred_fallthru
          _
        // Predicated region
        $region65: #{generator_forward.1} parent=11 // pred_check
          %p606 = pneg %p328
        $region66: #{generator_forward.1} parent=11 // pred_check_branch
          %608 = sbr.rel (%p606) target = $region68
        $region67: #{generator_forward.1} parent=11 // pred_region
          %610 = vsyncadd [#allocation24], 0
          %s612 = sshll.u32 %s13, 4
          %s613 = int_to_ptr.hbm [resolvable:$true] %s612
          %s614 = sshll.u32 [#allocation23], 4
          %s615 = int_to_ptr.vmem [resolvable:$true] %s614
          %617 = dma.hbm_to_vmem [thread:$0]  %s613, 128, %s615, [#allocation24]
        $region68: #{generator_forward.1} parent=11 // pred_fallthru
          _
        // Predicated region
        $region69: #{generator_forward.1} parent=11 // pred_check
          %p618 = pneg %p349
        $region70: #{generator_forward.1} parent=11 // pred_check_branch
          %620 = sbr.rel (%p618) target = $region72
        $region71: #{generator_forward.1} parent=11 // pred_region
          %622 = vsyncadd [#allocation24], 0
          %s624 = sshll.u32 %s14, 4
          %s625 = int_to_ptr.hbm [resolvable:$true] %s624
          %s626 = sshll.u32 [#allocation25], 4
          %s627 = int_to_ptr.vmem [resolvable:$true] %s626
          %629 = dma.hbm_to_vmem [thread:$0]  %s625, 128, %s627, [#allocation24]
        $region72: #{generator_forward.1} parent=11 // pred_fallthru
          _
      $region12: #{generator_forward.1} parent=5 // pred_fallthru
        _
      %p630 = scmp.lt.s32.totalorder %s34, 2
      // Predicated region
      $region73: #{generator_forward.1} parent=5 // pred_check
        %p631 = pneg %p630
      $region74: #{generator_forward.1} parent=5 // pred_check_branch
        %633 = sbr.rel (%p631) target = $region76
      $region75: #{generator_forward.1} parent=5 // pred_region
        // Predicated region
        $region77: #{generator_forward.1} parent=75 // pred_check
          %p634 = pneg %p369
        $region78: #{generator_forward.1} parent=75 // pred_check_branch
          %636 = sbr.rel (%p634) target = $region80
        $region79: #{generator_forward.1} parent=75 // pred_region
          %s637 = sand.u32 %s34, 1
          %s638 = scalar_lea.sflag [#allocation27], %s637
          %s639 = sand.u32 %s359, 1
          %s640 = smul.addr %s639, 3584
          %s641 = scalar_lea.vmem [#allocation26], %s640
          %s642 = smul.u32 7, %s34
          %644 = vsyncadd %s638, 0
          %s645 = smul.addr %s642, 4
          %s646 = scalar_lea.hbm %s15, %s645
          %s647 = sshll.u32 %s646, 4
          %s648 = int_to_ptr.hbm [resolvable:$true] %s647
          %s649 = sshll.u32 %s641, 4
          %s650 = int_to_ptr.vmem [resolvable:$true] %s649
          %655 = dma.hbm_to_vmem [thread:$0]  %s648, 57344, %s650, %s638, 896, 448, 28
        $region80: #{generator_forward.1} parent=75 // pred_fallthru
          _
        // Predicated region
        $region81: #{generator_forward.1} parent=75 // pred_check
          %p656 = pneg %p395
        $region82: #{generator_forward.1} parent=75 // pred_check_branch
          %658 = sbr.rel (%p656) target = $region84
        $region83: #{generator_forward.1} parent=75 // pred_region
          %s659 = sand.u32 %s34, 1
          %s660 = scalar_lea.sflag [#allocation27], %s659
          %s661 = sand.u32 %s385, 1
          %s662 = smul.addr %s661, 7
          %s663 = scalar_lea.vmem [#allocation28], %s662
          %s664 = smul.u32 7, %s34
          %666 = vsyncadd %s660, 0
          %s667 = scalar_lea.hbm %s16, %s664
          %s669 = sshll.u32 %s667, 4
          %s670 = int_to_ptr.hbm [resolvable:$true] %s669
          %s671 = sshll.u32 %s663, 4
          %s672 = int_to_ptr.vmem [resolvable:$true] %s671
          %674 = dma.hbm_to_vmem [thread:$0]  %s670, 112, %s672, %s660
        $region84: #{generator_forward.1} parent=75 // pred_fallthru
          _
      $region76: #{generator_forward.1} parent=5 // pred_fallthru
        _
      %p675 = scmp.le.s32.totalorder 1, %s34
      %p676 = scmp.lt.s32.totalorder %s34, 3
      %p677 = pnand %p675, %p676
      %p678 = pneg %p677
      // Predicated region
      $region85: #{generator_forward.1} parent=5 // pred_check
        _
      $region86: #{generator_forward.1} parent=5 // pred_check_branch
        %680 = sbr.rel (%p677) target = $region88
      $region87: #{generator_forward.1} parent=5 // pred_region
        %s681 = ssub.s32 %s34, 1
        // Predicated region
        $region89: #{generator_forward.1} parent=87 // pred_check
          %p682 = pneg %p55
        $region90: #{generator_forward.1} parent=87 // pred_check_branch
          %684 = sbr.rel (%p682) target = $region92
        $region91: #{generator_forward.1} parent=87 // pred_region
          %686 = dma.done [#allocation4], 128
        $region92: #{generator_forward.1} parent=87 // pred_fallthru
          _
        // Predicated region
        $region93: #{generator_forward.1} parent=87 // pred_check
          %p687 = pneg %p76
        $region94: #{generator_forward.1} parent=87 // pred_check_branch
          %689 = sbr.rel (%p687) target = $region96
        $region95: #{generator_forward.1} parent=87 // pred_region
          %691 = dma.done [#allocation6], 832
        $region96: #{generator_forward.1} parent=87 // pred_fallthru
          _
        // Predicated region
        $region97: #{generator_forward.1} parent=87 // pred_check
          %p692 = pneg %p97
        $region98: #{generator_forward.1} parent=87 // pred_check_branch
          %694 = sbr.rel (%p692) target = $region100
        $region99: #{generator_forward.1} parent=87 // pred_region
          %696 = dma.done [#allocation6], 16
        $region100: #{generator_forward.1} parent=87 // pred_fallthru
          _
        // Predicated region
        $region101: #{generator_forward.1} parent=87 // pred_check
          %p697 = pneg %p118
        $region102: #{generator_forward.1} parent=87 // pred_check_branch
          %699 = sbr.rel (%p697) target = $region104
        $region103: #{generator_forward.1} parent=87 // pred_region
          %701 = dma.done [#allocation9], 2048
        $region104: #{generator_forward.1} parent=87 // pred_fallthru
          _
        // Predicated region
        $region105: #{generator_forward.1} parent=87 // pred_check
          %p702 = pneg %p139
        $region106: #{generator_forward.1} parent=87 // pred_check_branch
          %704 = sbr.rel (%p702) target = $region108
        $region107: #{generator_forward.1} parent=87 // pred_region
          %706 = dma.done [#allocation9], 32
        $region108: #{generator_forward.1} parent=87 // pred_fallthru
          _
        // Predicated region
        $region109: #{generator_forward.1} parent=87 // pred_check
          %p707 = pneg %p160
        $region110: #{generator_forward.1} parent=87 // pred_check_branch
          %709 = sbr.rel (%p707) target = $region112
        $region111: #{generator_forward.1} parent=87 // pred_region
          %711 = dma.done [#allocation12], 32
        $region112: #{generator_forward.1} parent=87 // pred_fallthru
          _
        // Predicated region
        $region113: #{generator_forward.1} parent=87 // pred_check
          %p712 = pneg %p181
        $region114: #{generator_forward.1} parent=87 // pred_check_branch
          %714 = sbr.rel (%p712) target = $region116
        $region115: #{generator_forward.1} parent=87 // pred_region
          %716 = dma.done [#allocation12], 32
        $region116: #{generator_forward.1} parent=87 // pred_fallthru
          _
        // Predicated region
        $region117: #{generator_forward.1} parent=87 // pred_check
          %p717 = pneg %p202
        $region118: #{generator_forward.1} parent=87 // pred_check_branch
          %719 = sbr.rel (%p717) target = $region120
        $region119: #{generator_forward.1} parent=87 // pred_region
          %721 = dma.done [#allocation15], 8192
        $region120: #{generator_forward.1} parent=87 // pred_fallthru
          _
        // Predicated region
        $region121: #{generator_forward.1} parent=87 // pred_check
          %p722 = pneg %p223
        $region122: #{generator_forward.1} parent=87 // pred_check_branch
          %724 = sbr.rel (%p722) target = $region124
        $region123: #{generator_forward.1} parent=87 // pred_region
          %726 = dma.done [#allocation15], 64
        $region124: #{generator_forward.1} parent=87 // pred_fallthru
          _
        // Predicated region
        $region125: #{generator_forward.1} parent=87 // pred_check
          %p727 = pneg %p244
        $region126: #{generator_forward.1} parent=87 // pred_check_branch
          %729 = sbr.rel (%p727) target = $region128
        $region127: #{generator_forward.1} parent=87 // pred_region
          %731 = dma.done [#allocation18], 64
        $region128: #{generator_forward.1} parent=87 // pred_fallthru
          _
        // Predicated region
        $region129: #{generator_forward.1} parent=87 // pred_check
          %p732 = pneg %p265
        $region130: #{generator_forward.1} parent=87 // pred_check_branch
          %734 = sbr.rel (%p732) target = $region132
        $region131: #{generator_forward.1} parent=87 // pred_region
          %736 = dma.done [#allocation18], 64
        $region132: #{generator_forward.1} parent=87 // pred_fallthru
          _
        // Predicated region
        $region133: #{generator_forward.1} parent=87 // pred_check
          %p737 = pneg %p286
        $region134: #{generator_forward.1} parent=87 // pred_check_branch
          %739 = sbr.rel (%p737) target = $region136
        $region135: #{generator_forward.1} parent=87 // pred_region
          %741 = dma.done [#allocation21], 32768
        $region136: #{generator_forward.1} parent=87 // pred_fallthru
          _
        // Predicated region
        $region137: #{generator_forward.1} parent=87 // pred_check
          %p742 = pneg %p307
        $region138: #{generator_forward.1} parent=87 // pred_check_branch
          %744 = sbr.rel (%p742) target = $region140
        $region139: #{generator_forward.1} parent=87 // pred_region
          %746 = dma.done [#allocation21], 128
        $region140: #{generator_forward.1} parent=87 // pred_fallthru
          _
        // Predicated region
        $region141: #{generator_forward.1} parent=87 // pred_check
          %p747 = pneg %p328
        $region142: #{generator_forward.1} parent=87 // pred_check_branch
          %749 = sbr.rel (%p747) target = $region144
        $region143: #{generator_forward.1} parent=87 // pred_region
          %751 = dma.done [#allocation24], 128
        $region144: #{generator_forward.1} parent=87 // pred_fallthru
          _
        // Predicated region
        $region145: #{generator_forward.1} parent=87 // pred_check
          %p752 = pneg %p349
        $region146: #{generator_forward.1} parent=87 // pred_check_branch
          %754 = sbr.rel (%p752) target = $region148
        $region147: #{generator_forward.1} parent=87 // pred_region
          %756 = dma.done [#allocation24], 128
        $region148: #{generator_forward.1} parent=87 // pred_fallthru
          _
        %s757 = sand.u32 %s39, 1
        %s758 = scalar_lea.sflag [#allocation27], %s757
        %s759 = sand.u32 %s362, 1
        %s760 = smul.addr %s759, 3584
        %s761 = scalar_lea.vmem [#allocation26], %s760
        // Predicated region
        $region149: #{generator_forward.1} parent=87 // pred_check
          %p762 = pneg %p375
        $region150: #{generator_forward.1} parent=87 // pred_check_branch
          %764 = sbr.rel (%p762) target = $region152
        $region151: #{generator_forward.1} parent=87 // pred_region
          %766 = dma.done %s758, 57344
        $region152: #{generator_forward.1} parent=87 // pred_fallthru
          _
        %s767 = sand.u32 %s39, 1
        %s768 = scalar_lea.sflag [#allocation27], %s767
        %s769 = sand.u32 %s388, 1
        %s770 = smul.addr %s769, 7
        %s771 = scalar_lea.vmem [#allocation28], %s770
        // Predicated region
        $region153: #{generator_forward.1} parent=87 // pred_check
          %p772 = pneg %p401
        $region154: #{generator_forward.1} parent=87 // pred_check_branch
          %774 = sbr.rel (%p772) target = $region156
        $region155: #{generator_forward.1} parent=87 // pred_region
          %776 = dma.done %s768, 112
        $region156: #{generator_forward.1} parent=87 // pred_fallthru
          _
        %p777 = pneg %p55
        %p778 = pneg %p52
        %p779 = pneg %p76
        %p780 = pneg %p73
        %p781 = pneg %p97
        %p782 = pneg %p94
        %p783 = pneg %p118
        %p784 = pneg %p115
        %p785 = pneg %p139
        %p786 = pneg %p136
        %p787 = pneg %p160
        %p788 = pneg %p157
        %p789 = pneg %p181
        %p790 = pneg %p178
        %p791 = pneg %p202
        %p792 = pneg %p199
        %p793 = pneg %p223
        %p794 = pneg %p220
        %p795 = pneg %p244
        %p796 = pneg %p241
        %p797 = pneg %p265
        %p798 = pneg %p262
        %p799 = pneg %p286
        %p800 = pneg %p283
        %p801 = pneg %p307
        %p802 = pneg %p304
        %p803 = pneg %p328
        %p804 = pneg %p325
        %p805 = pneg %p349
        %p806 = pneg %p346
        %s807 = sand.u32 %s39, 1
        %s808 = scalar_lea.sflag [#allocation27], %s807
        %s809 = sand.u32 %s362, 1
        %s810 = smul.addr %s809, 3584
        %s811 = scalar_lea.vmem [#allocation26], %s810
        %p812 = pneg %p375
        %p813 = pneg %p372
        %s814 = sand.u32 %s39, 1
        %s815 = scalar_lea.sflag [#allocation27], %s814
        %s816 = sand.u32 %s388, 1
        %s817 = smul.addr %s816, 7
        %s818 = scalar_lea.vmem [#allocation28], %s817
        %p819 = pneg %p401
        %p820 = pneg %p398
        %p821 = pneg %p427
        %p822 = pneg %p424
        %s823 = smul.u32 7, %s39
        %p824 = scmp.lt.s32.totalorder %s823, 13
        %s825 = scalar_select %p824, %s823, 13
        %s826 = smul.addr %s825, 8
        %s827 = scalar_lea.vmem %s17, %s826
        %s828 = smul.u32 7, %s39
        %s829 = smul.u32 7, %s39
        %s830 = smul.u32 7, %s39
        %p831 = scmp.lt.s32.totalorder %s830, 13
        %s832 = scalar_select %p831, %s830, 13
        %s833 = smul.addr %s832, 8
        %s834 = scalar_lea.vmem %s17, %s833
        %s835 = smul.u32 7, %s39
        %p837 = scmp.eq.s32.totalorder %s39, 0
        // Predicated region
        $region157: #{generator_forward.1} parent=87 // pred_check
          %p838 = pneg %p837
        $region158: #{generator_forward.1} parent=87 // pred_check_branch
          %840 = sbr.rel (%p838) target = $region160
        $region159: #{generator_forward.1} parent=87 // pred_region
          %v841 = vld [vmem:[#allocation3] sm:$0xff]
          %v842 = vpack.c.bf16 %v841, %v841
          %v843 = vld [vmem:[#allocation5] sm:$0xf]
          %v844 = vld [vmem:[#allocation5 + $0x4] sm:$0xf]
          %v845 = vld [vmem:[#allocation5 + $0x8] sm:$0xf]
          %v846 = vld [vmem:[#allocation5 + $0xc] sm:$0xf]
          %v847 = vld [vmem:[#allocation5 + $0x10] sm:$0xf]
          %v848 = vld [vmem:[#allocation5 + $0x14] sm:$0xf]
          %v849 = vld [vmem:[#allocation5 + $0x18] sm:$0xf]
          %v850 = vld [vmem:[#allocation5 + $0x1c] sm:$0xf]
          %v851 = vld [vmem:[#allocation5 + $0x20] sm:$0xf]
          %v852 = vld [vmem:[#allocation5 + $0x24] sm:$0xf]
          %v853 = vld [vmem:[#allocation5 + $0x28] sm:$0xf]
          %v854 = vld [vmem:[#allocation5 + $0x2c] sm:$0xf]
          %v855 = vld [vmem:[#allocation5 + $0x30] sm:$0x3]
          %v856 = vld [vmem:[#allocation7] sm:$0x1]
          %v858 = vperm.slane %v856, 0
          %v873 = vunpack.c.l.b16 %v843
          %v874 = vunpack.c.l.b16 %v844
          %v875 = vunpack.c.l.b16 %v845
          %v876 = vunpack.c.l.b16 %v846
          %v877 = vunpack.c.l.b16 %v847
          %v878 = vunpack.c.l.b16 %v848
          %v879 = vunpack.c.l.b16 %v849
          %v880 = vunpack.c.l.b16 %v850
          %v881 = vunpack.c.l.b16 %v851
          %v882 = vunpack.c.l.b16 %v852
          %v883 = vunpack.c.l.b16 %v853
          %v884 = vunpack.c.l.b16 %v854
          %v885 = vunpack.c.l.b16 %v855
          %v886 = vpack.c.b16 %v874, %v873
          %v887 = vpack.c.b16 %v876, %v875
          %v888 = vpack.c.b16 %v878, %v877
          %v889 = vpack.c.b16 %v880, %v879
          %v890 = vpack.c.b16 %v882, %v881
          %v891 = vpack.c.b16 %v884, %v883
          %v892 = vpack.c.b16 %v885, %v885
          %vm899 = vcmask 818176
          %v901 = vsel %vm899, %v842, 0
          %vm903 = vcmask 1041408
          %v905 = vsel %vm903, %v892, 0
          %907 = vmatpush.bf16.msra.mxu0 0
          %908 = vmatpush.bf16.msra.mxu0 %v905
          %909 = vmatpush.bf16.msra.mxu0 %v891
          %910 = vmatpush.bf16.msra.mxu0 %v890
          %911 = vmatpush.bf16.msra.mxu0 %v889
          %912 = vmatpush.bf16.msra.mxu0 %v888
          %913 = vmatpush.bf16.msra.mxu0 %v887
          %914 = vmatpush.bf16.msra.mxu0 %v886
          %915 = vmatmul.bf16.gmra.mxu0 %v901
          %v916 = vpop.f32.mrf.mxu0
          %v917 = vadd.f32 %v858, %v916
          %v918 = vpop.f32.mrf.mxu0
          %919 = vdwg.mxu0
          %v920 = vmul.f32 %v917, 0.2
          %v921 = vmax.f32 %v917, %v920
          %v922 = vpack.c.bf16 %v921, %v921
          %v923 = vld [vmem:[#allocation8] sm:$0xff]
          %v924 = vld [vmem:[#allocation8 + $0x8] sm:$0xff]
          %v925 = vld [vmem:[#allocation8 + $0x10] sm:$0xff]
          %v926 = vld [vmem:[#allocation8 + $0x18] sm:$0xff]
          %v927 = vld [vmem:[#allocation8 + $0x20] sm:$0xff]
          %v928 = vld [vmem:[#allocation8 + $0x28] sm:$0xff]
          %v929 = vld [vmem:[#allocation8 + $0x30] sm:$0xff]
          %v930 = vld [vmem:[#allocation8 + $0x38] sm:$0xff]
          %v931 = vld [vmem:[#allocation8 + $0x40] sm:$0xff]
          %v932 = vld [vmem:[#allocation8 + $0x48] sm:$0xff]
          %v933 = vld [vmem:[#allocation8 + $0x50] sm:$0xff]
          %v934 = vld [vmem:[#allocation8 + $0x58] sm:$0xff]
          %v935 = vld [vmem:[#allocation8 + $0x60] sm:$0xff]
          %v936 = vld [vmem:[#allocation8 + $0x68] sm:$0xff]
          %v937 = vld [vmem:[#allocation8 + $0x70] sm:$0xff]
          %v938 = vld [vmem:[#allocation8 + $0x78] sm:$0xff]
          %v939 = vld [vmem:[#allocation10] sm:$0x3]
          %v941 = vperm.slane %v939, 0
          %v942 = vperm.slane %v939, 1
          %v961 = vunpack.c.l.b16 %v923
          %v962 = vunpack.c.h.b16 %v923
          %v963 = vunpack.c.l.b16 %v924
          %v964 = vunpack.c.h.b16 %v924
          %v965 = vunpack.c.l.b16 %v925
          %v966 = vunpack.c.h.b16 %v925
          %v967 = vunpack.c.l.b16 %v926
          %v968 = vunpack.c.h.b16 %v926
          %v969 = vunpack.c.l.b16 %v927
          %v970 = vunpack.c.h.b16 %v927
          %v971 = vunpack.c.l.b16 %v928
          %v972 = vunpack.c.h.b16 %v928
          %v973 = vunpack.c.l.b16 %v929
          %v974 = vunpack.c.h.b16 %v929
          %v975 = vunpack.c.l.b16 %v930
          %v976 = vunpack.c.h.b16 %v930
          %v977 = vunpack.c.l.b16 %v931
          %v978 = vunpack.c.h.b16 %v931
          %v979 = vunpack.c.l.b16 %v932
          %v980 = vunpack.c.h.b16 %v932
          %v981 = vunpack.c.l.b16 %v933
          %v982 = vunpack.c.h.b16 %v933
          %v983 = vunpack.c.l.b16 %v934
          %v984 = vunpack.c.h.b16 %v934
          %v985 = vunpack.c.l.b16 %v935
          %v986 = vunpack.c.h.b16 %v935
          %v987 = vunpack.c.l.b16 %v936
          %v988 = vunpack.c.h.b16 %v936
          %v989 = vunpack.c.l.b16 %v937
          %v990 = vunpack.c.h.b16 %v937
          %v991 = vunpack.c.l.b16 %v938
          %v992 = vunpack.c.h.b16 %v938
          %v993 = vpack.c.b16 %v963, %v961
          %v994 = vpack.c.b16 %v964, %v962
          %v995 = vpack.c.b16 %v967, %v965
          %v996 = vpack.c.b16 %v968, %v966
          %v997 = vpack.c.b16 %v971, %v969
          %v998 = vpack.c.b16 %v972, %v970
          %v999 = vpack.c.b16 %v975, %v973
          %v1000 = vpack.c.b16 %v976, %v974
          %v1001 = vpack.c.b16 %v979, %v977
          %v1002 = vpack.c.b16 %v980, %v978
          %v1003 = vpack.c.b16 %v983, %v981
          %v1004 = vpack.c.b16 %v984, %v982
          %v1005 = vpack.c.b16 %v987, %v985
          %v1006 = vpack.c.b16 %v988, %v986
          %v1007 = vpack.c.b16 %v991, %v989
          %v1008 = vpack.c.b16 %v992, %v990
          %1025 = vmatpush.bf16.msra.mxu0 %v1007
          %1026 = vmatpush.bf16.msra.mxu0 %v1005
          %1027 = vmatpush.bf16.msra.mxu0 %v1003
          %1028 = vmatpush.bf16.msra.mxu0 %v1001
          %1029 = vmatpush.bf16.msra.mxu0 %v999
          %1030 = vmatpush.bf16.msra.mxu0 %v997
          %1031 = vmatpush.bf16.msra.mxu0 %v995
          %1032 = vmatpush.bf16.msra.mxu0 %v993
          %1033 = vmatmul.bf16.gmra.mxu0 %v922
          %v1034 = vpop.f32.mrf.mxu0
          %v1035 = vadd.f32 %v941, %v1034
          %v1036 = vpop.f32.mrf.mxu0
          %1037 = vdwg.mxu0
          %1038 = vmatpush.bf16.msra.mxu0 %v1008
          %1039 = vmatpush.bf16.msra.mxu0 %v1006
          %1040 = vmatpush.bf16.msra.mxu0 %v1004
          %1041 = vmatpush.bf16.msra.mxu0 %v1002
          %1042 = vmatpush.bf16.msra.mxu0 %v1000
          %1043 = vmatpush.bf16.msra.mxu0 %v998
          %1044 = vmatpush.bf16.msra.mxu0 %v996
          %1045 = vmatpush.bf16.msra.mxu0 %v994
          %1046 = vmatmul.bf16.gmra.mxu0 %v922
          %v1047 = vpop.f32.mrf.mxu0
          %v1048 = vadd.f32 %v942, %v1047
          %v1049 = vpop.f32.mrf.mxu0
          %1050 = vdwg.mxu0
          %v1051 = vrot.slane %v1035, 4
          %v1052 = vadd.f32 %v1035, %v1051
          %v1053 = vrot.slane %v1052, 2
          %v1054 = vadd.f32 %v1052, %v1053
          %v1055 = vrot.slane %v1054, 1
          %v1056 = vadd.f32 %v1054, %v1055
          %v1057 = vrot.slane %v1048, 4
          %v1058 = vadd.f32 %v1048, %v1057
          %v1059 = vrot.slane %v1058, 2
          %v1060 = vadd.f32 %v1058, %v1059
          %v1061 = vrot.slane %v1060, 1
          %v1062 = vadd.f32 %v1060, %v1061
          %v1063 = vrcp.pop 8.0
          %v1064 = vmul.f32 8.0, %v1063
          %v1065 = vsub.f32 1.0, %v1064
          %v1066 = vmul.f32 %v1063, %v1065
          %v1067 = vadd.f32 %v1063, %v1066
          %vm1068 = vweird.f32 %v1063
          %v1069 = vsel %vm1068, %v1063, %v1067
          %v1070 = vmul.f32 %v1056, %v1069
          %v1071 = vmul.f32 %v1062, %v1069
          %v1072 = vsub.f32 %v1035, %v1070
          %v1073 = vsub.f32 %v1048, %v1071
          %v1074 = vmul.f32 %v1072, %v1072
          %v1075 = vmul.f32 %v1073, %v1073
          %v1076 = vrot.slane %v1074, 4
          %v1077 = vadd.f32 %v1074, %v1076
          %v1078 = vrot.slane %v1077, 2
          %v1079 = vadd.f32 %v1077, %v1078
          %v1080 = vrot.slane %v1079, 1
          %v1081 = vadd.f32 %v1079, %v1080
          %v1082 = vrot.slane %v1075, 4
          %v1083 = vadd.f32 %v1075, %v1082
          %v1084 = vrot.slane %v1083, 2
          %v1085 = vadd.f32 %v1083, %v1084
          %v1086 = vrot.slane %v1085, 1
          %v1087 = vadd.f32 %v1085, %v1086
          %v1088 = vmul.f32 %v1081, %v1069
          %v1089 = vmul.f32 %v1087, %v1069
          %v1090 = vadd.f32 %v1088, 0.8
          %v1091 = vadd.f32 %v1089, 0.8
          %v1092 = vrsqrt.pop %v1090
          %v1093 = vmul.f32 %v1092, %v1090
          %v1094 = vmul.f32 %v1093, %v1092
          %v1095 = vmul.f32 0.5, %v1094
          %v1096 = vsub.f32 1.5, %v1095
          %v1097 = vmul.f32 %v1092, %v1096
          %vm1098 = vweird.f32 %v1090
          %vm1099 = vweird.f32 %v1092
          %vm1100 = vmor %vm1098, %vm1099
          %v1101 = vsel %vm1100, %v1092, %v1097
          %v1102 = vrsqrt.pop %v1091
          %v1103 = vmul.f32 %v1102, %v1091
          %v1104 = vmul.f32 %v1103, %v1102
          %v1105 = vmul.f32 0.5, %v1104
          %v1106 = vsub.f32 1.5, %v1105
          %v1107 = vmul.f32 %v1102, %v1106
          %vm1108 = vweird.f32 %v1091
          %vm1109 = vweird.f32 %v1102
          %vm1110 = vmor %vm1108, %vm1109
          %v1111 = vsel %vm1110, %v1102, %v1107
          %v1112 = vmul.f32 %v1072, %v1101
          %v1113 = vmul.f32 %v1073, %v1111
          %v1114 = vld [vmem:[#allocation11] sm:$0x3]
          %v1116 = vperm.slane %v1114, 0
          %v1117 = vperm.slane %v1114, 1
          %v1120 = vmul.f32 %v1112, %v1116
          %v1121 = vmul.f32 %v1113, %v1117
          %v1122 = vld [vmem:[#allocation13] sm:$0x3]
          %v1124 = vperm.slane %v1122, 0
          %v1125 = vperm.slane %v1122, 1
          %v1128 = vadd.f32 %v1120, %v1124
          %v1129 = vadd.f32 %v1121, %v1125
          %v1130 = vmul.f32 %v1128, 0.2
          %v1131 = vmul.f32 %v1129, 0.2
          %v1132 = vmax.f32 %v1128, %v1130
          %v1133 = vmax.f32 %v1129, %v1131
          %v1134 = vpack.c.bf16 %v1132, %v1132
          %v1135 = vpack.c.bf16 %v1133, %v1133
          %v1136 = vld [vmem:[#allocation14] sm:$0xff]
          %v1137 = vld [vmem:[#allocation14 + $0x8] sm:$0xff]
          %v1138 = vld [vmem:[#allocation14 + $0x10] sm:$0xff]
          %v1139 = vld [vmem:[#allocation14 + $0x18] sm:$0xff]
          %v1140 = vld [vmem:[#allocation14 + $0x20] sm:$0xff]
          %v1141 = vld [vmem:[#allocation14 + $0x28] sm:$0xff]
          %v1142 = vld [vmem:[#allocation14 + $0x30] sm:$0xff]
          %v1143 = vld [vmem:[#allocation14 + $0x38] sm:$0xff]
          %v1144 = vld [vmem:[#allocation14 + $0x40] sm:$0xff]
          %v1145 = vld [vmem:[#allocation14 + $0x48] sm:$0xff]
          %v1146 = vld [vmem:[#allocation14 + $0x50] sm:$0xff]
          %v1147 = vld [vmem:[#allocation14 + $0x58] sm:$0xff]
          %v1148 = vld [vmem:[#allocation14 + $0x60] sm:$0xff]
          %v1149 = vld [vmem:[#allocation14 + $0x68] sm:$0xff]
          %v1150 = vld [vmem:[#allocation14 + $0x70] sm:$0xff]
          %v1151 = vld [vmem:[#allocation14 + $0x78] sm:$0xff]
          %v1152 = vld [vmem:[#allocation14 + $0x80] sm:$0xff]
          %v1153 = vld [vmem:[#allocation14 + $0x88] sm:$0xff]
          %v1154 = vld [vmem:[#allocation14 + $0x90] sm:$0xff]
          %v1155 = vld [vmem:[#allocation14 + $0x98] sm:$0xff]
          %v1156 = vld [vmem:[#allocation14 + $0xa0] sm:$0xff]
          %v1157 = vld [vmem:[#allocation14 + $0xa8] sm:$0xff]
          %v1158 = vld [vmem:[#allocation14 + $0xb0] sm:$0xff]
          %v1159 = vld [vmem:[#allocation14 + $0xb8] sm:$0xff]
          %v1160 = vld [vmem:[#allocation14 + $0xc0] sm:$0xff]
          %v1161 = vld [vmem:[#allocation14 + $0xc8] sm:$0xff]
          %v1162 = vld [vmem:[#allocation14 + $0xd0] sm:$0xff]
          %v1163 = vld [vmem:[#allocation14 + $0xd8] sm:$0xff]
          %v1164 = vld [vmem:[#allocation14 + $0xe0] sm:$0xff]
          %v1165 = vld [vmem:[#allocation14 + $0xe8] sm:$0xff]
          %v1166 = vld [vmem:[#allocation14 + $0xf0] sm:$0xff]
          %v1167 = vld [vmem:[#allocation14 + $0xf8] sm:$0xff]
          %v1168 = vld [vmem:[#allocation14 + $0x100] sm:$0xff]
          %v1169 = vld [vmem:[#allocation14 + $0x108] sm:$0xff]
          %v1170 = vld [vmem:[#allocation14 + $0x110] sm:$0xff]
          %v1171 = vld [vmem:[#allocation14 + $0x118] sm:$0xff]
          %v1172 = vld [vmem:[#allocation14 + $0x120] sm:$0xff]
          %v1173 = vld [vmem:[#allocation14 + $0x128] sm:$0xff]
          %v1174 = vld [vmem:[#allocation14 + $0x130] sm:$0xff]
          %v1175 = vld [vmem:[#allocation14 + $0x138] sm:$0xff]
          %v1176 = vld [vmem:[#allocation14 + $0x140] sm:$0xff]
          %v1177 = vld [vmem:[#allocation14 + $0x148] sm:$0xff]
          %v1178 = vld [vmem:[#allocation14 + $0x150] sm:$0xff]
          %v1179 = vld [vmem:[#allocation14 + $0x158] sm:$0xff]
          %v1180 = vld [vmem:[#allocation14 + $0x160] sm:$0xff]
          %v1181 = vld [vmem:[#allocation14 + $0x168] sm:$0xff]
          %v1182 = vld [vmem:[#allocation14 + $0x170] sm:$0xff]
          %v1183 = vld [vmem:[#allocation14 + $0x178] sm:$0xff]
          %v1184 = vld [vmem:[#allocation14 + $0x180] sm:$0xff]
          %v1185 = vld [vmem:[#allocation14 + $0x188] sm:$0xff]
          %v1186 = vld [vmem:[#allocation14 + $0x190] sm:$0xff]
          %v1187 = vld [vmem:[#allocation14 + $0x198] sm:$0xff]
          %v1188 = vld [vmem:[#allocation14 + $0x1a0] sm:$0xff]
          %v1189 = vld [vmem:[#allocation14 + $0x1a8] sm:$0xff]
          %v1190 = vld [vmem:[#allocation14 + $0x1b0] sm:$0xff]
          %v1191 = vld [vmem:[#allocation14 + $0x1b8] sm:$0xff]
          %v1192 = vld [vmem:[#allocation14 + $0x1c0] sm:$0xff]
          %v1193 = vld [vmem:[#allocation14 + $0x1c8] sm:$0xff]
          %v1194 = vld [vmem:[#allocation14 + $0x1d0] sm:$0xff]
          %v1195 = vld [vmem:[#allocation14 + $0x1d8] sm:$0xff]
          %v1196 = vld [vmem:[#allocation14 + $0x1e0] sm:$0xff]
          %v1197 = vld [vmem:[#allocation14 + $0x1e8] sm:$0xff]
          %v1198 = vld [vmem:[#allocation14 + $0x1f0] sm:$0xff]
          %v1199 = vld [vmem:[#allocation14 + $0x1f8] sm:$0xff]
          %v1200 = vld [vmem:[#allocation16] sm:$0xf]
          %v1202 = vperm.slane %v1200, 0
          %v1203 = vperm.slane %v1200, 1
          %v1204 = vperm.slane %v1200, 2
          %v1205 = vperm.slane %v1200, 3
          %v1274 = vunpack.c.l.b16 %v1136
          %v1275 = vunpack.c.h.b16 %v1136
          %v1276 = vunpack.c.l.b16 %v1137
          %v1277 = vunpack.c.h.b16 %v1137
          %v1278 = vunpack.c.l.b16 %v1138
          %v1279 = vunpack.c.h.b16 %v1138
          %v1280 = vunpack.c.l.b16 %v1139
          %v1281 = vunpack.c.h.b16 %v1139
          %v1282 = vunpack.c.l.b16 %v1140
          %v1283 = vunpack.c.h.b16 %v1140
          %v1284 = vunpack.c.l.b16 %v1141
          %v1285 = vunpack.c.h.b16 %v1141
          %v1286 = vunpack.c.l.b16 %v1142
          %v1287 = vunpack.c.h.b16 %v1142
          %v1288 = vunpack.c.l.b16 %v1143
          %v1289 = vunpack.c.h.b16 %v1143
          %v1290 = vunpack.c.l.b16 %v1144
          %v1291 = vunpack.c.h.b16 %v1144
          %v1292 = vunpack.c.l.b16 %v1145
          %v1293 = vunpack.c.h.b16 %v1145
          %v1294 = vunpack.c.l.b16 %v1146
          %v1295 = vunpack.c.h.b16 %v1146
          %v1296 = vunpack.c.l.b16 %v1147
          %v1297 = vunpack.c.h.b16 %v1147
          %v1298 = vunpack.c.l.b16 %v1148
          %v1299 = vunpack.c.h.b16 %v1148
          %v1300 = vunpack.c.l.b16 %v1149
          %v1301 = vunpack.c.h.b16 %v1149
          %v1302 = vunpack.c.l.b16 %v1150
          %v1303 = vunpack.c.h.b16 %v1150
          %v1304 = vunpack.c.l.b16 %v1151
          %v1305 = vunpack.c.h.b16 %v1151
          %v1306 = vunpack.c.l.b16 %v1152
          %v1307 = vunpack.c.h.b16 %v1152
          %v1308 = vunpack.c.l.b16 %v1153
          %v1309 = vunpack.c.h.b16 %v1153
          %v1310 = vunpack.c.l.b16 %v1154
          %v1311 = vunpack.c.h.b16 %v1154
          %v1312 = vunpack.c.l.b16 %v1155
          %v1313 = vunpack.c.h.b16 %v1155
          %v1314 = vunpack.c.l.b16 %v1156
          %v1315 = vunpack.c.h.b16 %v1156
          %v1316 = vunpack.c.l.b16 %v1157
          %v1317 = vunpack.c.h.b16 %v1157
          %v1318 = vunpack.c.l.b16 %v1158
          %v1319 = vunpack.c.h.b16 %v1158
          %v1320 = vunpack.c.l.b16 %v1159
          %v1321 = vunpack.c.h.b16 %v1159
          %v1322 = vunpack.c.l.b16 %v1160
          %v1323 = vunpack.c.h.b16 %v1160
          %v1324 = vunpack.c.l.b16 %v1161
          %v1325 = vunpack.c.h.b16 %v1161
          %v1326 = vunpack.c.l.b16 %v1162
          %v1327 = vunpack.c.h.b16 %v1162
          %v1328 = vunpack.c.l.b16 %v1163
          %v1329 = vunpack.c.h.b16 %v1163
          %v1330 = vunpack.c.l.b16 %v1164
          %v1331 = vunpack.c.h.b16 %v1164
          %v1332 = vunpack.c.l.b16 %v1165
          %v1333 = vunpack.c.h.b16 %v1165
          %v1334 = vunpack.c.l.b16 %v1166
          %v1335 = vunpack.c.h.b16 %v1166
          %v1336 = vunpack.c.l.b16 %v1167
          %v1337 = vunpack.c.h.b16 %v1167
          %v1338 = vunpack.c.l.b16 %v1168
          %v1339 = vunpack.c.h.b16 %v1168
          %v1340 = vunpack.c.l.b16 %v1169
          %v1341 = vunpack.c.h.b16 %v1169
          %v1342 = vunpack.c.l.b16 %v1170
          %v1343 = vunpack.c.h.b16 %v1170
          %v1344 = vunpack.c.l.b16 %v1171
          %v1345 = vunpack.c.h.b16 %v1171
          %v1346 = vunpack.c.l.b16 %v1172
          %v1347 = vunpack.c.h.b16 %v1172
          %v1348 = vunpack.c.l.b16 %v1173
          %v1349 = vunpack.c.h.b16 %v1173
          %v1350 = vunpack.c.l.b16 %v1174
          %v1351 = vunpack.c.h.b16 %v1174
          %v1352 = vunpack.c.l.b16 %v1175
          %v1353 = vunpack.c.h.b16 %v1175
          %v1354 = vunpack.c.l.b16 %v1176
          %v1355 = vunpack.c.h.b16 %v1176
          %v1356 = vunpack.c.l.b16 %v1177
          %v1357 = vunpack.c.h.b16 %v1177
          %v1358 = vunpack.c.l.b16 %v1178
          %v1359 = vunpack.c.h.b16 %v1178
          %v1360 = vunpack.c.l.b16 %v1179
          %v1361 = vunpack.c.h.b16 %v1179
          %v1362 = vunpack.c.l.b16 %v1180
          %v1363 = vunpack.c.h.b16 %v1180
          %v1364 = vunpack.c.l.b16 %v1181
          %v1365 = vunpack.c.h.b16 %v1181
          %v1366 = vunpack.c.l.b16 %v1182
          %v1367 = vunpack.c.h.b16 %v1182
          %v1368 = vunpack.c.l.b16 %v1183
          %v1369 = vunpack.c.h.b16 %v1183
          %v1370 = vunpack.c.l.b16 %v1184
          %v1371 = vunpack.c.h.b16 %v1184
          %v1372 = vunpack.c.l.b16 %v1185
          %v1373 = vunpack.c.h.b16 %v1185
          %v1374 = vunpack.c.l.b16 %v1186
          %v1375 = vunpack.c.h.b16 %v1186
          %v1376 = vunpack.c.l.b16 %v1187
          %v1377 = vunpack.c.h.b16 %v1187
          %v1378 = vunpack.c.l.b16 %v1188
          %v1379 = vunpack.c.h.b16 %v1188
          %v1380 = vunpack.c.l.b16 %v1189
          %v1381 = vunpack.c.h.b16 %v1189
          %v1382 = vunpack.c.l.b16 %v1190
          %v1383 = vunpack.c.h.b16 %v1190
          %v1384 = vunpack.c.l.b16 %v1191
          %v1385 = vunpack.c.h.b16 %v1191
          %v1386 = vunpack.c.l.b16 %v1192
          %v1387 = vunpack.c.h.b16 %v1192
          %v1388 = vunpack.c.l.b16 %v1193
          %v1389 = vunpack.c.h.b16 %v1193
          %v1390 = vunpack.c.l.b16 %v1194
          %v1391 = vunpack.c.h.b16 %v1194
          %v1392 = vunpack.c.l.b16 %v1195
          %v1393 = vunpack.c.h.b16 %v1195
          %v1394 = vunpack.c.l.b16 %v1196
          %v1395 = vunpack.c.h.b16 %v1196
          %v1396 = vunpack.c.l.b16 %v1197
          %v1397 = vunpack.c.h.b16 %v1197
          %v1398 = vunpack.c.l.b16 %v1198
          %v1399 = vunpack.c.h.b16 %v1198
          %v1400 = vunpack.c.l.b16 %v1199
          %v1401 = vunpack.c.h.b16 %v1199
          %v1402 = vpack.c.b16 %v1278, %v1274
          %v1403 = vpack.c.b16 %v1279, %v1275
          %v1404 = vpack.c.b16 %v1280, %v1276
          %v1405 = vpack.c.b16 %v1281, %v1277
          %v1406 = vpack.c.b16 %v1286, %v1282
          %v1407 = vpack.c.b16 %v1287, %v1283
          %v1408 = vpack.c.b16 %v1288, %v1284
          %v1409 = vpack.c.b16 %v1289, %v1285
          %v1410 = vpack.c.b16 %v1294, %v1290
          %v1411 = vpack.c.b16 %v1295, %v1291
          %v1412 = vpack.c.b16 %v1296, %v1292
          %v1413 = vpack.c.b16 %v1297, %v1293
          %v1414 = vpack.c.b16 %v1302, %v1298
          %v1415 = vpack.c.b16 %v1303, %v1299
          %v1416 = vpack.c.b16 %v1304, %v1300
          %v1417 = vpack.c.b16 %v1305, %v1301
          %v1418 = vpack.c.b16 %v1310, %v1306
          %v1419 = vpack.c.b16 %v1311, %v1307
          %v1420 = vpack.c.b16 %v1312, %v1308
          %v1421 = vpack.c.b16 %v1313, %v1309
          %v1422 = vpack.c.b16 %v1318, %v1314
          %v1423 = vpack.c.b16 %v1319, %v1315
          %v1424 = vpack.c.b16 %v1320, %v1316
          %v1425 = vpack.c.b16 %v1321, %v1317
          %v1426 = vpack.c.b16 %v1326, %v1322
          %v1427 = vpack.c.b16 %v1327, %v1323
          %v1428 = vpack.c.b16 %v1328, %v1324
          %v1429 = vpack.c.b16 %v1329, %v1325
          %v1430 = vpack.c.b16 %v1334, %v1330
          %v1431 = vpack.c.b16 %v1335, %v1331
          %v1432 = vpack.c.b16 %v1336, %v1332
          %v1433 = vpack.c.b16 %v1337, %v1333
          %v1434 = vpack.c.b16 %v1342, %v1338
          %v1435 = vpack.c.b16 %v1343, %v1339
          %v1436 = vpack.c.b16 %v1344, %v1340
          %v1437 = vpack.c.b16 %v1345, %v1341
          %v1438 = vpack.c.b16 %v1350, %v1346
          %v1439 = vpack.c.b16 %v1351, %v1347
          %v1440 = vpack.c.b16 %v1352, %v1348
          %v1441 = vpack.c.b16 %v1353, %v1349
          %v1442 = vpack.c.b16 %v1358, %v1354
          %v1443 = vpack.c.b16 %v1359, %v1355
          %v1444 = vpack.c.b16 %v1360, %v1356
          %v1445 = vpack.c.b16 %v1361, %v1357
          %v1446 = vpack.c.b16 %v1366, %v1362
          %v1447 = vpack.c.b16 %v1367, %v1363
          %v1448 = vpack.c.b16 %v1368, %v1364
          %v1449 = vpack.c.b16 %v1369, %v1365
          %v1450 = vpack.c.b16 %v1374, %v1370
          %v1451 = vpack.c.b16 %v1375, %v1371
          %v1452 = vpack.c.b16 %v1376, %v1372
          %v1453 = vpack.c.b16 %v1377, %v1373
          %v1454 = vpack.c.b16 %v1382, %v1378
          %v1455 = vpack.c.b16 %v1383, %v1379
          %v1456 = vpack.c.b16 %v1384, %v1380
          %v1457 = vpack.c.b16 %v1385, %v1381
          %v1458 = vpack.c.b16 %v1390, %v1386
          %v1459 = vpack.c.b16 %v1391, %v1387
          %v1460 = vpack.c.b16 %v1392, %v1388
          %v1461 = vpack.c.b16 %v1393, %v1389
          %v1462 = vpack.c.b16 %v1398, %v1394
          %v1463 = vpack.c.b16 %v1399, %v1395
          %v1464 = vpack.c.b16 %v1400, %v1396
          %v1465 = vpack.c.b16 %v1401, %v1397
          %1530 = vmatpush.bf16.msra.mxu0 %v1430
          %1531 = vmatpush.bf16.msra.mxu0 %v1426
          %1532 = vmatpush.bf16.msra.mxu0 %v1422
          %1533 = vmatpush.bf16.msra.mxu0 %v1418
          %1534 = vmatpush.bf16.msra.mxu0 %v1414
          %1535 = vmatpush.bf16.msra.mxu0 %v1410
          %1536 = vmatpush.bf16.msra.mxu0 %v1406
          %1537 = vmatpush.bf16.msra.mxu0 %v1402
          %1538 = vmatmul.bf16.gmra.mxu0 %v1134
          %v1539 = vpop.f32.mrf.mxu0
          %v1540 = vadd.f32 %v1202, %v1539
          %v1541 = vpop.f32.mrf.mxu0
          %1542 = vdwg.mxu0
          %1543 = vmatpush.bf16.msra.mxu0 %v1462
          %1544 = vmatpush.bf16.msra.mxu0 %v1458
          %1545 = vmatpush.bf16.msra.mxu0 %v1454
          %1546 = vmatpush.bf16.msra.mxu0 %v1450
          %1547 = vmatpush.bf16.msra.mxu0 %v1446
          %1548 = vmatpush.bf16.msra.mxu0 %v1442
          %1549 = vmatpush.bf16.msra.mxu0 %v1438
          %1550 = vmatpush.bf16.msra.mxu0 %v1434
          %1551 = vmatmul.bf16.gmra.mxu0 %v1135
          %v1552 = vpop.f32.mrf.mxu0
          %v1553 = vadd.f32 %v1540, %v1552
          %v1554 = vpop.f32.mrf.mxu0
          %1555 = vdwg.mxu0
          %1556 = vmatpush.bf16.msra.mxu0 %v1431
          %1557 = vmatpush.bf16.msra.mxu0 %v1427
          %1558 = vmatpush.bf16.msra.mxu0 %v1423
          %1559 = vmatpush.bf16.msra.mxu0 %v1419
          %1560 = vmatpush.bf16.msra.mxu0 %v1415
          %1561 = vmatpush.bf16.msra.mxu0 %v1411
          %1562 = vmatpush.bf16.msra.mxu0 %v1407
          %1563 = vmatpush.bf16.msra.mxu0 %v1403
          %1564 = vmatmul.bf16.gmra.mxu0 %v1134
          %v1565 = vpop.f32.mrf.mxu0
          %v1566 = vadd.f32 %v1203, %v1565
          %v1567 = vpop.f32.mrf.mxu0
          %1568 = vdwg.mxu0
          %1569 = vmatpush.bf16.msra.mxu0 %v1463
          %1570 = vmatpush.bf16.msra.mxu0 %v1459
          %1571 = vmatpush.bf16.msra.mxu0 %v1455
          %1572 = vmatpush.bf16.msra.mxu0 %v1451
          %1573 = vmatpush.bf16.msra.mxu0 %v1447
          %1574 = vmatpush.bf16.msra.mxu0 %v1443
          %1575 = vmatpush.bf16.msra.mxu0 %v1439
          %1576 = vmatpush.bf16.msra.mxu0 %v1435
          %1577 = vmatmul.bf16.gmra.mxu0 %v1135
          %v1578 = vpop.f32.mrf.mxu0
          %v1579 = vadd.f32 %v1566, %v1578
          %v1580 = vpop.f32.mrf.mxu0
          %1581 = vdwg.mxu0
          %1582 = vmatpush.bf16.msra.mxu0 %v1432
          %1583 = vmatpush.bf16.msra.mxu0 %v1428
          %1584 = vmatpush.bf16.msra.mxu0 %v1424
          %1585 = vmatpush.bf16.msra.mxu0 %v1420
          %1586 = vmatpush.bf16.msra.mxu0 %v1416
          %1587 = vmatpush.bf16.msra.mxu0 %v1412
          %1588 = vmatpush.bf16.msra.mxu0 %v1408
          %1589 = vmatpush.bf16.msra.mxu0 %v1404
          %1590 = vmatmul.bf16.gmra.mxu0 %v1134
          %v1591 = vpop.f32.mrf.mxu0
          %v1592 = vadd.f32 %v1204, %v1591
          %v1593 = vpop.f32.mrf.mxu0
          %1594 = vdwg.mxu0
          %1595 = vmatpush.bf16.msra.mxu0 %v1464
          %1596 = vmatpush.bf16.msra.mxu0 %v1460
          %1597 = vmatpush.bf16.msra.mxu0 %v1456
          %1598 = vmatpush.bf16.msra.mxu0 %v1452
          %1599 = vmatpush.bf16.msra.mxu0 %v1448
          %1600 = vmatpush.bf16.msra.mxu0 %v1444
          %1601 = vmatpush.bf16.msra.mxu0 %v1440
          %1602 = vmatpush.bf16.msra.mxu0 %v1436
          %1603 = vmatmul.bf16.gmra.mxu0 %v1135
          %v1604 = vpop.f32.mrf.mxu0
          %v1605 = vadd.f32 %v1592, %v1604
          %v1606 = vpop.f32.mrf.mxu0
          %1607 = vdwg.mxu0
          %1608 = vmatpush.bf16.msra.mxu0 %v1433
          %1609 = vmatpush.bf16.msra.mxu0 %v1429
          %1610 = vmatpush.bf16.msra.mxu0 %v1425
          %1611 = vmatpush.bf16.msra.mxu0 %v1421
          %1612 = vmatpush.bf16.msra.mxu0 %v1417
          %1613 = vmatpush.bf16.msra.mxu0 %v1413
          %1614 = vmatpush.bf16.msra.mxu0 %v1409
          %1615 = vmatpush.bf16.msra.mxu0 %v1405
          %1616 = vmatmul.bf16.gmra.mxu0 %v1134
          %v1617 = vpop.f32.mrf.mxu0
          %v1618 = vadd.f32 %v1205, %v1617
          %v1619 = vpop.f32.mrf.mxu0
          %1620 = vdwg.mxu0
          %1621 = vmatpush.bf16.msra.mxu0 %v1465
          %1622 = vmatpush.bf16.msra.mxu0 %v1461
          %1623 = vmatpush.bf16.msra.mxu0 %v1457
          %1624 = vmatpush.bf16.msra.mxu0 %v1453
          %1625 = vmatpush.bf16.msra.mxu0 %v1449
          %1626 = vmatpush.bf16.msra.mxu0 %v1445
          %1627 = vmatpush.bf16.msra.mxu0 %v1441
          %1628 = vmatpush.bf16.msra.mxu0 %v1437
          %1629 = vmatmul.bf16.gmra.mxu0 %v1135
          %v1630 = vpop.f32.mrf.mxu0
          %v1631 = vadd.f32 %v1618, %v1630
          %v1632 = vpop.f32.mrf.mxu0
          %1633 = vdwg.mxu0
          %v1634 = vrot.slane %v1553, 4
          %v1635 = vadd.f32 %v1553, %v1634
          %v1636 = vrot.slane %v1635, 2
          %v1637 = vadd.f32 %v1635, %v1636
          %v1638 = vrot.slane %v1637, 1
          %v1639 = vadd.f32 %v1637, %v1638
          %v1640 = vrot.slane %v1579, 4
          %v1641 = vadd.f32 %v1579, %v1640
          %v1642 = vrot.slane %v1641, 2
          %v1643 = vadd.f32 %v1641, %v1642
          %v1644 = vrot.slane %v1643, 1
          %v1645 = vadd.f32 %v1643, %v1644
          %v1646 = vrot.slane %v1605, 4
          %v1647 = vadd.f32 %v1605, %v1646
          %v1648 = vrot.slane %v1647, 2
          %v1649 = vadd.f32 %v1647, %v1648
          %v1650 = vrot.slane %v1649, 1
          %v1651 = vadd.f32 %v1649, %v1650
          %v1652 = vrot.slane %v1631, 4
          %v1653 = vadd.f32 %v1631, %v1652
          %v1654 = vrot.slane %v1653, 2
          %v1655 = vadd.f32 %v1653, %v1654
          %v1656 = vrot.slane %v1655, 1
          %v1657 = vadd.f32 %v1655, %v1656
          %v1658 = vmul.f32 %v1639, %v1069
          %v1659 = vmul.f32 %v1645, %v1069
          %v1660 = vmul.f32 %v1651, %v1069
          %v1661 = vmul.f32 %v1657, %v1069
          %v1662 = vsub.f32 %v1553, %v1658
          %v1663 = vsub.f32 %v1579, %v1659
          %v1664 = vsub.f32 %v1605, %v1660
          %v1665 = vsub.f32 %v1631, %v1661
          %v1666 = vmul.f32 %v1662, %v1662
          %v1667 = vmul.f32 %v1663, %v1663
          %v1668 = vmul.f32 %v1664, %v1664
          %v1669 = vmul.f32 %v1665, %v1665
          %v1670 = vrot.slane %v1666, 4
          %v1671 = vadd.f32 %v1666, %v1670
          %v1672 = vrot.slane %v1671, 2
          %v1673 = vadd.f32 %v1671, %v1672
          %v1674 = vrot.slane %v1673, 1
          %v1675 = vadd.f32 %v1673, %v1674
          %v1676 = vrot.slane %v1667, 4
          %v1677 = vadd.f32 %v1667, %v1676
          %v1678 = vrot.slane %v1677, 2
          %v1679 = vadd.f32 %v1677, %v1678
          %v1680 = vrot.slane %v1679, 1
          %v1681 = vadd.f32 %v1679, %v1680
          %v1682 = vrot.slane %v1668, 4
          %v1683 = vadd.f32 %v1668, %v1682
          %v1684 = vrot.slane %v1683, 2
          %v1685 = vadd.f32 %v1683, %v1684
          %v1686 = vrot.slane %v1685, 1
          %v1687 = vadd.f32 %v1685, %v1686
          %v1688 = vrot.slane %v1669, 4
          %v1689 = vadd.f32 %v1669, %v1688
          %v1690 = vrot.slane %v1689, 2
          %v1691 = vadd.f32 %v1689, %v1690
          %v1692 = vrot.slane %v1691, 1
          %v1693 = vadd.f32 %v1691, %v1692
          %v1694 = vmul.f32 %v1675, %v1069
          %v1695 = vmul.f32 %v1681, %v1069
          %v1696 = vmul.f32 %v1687, %v1069
          %v1697 = vmul.f32 %v1693, %v1069
          %v1698 = vadd.f32 %v1694, 0.8
          %v1699 = vadd.f32 %v1695, 0.8
          %v1700 = vadd.f32 %v1696, 0.8
          %v1701 = vadd.f32 %v1697, 0.8
          %v1702 = vrsqrt.pop %v1698
          %v1703 = vmul.f32 %v1702, %v1698
          %v1704 = vmul.f32 %v1703, %v1702
          %v1705 = vmul.f32 0.5, %v1704
          %v1706 = vsub.f32 1.5, %v1705
          %v1707 = vmul.f32 %v1702, %v1706
          %vm1708 = vweird.f32 %v1698
          %vm1709 = vweird.f32 %v1702
          %vm1710 = vmor %vm1708, %vm1709
          %v1711 = vsel %vm1710, %v1702, %v1707
          %v1712 = vrsqrt.pop %v1699
          %v1713 = vmul.f32 %v1712, %v1699
          %v1714 = vmul.f32 %v1713, %v1712
          %v1715 = vmul.f32 0.5, %v1714
          %v1716 = vsub.f32 1.5, %v1715
          %v1717 = vmul.f32 %v1712, %v1716
          %vm1718 = vweird.f32 %v1699
          %vm1719 = vweird.f32 %v1712
          %vm1720 = vmor %vm1718, %vm1719
          %v1721 = vsel %vm1720, %v1712, %v1717
          %v1722 = vrsqrt.pop %v1700
          %v1723 = vmul.f32 %v1722, %v1700
          %v1724 = vmul.f32 %v1723, %v1722
          %v1725 = vmul.f32 0.5, %v1724
          %v1726 = vsub.f32 1.5, %v1725
          %v1727 = vmul.f32 %v1722, %v1726
          %vm1728 = vweird.f32 %v1700
          %vm1729 = vweird.f32 %v1722
          %vm1730 = vmor %vm1728, %vm1729
          %v1731 = vsel %vm1730, %v1722, %v1727
          %v1732 = vrsqrt.pop %v1701
          %v1733 = vmul.f32 %v1732, %v1701
          %v1734 = vmul.f32 %v1733, %v1732
          %v1735 = vmul.f32 0.5, %v1734
          %v1736 = vsub.f32 1.5, %v1735
          %v1737 = vmul.f32 %v1732, %v1736
          %vm1738 = vweird.f32 %v1701
          %vm1739 = vweird.f32 %v1732
          %vm1740 = vmor %vm1738, %vm1739
          %v1741 = vsel %vm1740, %v1732, %v1737
          %v1742 = vmul.f32 %v1662, %v1711
          %v1743 = vmul.f32 %v1663, %v1721
          %v1744 = vmul.f32 %v1664, %v1731
          %v1745 = vmul.f32 %v1665, %v1741
          %v1746 = vld [vmem:[#allocation17] sm:$0xf]
          %v1748 = vperm.slane %v1746, 0
          %v1749 = vperm.slane %v1746, 1
          %v1750 = vperm.slane %v1746, 2
          %v1751 = vperm.slane %v1746, 3
          %v1756 = vmul.f32 %v1742, %v1748
          %v1757 = vmul.f32 %v1743, %v1749
          %v1758 = vmul.f32 %v1744, %v1750
          %v1759 = vmul.f32 %v1745, %v1751
          %v1760 = vld [vmem:[#allocation19] sm:$0xf]
          %v1762 = vperm.slane %v1760, 0
          %v1763 = vperm.slane %v1760, 1
          %v1764 = vperm.slane %v1760, 2
          %v1765 = vperm.slane %v1760, 3
          %v1770 = vadd.f32 %v1756, %v1762
          %v1771 = vadd.f32 %v1757, %v1763
          %v1772 = vadd.f32 %v1758, %v1764
          %v1773 = vadd.f32 %v1759, %v1765
          %v1774 = vmul.f32 %v1770, 0.2
          %v1775 = vmul.f32 %v1771, 0.2
          %v1776 = vmul.f32 %v1772, 0.2
          %v1777 = vmul.f32 %v1773, 0.2
          %v1778 = vmax.f32 %v1770, %v1774
          %v1779 = vmax.f32 %v1771, %v1775
          %v1780 = vmax.f32 %v1772, %v1776
          %v1781 = vmax.f32 %v1773, %v1777
          %v1782 = vpack.c.bf16 %v1778, %v1778
          %v1783 = vpack.c.bf16 %v1779, %v1779
          %v1784 = vpack.c.bf16 %v1780, %v1780
          %v1785 = vpack.c.bf16 %v1781, %v1781
          %v1786 = vld [vmem:[#allocation20] sm:$0xff]
          %v1787 = vld [vmem:[#allocation20 + $0x8] sm:$0xff]
          %v1788 = vld [vmem:[#allocation20 + $0x10] sm:$0xff]
          %v1789 = vld [vmem:[#allocation20 + $0x18] sm:$0xff]
          %v1790 = vld [vmem:[#allocation20 + $0x20] sm:$0xff]
          %v1791 = vld [vmem:[#allocation20 + $0x28] sm:$0xff]
          %v1792 = vld [vmem:[#allocation20 + $0x30] sm:$0xff]
          %v1793 = vld [vmem:[#allocation20 + $0x38] sm:$0xff]
          %v1794 = vld [vmem:[#allocation20 + $0x40] sm:$0xff]
          %v1795 = vld [vmem:[#allocation20 + $0x48] sm:$0xff]
          %v1796 = vld [vmem:[#allocation20 + $0x50] sm:$0xff]
          %v1797 = vld [vmem:[#allocation20 + $0x58] sm:$0xff]
          %v1798 = vld [vmem:[#allocation20 + $0x60] sm:$0xff]
          %v1799 = vld [vmem:[#allocation20 + $0x68] sm:$0xff]
          %v1800 = vld [vmem:[#allocation20 + $0x70] sm:$0xff]
          %v1801 = vld [vmem:[#allocation20 + $0x78] sm:$0xff]
          %v1802 = vld [vmem:[#allocation20 + $0x80] sm:$0xff]
          %v1803 = vld [vmem:[#allocation20 + $0x88] sm:$0xff]
          %v1804 = vld [vmem:[#allocation20 + $0x90] sm:$0xff]
          %v1805 = vld [vmem:[#allocation20 + $0x98] sm:$0xff]
          %v1806 = vld [vmem:[#allocation20 + $0xa0] sm:$0xff]
          %v1807 = vld [vmem:[#allocation20 + $0xa8] sm:$0xff]
          %v1808 = vld [vmem:[#allocation20 + $0xb0] sm:$0xff]
          %v1809 = vld [vmem:[#allocation20 + $0xb8] sm:$0xff]
          %v1810 = vld [vmem:[#allocation20 + $0xc0] sm:$0xff]
          %v1811 = vld [vmem:[#allocation20 + $0xc8] sm:$0xff]
          %v1812 = vld [vmem:[#allocation20 + $0xd0] sm:$0xff]
          %v1813 = vld [vmem:[#allocation20 + $0xd8] sm:$0xff]
          %v1814 = vld [vmem:[#allocation20 + $0xe0] sm:$0xff]
          %v1815 = vld [vmem:[#allocation20 + $0xe8] sm:$0xff]
          %v1816 = vld [vmem:[#allocation20 + $0xf0] sm:$0xff]
          %v1817 = vld [vmem:[#allocation20 + $0xf8] sm:$0xff]
          %v1818 = vld [vmem:[#allocation20 + $0x100] sm:$0xff]
          %v1819 = vld [vmem:[#allocation20 + $0x108] sm:$0xff]
          %v1820 = vld [vmem:[#allocation20 + $0x110] sm:$0xff]
          %v1821 = vld [vmem:[#allocation20 + $0x118] sm:$0xff]
          %v1822 = vld [vmem:[#allocation20 + $0x120] sm:$0xff]
          %v1823 = vld [vmem:[#allocation20 + $0x128] sm:$0xff]
          %v1824 = vld [vmem:[#allocation20 + $0x130] sm:$0xff]
          %v1825 = vld [vmem:[#allocation20 + $0x138] sm:$0xff]
          %v1826 = vld [vmem:[#allocation20 + $0x140] sm:$0xff]
          %v1827 = vld [vmem:[#allocation20 + $0x148] sm:$0xff]
          %v1828 = vld [vmem:[#allocation20 + $0x150] sm:$0xff]
          %v1829 = vld [vmem:[#allocation20 + $0x158] sm:$0xff]
          %v1830 = vld [vmem:[#allocation20 + $0x160] sm:$0xff]
          %v1831 = vld [vmem:[#allocation20 + $0x168] sm:$0xff]
          %v1832 = vld [vmem:[#allocation20 + $0x170] sm:$0xff]
          %v1833 = vld [vmem:[#allocation20 + $0x178] sm:$0xff]
          %v1834 = vld [vmem:[#allocation20 + $0x180] sm:$0xff]
          %v1835 = vld [vmem:[#allocation20 + $0x188] sm:$0xff]
          %v1836 = vld [vmem:[#allocation20 + $0x190] sm:$0xff]
          %v1837 = vld [vmem:[#allocation20 + $0x198] sm:$0xff]
          %v1838 = vld [vmem:[#allocation20 + $0x1a0] sm:$0xff]
          %v1839 = vld [vmem:[#allocation20 + $0x1a8] sm:$0xff]
          %v1840 = vld [vmem:[#allocation20 + $0x1b0] sm:$0xff]
          %v1841 = vld [vmem:[#allocation20 + $0x1b8] sm:$0xff]
          %v1842 = vld [vmem:[#allocation20 + $0x1c0] sm:$0xff]
          %v1843 = vld [vmem:[#allocation20 + $0x1c8] sm:$0xff]
          %v1844 = vld [vmem:[#allocation20 + $0x1d0] sm:$0xff]
          %v1845 = vld [vmem:[#allocation20 + $0x1d8] sm:$0xff]
          %v1846 = vld [vmem:[#allocation20 + $0x1e0] sm:$0xff]
          %v1847 = vld [vmem:[#allocation20 + $0x1e8] sm:$0xff]
          %v1848 = vld [vmem:[#allocation20 + $0x1f0] sm:$0xff]
          %v1849 = vld [vmem:[#allocation20 + $0x1f8] sm:$0xff]
          %v1850 = vld [vmem:[#allocation20 + $0x200] sm:$0xff]
          %v1851 = vld [vmem:[#allocation20 + $0x208] sm:$0xff]
          %v1852 = vld [vmem:[#allocation20 + $0x210] sm:$0xff]
          %v1853 = vld [vmem:[#allocation20 + $0x218] sm:$0xff]
          %v1854 = vld [vmem:[#allocation20 + $0x220] sm:$0xff]
          %v1855 = vld [vmem:[#allocation20 + $0x228] sm:$0xff]
          %v1856 = vld [vmem:[#allocation20 + $0x230] sm:$0xff]
          %v1857 = vld [vmem:[#allocation20 + $0x238] sm:$0xff]
          %v1858 = vld [vmem:[#allocation20 + $0x240] sm:$0xff]
          %v1859 = vld [vmem:[#allocation20 + $0x248] sm:$0xff]
          %v1860 = vld [vmem:[#allocation20 + $0x250] sm:$0xff]
          %v1861 = vld [vmem:[#allocation20 + $0x258] sm:$0xff]
          %v1862 = vld [vmem:[#allocation20 + $0x260] sm:$0xff]
          %v1863 = vld [vmem:[#allocation20 + $0x268] sm:$0xff]
          %v1864 = vld [vmem:[#allocation20 + $0x270] sm:$0xff]
          %v1865 = vld [vmem:[#allocation20 + $0x278] sm:$0xff]
          %v1866 = vld [vmem:[#allocation20 + $0x280] sm:$0xff]
          %v1867 = vld [vmem:[#allocation20 + $0x288] sm:$0xff]
          %v1868 = vld [vmem:[#allocation20 + $0x290] sm:$0xff]
          %v1869 = vld [vmem:[#allocation20 + $0x298] sm:$0xff]
          %v1870 = vld [vmem:[#allocation20 + $0x2a0] sm:$0xff]
          %v1871 = vld [vmem:[#allocation20 + $0x2a8] sm:$0xff]
          %v1872 = vld [vmem:[#allocation20 + $0x2b0] sm:$0xff]
          %v1873 = vld [vmem:[#allocation20 + $0x2b8] sm:$0xff]
          %v1874 = vld [vmem:[#allocation20 + $0x2c0] sm:$0xff]
          %v1875 = vld [vmem:[#allocation20 + $0x2c8] sm:$0xff]
          %v1876 = vld [vmem:[#allocation20 + $0x2d0] sm:$0xff]
          %v1877 = vld [vmem:[#allocation20 + $0x2d8] sm:$0xff]
          %v1878 = vld [vmem:[#allocation20 + $0x2e0] sm:$0xff]
          %v1879 = vld [vmem:[#allocation20 + $0x2e8] sm:$0xff]
          %v1880 = vld [vmem:[#allocation20 + $0x2f0] sm:$0xff]
          %v1881 = vld [vmem:[#allocation20 + $0x2f8] sm:$0xff]
          %v1882 = vld [vmem:[#allocation20 + $0x300] sm:$0xff]
          %v1883 = vld [vmem:[#allocation20 + $0x308] sm:$0xff]
          %v1884 = vld [vmem:[#allocation20 + $0x310] sm:$0xff]
          %v1885 = vld [vmem:[#allocation20 + $0x318] sm:$0xff]
          %v1886 = vld [vmem:[#allocation20 + $0x320] sm:$0xff]
          %v1887 = vld [vmem:[#allocation20 + $0x328] sm:$0xff]
          %v1888 = vld [vmem:[#allocation20 + $0x330] sm:$0xff]
          %v1889 = vld [vmem:[#allocation20 + $0x338] sm:$0xff]
          %v1890 = vld [vmem:[#allocation20 + $0x340] sm:$0xff]
          %v1891 = vld [vmem:[#allocation20 + $0x348] sm:$0xff]
          %v1892 = vld [vmem:[#allocation20 + $0x350] sm:$0xff]
          %v1893 = vld [vmem:[#allocation20 + $0x358] sm:$0xff]
          %v1894 = vld [vmem:[#allocation20 + $0x360] sm:$0xff]
          %v1895 = vld [vmem:[#allocation20 + $0x368] sm:$0xff]
          %v1896 = vld [vmem:[#allocation20 + $0x370] sm:$0xff]
          %v1897 = vld [vmem:[#allocation20 + $0x378] sm:$0xff]
          %v1898 = vld [vmem:[#allocation20 + $0x380] sm:$0xff]
          %v1899 = vld [vmem:[#allocation20 + $0x388] sm:$0xff]
          %v1900 = vld [vmem:[#allocation20 + $0x390] sm:$0xff]
          %v1901 = vld [vmem:[#allocation20 + $0x398] sm:$0xff]
          %v1902 = vld [vmem:[#allocation20 + $0x3a0] sm:$0xff]
          %v1903 = vld [vmem:[#allocation20 + $0x3a8] sm:$0xff]
          %v1904 = vld [vmem:[#allocation20 + $0x3b0] sm:$0xff]
          %v1905 = vld [vmem:[#allocation20 + $0x3b8] sm:$0xff]
          %v1906 = vld [vmem:[#allocation20 + $0x3c0] sm:$0xff]
          %v1907 = vld [vmem:[#allocation20 + $0x3c8] sm:$0xff]
          %v1908 = vld [vmem:[#allocation20 + $0x3d0] sm:$0xff]
          %v1909 = vld [vmem:[#allocation20 + $0x3d8] sm:$0xff]
          %v1910 = vld [vmem:[#allocation20 + $0x3e0] sm:$0xff]
          %v1911 = vld [vmem:[#allocation20 + $0x3e8] sm:$0xff]
          %v1912 = vld [vmem:[#allocation20 + $0x3f0] sm:$0xff]
          %v1913 = vld [vmem:[#allocation20 + $0x3f8] sm:$0xff]
          %v1914 = vld [vmem:[#allocation20 + $0x400] sm:$0xff]
          %v1915 = vld [vmem:[#allocation20 + $0x408] sm:$0xff]
          %v1916 = vld [vmem:[#allocation20 + $0x410] sm:$0xff]
          %v1917 = vld [vmem:[#allocation20 + $0x418] sm:$0xff]
          %v1918 = vld [vmem:[#allocation20 + $0x420] sm:$0xff]
          %v1919 = vld [vmem:[#allocation20 + $0x428] sm:$0xff]
          %v1920 = vld [vmem:[#allocation20 + $0x430] sm:$0xff]
          %v1921 = vld [vmem:[#allocation20 + $0x438] sm:$0xff]
          %v1922 = vld [vmem:[#allocation20 + $0x440] sm:$0xff]
          %v1923 = vld [vmem:[#allocation20 + $0x448] sm:$0xff]
          %v1924 = vld [vmem:[#allocation20 + $0x450] sm:$0xff]
          %v1925 = vld [vmem:[#allocation20 + $0x458] sm:$0xff]
          %v1926 = vld [vmem:[#allocation20 + $0x460] sm:$0xff]
          %v1927 = vld [vmem:[#allocation20 + $0x468] sm:$0xff]
          %v1928 = vld [vmem:[#allocation20 + $0x470] sm:$0xff]
          %v1929 = vld [vmem:[#allocation20 + $0x478] sm:$0xff]
          %v1930 = vld [vmem:[#allocation20 + $0x480] sm:$0xff]
          %v1931 = vld [vmem:[#allocation20 + $0x488] sm:$0xff]
          %v1932 = vld [vmem:[#allocation20 + $0x490] sm:$0xff]
          %v1933 = vld [vmem:[#allocation20 + $0x498] sm:$0xff]
          %v1934 = vld [vmem:[#allocation20 + $0x4a0] sm:$0xff]
          %v1935 = vld [vmem:[#allocation20 + $0x4a8] sm:$0xff]
          %v1936 = vld [vmem:[#allocation20 + $0x4b0] sm:$0xff]
          %v1937 = vld [vmem:[#allocation20 + $0x4b8] sm:$0xff]
          %v1938 = vld [vmem:[#allocation20 + $0x4c0] sm:$0xff]
          %v1939 = vld [vmem:[#allocation20 + $0x4c8] sm:$0xff]
          %v1940 = vld [vmem:[#allocation20 + $0x4d0] sm:$0xff]
          %v1941 = vld [vmem:[#allocation20 + $0x4d8] sm:$0xff]
          %v1942 = vld [vmem:[#allocation20 + $0x4e0] sm:$0xff]
          %v1943 = vld [vmem:[#allocation20 + $0x4e8] sm:$0xff]
          %v1944 = vld [vmem:[#allocation20 + $0x4f0] sm:$0xff]
          %v1945 = vld [vmem:[#allocation20 + $0x4f8] sm:$0xff]
          %v1946 = vld [vmem:[#allocation20 + $0x500] sm:$0xff]
          %v1947 = vld [vmem:[#allocation20 + $0x508] sm:$0xff]
          %v1948 = vld [vmem:[#allocation20 + $0x510] sm:$0xff]
          %v1949 = vld [vmem:[#allocation20 + $0x518] sm:$0xff]
          %v1950 = vld [vmem:[#allocation20 + $0x520] sm:$0xff]
          %v1951 = vld [vmem:[#allocation20 + $0x528] sm:$0xff]
          %v1952 = vld [vmem:[#allocation20 + $0x530] sm:$0xff]
          %v1953 = vld [vmem:[#allocation20 + $0x538] sm:$0xff]
          %v1954 = vld [vmem:[#allocation20 + $0x540] sm:$0xff]
          %v1955 = vld [vmem:[#allocation20 + $0x548] sm:$0xff]
          %v1956 = vld [vmem:[#allocation20 + $0x550] sm:$0xff]
          %v1957 = vld [vmem:[#allocation20 + $0x558] sm:$0xff]
          %v1958 = vld [vmem:[#allocation20 + $0x560] sm:$0xff]
          %v1959 = vld [vmem:[#allocation20 + $0x568] sm:$0xff]
          %v1960 = vld [vmem:[#allocation20 + $0x570] sm:$0xff]
          %v1961 = vld [vmem:[#allocation20 + $0x578] sm:$0xff]
          %v1962 = vld [vmem:[#allocation20 + $0x580] sm:$0xff]
          %v1963 = vld [vmem:[#allocation20 + $0x588] sm:$0xff]
          %v1964 = vld [vmem:[#allocation20 + $0x590] sm:$0xff]
          %v1965 = vld [vmem:[#allocation20 + $0x598] sm:$0xff]
          %v1966 = vld [vmem:[#allocation20 + $0x5a0] sm:$0xff]
          %v1967 = vld [vmem:[#allocation20 + $0x5a8] sm:$0xff]
          %v1968 = vld [vmem:[#allocation20 + $0x5b0] sm:$0xff]
          %v1969 = vld [vmem:[#allocation20 + $0x5b8] sm:$0xff]
          %v1970 = vld [vmem:[#allocation20 + $0x5c0] sm:$0xff]
          %v1971 = vld [vmem:[#allocation20 + $0x5c8] sm:$0xff]
          %v1972 = vld [vmem:[#allocation20 + $0x5d0] sm:$0xff]
          %v1973 = vld [vmem:[#allocation20 + $0x5d8] sm:$0xff]
          %v1974 = vld [vmem:[#allocation20 + $0x5e0] sm:$0xff]
          %v1975 = vld [vmem:[#allocation20 + $0x5e8] sm:$0xff]
          %v1976 = vld [vmem:[#allocation20 + $0x5f0] sm:$0xff]
          %v1977 = vld [vmem:[#allocation20 + $0x5f8] sm:$0xff]
          %v1978 = vld [vmem:[#allocation20 + $0x600] sm:$0xff]
          %v1979 = vld [vmem:[#allocation20 + $0x608] sm:$0xff]
          %v1980 = vld [vmem:[#allocation20 + $0x610] sm:$0xff]
          %v1981 = vld [vmem:[#allocation20 + $0x618] sm:$0xff]
          %v1982 = vld [vmem:[#allocation20 + $0x620] sm:$0xff]
          %v1983 = vld [vmem:[#allocation20 + $0x628] sm:$0xff]
          %v1984 = vld [vmem:[#allocation20 + $0x630] sm:$0xff]
          %v1985 = vld [vmem:[#allocation20 + $0x638] sm:$0xff]
          %v1986 = vld [vmem:[#allocation20 + $0x640] sm:$0xff]
          %v1987 = vld [vmem:[#allocation20 + $0x648] sm:$0xff]
          %v1988 = vld [vmem:[#allocation20 + $0x650] sm:$0xff]
          %v1989 = vld [vmem:[#allocation20 + $0x658] sm:$0xff]
          %v1990 = vld [vmem:[#allocation20 + $0x660] sm:$0xff]
          %v1991 = vld [vmem:[#allocation20 + $0x668] sm:$0xff]
          %v1992 = vld [vmem:[#allocation20 + $0x670] sm:$0xff]
          %v1993 = vld [vmem:[#allocation20 + $0x678] sm:$0xff]
          %v1994 = vld [vmem:[#allocation20 + $0x680] sm:$0xff]
          %v1995 = vld [vmem:[#allocation20 + $0x688] sm:$0xff]
          %v1996 = vld [vmem:[#allocation20 + $0x690] sm:$0xff]
          %v1997 = vld [vmem:[#allocation20 + $0x698] sm:$0xff]
          %v1998 = vld [vmem:[#allocation20 + $0x6a0] sm:$0xff]
          %v1999 = vld [vmem:[#allocation20 + $0x6a8] sm:$0xff]
          %v2000 = vld [vmem:[#allocation20 + $0x6b0] sm:$0xff]
          %v2001 = vld [vmem:[#allocation20 + $0x6b8] sm:$0xff]
          %v2002 = vld [vmem:[#allocation20 + $0x6c0] sm:$0xff]
          %v2003 = vld [vmem:[#allocation20 + $0x6c8] sm:$0xff]
          %v2004 = vld [vmem:[#allocation20 + $0x6d0] sm:$0xff]
          %v2005 = vld [vmem:[#allocation20 + $0x6d8] sm:$0xff]
          %v2006 = vld [vmem:[#allocation20 + $0x6e0] sm:$0xff]
          %v2007 = vld [vmem:[#allocation20 + $0x6e8] sm:$0xff]
          %v2008 = vld [vmem:[#allocation20 + $0x6f0] sm:$0xff]
          %v2009 = vld [vmem:[#allocation20 + $0x6f8] sm:$0xff]
          %v2010 = vld [vmem:[#allocation20 + $0x700] sm:$0xff]
          %v2011 = vld [vmem:[#allocation20 + $0x708] sm:$0xff]
          %v2012 = vld [vmem:[#allocation20 + $0x710] sm:$0xff]
          %v2013 = vld [vmem:[#allocation20 + $0x718] sm:$0xff]
          %v2014 = vld [vmem:[#allocation20 + $0x720] sm:$0xff]
          %v2015 = vld [vmem:[#allocation20 + $0x728] sm:$0xff]
          %v2016 = vld [vmem:[#allocation20 + $0x730] sm:$0xff]
          %v2017 = vld [vmem:[#allocation20 + $0x738] sm:$0xff]
          %v2018 = vld [vmem:[#allocation20 + $0x740] sm:$0xff]
          %v2019 = vld [vmem:[#allocation20 + $0x748] sm:$0xff]
          %v2020 = vld [vmem:[#allocation20 + $0x750] sm:$0xff]
          %v2021 = vld [vmem:[#allocation20 + $0x758] sm:$0xff]
          %v2022 = vld [vmem:[#allocation20 + $0x760] sm:$0xff]
          %v2023 = vld [vmem:[#allocation20 + $0x768] sm:$0xff]
          %v2024 = vld [vmem:[#allocation20 + $0x770] sm:$0xff]
          %v2025 = vld [vmem:[#allocation20 + $0x778] sm:$0xff]
          %v2026 = vld [vmem:[#allocation20 + $0x780] sm:$0xff]
          %v2027 = vld [vmem:[#allocation20 + $0x788] sm:$0xff]
          %v2028 = vld [vmem:[#allocation20 + $0x790] sm:$0xff]
          %v2029 = vld [vmem:[#allocation20 + $0x798] sm:$0xff]
          %v2030 = vld [vmem:[#allocation20 + $0x7a0] sm:$0xff]
          %v2031 = vld [vmem:[#allocation20 + $0x7a8] sm:$0xff]
          %v2032 = vld [vmem:[#allocation20 + $0x7b0] sm:$0xff]
          %v2033 = vld [vmem:[#allocation20 + $0x7b8] sm:$0xff]
          %v2034 = vld [vmem:[#allocation20 + $0x7c0] sm:$0xff]
          %v2035 = vld [vmem:[#allocation20 + $0x7c8] sm:$0xff]
          %v2036 = vld [vmem:[#allocation20 + $0x7d0] sm:$0xff]
          %v2037 = vld [vmem:[#allocation20 + $0x7d8] sm:$0xff]
          %v2038 = vld [vmem:[#allocation20 + $0x7e0] sm:$0xff]
          %v2039 = vld [vmem:[#allocation20 + $0x7e8] sm:$0xff]
          %v2040 = vld [vmem:[#allocation20 + $0x7f0] sm:$0xff]
          %v2041 = vld [vmem:[#allocation20 + $0x7f8] sm:$0xff]
          %v2042 = vld [vmem:[#allocation22] sm:$0xff]
          %v2044 = vperm.slane %v2042, 0
          %v2045 = vperm.slane %v2042, 1
          %v2046 = vperm.slane %v2042, 2
          %v2047 = vperm.slane %v2042, 3
          %v2048 = vperm.slane %v2042, 4
          %v2049 = vperm.slane %v2042, 5
          %v2050 = vperm.slane %v2042, 6
          %v2051 = vperm.slane %v2042, 7
          %v2316 = vunpack.c.l.b16 %v1786
          %v2317 = vunpack.c.h.b16 %v1786
          %v2318 = vunpack.c.l.b16 %v1787
          %v2319 = vunpack.c.h.b16 %v1787
          %v2320 = vunpack.c.l.b16 %v1788
          %v2321 = vunpack.c.h.b16 %v1788
          %v2322 = vunpack.c.l.b16 %v1789
          %v2323 = vunpack.c.h.b16 %v1789
          %v2324 = vunpack.c.l.b16 %v1790
          %v2325 = vunpack.c.h.b16 %v1790
          %v2326 = vunpack.c.l.b16 %v1791
          %v2327 = vunpack.c.h.b16 %v1791
          %v2328 = vunpack.c.l.b16 %v1792
          %v2329 = vunpack.c.h.b16 %v1792
          %v2330 = vunpack.c.l.b16 %v1793
          %v2331 = vunpack.c.h.b16 %v1793
          %v2332 = vunpack.c.l.b16 %v1794
          %v2333 = vunpack.c.h.b16 %v1794
          %v2334 = vunpack.c.l.b16 %v1795
          %v2335 = vunpack.c.h.b16 %v1795
          %v2336 = vunpack.c.l.b16 %v1796
          %v2337 = vunpack.c.h.b16 %v1796
          %v2338 = vunpack.c.l.b16 %v1797
          %v2339 = vunpack.c.h.b16 %v1797
          %v2340 = vunpack.c.l.b16 %v1798
          %v2341 = vunpack.c.h.b16 %v1798
          %v2342 = vunpack.c.l.b16 %v1799
          %v2343 = vunpack.c.h.b16 %v1799
          %v2344 = vunpack.c.l.b16 %v1800
          %v2345 = vunpack.c.h.b16 %v1800
          %v2346 = vunpack.c.l.b16 %v1801
          %v2347 = vunpack.c.h.b16 %v1801
          %v2348 = vunpack.c.l.b16 %v1802
          %v2349 = vunpack.c.h.b16 %v1802
          %v2350 = vunpack.c.l.b16 %v1803
          %v2351 = vunpack.c.h.b16 %v1803
          %v2352 = vunpack.c.l.b16 %v1804
          %v2353 = vunpack.c.h.b16 %v1804
          %v2354 = vunpack.c.l.b16 %v1805
          %v2355 = vunpack.c.h.b16 %v1805
          %v2356 = vunpack.c.l.b16 %v1806
          %v2357 = vunpack.c.h.b16 %v1806
          %v2358 = vunpack.c.l.b16 %v1807
          %v2359 = vunpack.c.h.b16 %v1807
          %v2360 = vunpack.c.l.b16 %v1808
          %v2361 = vunpack.c.h.b16 %v1808
          %v2362 = vunpack.c.l.b16 %v1809
          %v2363 = vunpack.c.h.b16 %v1809
          %v2364 = vunpack.c.l.b16 %v1810
          %v2365 = vunpack.c.h.b16 %v1810
          %v2366 = vunpack.c.l.b16 %v1811
          %v2367 = vunpack.c.h.b16 %v1811
          %v2368 = vunpack.c.l.b16 %v1812
          %v2369 = vunpack.c.h.b16 %v1812
          %v2370 = vunpack.c.l.b16 %v1813
          %v2371 = vunpack.c.h.b16 %v1813
          %v2372 = vunpack.c.l.b16 %v1814
          %v2373 = vunpack.c.h.b16 %v1814
          %v2374 = vunpack.c.l.b16 %v1815
          %v2375 = vunpack.c.h.b16 %v1815
          %v2376 = vunpack.c.l.b16 %v1816
          %v2377 = vunpack.c.h.b16 %v1816
          %v2378 = vunpack.c.l.b16 %v1817
          %v2379 = vunpack.c.h.b16 %v1817
          %v2380 = vunpack.c.l.b16 %v1818
          %v2381 = vunpack.c.h.b16 %v1818
          %v2382 = vunpack.c.l.b16 %v1819
          %v2383 = vunpack.c.h.b16 %v1819
          %v2384 = vunpack.c.l.b16 %v1820
          %v2385 = vunpack.c.h.b16 %v1820
          %v2386 = vunpack.c.l.b16 %v1821
          %v2387 = vunpack.c.h.b16 %v1821
          %v2388 = vunpack.c.l.b16 %v1822
          %v2389 = vunpack.c.h.b16 %v1822
          %v2390 = vunpack.c.l.b16 %v1823
          %v2391 = vunpack.c.h.b16 %v1823
          %v2392 = vunpack.c.l.b16 %v1824
          %v2393 = vunpack.c.h.b16 %v1824
          %v2394 = vunpack.c.l.b16 %v1825
          %v2395 = vunpack.c.h.b16 %v1825
          %v2396 = vunpack.c.l.b16 %v1826
          %v2397 = vunpack.c.h.b16 %v1826
          %v2398 = vunpack.c.l.b16 %v1827
          %v2399 = vunpack.c.h.b16 %v1827
          %v2400 = vunpack.c.l.b16 %v1828
          %v2401 = vunpack.c.h.b16 %v1828
          %v2402 = vunpack.c.l.b16 %v1829
          %v2403 = vunpack.c.h.b16 %v1829
          %v2404 = vunpack.c.l.b16 %v1830
          %v2405 = vunpack.c.h.b16 %v1830
          %v2406 = vunpack.c.l.b16 %v1831
          %v2407 = vunpack.c.h.b16 %v1831
          %v2408 = vunpack.c.l.b16 %v1832
          %v2409 = vunpack.c.h.b16 %v1832
          %v2410 = vunpack.c.l.b16 %v1833
          %v2411 = vunpack.c.h.b16 %v1833
          %v2412 = vunpack.c.l.b16 %v1834
          %v2413 = vunpack.c.h.b16 %v1834
          %v2414 = vunpack.c.l.b16 %v1835
          %v2415 = vunpack.c.h.b16 %v1835
          %v2416 = vunpack.c.l.b16 %v1836
          %v2417 = vunpack.c.h.b16 %v1836
          %v2418 = vunpack.c.l.b16 %v1837
          %v2419 = vunpack.c.h.b16 %v1837
          %v2420 = vunpack.c.l.b16 %v1838
          %v2421 = vunpack.c.h.b16 %v1838
          %v2422 = vunpack.c.l.b16 %v1839
          %v2423 = vunpack.c.h.b16 %v1839
          %v2424 = vunpack.c.l.b16 %v1840
          %v2425 = vunpack.c.h.b16 %v1840
          %v2426 = vunpack.c.l.b16 %v1841
          %v2427 = vunpack.c.h.b16 %v1841
          %v2428 = vunpack.c.l.b16 %v1842
          %v2429 = vunpack.c.h.b16 %v1842
          %v2430 = vunpack.c.l.b16 %v1843
          %v2431 = vunpack.c.h.b16 %v1843
          %v2432 = vunpack.c.l.b16 %v1844
          %v2433 = vunpack.c.h.b16 %v1844
          %v2434 = vunpack.c.l.b16 %v1845
          %v2435 = vunpack.c.h.b16 %v1845
          %v2436 = vunpack.c.l.b16 %v1846
          %v2437 = vunpack.c.h.b16 %v1846
          %v2438 = vunpack.c.l.b16 %v1847
          %v2439 = vunpack.c.h.b16 %v1847
          %v2440 = vunpack.c.l.b16 %v1848
          %v2441 = vunpack.c.h.b16 %v1848
          %v2442 = vunpack.c.l.b16 %v1849
          %v2443 = vunpack.c.h.b16 %v1849
          %v2444 = vunpack.c.l.b16 %v1850
          %v2445 = vunpack.c.h.b16 %v1850
          %v2446 = vunpack.c.l.b16 %v1851
          %v2447 = vunpack.c.h.b16 %v1851
          %v2448 = vunpack.c.l.b16 %v1852
          %v2449 = vunpack.c.h.b16 %v1852
          %v2450 = vunpack.c.l.b16 %v1853
          %v2451 = vunpack.c.h.b16 %v1853
          %v2452 = vunpack.c.l.b16 %v1854
          %v2453 = vunpack.c.h.b16 %v1854
          %v2454 = vunpack.c.l.b16 %v1855
          %v2455 = vunpack.c.h.b16 %v1855
          %v2456 = vunpack.c.l.b16 %v1856
          %v2457 = vunpack.c.h.b16 %v1856
          %v2458 = vunpack.c.l.b16 %v1857
          %v2459 = vunpack.c.h.b16 %v1857
          %v2460 = vunpack.c.l.b16 %v1858
          %v2461 = vunpack.c.h.b16 %v1858
          %v2462 = vunpack.c.l.b16 %v1859
          %v2463 = vunpack.c.h.b16 %v1859
          %v2464 = vunpack.c.l.b16 %v1860
          %v2465 = vunpack.c.h.b16 %v1860
          %v2466 = vunpack.c.l.b16 %v1861
          %v2467 = vunpack.c.h.b16 %v1861
          %v2468 = vunpack.c.l.b16 %v1862
          %v2469 = vunpack.c.h.b16 %v1862
          %v2470 = vunpack.c.l.b16 %v1863
          %v2471 = vunpack.c.h.b16 %v1863
          %v2472 = vunpack.c.l.b16 %v1864
          %v2473 = vunpack.c.h.b16 %v1864
          %v2474 = vunpack.c.l.b16 %v1865
          %v2475 = vunpack.c.h.b16 %v1865
          %v2476 = vunpack.c.l.b16 %v1866
          %v2477 = vunpack.c.h.b16 %v1866
          %v2478 = vunpack.c.l.b16 %v1867
          %v2479 = vunpack.c.h.b16 %v1867
          %v2480 = vunpack.c.l.b16 %v1868
          %v2481 = vunpack.c.h.b16 %v1868
          %v2482 = vunpack.c.l.b16 %v1869
          %v2483 = vunpack.c.h.b16 %v1869
          %v2484 = vunpack.c.l.b16 %v1870
          %v2485 = vunpack.c.h.b16 %v1870
          %v2486 = vunpack.c.l.b16 %v1871
          %v2487 = vunpack.c.h.b16 %v1871
          %v2488 = vunpack.c.l.b16 %v1872
          %v2489 = vunpack.c.h.b16 %v1872
          %v2490 = vunpack.c.l.b16 %v1873
          %v2491 = vunpack.c.h.b16 %v1873
          %v2492 = vunpack.c.l.b16 %v1874
          %v2493 = vunpack.c.h.b16 %v1874
          %v2494 = vunpack.c.l.b16 %v1875
          %v2495 = vunpack.c.h.b16 %v1875
          %v2496 = vunpack.c.l.b16 %v1876
          %v2497 = vunpack.c.h.b16 %v1876
          %v2498 = vunpack.c.l.b16 %v1877
          %v2499 = vunpack.c.h.b16 %v1877
          %v2500 = vunpack.c.l.b16 %v1878
          %v2501 = vunpack.c.h.b16 %v1878
          %v2502 = vunpack.c.l.b16 %v1879
          %v2503 = vunpack.c.h.b16 %v1879
          %v2504 = vunpack.c.l.b16 %v1880
          %v2505 = vunpack.c.h.b16 %v1880
          %v2506 = vunpack.c.l.b16 %v1881
          %v2507 = vunpack.c.h.b16 %v1881
          %v2508 = vunpack.c.l.b16 %v1882
          %v2509 = vunpack.c.h.b16 %v1882
          %v2510 = vunpack.c.l.b16 %v1883
          %v2511 = vunpack.c.h.b16 %v1883
          %v2512 = vunpack.c.l.b16 %v1884
          %v2513 = vunpack.c.h.b16 %v1884
          %v2514 = vunpack.c.l.b16 %v1885
          %v2515 = vunpack.c.h.b16 %v1885
          %v2516 = vunpack.c.l.b16 %v1886
          %v2517 = vunpack.c.h.b16 %v1886
          %v2518 = vunpack.c.l.b16 %v1887
          %v2519 = vunpack.c.h.b16 %v1887
          %v2520 = vunpack.c.l.b16 %v1888
          %v2521 = vunpack.c.h.b16 %v1888
          %v2522 = vunpack.c.l.b16 %v1889
          %v2523 = vunpack.c.h.b16 %v1889
          %v2524 = vunpack.c.l.b16 %v1890
          %v2525 = vunpack.c.h.b16 %v1890
          %v2526 = vunpack.c.l.b16 %v1891
          %v2527 = vunpack.c.h.b16 %v1891
          %v2528 = vunpack.c.l.b16 %v1892
          %v2529 = vunpack.c.h.b16 %v1892
          %v2530 = vunpack.c.l.b16 %v1893
          %v2531 = vunpack.c.h.b16 %v1893
          %v2532 = vunpack.c.l.b16 %v1894
          %v2533 = vunpack.c.h.b16 %v1894
          %v2534 = vunpack.c.l.b16 %v1895
          %v2535 = vunpack.c.h.b16 %v1895
          %v2536 = vunpack.c.l.b16 %v1896
          %v2537 = vunpack.c.h.b16 %v1896
          %v2538 = vunpack.c.l.b16 %v1897
          %v2539 = vunpack.c.h.b16 %v1897
          %v2540 = vunpack.c.l.b16 %v1898
          %v2541 = vunpack.c.h.b16 %v1898
          %v2542 = vunpack.c.l.b16 %v1899
          %v2543 = vunpack.c.h.b16 %v1899
          %v2544 = vunpack.c.l.b16 %v1900
          %v2545 = vunpack.c.h.b16 %v1900
          %v2546 = vunpack.c.l.b16 %v1901
          %v2547 = vunpack.c.h.b16 %v1901
          %v2548 = vunpack.c.l.b16 %v1902
          %v2549 = vunpack.c.h.b16 %v1902
          %v2550 = vunpack.c.l.b16 %v1903
          %v2551 = vunpack.c.h.b16 %v1903
          %v2552 = vunpack.c.l.b16 %v1904
          %v2553 = vunpack.c.h.b16 %v1904
          %v2554 = vunpack.c.l.b16 %v1905
          %v2555 = vunpack.c.h.b16 %v1905
          %v2556 = vunpack.c.l.b16 %v1906
          %v2557 = vunpack.c.h.b16 %v1906
          %v2558 = vunpack.c.l.b16 %v1907
          %v2559 = vunpack.c.h.b16 %v1907
          %v2560 = vunpack.c.l.b16 %v1908
          %v2561 = vunpack.c.h.b16 %v1908
          %v2562 = vunpack.c.l.b16 %v1909
          %v2563 = vunpack.c.h.b16 %v1909
          %v2564 = vunpack.c.l.b16 %v1910
          %v2565 = vunpack.c.h.b16 %v1910
          %v2566 = vunpack.c.l.b16 %v1911
          %v2567 = vunpack.c.h.b16 %v1911
          %v2568 = vunpack.c.l.b16 %v1912
          %v2569 = vunpack.c.h.b16 %v1912
          %v2570 = vunpack.c.l.b16 %v1913
          %v2571 = vunpack.c.h.b16 %v1913
          %v2572 = vunpack.c.l.b16 %v1914
          %v2573 = vunpack.c.h.b16 %v1914
          %v2574 = vunpack.c.l.b16 %v1915
          %v2575 = vunpack.c.h.b16 %v1915
          %v2576 = vunpack.c.l.b16 %v1916
          %v2577 = vunpack.c.h.b16 %v1916
          %v2578 = vunpack.c.l.b16 %v1917
          %v2579 = vunpack.c.h.b16 %v1917
          %v2580 = vunpack.c.l.b16 %v1918
          %v2581 = vunpack.c.h.b16 %v1918
          %v2582 = vunpack.c.l.b16 %v1919
          %v2583 = vunpack.c.h.b16 %v1919
          %v2584 = vunpack.c.l.b16 %v1920
          %v2585 = vunpack.c.h.b16 %v1920
          %v2586 = vunpack.c.l.b16 %v1921
          %v2587 = vunpack.c.h.b16 %v1921
          %v2588 = vunpack.c.l.b16 %v1922
          %v2589 = vunpack.c.h.b16 %v1922
          %v2590 = vunpack.c.l.b16 %v1923
          %v2591 = vunpack.c.h.b16 %v1923
          %v2592 = vunpack.c.l.b16 %v1924
          %v2593 = vunpack.c.h.b16 %v1924
          %v2594 = vunpack.c.l.b16 %v1925
          %v2595 = vunpack.c.h.b16 %v1925
          %v2596 = vunpack.c.l.b16 %v1926
          %v2597 = vunpack.c.h.b16 %v1926
          %v2598 = vunpack.c.l.b16 %v1927
          %v2599 = vunpack.c.h.b16 %v1927
          %v2600 = vunpack.c.l.b16 %v1928
          %v2601 = vunpack.c.h.b16 %v1928
          %v2602 = vunpack.c.l.b16 %v1929
          %v2603 = vunpack.c.h.b16 %v1929
          %v2604 = vunpack.c.l.b16 %v1930
          %v2605 = vunpack.c.h.b16 %v1930
          %v2606 = vunpack.c.l.b16 %v1931
          %v2607 = vunpack.c.h.b16 %v1931
          %v2608 = vunpack.c.l.b16 %v1932
          %v2609 = vunpack.c.h.b16 %v1932
          %v2610 = vunpack.c.l.b16 %v1933
          %v2611 = vunpack.c.h.b16 %v1933
          %v2612 = vunpack.c.l.b16 %v1934
          %v2613 = vunpack.c.h.b16 %v1934
          %v2614 = vunpack.c.l.b16 %v1935
          %v2615 = vunpack.c.h.b16 %v1935
          %v2616 = vunpack.c.l.b16 %v1936
          %v2617 = vunpack.c.h.b16 %v1936
          %v2618 = vunpack.c.l.b16 %v1937
          %v2619 = vunpack.c.h.b16 %v1937
          %v2620 = vunpack.c.l.b16 %v1938
          %v2621 = vunpack.c.h.b16 %v1938
          %v2622 = vunpack.c.l.b16 %v1939
          %v2623 = vunpack.c.h.b16 %v1939
          %v2624 = vunpack.c.l.b16 %v1940
          %v2625 = vunpack.c.h.b16 %v1940
          %v2626 = vunpack.c.l.b16 %v1941
          %v2627 = vunpack.c.h.b16 %v1941
          %v2628 = vunpack.c.l.b16 %v1942
          %v2629 = vunpack.c.h.b16 %v1942
          %v2630 = vunpack.c.l.b16 %v1943
          %v2631 = vunpack.c.h.b16 %v1943
          %v2632 = vunpack.c.l.b16 %v1944
          %v2633 = vunpack.c.h.b16 %v1944
          %v2634 = vunpack.c.l.b16 %v1945
          %v2635 = vunpack.c.h.b16 %v1945
          %v2636 = vunpack.c.l.b16 %v1946
          %v2637 = vunpack.c.h.b16 %v1946
          %v2638 = vunpack.c.l.b16 %v1947
          %v2639 = vunpack.c.h.b16 %v1947
          %v2640 = vunpack.c.l.b16 %v1948
          %v2641 = vunpack.c.h.b16 %v1948
          %v2642 = vunpack.c.l.b16 %v1949
          %v2643 = vunpack.c.h.b16 %v1949
          %v2644 = vunpack.c.l.b16 %v1950
          %v2645 = vunpack.c.h.b16 %v1950
          %v2646 = vunpack.c.l.b16 %v1951
          %v2647 = vunpack.c.h.b16 %v1951
          %v2648 = vunpack.c.l.b16 %v1952
          %v2649 = vunpack.c.h.b16 %v1952
          %v2650 = vunpack.c.l.b16 %v1953
          %v2651 = vunpack.c.h.b16 %v1953
          %v2652 = vunpack.c.l.b16 %v1954
          %v2653 = vunpack.c.h.b16 %v1954
          %v2654 = vunpack.c.l.b16 %v1955
          %v2655 = vunpack.c.h.b16 %v1955
          %v2656 = vunpack.c.l.b16 %v1956
          %v2657 = vunpack.c.h.b16 %v1956
          %v2658 = vunpack.c.l.b16 %v1957
          %v2659 = vunpack.c.h.b16 %v1957
          %v2660 = vunpack.c.l.b16 %v1958
          %v2661 = vunpack.c.h.b16 %v1958
          %v2662 = vunpack.c.l.b16 %v1959
          %v2663 = vunpack.c.h.b16 %v1959
          %v2664 = vunpack.c.l.b16 %v1960
          %v2665 = vunpack.c.h.b16 %v1960
          %v2666 = vunpack.c.l.b16 %v1961
          %v2667 = vunpack.c.h.b16 %v1961
          %v2668 = vunpack.c.l.b16 %v1962
          %v2669 = vunpack.c.h.b16 %v1962
          %v2670 = vunpack.c.l.b16 %v1963
          %v2671 = vunpack.c.h.b16 %v1963
          %v2672 = vunpack.c.l.b16 %v1964
          %v2673 = vunpack.c.h.b16 %v1964
          %v2674 = vunpack.c.l.b16 %v1965
          %v2675 = vunpack.c.h.b16 %v1965
          %v2676 = vunpack.c.l.b16 %v1966
          %v2677 = vunpack.c.h.b16 %v1966
          %v2678 = vunpack.c.l.b16 %v1967
          %v2679 = vunpack.c.h.b16 %v1967
          %v2680 = vunpack.c.l.b16 %v1968
          %v2681 = vunpack.c.h.b16 %v1968
          %v2682 = vunpack.c.l.b16 %v1969
          %v2683 = vunpack.c.h.b16 %v1969
          %v2684 = vunpack.c.l.b16 %v1970
          %v2685 = vunpack.c.h.b16 %v1970
          %v2686 = vunpack.c.l.b16 %v1971
          %v2687 = vunpack.c.h.b16 %v1971
          %v2688 = vunpack.c.l.b16 %v1972
          %v2689 = vunpack.c.h.b16 %v1972
          %v2690 = vunpack.c.l.b16 %v1973
          %v2691 = vunpack.c.h.b16 %v1973
          %v2692 = vunpack.c.l.b16 %v1974
          %v2693 = vunpack.c.h.b16 %v1974
          %v2694 = vunpack.c.l.b16 %v1975
          %v2695 = vunpack.c.h.b16 %v1975
          %v2696 = vunpack.c.l.b16 %v1976
          %v2697 = vunpack.c.h.b16 %v1976
          %v2698 = vunpack.c.l.b16 %v1977
          %v2699 = vunpack.c.h.b16 %v1977
          %v2700 = vunpack.c.l.b16 %v1978
          %v2701 = vunpack.c.h.b16 %v1978
          %v2702 = vunpack.c.l.b16 %v1979
          %v2703 = vunpack.c.h.b16 %v1979
          %v2704 = vunpack.c.l.b16 %v1980
          %v2705 = vunpack.c.h.b16 %v1980
          %v2706 = vunpack.c.l.b16 %v1981
          %v2707 = vunpack.c.h.b16 %v1981
          %v2708 = vunpack.c.l.b16 %v1982
          %v2709 = vunpack.c.h.b16 %v1982
          %v2710 = vunpack.c.l.b16 %v1983
          %v2711 = vunpack.c.h.b16 %v1983
          %v2712 = vunpack.c.l.b16 %v1984
          %v2713 = vunpack.c.h.b16 %v1984
          %v2714 = vunpack.c.l.b16 %v1985
          %v2715 = vunpack.c.h.b16 %v1985
          %v2716 = vunpack.c.l.b16 %v1986
          %v2717 = vunpack.c.h.b16 %v1986
          %v2718 = vunpack.c.l.b16 %v1987
          %v2719 = vunpack.c.h.b16 %v1987
          %v2720 = vunpack.c.l.b16 %v1988
          %v2721 = vunpack.c.h.b16 %v1988
          %v2722 = vunpack.c.l.b16 %v1989
          %v2723 = vunpack.c.h.b16 %v1989
          %v2724 = vunpack.c.l.b16 %v1990
          %v2725 = vunpack.c.h.b16 %v1990
          %v2726 = vunpack.c.l.b16 %v1991
          %v2727 = vunpack.c.h.b16 %v1991
          %v2728 = vunpack.c.l.b16 %v1992
          %v2729 = vunpack.c.h.b16 %v1992
          %v2730 = vunpack.c.l.b16 %v1993
          %v2731 = vunpack.c.h.b16 %v1993
          %v2732 = vunpack.c.l.b16 %v1994
          %v2733 = vunpack.c.h.b16 %v1994
          %v2734 = vunpack.c.l.b16 %v1995
          %v2735 = vunpack.c.h.b16 %v1995
          %v2736 = vunpack.c.l.b16 %v1996
          %v2737 = vunpack.c.h.b16 %v1996
          %v2738 = vunpack.c.l.b16 %v1997
          %v2739 = vunpack.c.h.b16 %v1997
          %v2740 = vunpack.c.l.b16 %v1998
          %v2741 = vunpack.c.h.b16 %v1998
          %v2742 = vunpack.c.l.b16 %v1999
          %v2743 = vunpack.c.h.b16 %v1999
          %v2744 = vunpack.c.l.b16 %v2000
          %v2745 = vunpack.c.h.b16 %v2000
          %v2746 = vunpack.c.l.b16 %v2001
          %v2747 = vunpack.c.h.b16 %v2001
          %v2748 = vunpack.c.l.b16 %v2002
          %v2749 = vunpack.c.h.b16 %v2002
          %v2750 = vunpack.c.l.b16 %v2003
          %v2751 = vunpack.c.h.b16 %v2003
          %v2752 = vunpack.c.l.b16 %v2004
          %v2753 = vunpack.c.h.b16 %v2004
          %v2754 = vunpack.c.l.b16 %v2005
          %v2755 = vunpack.c.h.b16 %v2005
          %v2756 = vunpack.c.l.b16 %v2006
          %v2757 = vunpack.c.h.b16 %v2006
          %v2758 = vunpack.c.l.b16 %v2007
          %v2759 = vunpack.c.h.b16 %v2007
          %v2760 = vunpack.c.l.b16 %v2008
          %v2761 = vunpack.c.h.b16 %v2008
          %v2762 = vunpack.c.l.b16 %v2009
          %v2763 = vunpack.c.h.b16 %v2009
          %v2764 = vunpack.c.l.b16 %v2010
          %v2765 = vunpack.c.h.b16 %v2010
          %v2766 = vunpack.c.l.b16 %v2011
          %v2767 = vunpack.c.h.b16 %v2011
          %v2768 = vunpack.c.l.b16 %v2012
          %v2769 = vunpack.c.h.b16 %v2012
          %v2770 = vunpack.c.l.b16 %v2013
          %v2771 = vunpack.c.h.b16 %v2013
          %v2772 = vunpack.c.l.b16 %v2014
          %v2773 = vunpack.c.h.b16 %v2014
          %v2774 = vunpack.c.l.b16 %v2015
          %v2775 = vunpack.c.h.b16 %v2015
          %v2776 = vunpack.c.l.b16 %v2016
          %v2777 = vunpack.c.h.b16 %v2016
          %v2778 = vunpack.c.l.b16 %v2017
          %v2779 = vunpack.c.h.b16 %v2017
          %v2780 = vunpack.c.l.b16 %v2018
          %v2781 = vunpack.c.h.b16 %v2018
          %v2782 = vunpack.c.l.b16 %v2019
          %v2783 = vunpack.c.h.b16 %v2019
          %v2784 = vunpack.c.l.b16 %v2020
          %v2785 = vunpack.c.h.b16 %v2020
          %v2786 = vunpack.c.l.b16 %v2021
          %v2787 = vunpack.c.h.b16 %v2021
          %v2788 = vunpack.c.l.b16 %v2022
          %v2789 = vunpack.c.h.b16 %v2022
          %v2790 = vunpack.c.l.b16 %v2023
          %v2791 = vunpack.c.h.b16 %v2023
          %v2792 = vunpack.c.l.b16 %v2024
          %v2793 = vunpack.c.h.b16 %v2024
          %v2794 = vunpack.c.l.b16 %v2025
          %v2795 = vunpack.c.h.b16 %v2025
          %v2796 = vunpack.c.l.b16 %v2026
          %v2797 = vunpack.c.h.b16 %v2026
          %v2798 = vunpack.c.l.b16 %v2027
          %v2799 = vunpack.c.h.b16 %v2027
          %v2800 = vunpack.c.l.b16 %v2028
          %v2801 = vunpack.c.h.b16 %v2028
          %v2802 = vunpack.c.l.b16 %v2029
          %v2803 = vunpack.c.h.b16 %v2029
          %v2804 = vunpack.c.l.b16 %v2030
          %v2805 = vunpack.c.h.b16 %v2030
          %v2806 = vunpack.c.l.b16 %v2031
          %v2807 = vunpack.c.h.b16 %v2031
          %v2808 = vunpack.c.l.b16 %v2032
          %v2809 = vunpack.c.h.b16 %v2032
          %v2810 = vunpack.c.l.b16 %v2033
          %v2811 = vunpack.c.h.b16 %v2033
          %v2812 = vunpack.c.l.b16 %v2034
          %v2813 = vunpack.c.h.b16 %v2034
          %v2814 = vunpack.c.l.b16 %v2035
          %v2815 = vunpack.c.h.b16 %v2035
          %v2816 = vunpack.c.l.b16 %v2036
          %v2817 = vunpack.c.h.b16 %v2036
          %v2818 = vunpack.c.l.b16 %v2037
          %v2819 = vunpack.c.h.b16 %v2037
          %v2820 = vunpack.c.l.b16 %v2038
          %v2821 = vunpack.c.h.b16 %v2038
          %v2822 = vunpack.c.l.b16 %v2039
          %v2823 = vunpack.c.h.b16 %v2039
          %v2824 = vunpack.c.l.b16 %v2040
          %v2825 = vunpack.c.h.b16 %v2040
          %v2826 = vunpack.c.l.b16 %v2041
          %v2827 = vunpack.c.h.b16 %v2041
          %v2828 = vpack.c.b16 %v2324, %v2316
          %v2829 = vpack.c.b16 %v2325, %v2317
          %v2830 = vpack.c.b16 %v2326, %v2318
          %v2831 = vpack.c.b16 %v2327, %v2319
          %v2832 = vpack.c.b16 %v2328, %v2320
          %v2833 = vpack.c.b16 %v2329, %v2321
          %v2834 = vpack.c.b16 %v2330, %v2322
          %v2835 = vpack.c.b16 %v2331, %v2323
          %v2836 = vpack.c.b16 %v2340, %v2332
          %v2837 = vpack.c.b16 %v2341, %v2333
          %v2838 = vpack.c.b16 %v2342, %v2334
          %v2839 = vpack.c.b16 %v2343, %v2335
          %v2840 = vpack.c.b16 %v2344, %v2336
          %v2841 = vpack.c.b16 %v2345, %v2337
          %v2842 = vpack.c.b16 %v2346, %v2338
          %v2843 = vpack.c.b16 %v2347, %v2339
          %v2844 = vpack.c.b16 %v2356, %v2348
          %v2845 = vpack.c.b16 %v2357, %v2349
          %v2846 = vpack.c.b16 %v2358, %v2350
          %v2847 = vpack.c.b16 %v2359, %v2351
          %v2848 = vpack.c.b16 %v2360, %v2352
          %v2849 = vpack.c.b16 %v2361, %v2353
          %v2850 = vpack.c.b16 %v2362, %v2354
          %v2851 = vpack.c.b16 %v2363, %v2355
          %v2852 = vpack.c.b16 %v2372, %v2364
          %v2853 = vpack.c.b16 %v2373, %v2365
          %v2854 = vpack.c.b16 %v2374, %v2366
          %v2855 = vpack.c.b16 %v2375, %v2367
          %v2856 = vpack.c.b16 %v2376, %v2368
          %v2857 = vpack.c.b16 %v2377, %v2369
          %v2858 = vpack.c.b16 %v2378, %v2370
          %v2859 = vpack.c.b16 %v2379, %v2371
          %v2860 = vpack.c.b16 %v2388, %v2380
          %v2861 = vpack.c.b16 %v2389, %v2381
          %v2862 = vpack.c.b16 %v2390, %v2382
          %v2863 = vpack.c.b16 %v2391, %v2383
          %v2864 = vpack.c.b16 %v2392, %v2384
          %v2865 = vpack.c.b16 %v2393, %v2385
          %v2866 = vpack.c.b16 %v2394, %v2386
          %v2867 = vpack.c.b16 %v2395, %v2387
          %v2868 = vpack.c.b16 %v2404, %v2396
          %v2869 = vpack.c.b16 %v2405, %v2397
          %v2870 = vpack.c.b16 %v2406, %v2398
          %v2871 = vpack.c.b16 %v2407, %v2399
          %v2872 = vpack.c.b16 %v2408, %v2400
          %v2873 = vpack.c.b16 %v2409, %v2401
          %v2874 = vpack.c.b16 %v2410, %v2402
          %v2875 = vpack.c.b16 %v2411, %v2403
          %v2876 = vpack.c.b16 %v2420, %v2412
          %v2877 = vpack.c.b16 %v2421, %v2413
          %v2878 = vpack.c.b16 %v2422, %v2414
          %v2879 = vpack.c.b16 %v2423, %v2415
          %v2880 = vpack.c.b16 %v2424, %v2416
          %v2881 = vpack.c.b16 %v2425, %v2417
          %v2882 = vpack.c.b16 %v2426, %v2418
          %v2883 = vpack.c.b16 %v2427, %v2419
          %v2884 = vpack.c.b16 %v2436, %v2428
          %v2885 = vpack.c.b16 %v2437, %v2429
          %v2886 = vpack.c.b16 %v2438, %v2430
          %v2887 = vpack.c.b16 %v2439, %v2431
          %v2888 = vpack.c.b16 %v2440, %v2432
          %v2889 = vpack.c.b16 %v2441, %v2433
          %v2890 = vpack.c.b16 %v2442, %v2434
          %v2891 = vpack.c.b16 %v2443, %v2435
          %v2892 = vpack.c.b16 %v2452, %v2444
          %v2893 = vpack.c.b16 %v2453, %v2445
          %v2894 = vpack.c.b16 %v2454, %v2446
          %v2895 = vpack.c.b16 %v2455, %v2447
          %v2896 = vpack.c.b16 %v2456, %v2448
          %v2897 = vpack.c.b16 %v2457, %v2449
          %v2898 = vpack.c.b16 %v2458, %v2450
          %v2899 = vpack.c.b16 %v2459, %v2451
          %v2900 = vpack.c.b16 %v2468, %v2460
          %v2901 = vpack.c.b16 %v2469, %v2461
          %v2902 = vpack.c.b16 %v2470, %v2462
          %v2903 = vpack.c.b16 %v2471, %v2463
          %v2904 = vpack.c.b16 %v2472, %v2464
          %v2905 = vpack.c.b16 %v2473, %v2465
          %v2906 = vpack.c.b16 %v2474, %v2466
          %v2907 = vpack.c.b16 %v2475, %v2467
          %v2908 = vpack.c.b16 %v2484, %v2476
          %v2909 = vpack.c.b16 %v2485, %v2477
          %v2910 = vpack.c.b16 %v2486, %v2478
          %v2911 = vpack.c.b16 %v2487, %v2479
          %v2912 = vpack.c.b16 %v2488, %v2480
          %v2913 = vpack.c.b16 %v2489, %v2481
          %v2914 = vpack.c.b16 %v2490, %v2482
          %v2915 = vpack.c.b16 %v2491, %v2483
          %v2916 = vpack.c.b16 %v2500, %v2492
          %v2917 = vpack.c.b16 %v2501, %v2493
          %v2918 = vpack.c.b16 %v2502, %v2494
          %v2919 = vpack.c.b16 %v2503, %v2495
          %v2920 = vpack.c.b16 %v2504, %v2496
          %v2921 = vpack.c.b16 %v2505, %v2497
          %v2922 = vpack.c.b16 %v2506, %v2498
          %v2923 = vpack.c.b16 %v2507, %v2499
          %v2924 = vpack.c.b16 %v2516, %v2508
          %v2925 = vpack.c.b16 %v2517, %v2509
          %v2926 = vpack.c.b16 %v2518, %v2510
          %v2927 = vpack.c.b16 %v2519, %v2511
          %v2928 = vpack.c.b16 %v2520, %v2512
          %v2929 = vpack.c.b16 %v2521, %v2513
          %v2930 = vpack.c.b16 %v2522, %v2514
          %v2931 = vpack.c.b16 %v2523, %v2515
          %v2932 = vpack.c.b16 %v2532, %v2524
          %v2933 = vpack.c.b16 %v2533, %v2525
          %v2934 = vpack.c.b16 %v2534, %v2526
          %v2935 = vpack.c.b16 %v2535, %v2527
          %v2936 = vpack.c.b16 %v2536, %v2528
          %v2937 = vpack.c.b16 %v2537, %v2529
          %v2938 = vpack.c.b16 %v2538, %v2530
          %v2939 = vpack.c.b16 %v2539, %v2531
          %v2940 = vpack.c.b16 %v2548, %v2540
          %v2941 = vpack.c.b16 %v2549, %v2541
          %v2942 = vpack.c.b16 %v2550, %v2542
          %v2943 = vpack.c.b16 %v2551, %v2543
          %v2944 = vpack.c.b16 %v2552, %v2544
          %v2945 = vpack.c.b16 %v2553, %v2545
          %v2946 = vpack.c.b16 %v2554, %v2546
          %v2947 = vpack.c.b16 %v2555, %v2547
          %v2948 = vpack.c.b16 %v2564, %v2556
          %v2949 = vpack.c.b16 %v2565, %v2557
          %v2950 = vpack.c.b16 %v2566, %v2558
          %v2951 = vpack.c.b16 %v2567, %v2559
          %v2952 = vpack.c.b16 %v2568, %v2560
          %v2953 = vpack.c.b16 %v2569, %v2561
          %v2954 = vpack.c.b16 %v2570, %v2562
          %v2955 = vpack.c.b16 %v2571, %v2563
          %v2956 = vpack.c.b16 %v2580, %v2572
          %v2957 = vpack.c.b16 %v2581, %v2573
          %v2958 = vpack.c.b16 %v2582, %v2574
          %v2959 = vpack.c.b16 %v2583, %v2575
          %v2960 = vpack.c.b16 %v2584, %v2576
          %v2961 = vpack.c.b16 %v2585, %v2577
          %v2962 = vpack.c.b16 %v2586, %v2578
          %v2963 = vpack.c.b16 %v2587, %v2579
          %v2964 = vpack.c.b16 %v2596, %v2588
          %v2965 = vpack.c.b16 %v2597, %v2589
          %v2966 = vpack.c.b16 %v2598, %v2590
          %v2967 = vpack.c.b16 %v2599, %v2591
          %v2968 = vpack.c.b16 %v2600, %v2592
          %v2969 = vpack.c.b16 %v2601, %v2593
          %v2970 = vpack.c.b16 %v2602, %v2594
          %v2971 = vpack.c.b16 %v2603, %v2595
          %v2972 = vpack.c.b16 %v2612, %v2604
          %v2973 = vpack.c.b16 %v2613, %v2605
          %v2974 = vpack.c.b16 %v2614, %v2606
          %v2975 = vpack.c.b16 %v2615, %v2607
          %v2976 = vpack.c.b16 %v2616, %v2608
          %v2977 = vpack.c.b16 %v2617, %v2609
          %v2978 = vpack.c.b16 %v2618, %v2610
          %v2979 = vpack.c.b16 %v2619, %v2611
          %v2980 = vpack.c.b16 %v2628, %v2620
          %v2981 = vpack.c.b16 %v2629, %v2621
          %v2982 = vpack.c.b16 %v2630, %v2622
          %v2983 = vpack.c.b16 %v2631, %v2623
          %v2984 = vpack.c.b16 %v2632, %v2624
          %v2985 = vpack.c.b16 %v2633, %v2625
          %v2986 = vpack.c.b16 %v2634, %v2626
          %v2987 = vpack.c.b16 %v2635, %v2627
          %v2988 = vpack.c.b16 %v2644, %v2636
          %v2989 = vpack.c.b16 %v2645, %v2637
          %v2990 = vpack.c.b16 %v2646, %v2638
          %v2991 = vpack.c.b16 %v2647, %v2639
          %v2992 = vpack.c.b16 %v2648, %v2640
          %v2993 = vpack.c.b16 %v2649, %v2641
          %v2994 = vpack.c.b16 %v2650, %v2642
          %v2995 = vpack.c.b16 %v2651, %v2643
          %v2996 = vpack.c.b16 %v2660, %v2652
          %v2997 = vpack.c.b16 %v2661, %v2653
          %v2998 = vpack.c.b16 %v2662, %v2654
          %v2999 = vpack.c.b16 %v2663, %v2655
          %v3000 = vpack.c.b16 %v2664, %v2656
          %v3001 = vpack.c.b16 %v2665, %v2657
          %v3002 = vpack.c.b16 %v2666, %v2658
          %v3003 = vpack.c.b16 %v2667, %v2659
          %v3004 = vpack.c.b16 %v2676, %v2668
          %v3005 = vpack.c.b16 %v2677, %v2669
          %v3006 = vpack.c.b16 %v2678, %v2670
          %v3007 = vpack.c.b16 %v2679, %v2671
          %v3008 = vpack.c.b16 %v2680, %v2672
          %v3009 = vpack.c.b16 %v2681, %v2673
          %v3010 = vpack.c.b16 %v2682, %v2674
          %v3011 = vpack.c.b16 %v2683, %v2675
          %v3012 = vpack.c.b16 %v2692, %v2684
          %v3013 = vpack.c.b16 %v2693, %v2685
          %v3014 = vpack.c.b16 %v2694, %v2686
          %v3015 = vpack.c.b16 %v2695, %v2687
          %v3016 = vpack.c.b16 %v2696, %v2688
          %v3017 = vpack.c.b16 %v2697, %v2689
          %v3018 = vpack.c.b16 %v2698, %v2690
          %v3019 = vpack.c.b16 %v2699, %v2691
          %v3020 = vpack.c.b16 %v2708, %v2700
          %v3021 = vpack.c.b16 %v2709, %v2701
          %v3022 = vpack.c.b16 %v2710, %v2702
          %v3023 = vpack.c.b16 %v2711, %v2703
          %v3024 = vpack.c.b16 %v2712, %v2704
          %v3025 = vpack.c.b16 %v2713, %v2705
          %v3026 = vpack.c.b16 %v2714, %v2706
          %v3027 = vpack.c.b16 %v2715, %v2707
          %v3028 = vpack.c.b16 %v2724, %v2716
          %v3029 = vpack.c.b16 %v2725, %v2717
          %v3030 = vpack.c.b16 %v2726, %v2718
          %v3031 = vpack.c.b16 %v2727, %v2719
          %v3032 = vpack.c.b16 %v2728, %v2720
          %v3033 = vpack.c.b16 %v2729, %v2721
          %v3034 = vpack.c.b16 %v2730, %v2722
          %v3035 = vpack.c.b16 %v2731, %v2723
          %v3036 = vpack.c.b16 %v2740, %v2732
          %v3037 = vpack.c.b16 %v2741, %v2733
          %v3038 = vpack.c.b16 %v2742, %v2734
          %v3039 = vpack.c.b16 %v2743, %v2735
          %v3040 = vpack.c.b16 %v2744, %v2736
          %v3041 = vpack.c.b16 %v2745, %v2737
          %v3042 = vpack.c.b16 %v2746, %v2738
          %v3043 = vpack.c.b16 %v2747, %v2739
          %v3044 = vpack.c.b16 %v2756, %v2748
          %v3045 = vpack.c.b16 %v2757, %v2749
          %v3046 = vpack.c.b16 %v2758, %v2750
          %v3047 = vpack.c.b16 %v2759, %v2751
          %v3048 = vpack.c.b16 %v2760, %v2752
          %v3049 = vpack.c.b16 %v2761, %v2753
          %v3050 = vpack.c.b16 %v2762, %v2754
          %v3051 = vpack.c.b16 %v2763, %v2755
          %v3052 = vpack.c.b16 %v2772, %v2764
          %v3053 = vpack.c.b16 %v2773, %v2765
          %v3054 = vpack.c.b16 %v2774, %v2766
          %v3055 = vpack.c.b16 %v2775, %v2767
          %v3056 = vpack.c.b16 %v2776, %v2768
          %v3057 = vpack.c.b16 %v2777, %v2769
          %v3058 = vpack.c.b16 %v2778, %v2770
          %v3059 = vpack.c.b16 %v2779, %v2771
          %v3060 = vpack.c.b16 %v2788, %v2780
          %v3061 = vpack.c.b16 %v2789, %v2781
          %v3062 = vpack.c.b16 %v2790, %v2782
          %v3063 = vpack.c.b16 %v2791, %v2783
          %v3064 = vpack.c.b16 %v2792, %v2784
          %v3065 = vpack.c.b16 %v2793, %v2785
          %v3066 = vpack.c.b16 %v2794, %v2786
          %v3067 = vpack.c.b16 %v2795, %v2787
          %v3068 = vpack.c.b16 %v2804, %v2796
          %v3069 = vpack.c.b16 %v2805, %v2797
          %v3070 = vpack.c.b16 %v2806, %v2798
          %v3071 = vpack.c.b16 %v2807, %v2799
          %v3072 = vpack.c.b16 %v2808, %v2800
          %v3073 = vpack.c.b16 %v2809, %v2801
          %v3074 = vpack.c.b16 %v2810, %v2802
          %v3075 = vpack.c.b16 %v2811, %v2803
          %v3076 = vpack.c.b16 %v2820, %v2812
          %v3077 = vpack.c.b16 %v2821, %v2813
          %v3078 = vpack.c.b16 %v2822, %v2814
          %v3079 = vpack.c.b16 %v2823, %v2815
          %v3080 = vpack.c.b16 %v2824, %v2816
          %v3081 = vpack.c.b16 %v2825, %v2817
          %v3082 = vpack.c.b16 %v2826, %v2818
          %v3083 = vpack.c.b16 %v2827, %v2819
          %3340 = vmatpush.bf16.msra.mxu0 %v2884
          %3341 = vmatpush.bf16.msra.mxu0 %v2876
          %3342 = vmatpush.bf16.msra.mxu0 %v2868
          %3343 = vmatpush.bf16.msra.mxu0 %v2860
          %3344 = vmatpush.bf16.msra.mxu0 %v2852
          %3345 = vmatpush.bf16.msra.mxu0 %v2844
          %3346 = vmatpush.bf16.msra.mxu0 %v2836
          %3347 = vmatpush.bf16.msra.mxu0 %v2828
          %3348 = vmatmul.bf16.gmra.mxu0 %v1782
          %v3349 = vpop.f32.mrf.mxu0
          %v3350 = vadd.f32 %v2044, %v3349
          %v3351 = vpop.f32.mrf.mxu0
          %3352 = vdwg.mxu0
          %3353 = vmatpush.bf16.msra.mxu0 %v2948
          %3354 = vmatpush.bf16.msra.mxu0 %v2940
          %3355 = vmatpush.bf16.msra.mxu0 %v2932
          %3356 = vmatpush.bf16.msra.mxu0 %v2924
          %3357 = vmatpush.bf16.msra.mxu0 %v2916
          %3358 = vmatpush.bf16.msra.mxu0 %v2908
          %3359 = vmatpush.bf16.msra.mxu0 %v2900
          %3360 = vmatpush.bf16.msra.mxu0 %v2892
          %3361 = vmatmul.bf16.gmra.mxu0 %v1783
          %v3362 = vpop.f32.mrf.mxu0
          %v3363 = vadd.f32 %v3350, %v3362
          %v3364 = vpop.f32.mrf.mxu0
          %3365 = vdwg.mxu0
          %3366 = vmatpush.bf16.msra.mxu0 %v3012
          %3367 = vmatpush.bf16.msra.mxu0 %v3004
          %3368 = vmatpush.bf16.msra.mxu0 %v2996
          %3369 = vmatpush.bf16.msra.mxu0 %v2988
          %3370 = vmatpush.bf16.msra.mxu0 %v2980
          %3371 = vmatpush.bf16.msra.mxu0 %v2972
          %3372 = vmatpush.bf16.msra.mxu0 %v2964
          %3373 = vmatpush.bf16.msra.mxu0 %v2956
          %3374 = vmatmul.bf16.gmra.mxu0 %v1784
          %v3375 = vpop.f32.mrf.mxu0
          %v3376 = vadd.f32 %v3363, %v3375
          %v3377 = vpop.f32.mrf.mxu0
          %3378 = vdwg.mxu0
          %3379 = vmatpush.bf16.msra.mxu0 %v3076
          %3380 = vmatpush.bf16.msra.mxu0 %v3068
          %3381 = vmatpush.bf16.msra.mxu0 %v3060
          %3382 = vmatpush.bf16.msra.mxu0 %v3052
          %3383 = vmatpush.bf16.msra.mxu0 %v3044
          %3384 = vmatpush.bf16.msra.mxu0 %v3036
          %3385 = vmatpush.bf16.msra.mxu0 %v3028
          %3386 = vmatpush.bf16.msra.mxu0 %v3020
          %3387 = vmatmul.bf16.gmra.mxu0 %v1785
          %v3388 = vpop.f32.mrf.mxu0
          %v3389 = vadd.f32 %v3376, %v3388
          %v3390 = vpop.f32.mrf.mxu0
          %3391 = vdwg.mxu0
          %3392 = vmatpush.bf16.msra.mxu0 %v2885
          %3393 = vmatpush.bf16.msra.mxu0 %v2877
          %3394 = vmatpush.bf16.msra.mxu0 %v2869
          %3395 = vmatpush.bf16.msra.mxu0 %v2861
          %3396 = vmatpush.bf16.msra.mxu0 %v2853
          %3397 = vmatpush.bf16.msra.mxu0 %v2845
          %3398 = vmatpush.bf16.msra.mxu0 %v2837
          %3399 = vmatpush.bf16.msra.mxu0 %v2829
          %3400 = vmatmul.bf16.gmra.mxu0 %v1782
          %v3401 = vpop.f32.mrf.mxu0
          %v3402 = vadd.f32 %v2045, %v3401
          %v3403 = vpop.f32.mrf.mxu0
          %3404 = vdwg.mxu0
          %3405 = vmatpush.bf16.msra.mxu0 %v2949
          %3406 = vmatpush.bf16.msra.mxu0 %v2941
          %3407 = vmatpush.bf16.msra.mxu0 %v2933
          %3408 = vmatpush.bf16.msra.mxu0 %v2925
          %3409 = vmatpush.bf16.msra.mxu0 %v2917
          %3410 = vmatpush.bf16.msra.mxu0 %v2909
          %3411 = vmatpush.bf16.msra.mxu0 %v2901
          %3412 = vmatpush.bf16.msra.mxu0 %v2893
          %3413 = vmatmul.bf16.gmra.mxu0 %v1783
          %v3414 = vpop.f32.mrf.mxu0
          %v3415 = vadd.f32 %v3402, %v3414
          %v3416 = vpop.f32.mrf.mxu0
          %3417 = vdwg.mxu0
          %3418 = vmatpush.bf16.msra.mxu0 %v3013
          %3419 = vmatpush.bf16.msra.mxu0 %v3005
          %3420 = vmatpush.bf16.msra.mxu0 %v2997
          %3421 = vmatpush.bf16.msra.mxu0 %v2989
          %3422 = vmatpush.bf16.msra.mxu0 %v2981
          %3423 = vmatpush.bf16.msra.mxu0 %v2973
          %3424 = vmatpush.bf16.msra.mxu0 %v2965
          %3425 = vmatpush.bf16.msra.mxu0 %v2957
          %3426 = vmatmul.bf16.gmra.mxu0 %v1784
          %v3427 = vpop.f32.mrf.mxu0
          %v3428 = vadd.f32 %v3415, %v3427
          %v3429 = vpop.f32.mrf.mxu0
          %3430 = vdwg.mxu0
          %3431 = vmatpush.bf16.msra.mxu0 %v3077
          %3432 = vmatpush.bf16.msra.mxu0 %v3069
          %3433 = vmatpush.bf16.msra.mxu0 %v3061
          %3434 = vmatpush.bf16.msra.mxu0 %v3053
          %3435 = vmatpush.bf16.msra.mxu0 %v3045
          %3436 = vmatpush.bf16.msra.mxu0 %v3037
          %3437 = vmatpush.bf16.msra.mxu0 %v3029
          %3438 = vmatpush.bf16.msra.mxu0 %v3021
          %3439 = vmatmul.bf16.gmra.mxu0 %v1785
          %v3440 = vpop.f32.mrf.mxu0
          %v3441 = vadd.f32 %v3428, %v3440
          %v3442 = vpop.f32.mrf.mxu0
          %3443 = vdwg.mxu0
          %3444 = vmatpush.bf16.msra.mxu0 %v2886
          %3445 = vmatpush.bf16.msra.mxu0 %v2878
          %3446 = vmatpush.bf16.msra.mxu0 %v2870
          %3447 = vmatpush.bf16.msra.mxu0 %v2862
          %3448 = vmatpush.bf16.msra.mxu0 %v2854
          %3449 = vmatpush.bf16.msra.mxu0 %v2846
          %3450 = vmatpush.bf16.msra.mxu0 %v2838
          %3451 = vmatpush.bf16.msra.mxu0 %v2830
          %3452 = vmatmul.bf16.gmra.mxu0 %v1782
          %v3453 = vpop.f32.mrf.mxu0
          %v3454 = vadd.f32 %v2046, %v3453
          %v3455 = vpop.f32.mrf.mxu0
          %3456 = vdwg.mxu0
          %3457 = vmatpush.bf16.msra.mxu0 %v2950
          %3458 = vmatpush.bf16.msra.mxu0 %v2942
          %3459 = vmatpush.bf16.msra.mxu0 %v2934
          %3460 = vmatpush.bf16.msra.mxu0 %v2926
          %3461 = vmatpush.bf16.msra.mxu0 %v2918
          %3462 = vmatpush.bf16.msra.mxu0 %v2910
          %3463 = vmatpush.bf16.msra.mxu0 %v2902
          %3464 = vmatpush.bf16.msra.mxu0 %v2894
          %3465 = vmatmul.bf16.gmra.mxu0 %v1783
          %v3466 = vpop.f32.mrf.mxu0
          %v3467 = vadd.f32 %v3454, %v3466
          %v3468 = vpop.f32.mrf.mxu0
          %3469 = vdwg.mxu0
          %3470 = vmatpush.bf16.msra.mxu0 %v3014
          %3471 = vmatpush.bf16.msra.mxu0 %v3006
          %3472 = vmatpush.bf16.msra.mxu0 %v2998
          %3473 = vmatpush.bf16.msra.mxu0 %v2990
          %3474 = vmatpush.bf16.msra.mxu0 %v2982
          %3475 = vmatpush.bf16.msra.mxu0 %v2974
          %3476 = vmatpush.bf16.msra.mxu0 %v2966
          %3477 = vmatpush.bf16.msra.mxu0 %v2958
          %3478 = vmatmul.bf16.gmra.mxu0 %v1784
          %v3479 = vpop.f32.mrf.mxu0
          %v3480 = vadd.f32 %v3467, %v3479
          %v3481 = vpop.f32.mrf.mxu0
          %3482 = vdwg.mxu0
          %3483 = vmatpush.bf16.msra.mxu0 %v3078
          %3484 = vmatpush.bf16.msra.mxu0 %v3070
          %3485 = vmatpush.bf16.msra.mxu0 %v3062
          %3486 = vmatpush.bf16.msra.mxu0 %v3054
          %3487 = vmatpush.bf16.msra.mxu0 %v3046
          %3488 = vmatpush.bf16.msra.mxu0 %v3038
          %3489 = vmatpush.bf16.msra.mxu0 %v3030
          %3490 = vmatpush.bf16.msra.mxu0 %v3022
          %3491 = vmatmul.bf16.gmra.mxu0 %v1785
          %v3492 = vpop.f32.mrf.mxu0
          %v3493 = vadd.f32 %v3480, %v3492
          %v3494 = vpop.f32.mrf.mxu0
          %3495 = vdwg.mxu0
          %3496 = vmatpush.bf16.msra.mxu0 %v2887
          %3497 = vmatpush.bf16.msra.mxu0 %v2879
          %3498 = vmatpush.bf16.msra.mxu0 %v2871
          %3499 = vmatpush.bf16.msra.mxu0 %v2863
          %3500 = vmatpush.bf16.msra.mxu0 %v2855
          %3501 = vmatpush.bf16.msra.mxu0 %v2847
          %3502 = vmatpush.bf16.msra.mxu0 %v2839
          %3503 = vmatpush.bf16.msra.mxu0 %v2831
          %3504 = vmatmul.bf16.gmra.mxu0 %v1782
          %v3505 = vpop.f32.mrf.mxu0
          %v3506 = vadd.f32 %v2047, %v3505
          %v3507 = vpop.f32.mrf.mxu0
          %3508 = vdwg.mxu0
          %3509 = vmatpush.bf16.msra.mxu0 %v2951
          %3510 = vmatpush.bf16.msra.mxu0 %v2943
          %3511 = vmatpush.bf16.msra.mxu0 %v2935
          %3512 = vmatpush.bf16.msra.mxu0 %v2927
          %3513 = vmatpush.bf16.msra.mxu0 %v2919
          %3514 = vmatpush.bf16.msra.mxu0 %v2911
          %3515 = vmatpush.bf16.msra.mxu0 %v2903
          %3516 = vmatpush.bf16.msra.mxu0 %v2895
          %3517 = vmatmul.bf16.gmra.mxu0 %v1783
          %v3518 = vpop.f32.mrf.mxu0
          %v3519 = vadd.f32 %v3506, %v3518
          %v3520 = vpop.f32.mrf.mxu0
          %3521 = vdwg.mxu0
          %3522 = vmatpush.bf16.msra.mxu0 %v3015
          %3523 = vmatpush.bf16.msra.mxu0 %v3007
          %3524 = vmatpush.bf16.msra.mxu0 %v2999
          %3525 = vmatpush.bf16.msra.mxu0 %v2991
          %3526 = vmatpush.bf16.msra.mxu0 %v2983
          %3527 = vmatpush.bf16.msra.mxu0 %v2975
          %3528 = vmatpush.bf16.msra.mxu0 %v2967
          %3529 = vmatpush.bf16.msra.mxu0 %v2959
          %3530 = vmatmul.bf16.gmra.mxu0 %v1784
          %v3531 = vpop.f32.mrf.mxu0
          %v3532 = vadd.f32 %v3519, %v3531
          %v3533 = vpop.f32.mrf.mxu0
          %3534 = vdwg.mxu0
          %3535 = vmatpush.bf16.msra.mxu0 %v3079
          %3536 = vmatpush.bf16.msra.mxu0 %v3071
          %3537 = vmatpush.bf16.msra.mxu0 %v3063
          %3538 = vmatpush.bf16.msra.mxu0 %v3055
          %3539 = vmatpush.bf16.msra.mxu0 %v3047
          %3540 = vmatpush.bf16.msra.mxu0 %v3039
          %3541 = vmatpush.bf16.msra.mxu0 %v3031
          %3542 = vmatpush.bf16.msra.mxu0 %v3023
          %3543 = vmatmul.bf16.gmra.mxu0 %v1785
          %v3544 = vpop.f32.mrf.mxu0
          %v3545 = vadd.f32 %v3532, %v3544
          %v3546 = vpop.f32.mrf.mxu0
          %3547 = vdwg.mxu0
          %3548 = vmatpush.bf16.msra.mxu0 %v2888
          %3549 = vmatpush.bf16.msra.mxu0 %v2880
          %3550 = vmatpush.bf16.msra.mxu0 %v2872
          %3551 = vmatpush.bf16.msra.mxu0 %v2864
          %3552 = vmatpush.bf16.msra.mxu0 %v2856
          %3553 = vmatpush.bf16.msra.mxu0 %v2848
          %3554 = vmatpush.bf16.msra.mxu0 %v2840
          %3555 = vmatpush.bf16.msra.mxu0 %v2832
          %3556 = vmatmul.bf16.gmra.mxu0 %v1782
          %v3557 = vpop.f32.mrf.mxu0
          %v3558 = vadd.f32 %v2048, %v3557
          %v3559 = vpop.f32.mrf.mxu0
          %3560 = vdwg.mxu0
          %3561 = vmatpush.bf16.msra.mxu0 %v2952
          %3562 = vmatpush.bf16.msra.mxu0 %v2944
          %3563 = vmatpush.bf16.msra.mxu0 %v2936
          %3564 = vmatpush.bf16.msra.mxu0 %v2928
          %3565 = vmatpush.bf16.msra.mxu0 %v2920
          %3566 = vmatpush.bf16.msra.mxu0 %v2912
          %3567 = vmatpush.bf16.msra.mxu0 %v2904
          %3568 = vmatpush.bf16.msra.mxu0 %v2896
          %3569 = vmatmul.bf16.gmra.mxu0 %v1783
          %v3570 = vpop.f32.mrf.mxu0
          %v3571 = vadd.f32 %v3558, %v3570
          %v3572 = vpop.f32.mrf.mxu0
          %3573 = vdwg.mxu0
          %3574 = vmatpush.bf16.msra.mxu0 %v3016
          %3575 = vmatpush.bf16.msra.mxu0 %v3008
          %3576 = vmatpush.bf16.msra.mxu0 %v3000
          %3577 = vmatpush.bf16.msra.mxu0 %v2992
          %3578 = vmatpush.bf16.msra.mxu0 %v2984
          %3579 = vmatpush.bf16.msra.mxu0 %v2976
          %3580 = vmatpush.bf16.msra.mxu0 %v2968
          %3581 = vmatpush.bf16.msra.mxu0 %v2960
          %3582 = vmatmul.bf16.gmra.mxu0 %v1784
          %v3583 = vpop.f32.mrf.mxu0
          %v3584 = vadd.f32 %v3571, %v3583
          %v3585 = vpop.f32.mrf.mxu0
          %3586 = vdwg.mxu0
          %3587 = vmatpush.bf16.msra.mxu0 %v3080
          %3588 = vmatpush.bf16.msra.mxu0 %v3072
          %3589 = vmatpush.bf16.msra.mxu0 %v3064
          %3590 = vmatpush.bf16.msra.mxu0 %v3056
          %3591 = vmatpush.bf16.msra.mxu0 %v3048
          %3592 = vmatpush.bf16.msra.mxu0 %v3040
          %3593 = vmatpush.bf16.msra.mxu0 %v3032
          %3594 = vmatpush.bf16.msra.mxu0 %v3024
          %3595 = vmatmul.bf16.gmra.mxu0 %v1785
          %v3596 = vpop.f32.mrf.mxu0
          %v3597 = vadd.f32 %v3584, %v3596
          %v3598 = vpop.f32.mrf.mxu0
          %3599 = vdwg.mxu0
          %3600 = vmatpush.bf16.msra.mxu0 %v2889
          %3601 = vmatpush.bf16.msra.mxu0 %v2881
          %3602 = vmatpush.bf16.msra.mxu0 %v2873
          %3603 = vmatpush.bf16.msra.mxu0 %v2865
          %3604 = vmatpush.bf16.msra.mxu0 %v2857
          %3605 = vmatpush.bf16.msra.mxu0 %v2849
          %3606 = vmatpush.bf16.msra.mxu0 %v2841
          %3607 = vmatpush.bf16.msra.mxu0 %v2833
          %3608 = vmatmul.bf16.gmra.mxu0 %v1782
          %v3609 = vpop.f32.mrf.mxu0
          %v3610 = vadd.f32 %v2049, %v3609
          %v3611 = vpop.f32.mrf.mxu0
          %3612 = vdwg.mxu0
          %3613 = vmatpush.bf16.msra.mxu0 %v2953
          %3614 = vmatpush.bf16.msra.mxu0 %v2945
          %3615 = vmatpush.bf16.msra.mxu0 %v2937
          %3616 = vmatpush.bf16.msra.mxu0 %v2929
          %3617 = vmatpush.bf16.msra.mxu0 %v2921
          %3618 = vmatpush.bf16.msra.mxu0 %v2913
          %3619 = vmatpush.bf16.msra.mxu0 %v2905
          %3620 = vmatpush.bf16.msra.mxu0 %v2897
          %3621 = vmatmul.bf16.gmra.mxu0 %v1783
          %v3622 = vpop.f32.mrf.mxu0
          %v3623 = vadd.f32 %v3610, %v3622
          %v3624 = vpop.f32.mrf.mxu0
          %3625 = vdwg.mxu0
          %3626 = vmatpush.bf16.msra.mxu0 %v3017
          %3627 = vmatpush.bf16.msra.mxu0 %v3009
          %3628 = vmatpush.bf16.msra.mxu0 %v3001
          %3629 = vmatpush.bf16.msra.mxu0 %v2993
          %3630 = vmatpush.bf16.msra.mxu0 %v2985
          %3631 = vmatpush.bf16.msra.mxu0 %v2977
          %3632 = vmatpush.bf16.msra.mxu0 %v2969
          %3633 = vmatpush.bf16.msra.mxu0 %v2961
          %3634 = vmatmul.bf16.gmra.mxu0 %v1784
          %v3635 = vpop.f32.mrf.mxu0
          %v3636 = vadd.f32 %v3623, %v3635
          %v3637 = vpop.f32.mrf.mxu0
          %3638 = vdwg.mxu0
          %3639 = vmatpush.bf16.msra.mxu0 %v3081
          %3640 = vmatpush.bf16.msra.mxu0 %v3073
          %3641 = vmatpush.bf16.msra.mxu0 %v3065
          %3642 = vmatpush.bf16.msra.mxu0 %v3057
          %3643 = vmatpush.bf16.msra.mxu0 %v3049
          %3644 = vmatpush.bf16.msra.mxu0 %v3041
          %3645 = vmatpush.bf16.msra.mxu0 %v3033
          %3646 = vmatpush.bf16.msra.mxu0 %v3025
          %3647 = vmatmul.bf16.gmra.mxu0 %v1785
          %v3648 = vpop.f32.mrf.mxu0
          %v3649 = vadd.f32 %v3636, %v3648
          %v3650 = vpop.f32.mrf.mxu0
          %3651 = vdwg.mxu0
          %3652 = vmatpush.bf16.msra.mxu0 %v2890
          %3653 = vmatpush.bf16.msra.mxu0 %v2882
          %3654 = vmatpush.bf16.msra.mxu0 %v2874
          %3655 = vmatpush.bf16.msra.mxu0 %v2866
          %3656 = vmatpush.bf16.msra.mxu0 %v2858
          %3657 = vmatpush.bf16.msra.mxu0 %v2850
          %3658 = vmatpush.bf16.msra.mxu0 %v2842
          %3659 = vmatpush.bf16.msra.mxu0 %v2834
          %3660 = vmatmul.bf16.gmra.mxu0 %v1782
          %v3661 = vpop.f32.mrf.mxu0
          %v3662 = vadd.f32 %v2050, %v3661
          %v3663 = vpop.f32.mrf.mxu0
          %3664 = vdwg.mxu0
          %3665 = vmatpush.bf16.msra.mxu0 %v2954
          %3666 = vmatpush.bf16.msra.mxu0 %v2946
          %3667 = vmatpush.bf16.msra.mxu0 %v2938
          %3668 = vmatpush.bf16.msra.mxu0 %v2930
          %3669 = vmatpush.bf16.msra.mxu0 %v2922
          %3670 = vmatpush.bf16.msra.mxu0 %v2914
          %3671 = vmatpush.bf16.msra.mxu0 %v2906
          %3672 = vmatpush.bf16.msra.mxu0 %v2898
          %3673 = vmatmul.bf16.gmra.mxu0 %v1783
          %v3674 = vpop.f32.mrf.mxu0
          %v3675 = vadd.f32 %v3662, %v3674
          %v3676 = vpop.f32.mrf.mxu0
          %3677 = vdwg.mxu0
          %3678 = vmatpush.bf16.msra.mxu0 %v3018
          %3679 = vmatpush.bf16.msra.mxu0 %v3010
          %3680 = vmatpush.bf16.msra.mxu0 %v3002
          %3681 = vmatpush.bf16.msra.mxu0 %v2994
          %3682 = vmatpush.bf16.msra.mxu0 %v2986
          %3683 = vmatpush.bf16.msra.mxu0 %v2978
          %3684 = vmatpush.bf16.msra.mxu0 %v2970
          %3685 = vmatpush.bf16.msra.mxu0 %v2962
          %3686 = vmatmul.bf16.gmra.mxu0 %v1784
          %v3687 = vpop.f32.mrf.mxu0
          %v3688 = vadd.f32 %v3675, %v3687
          %v3689 = vpop.f32.mrf.mxu0
          %3690 = vdwg.mxu0
          %3691 = vmatpush.bf16.msra.mxu0 %v3082
          %3692 = vmatpush.bf16.msra.mxu0 %v3074
          %3693 = vmatpush.bf16.msra.mxu0 %v3066
          %3694 = vmatpush.bf16.msra.mxu0 %v3058
          %3695 = vmatpush.bf16.msra.mxu0 %v3050
          %3696 = vmatpush.bf16.msra.mxu0 %v3042
          %3697 = vmatpush.bf16.msra.mxu0 %v3034
          %3698 = vmatpush.bf16.msra.mxu0 %v3026
          %3699 = vmatmul.bf16.gmra.mxu0 %v1785
          %v3700 = vpop.f32.mrf.mxu0
          %v3701 = vadd.f32 %v3688, %v3700
          %v3702 = vpop.f32.mrf.mxu0
          %3703 = vdwg.mxu0
          %3704 = vmatpush.bf16.msra.mxu0 %v2891
          %3705 = vmatpush.bf16.msra.mxu0 %v2883
          %3706 = vmatpush.bf16.msra.mxu0 %v2875
          %3707 = vmatpush.bf16.msra.mxu0 %v2867
          %3708 = vmatpush.bf16.msra.mxu0 %v2859
          %3709 = vmatpush.bf16.msra.mxu0 %v2851
          %3710 = vmatpush.bf16.msra.mxu0 %v2843
          %3711 = vmatpush.bf16.msra.mxu0 %v2835
          %3712 = vmatmul.bf16.gmra.mxu0 %v1782
          %v3713 = vpop.f32.mrf.mxu0
          %v3714 = vadd.f32 %v2051, %v3713
          %v3715 = vpop.f32.mrf.mxu0
          %3716 = vdwg.mxu0
          %3717 = vmatpush.bf16.msra.mxu0 %v2955
          %3718 = vmatpush.bf16.msra.mxu0 %v2947
          %3719 = vmatpush.bf16.msra.mxu0 %v2939
          %3720 = vmatpush.bf16.msra.mxu0 %v2931
          %3721 = vmatpush.bf16.msra.mxu0 %v2923
          %3722 = vmatpush.bf16.msra.mxu0 %v2915
          %3723 = vmatpush.bf16.msra.mxu0 %v2907
          %3724 = vmatpush.bf16.msra.mxu0 %v2899
          %3725 = vmatmul.bf16.gmra.mxu0 %v1783
          %v3726 = vpop.f32.mrf.mxu0
          %v3727 = vadd.f32 %v3714, %v3726
          %v3728 = vpop.f32.mrf.mxu0
          %3729 = vdwg.mxu0
          %3730 = vmatpush.bf16.msra.mxu0 %v3019
          %3731 = vmatpush.bf16.msra.mxu0 %v3011
          %3732 = vmatpush.bf16.msra.mxu0 %v3003
          %3733 = vmatpush.bf16.msra.mxu0 %v2995
          %3734 = vmatpush.bf16.msra.mxu0 %v2987
          %3735 = vmatpush.bf16.msra.mxu0 %v2979
          %3736 = vmatpush.bf16.msra.mxu0 %v2971
          %3737 = vmatpush.bf16.msra.mxu0 %v2963
          %3738 = vmatmul.bf16.gmra.mxu0 %v1784
          %v3739 = vpop.f32.mrf.mxu0
          %v3740 = vadd.f32 %v3727, %v3739
          %v3741 = vpop.f32.mrf.mxu0
          %3742 = vdwg.mxu0
          %3743 = vmatpush.bf16.msra.mxu0 %v3083
          %3744 = vmatpush.bf16.msra.mxu0 %v3075
          %3745 = vmatpush.bf16.msra.mxu0 %v3067
          %3746 = vmatpush.bf16.msra.mxu0 %v3059
          %3747 = vmatpush.bf16.msra.mxu0 %v3051
          %3748 = vmatpush.bf16.msra.mxu0 %v3043
          %3749 = vmatpush.bf16.msra.mxu0 %v3035
          %3750 = vmatpush.bf16.msra.mxu0 %v3027
          %3751 = vmatmul.bf16.gmra.mxu0 %v1785
          %v3752 = vpop.f32.mrf.mxu0
          %v3753 = vadd.f32 %v3740, %v3752
          %v3754 = vpop.f32.mrf.mxu0
          %3755 = vdwg.mxu0
          %v3756 = vrot.slane %v3389, 4
          %v3757 = vadd.f32 %v3389, %v3756
          %v3758 = vrot.slane %v3757, 2
          %v3759 = vadd.f32 %v3757, %v3758
          %v3760 = vrot.slane %v3759, 1
          %v3761 = vadd.f32 %v3759, %v3760
          %v3762 = vrot.slane %v3441, 4
          %v3763 = vadd.f32 %v3441, %v3762
          %v3764 = vrot.slane %v3763, 2
          %v3765 = vadd.f32 %v3763, %v3764
          %v3766 = vrot.slane %v3765, 1
          %v3767 = vadd.f32 %v3765, %v3766
          %v3768 = vrot.slane %v3493, 4
          %v3769 = vadd.f32 %v3493, %v3768
          %v3770 = vrot.slane %v3769, 2
          %v3771 = vadd.f32 %v3769, %v3770
          %v3772 = vrot.slane %v3771, 1
          %v3773 = vadd.f32 %v3771, %v3772
          %v3774 = vrot.slane %v3545, 4
          %v3775 = vadd.f32 %v3545, %v3774
          %v3776 = vrot.slane %v3775, 2
          %v3777 = vadd.f32 %v3775, %v3776
          %v3778 = vrot.slane %v3777, 1
          %v3779 = vadd.f32 %v3777, %v3778
          %v3780 = vrot.slane %v3597, 4
          %v3781 = vadd.f32 %v3597, %v3780
          %v3782 = vrot.slane %v3781, 2
          %v3783 = vadd.f32 %v3781, %v3782
          %v3784 = vrot.slane %v3783, 1
          %v3785 = vadd.f32 %v3783, %v3784
          %v3786 = vrot.slane %v3649, 4
          %v3787 = vadd.f32 %v3649, %v3786
          %v3788 = vrot.slane %v3787, 2
          %v3789 = vadd.f32 %v3787, %v3788
          %v3790 = vrot.slane %v3789, 1
          %v3791 = vadd.f32 %v3789, %v3790
          %v3792 = vrot.slane %v3701, 4
          %v3793 = vadd.f32 %v3701, %v3792
          %v3794 = vrot.slane %v3793, 2
          %v3795 = vadd.f32 %v3793, %v3794
          %v3796 = vrot.slane %v3795, 1
          %v3797 = vadd.f32 %v3795, %v3796
          %v3798 = vrot.slane %v3753, 4
          %v3799 = vadd.f32 %v3753, %v3798
          %v3800 = vrot.slane %v3799, 2
          %v3801 = vadd.f32 %v3799, %v3800
          %v3802 = vrot.slane %v3801, 1
          %v3803 = vadd.f32 %v3801, %v3802
          %v3804 = vmul.f32 %v3761, %v1069
          %v3805 = vmul.f32 %v3767, %v1069
          %v3806 = vmul.f32 %v3773, %v1069
          %v3807 = vmul.f32 %v3779, %v1069
          %v3808 = vmul.f32 %v3785, %v1069
          %v3809 = vmul.f32 %v3791, %v1069
          %v3810 = vmul.f32 %v3797, %v1069
          %v3811 = vmul.f32 %v3803, %v1069
          %v3812 = vsub.f32 %v3389, %v3804
          %v3813 = vsub.f32 %v3441, %v3805
          %v3814 = vsub.f32 %v3493, %v3806
          %v3815 = vsub.f32 %v3545, %v3807
          %v3816 = vsub.f32 %v3597, %v3808
          %v3817 = vsub.f32 %v3649, %v3809
          %v3818 = vsub.f32 %v3701, %v3810
          %v3819 = vsub.f32 %v3753, %v3811
          %v3820 = vmul.f32 %v3812, %v3812
          %v3821 = vmul.f32 %v3813, %v3813
          %v3822 = vmul.f32 %v3814, %v3814
          %v3823 = vmul.f32 %v3815, %v3815
          %v3824 = vmul.f32 %v3816, %v3816
          %v3825 = vmul.f32 %v3817, %v3817
          %v3826 = vmul.f32 %v3818, %v3818
          %v3827 = vmul.f32 %v3819, %v3819
          %v3828 = vrot.slane %v3820, 4
          %v3829 = vadd.f32 %v3820, %v3828
          %v3830 = vrot.slane %v3829, 2
          %v3831 = vadd.f32 %v3829, %v3830
          %v3832 = vrot.slane %v3831, 1
          %v3833 = vadd.f32 %v3831, %v3832
          %v3834 = vrot.slane %v3821, 4
          %v3835 = vadd.f32 %v3821, %v3834
          %v3836 = vrot.slane %v3835, 2
          %v3837 = vadd.f32 %v3835, %v3836
          %v3838 = vrot.slane %v3837, 1
          %v3839 = vadd.f32 %v3837, %v3838
          %v3840 = vrot.slane %v3822, 4
          %v3841 = vadd.f32 %v3822, %v3840
          %v3842 = vrot.slane %v3841, 2
          %v3843 = vadd.f32 %v3841, %v3842
          %v3844 = vrot.slane %v3843, 1
          %v3845 = vadd.f32 %v3843, %v3844
          %v3846 = vrot.slane %v3823, 4
          %v3847 = vadd.f32 %v3823, %v3846
          %v3848 = vrot.slane %v3847, 2
          %v3849 = vadd.f32 %v3847, %v3848
          %v3850 = vrot.slane %v3849, 1
          %v3851 = vadd.f32 %v3849, %v3850
          %v3852 = vrot.slane %v3824, 4
          %v3853 = vadd.f32 %v3824, %v3852
          %v3854 = vrot.slane %v3853, 2
          %v3855 = vadd.f32 %v3853, %v3854
          %v3856 = vrot.slane %v3855, 1
          %v3857 = vadd.f32 %v3855, %v3856
          %v3858 = vrot.slane %v3825, 4
          %v3859 = vadd.f32 %v3825, %v3858
          %v3860 = vrot.slane %v3859, 2
          %v3861 = vadd.f32 %v3859, %v3860
          %v3862 = vrot.slane %v3861, 1
          %v3863 = vadd.f32 %v3861, %v3862
          %v3864 = vrot.slane %v3826, 4
          %v3865 = vadd.f32 %v3826, %v3864
          %v3866 = vrot.slane %v3865, 2
          %v3867 = vadd.f32 %v3865, %v3866
          %v3868 = vrot.slane %v3867, 1
          %v3869 = vadd.f32 %v3867, %v3868
          %v3870 = vrot.slane %v3827, 4
          %v3871 = vadd.f32 %v3827, %v3870
          %v3872 = vrot.slane %v3871, 2
          %v3873 = vadd.f32 %v3871, %v3872
          %v3874 = vrot.slane %v3873, 1
          %v3875 = vadd.f32 %v3873, %v3874
          %v3876 = vmul.f32 %v3833, %v1069
          %v3877 = vmul.f32 %v3839, %v1069
          %v3878 = vmul.f32 %v3845, %v1069
          %v3879 = vmul.f32 %v3851, %v1069
          %v3880 = vmul.f32 %v3857, %v1069
          %v3881 = vmul.f32 %v3863, %v1069
          %v3882 = vmul.f32 %v3869, %v1069
          %v3883 = vmul.f32 %v3875, %v1069
          %v3884 = vadd.f32 %v3876, 0.8
          %v3885 = vadd.f32 %v3877, 0.8
          %v3886 = vadd.f32 %v3878, 0.8
          %v3887 = vadd.f32 %v3879, 0.8
          %v3888 = vadd.f32 %v3880, 0.8
          %v3889 = vadd.f32 %v3881, 0.8
          %v3890 = vadd.f32 %v3882, 0.8
          %v3891 = vadd.f32 %v3883, 0.8
          %v3892 = vrsqrt.pop %v3884
          %v3893 = vmul.f32 %v3892, %v3884
          %v3894 = vmul.f32 %v3893, %v3892
          %v3895 = vmul.f32 0.5, %v3894
          %v3896 = vsub.f32 1.5, %v3895
          %v3897 = vmul.f32 %v3892, %v3896
          %vm3898 = vweird.f32 %v3884
          %vm3899 = vweird.f32 %v3892
          %vm3900 = vmor %vm3898, %vm3899
          %v3901 = vsel %vm3900, %v3892, %v3897
          %v3902 = vrsqrt.pop %v3885
          %v3903 = vmul.f32 %v3902, %v3885
          %v3904 = vmul.f32 %v3903, %v3902
          %v3905 = vmul.f32 0.5, %v3904
          %v3906 = vsub.f32 1.5, %v3905
          %v3907 = vmul.f32 %v3902, %v3906
          %vm3908 = vweird.f32 %v3885
          %vm3909 = vweird.f32 %v3902
          %vm3910 = vmor %vm3908, %vm3909
          %v3911 = vsel %vm3910, %v3902, %v3907
          %v3912 = vrsqrt.pop %v3886
          %v3913 = vmul.f32 %v3912, %v3886
          %v3914 = vmul.f32 %v3913, %v3912
          %v3915 = vmul.f32 0.5, %v3914
          %v3916 = vsub.f32 1.5, %v3915
          %v3917 = vmul.f32 %v3912, %v3916
          %vm3918 = vweird.f32 %v3886
          %vm3919 = vweird.f32 %v3912
          %vm3920 = vmor %vm3918, %vm3919
          %v3921 = vsel %vm3920, %v3912, %v3917
          %v3922 = vrsqrt.pop %v3887
          %v3923 = vmul.f32 %v3922, %v3887
          %v3924 = vmul.f32 %v3923, %v3922
          %v3925 = vmul.f32 0.5, %v3924
          %v3926 = vsub.f32 1.5, %v3925
          %v3927 = vmul.f32 %v3922, %v3926
          %vm3928 = vweird.f32 %v3887
          %vm3929 = vweird.f32 %v3922
          %vm3930 = vmor %vm3928, %vm3929
          %v3931 = vsel %vm3930, %v3922, %v3927
          %v3932 = vrsqrt.pop %v3888
          %v3933 = vmul.f32 %v3932, %v3888
          %v3934 = vmul.f32 %v3933, %v3932
          %v3935 = vmul.f32 0.5, %v3934
          %v3936 = vsub.f32 1.5, %v3935
          %v3937 = vmul.f32 %v3932, %v3936
          %vm3938 = vweird.f32 %v3888
          %vm3939 = vweird.f32 %v3932
          %vm3940 = vmor %vm3938, %vm3939
          %v3941 = vsel %vm3940, %v3932, %v3937
          %v3942 = vrsqrt.pop %v3889
          %v3943 = vmul.f32 %v3942, %v3889
          %v3944 = vmul.f32 %v3943, %v3942
          %v3945 = vmul.f32 0.5, %v3944
          %v3946 = vsub.f32 1.5, %v3945
          %v3947 = vmul.f32 %v3942, %v3946
          %vm3948 = vweird.f32 %v3889
          %vm3949 = vweird.f32 %v3942
          %vm3950 = vmor %vm3948, %vm3949
          %v3951 = vsel %vm3950, %v3942, %v3947
          %v3952 = vrsqrt.pop %v3890
          %v3953 = vmul.f32 %v3952, %v3890
          %v3954 = vmul.f32 %v3953, %v3952
          %v3955 = vmul.f32 0.5, %v3954
          %v3956 = vsub.f32 1.5, %v3955
          %v3957 = vmul.f32 %v3952, %v3956
          %vm3958 = vweird.f32 %v3890
          %vm3959 = vweird.f32 %v3952
          %vm3960 = vmor %vm3958, %vm3959
          %v3961 = vsel %vm3960, %v3952, %v3957
          %v3962 = vrsqrt.pop %v3891
          %v3963 = vmul.f32 %v3962, %v3891
          %v3964 = vmul.f32 %v3963, %v3962
          %v3965 = vmul.f32 0.5, %v3964
          %v3966 = vsub.f32 1.5, %v3965
          %v3967 = vmul.f32 %v3962, %v3966
          %vm3968 = vweird.f32 %v3891
          %vm3969 = vweird.f32 %v3962
          %vm3970 = vmor %vm3968, %vm3969
          %v3971 = vsel %vm3970, %v3962, %v3967
          %v3972 = vmul.f32 %v3812, %v3901
          %v3973 = vmul.f32 %v3813, %v3911
          %v3974 = vmul.f32 %v3814, %v3921
          %v3975 = vmul.f32 %v3815, %v3931
          %v3976 = vmul.f32 %v3816, %v3941
          %v3977 = vmul.f32 %v3817, %v3951
          %v3978 = vmul.f32 %v3818, %v3961
          %v3979 = vmul.f32 %v3819, %v3971
          %v3980 = vld [vmem:[#allocation23] sm:$0xff]
          %v3982 = vperm.slane %v3980, 0
          %v3983 = vperm.slane %v3980, 1
          %v3984 = vperm.slane %v3980, 2
          %v3985 = vperm.slane %v3980, 3
          %v3986 = vperm.slane %v3980, 4
          %v3987 = vperm.slane %v3980, 5
          %v3988 = vperm.slane %v3980, 6
          %v3989 = vperm.slane %v3980, 7
          %v3998 = vmul.f32 %v3972, %v3982
          %v3999 = vmul.f32 %v3973, %v3983
          %v4000 = vmul.f32 %v3974, %v3984
          %v4001 = vmul.f32 %v3975, %v3985
          %v4002 = vmul.f32 %v3976, %v3986
          %v4003 = vmul.f32 %v3977, %v3987
          %v4004 = vmul.f32 %v3978, %v3988
          %v4005 = vmul.f32 %v3979, %v3989
          %v4006 = vld [vmem:[#allocation25] sm:$0xff]
          %v4008 = vperm.slane %v4006, 0
          %v4009 = vperm.slane %v4006, 1
          %v4010 = vperm.slane %v4006, 2
          %v4011 = vperm.slane %v4006, 3
          %v4012 = vperm.slane %v4006, 4
          %v4013 = vperm.slane %v4006, 5
          %v4014 = vperm.slane %v4006, 6
          %v4015 = vperm.slane %v4006, 7
          %v4024 = vadd.f32 %v3998, %v4008
          %v4025 = vadd.f32 %v3999, %v4009
          %v4026 = vadd.f32 %v4000, %v4010
          %v4027 = vadd.f32 %v4001, %v4011
          %v4028 = vadd.f32 %v4002, %v4012
          %v4029 = vadd.f32 %v4003, %v4013
          %v4030 = vadd.f32 %v4004, %v4014
          %v4031 = vadd.f32 %v4005, %v4015
          %v4032 = vmul.f32 %v4024, 0.2
          %v4033 = vmul.f32 %v4025, 0.2
          %v4034 = vmul.f32 %v4026, 0.2
          %v4035 = vmul.f32 %v4027, 0.2
          %v4036 = vmul.f32 %v4028, 0.2
          %v4037 = vmul.f32 %v4029, 0.2
          %v4038 = vmul.f32 %v4030, 0.2
          %v4039 = vmul.f32 %v4031, 0.2
          %v4040 = vmax.f32 %v4024, %v4032
          %v4041 = vmax.f32 %v4025, %v4033
          %v4042 = vmax.f32 %v4026, %v4034
          %v4043 = vmax.f32 %v4027, %v4035
          %v4044 = vmax.f32 %v4028, %v4036
          %v4045 = vmax.f32 %v4029, %v4037
          %v4046 = vmax.f32 %v4030, %v4038
          %v4047 = vmax.f32 %v4031, %v4039
          %v4048 = vpack.c.bf16 %v4041, %v4040
          %v4049 = vpack.c.bf16 %v4043, %v4042
          %v4050 = vpack.c.bf16 %v4045, %v4044
          %v4051 = vpack.c.bf16 %v4047, %v4046
          %4052 = vst [vmem:[#allocation2] sm:$0xff] %v4048
          %4053 = vst [vmem:[#allocation2 + $0x8] sm:$0xff] %v4049
          %4054 = vst [vmem:[#allocation2 + $0x10] sm:$0xff] %v4050
          %4055 = vst [vmem:[#allocation2 + $0x18] sm:$0xff] %v4051
        $region160: #{generator_forward.1} parent=87 // pred_fallthru
          _
        %v4056 = vld [vmem:[#allocation2] sm:$0xff]
        %v4057 = vld [vmem:[#allocation2 + $0x8] sm:$0xff]
        %v4058 = vld [vmem:[#allocation2 + $0x10] sm:$0xff]
        %v4059 = vld [vmem:[#allocation2 + $0x18] sm:$0xff]
        %v4060 = vld [vmem:[%s761] sm:$0xff]
        %v4061 = vld [vmem:[%s761 + $0x8] sm:$0xff]
        %v4062 = vld [vmem:[%s761 + $0x10] sm:$0xff]
        %v4063 = vld [vmem:[%s761 + $0x18] sm:$0xf]
        %v4064 = vld [vmem:[%s761 + $0x1c] sm:$0xff]
        %v4065 = vld [vmem:[%s761 + $0x24] sm:$0xff]
        %v4066 = vld [vmem:[%s761 + $0x2c] sm:$0xff]
        %v4067 = vld [vmem:[%s761 + $0x34] sm:$0xf]
        %v4068 = vld [vmem:[%s761 + $0x38] sm:$0xff]
        %v4069 = vld [vmem:[%s761 + $0x40] sm:$0xff]
        %v4070 = vld [vmem:[%s761 + $0x48] sm:$0xff]
        %v4071 = vld [vmem:[%s761 + $0x50] sm:$0xf]
        %v4072 = vld [vmem:[%s761 + $0x54] sm:$0xff]
        %v4073 = vld [vmem:[%s761 + $0x5c] sm:$0xff]
        %v4074 = vld [vmem:[%s761 + $0x64] sm:$0xff]
        %v4075 = vld [vmem:[%s761 + $0x6c] sm:$0xf]
        %v4076 = vld [vmem:[%s761 + $0x70] sm:$0xff]
        %v4077 = vld [vmem:[%s761 + $0x78] sm:$0xff]
        %v4078 = vld [vmem:[%s761 + $0x80] sm:$0xff]
        %v4079 = vld [vmem:[%s761 + $0x88] sm:$0xf]
        %v4080 = vld [vmem:[%s761 + $0x8c] sm:$0xff]
        %v4081 = vld [vmem:[%s761 + $0x94] sm:$0xff]
        %v4082 = vld [vmem:[%s761 + $0x9c] sm:$0xff]
        %v4083 = vld [vmem:[%s761 + $0xa4] sm:$0xf]
        %v4084 = vld [vmem:[%s761 + $0xa8] sm:$0xff]
        %v4085 = vld [vmem:[%s761 + $0xb0] sm:$0xff]
        %v4086 = vld [vmem:[%s761 + $0xb8] sm:$0xff]
        %v4087 = vld [vmem:[%s761 + $0xc0] sm:$0xf]
        %v4088 = vld [vmem:[%s761 + $0xc4] sm:$0xff]
        %v4089 = vld [vmem:[%s761 + $0xcc] sm:$0xff]
        %v4090 = vld [vmem:[%s761 + $0xd4] sm:$0xff]
        %v4091 = vld [vmem:[%s761 + $0xdc] sm:$0xf]
        %v4092 = vld [vmem:[%s761 + $0xe0] sm:$0xff]
        %v4093 = vld [vmem:[%s761 + $0xe8] sm:$0xff]
        %v4094 = vld [vmem:[%s761 + $0xf0] sm:$0xff]
        %v4095 = vld [vmem:[%s761 + $0xf8] sm:$0xf]
        %v4096 = vld [vmem:[%s761 + $0xfc] sm:$0xff]
        %v4097 = vld [vmem:[%s761 + $0x104] sm:$0xff]
        %v4098 = vld [vmem:[%s761 + $0x10c] sm:$0xff]
        %v4099 = vld [vmem:[%s761 + $0x114] sm:$0xf]
        %v4100 = vld [vmem:[%s761 + $0x118] sm:$0xff]
        %v4101 = vld [vmem:[%s761 + $0x120] sm:$0xff]
        %v4102 = vld [vmem:[%s761 + $0x128] sm:$0xff]
        %v4103 = vld [vmem:[%s761 + $0x130] sm:$0xf]
        %v4104 = vld [vmem:[%s761 + $0x134] sm:$0xff]
        %v4105 = vld [vmem:[%s761 + $0x13c] sm:$0xff]
        %v4106 = vld [vmem:[%s761 + $0x144] sm:$0xff]
        %v4107 = vld [vmem:[%s761 + $0x14c] sm:$0xf]
        %v4108 = vld [vmem:[%s761 + $0x150] sm:$0xff]
        %v4109 = vld [vmem:[%s761 + $0x158] sm:$0xff]
        %v4110 = vld [vmem:[%s761 + $0x160] sm:$0xff]
        %v4111 = vld [vmem:[%s761 + $0x168] sm:$0xf]
        %v4112 = vld [vmem:[%s761 + $0x16c] sm:$0xff]
        %v4113 = vld [vmem:[%s761 + $0x174] sm:$0xff]
        %v4114 = vld [vmem:[%s761 + $0x17c] sm:$0xff]
        %v4115 = vld [vmem:[%s761 + $0x184] sm:$0xf]
        %v4116 = vld [vmem:[%s761 + $0x188] sm:$0xff]
        %v4117 = vld [vmem:[%s761 + $0x190] sm:$0xff]
        %v4118 = vld [vmem:[%s761 + $0x198] sm:$0xff]
        %v4119 = vld [vmem:[%s761 + $0x1a0] sm:$0xf]
        %v4120 = vld [vmem:[%s761 + $0x1a4] sm:$0xff]
        %v4121 = vld [vmem:[%s761 + $0x1ac] sm:$0xff]
        %v4122 = vld [vmem:[%s761 + $0x1b4] sm:$0xff]
        %v4123 = vld [vmem:[%s761 + $0x1bc] sm:$0xf]
        %v4124 = vld [vmem:[%s761 + $0x1c0] sm:$0xff]
        %v4125 = vld [vmem:[%s761 + $0x1c8] sm:$0xff]
        %v4126 = vld [vmem:[%s761 + $0x1d0] sm:$0xff]
        %v4127 = vld [vmem:[%s761 + $0x1d8] sm:$0xf]
        %v4128 = vld [vmem:[%s761 + $0x1dc] sm:$0xff]
        %v4129 = vld [vmem:[%s761 + $0x1e4] sm:$0xff]
        %v4130 = vld [vmem:[%s761 + $0x1ec] sm:$0xff]
        %v4131 = vld [vmem:[%s761 + $0x1f4] sm:$0xf]
        %v4132 = vld [vmem:[%s761 + $0x1f8] sm:$0xff]
        %v4133 = vld [vmem:[%s761 + $0x200] sm:$0xff]
        %v4134 = vld [vmem:[%s761 + $0x208] sm:$0xff]
        %v4135 = vld [vmem:[%s761 + $0x210] sm:$0xf]
        %v4136 = vld [vmem:[%s761 + $0x214] sm:$0xff]
        %v4137 = vld [vmem:[%s761 + $0x21c] sm:$0xff]
        %v4138 = vld [vmem:[%s761 + $0x224] sm:$0xff]
        %v4139 = vld [vmem:[%s761 + $0x22c] sm:$0xf]
        %v4140 = vld [vmem:[%s761 + $0x230] sm:$0xff]
        %v4141 = vld [vmem:[%s761 + $0x238] sm:$0xff]
        %v4142 = vld [vmem:[%s761 + $0x240] sm:$0xff]
        %v4143 = vld [vmem:[%s761 + $0x248] sm:$0xf]
        %v4144 = vld [vmem:[%s761 + $0x24c] sm:$0xff]
        %v4145 = vld [vmem:[%s761 + $0x254] sm:$0xff]
        %v4146 = vld [vmem:[%s761 + $0x25c] sm:$0xff]
        %v4147 = vld [vmem:[%s761 + $0x264] sm:$0xf]
        %v4148 = vld [vmem:[%s761 + $0x268] sm:$0xff]
        %v4149 = vld [vmem:[%s761 + $0x270] sm:$0xff]
        %v4150 = vld [vmem:[%s761 + $0x278] sm:$0xff]
        %v4151 = vld [vmem:[%s761 + $0x280] sm:$0xf]
        %v4152 = vld [vmem:[%s761 + $0x284] sm:$0xff]
        %v4153 = vld [vmem:[%s761 + $0x28c] sm:$0xff]
        %v4154 = vld [vmem:[%s761 + $0x294] sm:$0xff]
        %v4155 = vld [vmem:[%s761 + $0x29c] sm:$0xf]
        %v4156 = vld [vmem:[%s761 + $0x2a0] sm:$0xff]
        %v4157 = vld [vmem:[%s761 + $0x2a8] sm:$0xff]
        %v4158 = vld [vmem:[%s761 + $0x2b0] sm:$0xff]
        %v4159 = vld [vmem:[%s761 + $0x2b8] sm:$0xf]
        %v4160 = vld [vmem:[%s761 + $0x2bc] sm:$0xff]
        %v4161 = vld [vmem:[%s761 + $0x2c4] sm:$0xff]
        %v4162 = vld [vmem:[%s761 + $0x2cc] sm:$0xff]
        %v4163 = vld [vmem:[%s761 + $0x2d4] sm:$0xf]
        %v4164 = vld [vmem:[%s761 + $0x2d8] sm:$0xff]
        %v4165 = vld [vmem:[%s761 + $0x2e0] sm:$0xff]
        %v4166 = vld [vmem:[%s761 + $0x2e8] sm:$0xff]
        %v4167 = vld [vmem:[%s761 + $0x2f0] sm:$0xf]
        %v4168 = vld [vmem:[%s761 + $0x2f4] sm:$0xff]
        %v4169 = vld [vmem:[%s761 + $0x2fc] sm:$0xff]
        %v4170 = vld [vmem:[%s761 + $0x304] sm:$0xff]
        %v4171 = vld [vmem:[%s761 + $0x30c] sm:$0xf]
        %v4172 = vld [vmem:[%s761 + $0x310] sm:$0xff]
        %v4173 = vld [vmem:[%s761 + $0x318] sm:$0xff]
        %v4174 = vld [vmem:[%s761 + $0x320] sm:$0xff]
        %v4175 = vld [vmem:[%s761 + $0x328] sm:$0xf]
        %v4176 = vld [vmem:[%s761 + $0x32c] sm:$0xff]
        %v4177 = vld [vmem:[%s761 + $0x334] sm:$0xff]
        %v4178 = vld [vmem:[%s761 + $0x33c] sm:$0xff]
        %v4179 = vld [vmem:[%s761 + $0x344] sm:$0xf]
        %v4180 = vld [vmem:[%s761 + $0x348] sm:$0xff]
        %v4181 = vld [vmem:[%s761 + $0x350] sm:$0xff]
        %v4182 = vld [vmem:[%s761 + $0x358] sm:$0xff]
        %v4183 = vld [vmem:[%s761 + $0x360] sm:$0xf]
        %v4184 = vld [vmem:[%s761 + $0x364] sm:$0xff]
        %v4185 = vld [vmem:[%s761 + $0x36c] sm:$0xff]
        %v4186 = vld [vmem:[%s761 + $0x374] sm:$0xff]
        %v4187 = vld [vmem:[%s761 + $0x37c] sm:$0xf]
        %v4188 = vld [vmem:[%s761 + $0x380] sm:$0xff]
        %v4189 = vld [vmem:[%s761 + $0x388] sm:$0xff]
        %v4190 = vld [vmem:[%s761 + $0x390] sm:$0xff]
        %v4191 = vld [vmem:[%s761 + $0x398] sm:$0xf]
        %v4192 = vld [vmem:[%s761 + $0x39c] sm:$0xff]
        %v4193 = vld [vmem:[%s761 + $0x3a4] sm:$0xff]
        %v4194 = vld [vmem:[%s761 + $0x3ac] sm:$0xff]
        %v4195 = vld [vmem:[%s761 + $0x3b4] sm:$0xf]
        %v4196 = vld [vmem:[%s761 + $0x3b8] sm:$0xff]
        %v4197 = vld [vmem:[%s761 + $0x3c0] sm:$0xff]
        %v4198 = vld [vmem:[%s761 + $0x3c8] sm:$0xff]
        %v4199 = vld [vmem:[%s761 + $0x3d0] sm:$0xf]
        %v4200 = vld [vmem:[%s761 + $0x3d4] sm:$0xff]
        %v4201 = vld [vmem:[%s761 + $0x3dc] sm:$0xff]
        %v4202 = vld [vmem:[%s761 + $0x3e4] sm:$0xff]
        %v4203 = vld [vmem:[%s761 + $0x3ec] sm:$0xf]
        %v4204 = vld [vmem:[%s761 + $0x3f0] sm:$0xff]
        %v4205 = vld [vmem:[%s761 + $0x3f8] sm:$0xff]
        %v4206 = vld [vmem:[%s761 + $0x400] sm:$0xff]
        %v4207 = vld [vmem:[%s761 + $0x408] sm:$0xf]
        %v4208 = vld [vmem:[%s761 + $0x40c] sm:$0xff]
        %v4209 = vld [vmem:[%s761 + $0x414] sm:$0xff]
        %v4210 = vld [vmem:[%s761 + $0x41c] sm:$0xff]
        %v4211 = vld [vmem:[%s761 + $0x424] sm:$0xf]
        %v4212 = vld [vmem:[%s761 + $0x428] sm:$0xff]
        %v4213 = vld [vmem:[%s761 + $0x430] sm:$0xff]
        %v4214 = vld [vmem:[%s761 + $0x438] sm:$0xff]
        %v4215 = vld [vmem:[%s761 + $0x440] sm:$0xf]
        %v4216 = vld [vmem:[%s761 + $0x444] sm:$0xff]
        %v4217 = vld [vmem:[%s761 + $0x44c] sm:$0xff]
        %v4218 = vld [vmem:[%s761 + $0x454] sm:$0xff]
        %v4219 = vld [vmem:[%s761 + $0x45c] sm:$0xf]
        %v4220 = vld [vmem:[%s761 + $0x460] sm:$0xff]
        %v4221 = vld [vmem:[%s761 + $0x468] sm:$0xff]
        %v4222 = vld [vmem:[%s761 + $0x470] sm:$0xff]
        %v4223 = vld [vmem:[%s761 + $0x478] sm:$0xf]
        %v4224 = vld [vmem:[%s761 + $0x47c] sm:$0xff]
        %v4225 = vld [vmem:[%s761 + $0x484] sm:$0xff]
        %v4226 = vld [vmem:[%s761 + $0x48c] sm:$0xff]
        %v4227 = vld [vmem:[%s761 + $0x494] sm:$0xf]
        %v4228 = vld [vmem:[%s761 + $0x498] sm:$0xff]
        %v4229 = vld [vmem:[%s761 + $0x4a0] sm:$0xff]
        %v4230 = vld [vmem:[%s761 + $0x4a8] sm:$0xff]
        %v4231 = vld [vmem:[%s761 + $0x4b0] sm:$0xf]
        %v4232 = vld [vmem:[%s761 + $0x4b4] sm:$0xff]
        %v4233 = vld [vmem:[%s761 + $0x4bc] sm:$0xff]
        %v4234 = vld [vmem:[%s761 + $0x4c4] sm:$0xff]
        %v4235 = vld [vmem:[%s761 + $0x4cc] sm:$0xf]
        %v4236 = vld [vmem:[%s761 + $0x4d0] sm:$0xff]
        %v4237 = vld [vmem:[%s761 + $0x4d8] sm:$0xff]
        %v4238 = vld [vmem:[%s761 + $0x4e0] sm:$0xff]
        %v4239 = vld [vmem:[%s761 + $0x4e8] sm:$0xf]
        %v4240 = vld [vmem:[%s761 + $0x4ec] sm:$0xff]
        %v4241 = vld [vmem:[%s761 + $0x4f4] sm:$0xff]
        %v4242 = vld [vmem:[%s761 + $0x4fc] sm:$0xff]
        %v4243 = vld [vmem:[%s761 + $0x504] sm:$0xf]
        %v4244 = vld [vmem:[%s761 + $0x508] sm:$0xff]
        %v4245 = vld [vmem:[%s761 + $0x510] sm:$0xff]
        %v4246 = vld [vmem:[%s761 + $0x518] sm:$0xff]
        %v4247 = vld [vmem:[%s761 + $0x520] sm:$0xf]
        %v4248 = vld [vmem:[%s761 + $0x524] sm:$0xff]
        %v4249 = vld [vmem:[%s761 + $0x52c] sm:$0xff]
        %v4250 = vld [vmem:[%s761 + $0x534] sm:$0xff]
        %v4251 = vld [vmem:[%s761 + $0x53c] sm:$0xf]
        %v4252 = vld [vmem:[%s761 + $0x540] sm:$0xff]
        %v4253 = vld [vmem:[%s761 + $0x548] sm:$0xff]
        %v4254 = vld [vmem:[%s761 + $0x550] sm:$0xff]
        %v4255 = vld [vmem:[%s761 + $0x558] sm:$0xf]
        %v4256 = vld [vmem:[%s761 + $0x55c] sm:$0xff]
        %v4257 = vld [vmem:[%s761 + $0x564] sm:$0xff]
        %v4258 = vld [vmem:[%s761 + $0x56c] sm:$0xff]
        %v4259 = vld [vmem:[%s761 + $0x574] sm:$0xf]
        %v4260 = vld [vmem:[%s761 + $0x578] sm:$0xff]
        %v4261 = vld [vmem:[%s761 + $0x580] sm:$0xff]
        %v4262 = vld [vmem:[%s761 + $0x588] sm:$0xff]
        %v4263 = vld [vmem:[%s761 + $0x590] sm:$0xf]
        %v4264 = vld [vmem:[%s761 + $0x594] sm:$0xff]
        %v4265 = vld [vmem:[%s761 + $0x59c] sm:$0xff]
        %v4266 = vld [vmem:[%s761 + $0x5a4] sm:$0xff]
        %v4267 = vld [vmem:[%s761 + $0x5ac] sm:$0xf]
        %v4268 = vld [vmem:[%s761 + $0x5b0] sm:$0xff]
        %v4269 = vld [vmem:[%s761 + $0x5b8] sm:$0xff]
        %v4270 = vld [vmem:[%s761 + $0x5c0] sm:$0xff]
        %v4271 = vld [vmem:[%s761 + $0x5c8] sm:$0xf]
        %v4272 = vld [vmem:[%s761 + $0x5cc] sm:$0xff]
        %v4273 = vld [vmem:[%s761 + $0x5d4] sm:$0xff]
        %v4274 = vld [vmem:[%s761 + $0x5dc] sm:$0xff]
        %v4275 = vld [vmem:[%s761 + $0x5e4] sm:$0xf]
        %v4276 = vld [vmem:[%s761 + $0x5e8] sm:$0xff]
        %v4277 = vld [vmem:[%s761 + $0x5f0] sm:$0xff]
        %v4278 = vld [vmem:[%s761 + $0x5f8] sm:$0xff]
        %v4279 = vld [vmem:[%s761 + $0x600] sm:$0xf]
        %v4280 = vld [vmem:[%s761 + $0x604] sm:$0xff]
        %v4281 = vld [vmem:[%s761 + $0x60c] sm:$0xff]
        %v4282 = vld [vmem:[%s761 + $0x614] sm:$0xff]
        %v4283 = vld [vmem:[%s761 + $0x61c] sm:$0xf]
        %v4284 = vld [vmem:[%s761 + $0x620] sm:$0xff]
        %v4285 = vld [vmem:[%s761 + $0x628] sm:$0xff]
        %v4286 = vld [vmem:[%s761 + $0x630] sm:$0xff]
        %v4287 = vld [vmem:[%s761 + $0x638] sm:$0xf]
        %v4288 = vld [vmem:[%s761 + $0x63c] sm:$0xff]
        %v4289 = vld [vmem:[%s761 + $0x644] sm:$0xff]
        %v4290 = vld [vmem:[%s761 + $0x64c] sm:$0xff]
        %v4291 = vld [vmem:[%s761 + $0x654] sm:$0xf]
        %v4292 = vld [vmem:[%s761 + $0x658] sm:$0xff]
        %v4293 = vld [vmem:[%s761 + $0x660] sm:$0xff]
        %v4294 = vld [vmem:[%s761 + $0x668] sm:$0xff]
        %v4295 = vld [vmem:[%s761 + $0x670] sm:$0xf]
        %v4296 = vld [vmem:[%s761 + $0x674] sm:$0xff]
        %v4297 = vld [vmem:[%s761 + $0x67c] sm:$0xff]
        %v4298 = vld [vmem:[%s761 + $0x684] sm:$0xff]
        %v4299 = vld [vmem:[%s761 + $0x68c] sm:$0xf]
        %v4300 = vld [vmem:[%s761 + $0x690] sm:$0xff]
        %v4301 = vld [vmem:[%s761 + $0x698] sm:$0xff]
        %v4302 = vld [vmem:[%s761 + $0x6a0] sm:$0xff]
        %v4303 = vld [vmem:[%s761 + $0x6a8] sm:$0xf]
        %v4304 = vld [vmem:[%s761 + $0x6ac] sm:$0xff]
        %v4305 = vld [vmem:[%s761 + $0x6b4] sm:$0xff]
        %v4306 = vld [vmem:[%s761 + $0x6bc] sm:$0xff]
        %v4307 = vld [vmem:[%s761 + $0x6c4] sm:$0xf]
        %v4308 = vld [vmem:[%s761 + $0x6c8] sm:$0xff]
        %v4309 = vld [vmem:[%s761 + $0x6d0] sm:$0xff]
        %v4310 = vld [vmem:[%s761 + $0x6d8] sm:$0xff]
        %v4311 = vld [vmem:[%s761 + $0x6e0] sm:$0xf]
        %v4312 = vld [vmem:[%s761 + $0x6e4] sm:$0xff]
        %v4313 = vld [vmem:[%s761 + $0x6ec] sm:$0xff]
        %v4314 = vld [vmem:[%s761 + $0x6f4] sm:$0xff]
        %v4315 = vld [vmem:[%s761 + $0x6fc] sm:$0xf]
        %v4316 = vld [vmem:[%s761 + $0x700] sm:$0xff]
        %v4317 = vld [vmem:[%s761 + $0x708] sm:$0xff]
        %v4318 = vld [vmem:[%s761 + $0x710] sm:$0xff]
        %v4319 = vld [vmem:[%s761 + $0x718] sm:$0xf]
        %v4320 = vld [vmem:[%s761 + $0x71c] sm:$0xff]
        %v4321 = vld [vmem:[%s761 + $0x724] sm:$0xff]
        %v4322 = vld [vmem:[%s761 + $0x72c] sm:$0xff]
        %v4323 = vld [vmem:[%s761 + $0x734] sm:$0xf]
        %v4324 = vld [vmem:[%s761 + $0x738] sm:$0xff]
        %v4325 = vld [vmem:[%s761 + $0x740] sm:$0xff]
        %v4326 = vld [vmem:[%s761 + $0x748] sm:$0xff]
        %v4327 = vld [vmem:[%s761 + $0x750] sm:$0xf]
        %v4328 = vld [vmem:[%s761 + $0x754] sm:$0xff]
        %v4329 = vld [vmem:[%s761 + $0x75c] sm:$0xff]
        %v4330 = vld [vmem:[%s761 + $0x764] sm:$0xff]
        %v4331 = vld [vmem:[%s761 + $0x76c] sm:$0xf]
        %v4332 = vld [vmem:[%s761 + $0x770] sm:$0xff]
        %v4333 = vld [vmem:[%s761 + $0x778] sm:$0xff]
        %v4334 = vld [vmem:[%s761 + $0x780] sm:$0xff]
        %v4335 = vld [vmem:[%s761 + $0x788] sm:$0xf]
        %v4336 = vld [vmem:[%s761 + $0x78c] sm:$0xff]
        %v4337 = vld [vmem:[%s761 + $0x794] sm:$0xff]
        %v4338 = vld [vmem:[%s761 + $0x79c] sm:$0xff]
        %v4339 = vld [vmem:[%s761 + $0x7a4] sm:$0xf]
        %v4340 = vld [vmem:[%s761 + $0x7a8] sm:$0xff]
        %v4341 = vld [vmem:[%s761 + $0x7b0] sm:$0xff]
        %v4342 = vld [vmem:[%s761 + $0x7b8] sm:$0xff]
        %v4343 = vld [vmem:[%s761 + $0x7c0] sm:$0xf]
        %v4344 = vld [vmem:[%s761 + $0x7c4] sm:$0xff]
        %v4345 = vld [vmem:[%s761 + $0x7cc] sm:$0xff]
        %v4346 = vld [vmem:[%s761 + $0x7d4] sm:$0xff]
        %v4347 = vld [vmem:[%s761 + $0x7dc] sm:$0xf]
        %v4348 = vld [vmem:[%s761 + $0x7e0] sm:$0xff]
        %v4349 = vld [vmem:[%s761 + $0x7e8] sm:$0xff]
        %v4350 = vld [vmem:[%s761 + $0x7f0] sm:$0xff]
        %v4351 = vld [vmem:[%s761 + $0x7f8] sm:$0xf]
        %v4352 = vld [vmem:[%s761 + $0x7fc] sm:$0xff]
        %v4353 = vld [vmem:[%s761 + $0x804] sm:$0xff]
        %v4354 = vld [vmem:[%s761 + $0x80c] sm:$0xff]
        %v4355 = vld [vmem:[%s761 + $0x814] sm:$0xf]
        %v4356 = vld [vmem:[%s761 + $0x818] sm:$0xff]
        %v4357 = vld [vmem:[%s761 + $0x820] sm:$0xff]
        %v4358 = vld [vmem:[%s761 + $0x828] sm:$0xff]
        %v4359 = vld [vmem:[%s761 + $0x830] sm:$0xf]
        %v4360 = vld [vmem:[%s761 + $0x834] sm:$0xff]
        %v4361 = vld [vmem:[%s761 + $0x83c] sm:$0xff]
        %v4362 = vld [vmem:[%s761 + $0x844] sm:$0xff]
        %v4363 = vld [vmem:[%s761 + $0x84c] sm:$0xf]
        %v4364 = vld [vmem:[%s761 + $0x850] sm:$0xff]
        %v4365 = vld [vmem:[%s761 + $0x858] sm:$0xff]
        %v4366 = vld [vmem:[%s761 + $0x860] sm:$0xff]
        %v4367 = vld [vmem:[%s761 + $0x868] sm:$0xf]
        %v4368 = vld [vmem:[%s761 + $0x86c] sm:$0xff]
        %v4369 = vld [vmem:[%s761 + $0x874] sm:$0xff]
        %v4370 = vld [vmem:[%s761 + $0x87c] sm:$0xff]
        %v4371 = vld [vmem:[%s761 + $0x884] sm:$0xf]
        %v4372 = vld [vmem:[%s761 + $0x888] sm:$0xff]
        %v4373 = vld [vmem:[%s761 + $0x890] sm:$0xff]
        %v4374 = vld [vmem:[%s761 + $0x898] sm:$0xff]
        %v4375 = vld [vmem:[%s761 + $0x8a0] sm:$0xf]
        %v4376 = vld [vmem:[%s761 + $0x8a4] sm:$0xff]
        %v4377 = vld [vmem:[%s761 + $0x8ac] sm:$0xff]
        %v4378 = vld [vmem:[%s761 + $0x8b4] sm:$0xff]
        %v4379 = vld [vmem:[%s761 + $0x8bc] sm:$0xf]
        %v4380 = vld [vmem:[%s761 + $0x8c0] sm:$0xff]
        %v4381 = vld [vmem:[%s761 + $0x8c8] sm:$0xff]
        %v4382 = vld [vmem:[%s761 + $0x8d0] sm:$0xff]
        %v4383 = vld [vmem:[%s761 + $0x8d8] sm:$0xf]
        %v4384 = vld [vmem:[%s761 + $0x8dc] sm:$0xff]
        %v4385 = vld [vmem:[%s761 + $0x8e4] sm:$0xff]
        %v4386 = vld [vmem:[%s761 + $0x8ec] sm:$0xff]
        %v4387 = vld [vmem:[%s761 + $0x8f4] sm:$0xf]
        %v4388 = vld [vmem:[%s761 + $0x8f8] sm:$0xff]
        %v4389 = vld [vmem:[%s761 + $0x900] sm:$0xff]
        %v4390 = vld [vmem:[%s761 + $0x908] sm:$0xff]
        %v4391 = vld [vmem:[%s761 + $0x910] sm:$0xf]
        %v4392 = vld [vmem:[%s761 + $0x914] sm:$0xff]
        %v4393 = vld [vmem:[%s761 + $0x91c] sm:$0xff]
        %v4394 = vld [vmem:[%s761 + $0x924] sm:$0xff]
        %v4395 = vld [vmem:[%s761 + $0x92c] sm:$0xf]
        %v4396 = vld [vmem:[%s761 + $0x930] sm:$0xff]
        %v4397 = vld [vmem:[%s761 + $0x938] sm:$0xff]
        %v4398 = vld [vmem:[%s761 + $0x940] sm:$0xff]
        %v4399 = vld [vmem:[%s761 + $0x948] sm:$0xf]
        %v4400 = vld [vmem:[%s761 + $0x94c] sm:$0xff]
        %v4401 = vld [vmem:[%s761 + $0x954] sm:$0xff]
        %v4402 = vld [vmem:[%s761 + $0x95c] sm:$0xff]
        %v4403 = vld [vmem:[%s761 + $0x964] sm:$0xf]
        %v4404 = vld [vmem:[%s761 + $0x968] sm:$0xff]
        %v4405 = vld [vmem:[%s761 + $0x970] sm:$0xff]
        %v4406 = vld [vmem:[%s761 + $0x978] sm:$0xff]
        %v4407 = vld [vmem:[%s761 + $0x980] sm:$0xf]
        %v4408 = vld [vmem:[%s761 + $0x984] sm:$0xff]
        %v4409 = vld [vmem:[%s761 + $0x98c] sm:$0xff]
        %v4410 = vld [vmem:[%s761 + $0x994] sm:$0xff]
        %v4411 = vld [vmem:[%s761 + $0x99c] sm:$0xf]
        %v4412 = vld [vmem:[%s761 + $0x9a0] sm:$0xff]
        %v4413 = vld [vmem:[%s761 + $0x9a8] sm:$0xff]
        %v4414 = vld [vmem:[%s761 + $0x9b0] sm:$0xff]
        %v4415 = vld [vmem:[%s761 + $0x9b8] sm:$0xf]
        %v4416 = vld [vmem:[%s761 + $0x9bc] sm:$0xff]
        %v4417 = vld [vmem:[%s761 + $0x9c4] sm:$0xff]
        %v4418 = vld [vmem:[%s761 + $0x9cc] sm:$0xff]
        %v4419 = vld [vmem:[%s761 + $0x9d4] sm:$0xf]
        %v4420 = vld [vmem:[%s761 + $0x9d8] sm:$0xff]
        %v4421 = vld [vmem:[%s761 + $0x9e0] sm:$0xff]
        %v4422 = vld [vmem:[%s761 + $0x9e8] sm:$0xff]
        %v4423 = vld [vmem:[%s761 + $0x9f0] sm:$0xf]
        %v4424 = vld [vmem:[%s761 + $0x9f4] sm:$0xff]
        %v4425 = vld [vmem:[%s761 + $0x9fc] sm:$0xff]
        %v4426 = vld [vmem:[%s761 + $0xa04] sm:$0xff]
        %v4427 = vld [vmem:[%s761 + $0xa0c] sm:$0xf]
        %v4428 = vld [vmem:[%s761 + $0xa10] sm:$0xff]
        %v4429 = vld [vmem:[%s761 + $0xa18] sm:$0xff]
        %v4430 = vld [vmem:[%s761 + $0xa20] sm:$0xff]
        %v4431 = vld [vmem:[%s761 + $0xa28] sm:$0xf]
        %v4432 = vld [vmem:[%s761 + $0xa2c] sm:$0xff]
        %v4433 = vld [vmem:[%s761 + $0xa34] sm:$0xff]
        %v4434 = vld [vmem:[%s761 + $0xa3c] sm:$0xff]
        %v4435 = vld [vmem:[%s761 + $0xa44] sm:$0xf]
        %v4436 = vld [vmem:[%s761 + $0xa48] sm:$0xff]
        %v4437 = vld [vmem:[%s761 + $0xa50] sm:$0xff]
        %v4438 = vld [vmem:[%s761 + $0xa58] sm:$0xff]
        %v4439 = vld [vmem:[%s761 + $0xa60] sm:$0xf]
        %v4440 = vld [vmem:[%s761 + $0xa64] sm:$0xff]
        %v4441 = vld [vmem:[%s761 + $0xa6c] sm:$0xff]
        %v4442 = vld [vmem:[%s761 + $0xa74] sm:$0xff]
        %v4443 = vld [vmem:[%s761 + $0xa7c] sm:$0xf]
        %v4444 = vld [vmem:[%s761 + $0xa80] sm:$0xff]
        %v4445 = vld [vmem:[%s761 + $0xa88] sm:$0xff]
        %v4446 = vld [vmem:[%s761 + $0xa90] sm:$0xff]
        %v4447 = vld [vmem:[%s761 + $0xa98] sm:$0xf]
        %v4448 = vld [vmem:[%s761 + $0xa9c] sm:$0xff]
        %v4449 = vld [vmem:[%s761 + $0xaa4] sm:$0xff]
        %v4450 = vld [vmem:[%s761 + $0xaac] sm:$0xff]
        %v4451 = vld [vmem:[%s761 + $0xab4] sm:$0xf]
        %v4452 = vld [vmem:[%s761 + $0xab8] sm:$0xff]
        %v4453 = vld [vmem:[%s761 + $0xac0] sm:$0xff]
        %v4454 = vld [vmem:[%s761 + $0xac8] sm:$0xff]
        %v4455 = vld [vmem:[%s761 + $0xad0] sm:$0xf]
        %v4456 = vld [vmem:[%s761 + $0xad4] sm:$0xff]
        %v4457 = vld [vmem:[%s761 + $0xadc] sm:$0xff]
        %v4458 = vld [vmem:[%s761 + $0xae4] sm:$0xff]
        %v4459 = vld [vmem:[%s761 + $0xaec] sm:$0xf]
        %v4460 = vld [vmem:[%s761 + $0xaf0] sm:$0xff]
        %v4461 = vld [vmem:[%s761 + $0xaf8] sm:$0xff]
        %v4462 = vld [vmem:[%s761 + $0xb00] sm:$0xff]
        %v4463 = vld [vmem:[%s761 + $0xb08] sm:$0xf]
        %v4464 = vld [vmem:[%s761 + $0xb0c] sm:$0xff]
        %v4465 = vld [vmem:[%s761 + $0xb14] sm:$0xff]
        %v4466 = vld [vmem:[%s761 + $0xb1c] sm:$0xff]
        %v4467 = vld [vmem:[%s761 + $0xb24] sm:$0xf]
        %v4468 = vld [vmem:[%s761 + $0xb28] sm:$0xff]
        %v4469 = vld [vmem:[%s761 + $0xb30] sm:$0xff]
        %v4470 = vld [vmem:[%s761 + $0xb38] sm:$0xff]
        %v4471 = vld [vmem:[%s761 + $0xb40] sm:$0xf]
        %v4472 = vld [vmem:[%s761 + $0xb44] sm:$0xff]
        %v4473 = vld [vmem:[%s761 + $0xb4c] sm:$0xff]
        %v4474 = vld [vmem:[%s761 + $0xb54] sm:$0xff]
        %v4475 = vld [vmem:[%s761 + $0xb5c] sm:$0xf]
        %v4476 = vld [vmem:[%s761 + $0xb60] sm:$0xff]
        %v4477 = vld [vmem:[%s761 + $0xb68] sm:$0xff]
        %v4478 = vld [vmem:[%s761 + $0xb70] sm:$0xff]
        %v4479 = vld [vmem:[%s761 + $0xb78] sm:$0xf]
        %v4480 = vld [vmem:[%s761 + $0xb7c] sm:$0xff]
        %v4481 = vld [vmem:[%s761 + $0xb84] sm:$0xff]
        %v4482 = vld [vmem:[%s761 + $0xb8c] sm:$0xff]
        %v4483 = vld [vmem:[%s761 + $0xb94] sm:$0xf]
        %v4484 = vld [vmem:[%s761 + $0xb98] sm:$0xff]
        %v4485 = vld [vmem:[%s761 + $0xba0] sm:$0xff]
        %v4486 = vld [vmem:[%s761 + $0xba8] sm:$0xff]
        %v4487 = vld [vmem:[%s761 + $0xbb0] sm:$0xf]
        %v4488 = vld [vmem:[%s761 + $0xbb4] sm:$0xff]
        %v4489 = vld [vmem:[%s761 + $0xbbc] sm:$0xff]
        %v4490 = vld [vmem:[%s761 + $0xbc4] sm:$0xff]
        %v4491 = vld [vmem:[%s761 + $0xbcc] sm:$0xf]
        %v4492 = vld [vmem:[%s761 + $0xbd0] sm:$0xff]
        %v4493 = vld [vmem:[%s761 + $0xbd8] sm:$0xff]
        %v4494 = vld [vmem:[%s761 + $0xbe0] sm:$0xff]
        %v4495 = vld [vmem:[%s761 + $0xbe8] sm:$0xf]
        %v4496 = vld [vmem:[%s761 + $0xbec] sm:$0xff]
        %v4497 = vld [vmem:[%s761 + $0xbf4] sm:$0xff]
        %v4498 = vld [vmem:[%s761 + $0xbfc] sm:$0xff]
        %v4499 = vld [vmem:[%s761 + $0xc04] sm:$0xf]
        %v4500 = vld [vmem:[%s761 + $0xc08] sm:$0xff]
        %v4501 = vld [vmem:[%s761 + $0xc10] sm:$0xff]
        %v4502 = vld [vmem:[%s761 + $0xc18] sm:$0xff]
        %v4503 = vld [vmem:[%s761 + $0xc20] sm:$0xf]
        %v4504 = vld [vmem:[%s761 + $0xc24] sm:$0xff]
        %v4505 = vld [vmem:[%s761 + $0xc2c] sm:$0xff]
        %v4506 = vld [vmem:[%s761 + $0xc34] sm:$0xff]
        %v4507 = vld [vmem:[%s761 + $0xc3c] sm:$0xf]
        %v4508 = vld [vmem:[%s761 + $0xc40] sm:$0xff]
        %v4509 = vld [vmem:[%s761 + $0xc48] sm:$0xff]
        %v4510 = vld [vmem:[%s761 + $0xc50] sm:$0xff]
        %v4511 = vld [vmem:[%s761 + $0xc58] sm:$0xf]
        %v4512 = vld [vmem:[%s761 + $0xc5c] sm:$0xff]
        %v4513 = vld [vmem:[%s761 + $0xc64] sm:$0xff]
        %v4514 = vld [vmem:[%s761 + $0xc6c] sm:$0xff]
        %v4515 = vld [vmem:[%s761 + $0xc74] sm:$0xf]
        %v4516 = vld [vmem:[%s761 + $0xc78] sm:$0xff]
        %v4517 = vld [vmem:[%s761 + $0xc80] sm:$0xff]
        %v4518 = vld [vmem:[%s761 + $0xc88] sm:$0xff]
        %v4519 = vld [vmem:[%s761 + $0xc90] sm:$0xf]
        %v4520 = vld [vmem:[%s761 + $0xc94] sm:$0xff]
        %v4521 = vld [vmem:[%s761 + $0xc9c] sm:$0xff]
        %v4522 = vld [vmem:[%s761 + $0xca4] sm:$0xff]
        %v4523 = vld [vmem:[%s761 + $0xcac] sm:$0xf]
        %v4524 = vld [vmem:[%s761 + $0xcb0] sm:$0xff]
        %v4525 = vld [vmem:[%s761 + $0xcb8] sm:$0xff]
        %v4526 = vld [vmem:[%s761 + $0xcc0] sm:$0xff]
        %v4527 = vld [vmem:[%s761 + $0xcc8] sm:$0xf]
        %v4528 = vld [vmem:[%s761 + $0xccc] sm:$0xff]
        %v4529 = vld [vmem:[%s761 + $0xcd4] sm:$0xff]
        %v4530 = vld [vmem:[%s761 + $0xcdc] sm:$0xff]
        %v4531 = vld [vmem:[%s761 + $0xce4] sm:$0xf]
        %v4532 = vld [vmem:[%s761 + $0xce8] sm:$0xff]
        %v4533 = vld [vmem:[%s761 + $0xcf0] sm:$0xff]
        %v4534 = vld [vmem:[%s761 + $0xcf8] sm:$0xff]
        %v4535 = vld [vmem:[%s761 + $0xd00] sm:$0xf]
        %v4536 = vld [vmem:[%s761 + $0xd04] sm:$0xff]
        %v4537 = vld [vmem:[%s761 + $0xd0c] sm:$0xff]
        %v4538 = vld [vmem:[%s761 + $0xd14] sm:$0xff]
        %v4539 = vld [vmem:[%s761 + $0xd1c] sm:$0xf]
        %v4540 = vld [vmem:[%s761 + $0xd20] sm:$0xff]
        %v4541 = vld [vmem:[%s761 + $0xd28] sm:$0xff]
        %v4542 = vld [vmem:[%s761 + $0xd30] sm:$0xff]
        %v4543 = vld [vmem:[%s761 + $0xd38] sm:$0xf]
        %v4544 = vld [vmem:[%s761 + $0xd3c] sm:$0xff]
        %v4545 = vld [vmem:[%s761 + $0xd44] sm:$0xff]
        %v4546 = vld [vmem:[%s761 + $0xd4c] sm:$0xff]
        %v4547 = vld [vmem:[%s761 + $0xd54] sm:$0xf]
        %v4548 = vld [vmem:[%s761 + $0xd58] sm:$0xff]
        %v4549 = vld [vmem:[%s761 + $0xd60] sm:$0xff]
        %v4550 = vld [vmem:[%s761 + $0xd68] sm:$0xff]
        %v4551 = vld [vmem:[%s761 + $0xd70] sm:$0xf]
        %v4552 = vld [vmem:[%s761 + $0xd74] sm:$0xff]
        %v4553 = vld [vmem:[%s761 + $0xd7c] sm:$0xff]
        %v4554 = vld [vmem:[%s761 + $0xd84] sm:$0xff]
        %v4555 = vld [vmem:[%s761 + $0xd8c] sm:$0xf]
        %v4556 = vld [vmem:[%s761 + $0xd90] sm:$0xff]
        %v4557 = vld [vmem:[%s761 + $0xd98] sm:$0xff]
        %v4558 = vld [vmem:[%s761 + $0xda0] sm:$0xff]
        %v4559 = vld [vmem:[%s761 + $0xda8] sm:$0xf]
        %v4560 = vld [vmem:[%s761 + $0xdac] sm:$0xff]
        %v4561 = vld [vmem:[%s761 + $0xdb4] sm:$0xff]
        %v4562 = vld [vmem:[%s761 + $0xdbc] sm:$0xff]
        %v4563 = vld [vmem:[%s761 + $0xdc4] sm:$0xf]
        %v4564 = vld [vmem:[%s761 + $0xdc8] sm:$0xff]
        %v4565 = vld [vmem:[%s761 + $0xdd0] sm:$0xff]
        %v4566 = vld [vmem:[%s761 + $0xdd8] sm:$0xff]
        %v4567 = vld [vmem:[%s761 + $0xde0] sm:$0xf]
        %v4568 = vld [vmem:[%s761 + $0xde4] sm:$0xff]
        %v4569 = vld [vmem:[%s761 + $0xdec] sm:$0xff]
        %v4570 = vld [vmem:[%s761 + $0xdf4] sm:$0xff]
        %v4571 = vld [vmem:[%s761 + $0xdfc] sm:$0xf]
        %v4572 = vld [vmem:[%s771] sm:$0xff]
        %v4574 = vperm.slane %v4572, 0
        %v4575 = vperm.slane %v4572, 1
        %v4576 = vperm.slane %v4572, 2
        %v4577 = vperm.slane %v4572, 3
        %v4578 = vperm.slane %v4572, 4
        %v4579 = vperm.slane %v4572, 5
        %v4580 = vperm.slane %v4572, 6
        %v4592 = vunpack.c.l.b16 %v4056
        %v4593 = vunpack.c.h.b16 %v4056
        %v4594 = vunpack.c.l.b16 %v4057
        %v4595 = vunpack.c.h.b16 %v4057
        %v4596 = vunpack.c.l.b16 %v4058
        %v4597 = vunpack.c.h.b16 %v4058
        %v4598 = vunpack.c.l.b16 %v4059
        %v4599 = vunpack.c.h.b16 %v4059
        %v4600 = vpack.c.b16 %v4592, %v4592
        %v4601 = vpack.c.b16 %v4593, %v4593
        %v4602 = vpack.c.b16 %v4594, %v4594
        %v4603 = vpack.c.b16 %v4595, %v4595
        %v4604 = vpack.c.b16 %v4596, %v4596
        %v4605 = vpack.c.b16 %v4597, %v4597
        %v4606 = vpack.c.b16 %v4598, %v4598
        %v4607 = vpack.c.b16 %v4599, %v4599
        %v5128 = vunpack.c.l.b16 %v4060
        %v5129 = vunpack.c.h.b16 %v4060
        %v5130 = vunpack.c.l.b16 %v4061
        %v5131 = vunpack.c.h.b16 %v4061
        %v5132 = vunpack.c.l.b16 %v4062
        %v5133 = vunpack.c.h.b16 %v4062
        %v5134 = vunpack.c.l.b16 %v4063
        %v5135 = vunpack.c.l.b16 %v4064
        %v5136 = vunpack.c.h.b16 %v4064
        %v5137 = vunpack.c.l.b16 %v4065
        %v5138 = vunpack.c.h.b16 %v4065
        %v5139 = vunpack.c.l.b16 %v4066
        %v5140 = vunpack.c.h.b16 %v4066
        %v5141 = vunpack.c.l.b16 %v4067
        %v5142 = vunpack.c.l.b16 %v4068
        %v5143 = vunpack.c.h.b16 %v4068
        %v5144 = vunpack.c.l.b16 %v4069
        %v5145 = vunpack.c.h.b16 %v4069
        %v5146 = vunpack.c.l.b16 %v4070
        %v5147 = vunpack.c.h.b16 %v4070
        %v5148 = vunpack.c.l.b16 %v4071
        %v5149 = vunpack.c.l.b16 %v4072
        %v5150 = vunpack.c.h.b16 %v4072
        %v5151 = vunpack.c.l.b16 %v4073
        %v5152 = vunpack.c.h.b16 %v4073
        %v5153 = vunpack.c.l.b16 %v4074
        %v5154 = vunpack.c.h.b16 %v4074
        %v5155 = vunpack.c.l.b16 %v4075
        %v5156 = vunpack.c.l.b16 %v4076
        %v5157 = vunpack.c.h.b16 %v4076
        %v5158 = vunpack.c.l.b16 %v4077
        %v5159 = vunpack.c.h.b16 %v4077
        %v5160 = vunpack.c.l.b16 %v4078
        %v5161 = vunpack.c.h.b16 %v4078
        %v5162 = vunpack.c.l.b16 %v4079
        %v5163 = vunpack.c.l.b16 %v4080
        %v5164 = vunpack.c.h.b16 %v4080
        %v5165 = vunpack.c.l.b16 %v4081
        %v5166 = vunpack.c.h.b16 %v4081
        %v5167 = vunpack.c.l.b16 %v4082
        %v5168 = vunpack.c.h.b16 %v4082
        %v5169 = vunpack.c.l.b16 %v4083
        %v5170 = vunpack.c.l.b16 %v4084
        %v5171 = vunpack.c.h.b16 %v4084
        %v5172 = vunpack.c.l.b16 %v4085
        %v5173 = vunpack.c.h.b16 %v4085
        %v5174 = vunpack.c.l.b16 %v4086
        %v5175 = vunpack.c.h.b16 %v4086
        %v5176 = vunpack.c.l.b16 %v4087
        %v5177 = vunpack.c.l.b16 %v4088
        %v5178 = vunpack.c.h.b16 %v4088
        %v5179 = vunpack.c.l.b16 %v4089
        %v5180 = vunpack.c.h.b16 %v4089
        %v5181 = vunpack.c.l.b16 %v4090
        %v5182 = vunpack.c.h.b16 %v4090
        %v5183 = vunpack.c.l.b16 %v4091
        %v5184 = vunpack.c.l.b16 %v4092
        %v5185 = vunpack.c.h.b16 %v4092
        %v5186 = vunpack.c.l.b16 %v4093
        %v5187 = vunpack.c.h.b16 %v4093
        %v5188 = vunpack.c.l.b16 %v4094
        %v5189 = vunpack.c.h.b16 %v4094
        %v5190 = vunpack.c.l.b16 %v4095
        %v5191 = vunpack.c.l.b16 %v4096
        %v5192 = vunpack.c.h.b16 %v4096
        %v5193 = vunpack.c.l.b16 %v4097
        %v5194 = vunpack.c.h.b16 %v4097
        %v5195 = vunpack.c.l.b16 %v4098
        %v5196 = vunpack.c.h.b16 %v4098
        %v5197 = vunpack.c.l.b16 %v4099
        %v5198 = vunpack.c.l.b16 %v4100
        %v5199 = vunpack.c.h.b16 %v4100
        %v5200 = vunpack.c.l.b16 %v4101
        %v5201 = vunpack.c.h.b16 %v4101
        %v5202 = vunpack.c.l.b16 %v4102
        %v5203 = vunpack.c.h.b16 %v4102
        %v5204 = vunpack.c.l.b16 %v4103
        %v5205 = vunpack.c.l.b16 %v4104
        %v5206 = vunpack.c.h.b16 %v4104
        %v5207 = vunpack.c.l.b16 %v4105
        %v5208 = vunpack.c.h.b16 %v4105
        %v5209 = vunpack.c.l.b16 %v4106
        %v5210 = vunpack.c.h.b16 %v4106
        %v5211 = vunpack.c.l.b16 %v4107
        %v5212 = vunpack.c.l.b16 %v4108
        %v5213 = vunpack.c.h.b16 %v4108
        %v5214 = vunpack.c.l.b16 %v4109
        %v5215 = vunpack.c.h.b16 %v4109
        %v5216 = vunpack.c.l.b16 %v4110
        %v5217 = vunpack.c.h.b16 %v4110
        %v5218 = vunpack.c.l.b16 %v4111
        %v5219 = vunpack.c.l.b16 %v4112
        %v5220 = vunpack.c.h.b16 %v4112
        %v5221 = vunpack.c.l.b16 %v4113
        %v5222 = vunpack.c.h.b16 %v4113
        %v5223 = vunpack.c.l.b16 %v4114
        %v5224 = vunpack.c.h.b16 %v4114
        %v5225 = vunpack.c.l.b16 %v4115
        %v5226 = vunpack.c.l.b16 %v4116
        %v5227 = vunpack.c.h.b16 %v4116
        %v5228 = vunpack.c.l.b16 %v4117
        %v5229 = vunpack.c.h.b16 %v4117
        %v5230 = vunpack.c.l.b16 %v4118
        %v5231 = vunpack.c.h.b16 %v4118
        %v5232 = vunpack.c.l.b16 %v4119
        %v5233 = vunpack.c.l.b16 %v4120
        %v5234 = vunpack.c.h.b16 %v4120
        %v5235 = vunpack.c.l.b16 %v4121
        %v5236 = vunpack.c.h.b16 %v4121
        %v5237 = vunpack.c.l.b16 %v4122
        %v5238 = vunpack.c.h.b16 %v4122
        %v5239 = vunpack.c.l.b16 %v4123
        %v5240 = vunpack.c.l.b16 %v4124
        %v5241 = vunpack.c.h.b16 %v4124
        %v5242 = vunpack.c.l.b16 %v4125
        %v5243 = vunpack.c.h.b16 %v4125
        %v5244 = vunpack.c.l.b16 %v4126
        %v5245 = vunpack.c.h.b16 %v4126
        %v5246 = vunpack.c.l.b16 %v4127
        %v5247 = vunpack.c.l.b16 %v4128
        %v5248 = vunpack.c.h.b16 %v4128
        %v5249 = vunpack.c.l.b16 %v4129
        %v5250 = vunpack.c.h.b16 %v4129
        %v5251 = vunpack.c.l.b16 %v4130
        %v5252 = vunpack.c.h.b16 %v4130
        %v5253 = vunpack.c.l.b16 %v4131
        %v5254 = vunpack.c.l.b16 %v4132
        %v5255 = vunpack.c.h.b16 %v4132
        %v5256 = vunpack.c.l.b16 %v4133
        %v5257 = vunpack.c.h.b16 %v4133
        %v5258 = vunpack.c.l.b16 %v4134
        %v5259 = vunpack.c.h.b16 %v4134
        %v5260 = vunpack.c.l.b16 %v4135
        %v5261 = vunpack.c.l.b16 %v4136
        %v5262 = vunpack.c.h.b16 %v4136
        %v5263 = vunpack.c.l.b16 %v4137
        %v5264 = vunpack.c.h.b16 %v4137
        %v5265 = vunpack.c.l.b16 %v4138
        %v5266 = vunpack.c.h.b16 %v4138
        %v5267 = vunpack.c.l.b16 %v4139
        %v5268 = vunpack.c.l.b16 %v4140
        %v5269 = vunpack.c.h.b16 %v4140
        %v5270 = vunpack.c.l.b16 %v4141
        %v5271 = vunpack.c.h.b16 %v4141
        %v5272 = vunpack.c.l.b16 %v4142
        %v5273 = vunpack.c.h.b16 %v4142
        %v5274 = vunpack.c.l.b16 %v4143
        %v5275 = vunpack.c.l.b16 %v4144
        %v5276 = vunpack.c.h.b16 %v4144
        %v5277 = vunpack.c.l.b16 %v4145
        %v5278 = vunpack.c.h.b16 %v4145
        %v5279 = vunpack.c.l.b16 %v4146
        %v5280 = vunpack.c.h.b16 %v4146
        %v5281 = vunpack.c.l.b16 %v4147
        %v5282 = vunpack.c.l.b16 %v4148
        %v5283 = vunpack.c.h.b16 %v4148
        %v5284 = vunpack.c.l.b16 %v4149
        %v5285 = vunpack.c.h.b16 %v4149
        %v5286 = vunpack.c.l.b16 %v4150
        %v5287 = vunpack.c.h.b16 %v4150
        %v5288 = vunpack.c.l.b16 %v4151
        %v5289 = vunpack.c.l.b16 %v4152
        %v5290 = vunpack.c.h.b16 %v4152
        %v5291 = vunpack.c.l.b16 %v4153
        %v5292 = vunpack.c.h.b16 %v4153
        %v5293 = vunpack.c.l.b16 %v4154
        %v5294 = vunpack.c.h.b16 %v4154
        %v5295 = vunpack.c.l.b16 %v4155
        %v5296 = vunpack.c.l.b16 %v4156
        %v5297 = vunpack.c.h.b16 %v4156
        %v5298 = vunpack.c.l.b16 %v4157
        %v5299 = vunpack.c.h.b16 %v4157
        %v5300 = vunpack.c.l.b16 %v4158
        %v5301 = vunpack.c.h.b16 %v4158
        %v5302 = vunpack.c.l.b16 %v4159
        %v5303 = vunpack.c.l.b16 %v4160
        %v5304 = vunpack.c.h.b16 %v4160
        %v5305 = vunpack.c.l.b16 %v4161
        %v5306 = vunpack.c.h.b16 %v4161
        %v5307 = vunpack.c.l.b16 %v4162
        %v5308 = vunpack.c.h.b16 %v4162
        %v5309 = vunpack.c.l.b16 %v4163
        %v5310 = vunpack.c.l.b16 %v4164
        %v5311 = vunpack.c.h.b16 %v4164
        %v5312 = vunpack.c.l.b16 %v4165
        %v5313 = vunpack.c.h.b16 %v4165
        %v5314 = vunpack.c.l.b16 %v4166
        %v5315 = vunpack.c.h.b16 %v4166
        %v5316 = vunpack.c.l.b16 %v4167
        %v5317 = vunpack.c.l.b16 %v4168
        %v5318 = vunpack.c.h.b16 %v4168
        %v5319 = vunpack.c.l.b16 %v4169
        %v5320 = vunpack.c.h.b16 %v4169
        %v5321 = vunpack.c.l.b16 %v4170
        %v5322 = vunpack.c.h.b16 %v4170
        %v5323 = vunpack.c.l.b16 %v4171
        %v5324 = vunpack.c.l.b16 %v4172
        %v5325 = vunpack.c.h.b16 %v4172
        %v5326 = vunpack.c.l.b16 %v4173
        %v5327 = vunpack.c.h.b16 %v4173
        %v5328 = vunpack.c.l.b16 %v4174
        %v5329 = vunpack.c.h.b16 %v4174
        %v5330 = vunpack.c.l.b16 %v4175
        %v5331 = vunpack.c.l.b16 %v4176
        %v5332 = vunpack.c.h.b16 %v4176
        %v5333 = vunpack.c.l.b16 %v4177
        %v5334 = vunpack.c.h.b16 %v4177
        %v5335 = vunpack.c.l.b16 %v4178
        %v5336 = vunpack.c.h.b16 %v4178
        %v5337 = vunpack.c.l.b16 %v4179
        %v5338 = vunpack.c.l.b16 %v4180
        %v5339 = vunpack.c.h.b16 %v4180
        %v5340 = vunpack.c.l.b16 %v4181
        %v5341 = vunpack.c.h.b16 %v4181
        %v5342 = vunpack.c.l.b16 %v4182
        %v5343 = vunpack.c.h.b16 %v4182
        %v5344 = vunpack.c.l.b16 %v4183
        %v5345 = vunpack.c.l.b16 %v4184
        %v5346 = vunpack.c.h.b16 %v4184
        %v5347 = vunpack.c.l.b16 %v4185
        %v5348 = vunpack.c.h.b16 %v4185
        %v5349 = vunpack.c.l.b16 %v4186
        %v5350 = vunpack.c.h.b16 %v4186
        %v5351 = vunpack.c.l.b16 %v4187
        %v5352 = vunpack.c.l.b16 %v4188
        %v5353 = vunpack.c.h.b16 %v4188
        %v5354 = vunpack.c.l.b16 %v4189
        %v5355 = vunpack.c.h.b16 %v4189
        %v5356 = vunpack.c.l.b16 %v4190
        %v5357 = vunpack.c.h.b16 %v4190
        %v5358 = vunpack.c.l.b16 %v4191
        %v5359 = vunpack.c.l.b16 %v4192
        %v5360 = vunpack.c.h.b16 %v4192
        %v5361 = vunpack.c.l.b16 %v4193
        %v5362 = vunpack.c.h.b16 %v4193
        %v5363 = vunpack.c.l.b16 %v4194
        %v5364 = vunpack.c.h.b16 %v4194
        %v5365 = vunpack.c.l.b16 %v4195
        %v5366 = vunpack.c.l.b16 %v4196
        %v5367 = vunpack.c.h.b16 %v4196
        %v5368 = vunpack.c.l.b16 %v4197
        %v5369 = vunpack.c.h.b16 %v4197
        %v5370 = vunpack.c.l.b16 %v4198
        %v5371 = vunpack.c.h.b16 %v4198
        %v5372 = vunpack.c.l.b16 %v4199
        %v5373 = vunpack.c.l.b16 %v4200
        %v5374 = vunpack.c.h.b16 %v4200
        %v5375 = vunpack.c.l.b16 %v4201
        %v5376 = vunpack.c.h.b16 %v4201
        %v5377 = vunpack.c.l.b16 %v4202
        %v5378 = vunpack.c.h.b16 %v4202
        %v5379 = vunpack.c.l.b16 %v4203
        %v5380 = vunpack.c.l.b16 %v4204
        %v5381 = vunpack.c.h.b16 %v4204
        %v5382 = vunpack.c.l.b16 %v4205
        %v5383 = vunpack.c.h.b16 %v4205
        %v5384 = vunpack.c.l.b16 %v4206
        %v5385 = vunpack.c.h.b16 %v4206
        %v5386 = vunpack.c.l.b16 %v4207
        %v5387 = vunpack.c.l.b16 %v4208
        %v5388 = vunpack.c.h.b16 %v4208
        %v5389 = vunpack.c.l.b16 %v4209
        %v5390 = vunpack.c.h.b16 %v4209
        %v5391 = vunpack.c.l.b16 %v4210
        %v5392 = vunpack.c.h.b16 %v4210
        %v5393 = vunpack.c.l.b16 %v4211
        %v5394 = vunpack.c.l.b16 %v4212
        %v5395 = vunpack.c.h.b16 %v4212
        %v5396 = vunpack.c.l.b16 %v4213
        %v5397 = vunpack.c.h.b16 %v4213
        %v5398 = vunpack.c.l.b16 %v4214
        %v5399 = vunpack.c.h.b16 %v4214
        %v5400 = vunpack.c.l.b16 %v4215
        %v5401 = vunpack.c.l.b16 %v4216
        %v5402 = vunpack.c.h.b16 %v4216
        %v5403 = vunpack.c.l.b16 %v4217
        %v5404 = vunpack.c.h.b16 %v4217
        %v5405 = vunpack.c.l.b16 %v4218
        %v5406 = vunpack.c.h.b16 %v4218
        %v5407 = vunpack.c.l.b16 %v4219
        %v5408 = vunpack.c.l.b16 %v4220
        %v5409 = vunpack.c.h.b16 %v4220
        %v5410 = vunpack.c.l.b16 %v4221
        %v5411 = vunpack.c.h.b16 %v4221
        %v5412 = vunpack.c.l.b16 %v4222
        %v5413 = vunpack.c.h.b16 %v4222
        %v5414 = vunpack.c.l.b16 %v4223
        %v5415 = vunpack.c.l.b16 %v4224
        %v5416 = vunpack.c.h.b16 %v4224
        %v5417 = vunpack.c.l.b16 %v4225
        %v5418 = vunpack.c.h.b16 %v4225
        %v5419 = vunpack.c.l.b16 %v4226
        %v5420 = vunpack.c.h.b16 %v4226
        %v5421 = vunpack.c.l.b16 %v4227
        %v5422 = vunpack.c.l.b16 %v4228
        %v5423 = vunpack.c.h.b16 %v4228
        %v5424 = vunpack.c.l.b16 %v4229
        %v5425 = vunpack.c.h.b16 %v4229
        %v5426 = vunpack.c.l.b16 %v4230
        %v5427 = vunpack.c.h.b16 %v4230
        %v5428 = vunpack.c.l.b16 %v4231
        %v5429 = vunpack.c.l.b16 %v4232
        %v5430 = vunpack.c.h.b16 %v4232
        %v5431 = vunpack.c.l.b16 %v4233
        %v5432 = vunpack.c.h.b16 %v4233
        %v5433 = vunpack.c.l.b16 %v4234
        %v5434 = vunpack.c.h.b16 %v4234
        %v5435 = vunpack.c.l.b16 %v4235
        %v5436 = vunpack.c.l.b16 %v4236
        %v5437 = vunpack.c.h.b16 %v4236
        %v5438 = vunpack.c.l.b16 %v4237
        %v5439 = vunpack.c.h.b16 %v4237
        %v5440 = vunpack.c.l.b16 %v4238
        %v5441 = vunpack.c.h.b16 %v4238
        %v5442 = vunpack.c.l.b16 %v4239
        %v5443 = vunpack.c.l.b16 %v4240
        %v5444 = vunpack.c.h.b16 %v4240
        %v5445 = vunpack.c.l.b16 %v4241
        %v5446 = vunpack.c.h.b16 %v4241
        %v5447 = vunpack.c.l.b16 %v4242
        %v5448 = vunpack.c.h.b16 %v4242
        %v5449 = vunpack.c.l.b16 %v4243
        %v5450 = vunpack.c.l.b16 %v4244
        %v5451 = vunpack.c.h.b16 %v4244
        %v5452 = vunpack.c.l.b16 %v4245
        %v5453 = vunpack.c.h.b16 %v4245
        %v5454 = vunpack.c.l.b16 %v4246
        %v5455 = vunpack.c.h.b16 %v4246
        %v5456 = vunpack.c.l.b16 %v4247
        %v5457 = vunpack.c.l.b16 %v4248
        %v5458 = vunpack.c.h.b16 %v4248
        %v5459 = vunpack.c.l.b16 %v4249
        %v5460 = vunpack.c.h.b16 %v4249
        %v5461 = vunpack.c.l.b16 %v4250
        %v5462 = vunpack.c.h.b16 %v4250
        %v5463 = vunpack.c.l.b16 %v4251
        %v5464 = vunpack.c.l.b16 %v4252
        %v5465 = vunpack.c.h.b16 %v4252
        %v5466 = vunpack.c.l.b16 %v4253
        %v5467 = vunpack.c.h.b16 %v4253
        %v5468 = vunpack.c.l.b16 %v4254
        %v5469 = vunpack.c.h.b16 %v4254
        %v5470 = vunpack.c.l.b16 %v4255
        %v5471 = vunpack.c.l.b16 %v4256
        %v5472 = vunpack.c.h.b16 %v4256
        %v5473 = vunpack.c.l.b16 %v4257
        %v5474 = vunpack.c.h.b16 %v4257
        %v5475 = vunpack.c.l.b16 %v4258
        %v5476 = vunpack.c.h.b16 %v4258
        %v5477 = vunpack.c.l.b16 %v4259
        %v5478 = vunpack.c.l.b16 %v4260
        %v5479 = vunpack.c.h.b16 %v4260
        %v5480 = vunpack.c.l.b16 %v4261
        %v5481 = vunpack.c.h.b16 %v4261
        %v5482 = vunpack.c.l.b16 %v4262
        %v5483 = vunpack.c.h.b16 %v4262
        %v5484 = vunpack.c.l.b16 %v4263
        %v5485 = vunpack.c.l.b16 %v4264
        %v5486 = vunpack.c.h.b16 %v4264
        %v5487 = vunpack.c.l.b16 %v4265
        %v5488 = vunpack.c.h.b16 %v4265
        %v5489 = vunpack.c.l.b16 %v4266
        %v5490 = vunpack.c.h.b16 %v4266
        %v5491 = vunpack.c.l.b16 %v4267
        %v5492 = vunpack.c.l.b16 %v4268
        %v5493 = vunpack.c.h.b16 %v4268
        %v5494 = vunpack.c.l.b16 %v4269
        %v5495 = vunpack.c.h.b16 %v4269
        %v5496 = vunpack.c.l.b16 %v4270
        %v5497 = vunpack.c.h.b16 %v4270
        %v5498 = vunpack.c.l.b16 %v4271
        %v5499 = vunpack.c.l.b16 %v4272
        %v5500 = vunpack.c.h.b16 %v4272
        %v5501 = vunpack.c.l.b16 %v4273
        %v5502 = vunpack.c.h.b16 %v4273
        %v5503 = vunpack.c.l.b16 %v4274
        %v5504 = vunpack.c.h.b16 %v4274
        %v5505 = vunpack.c.l.b16 %v4275
        %v5506 = vunpack.c.l.b16 %v4276
        %v5507 = vunpack.c.h.b16 %v4276
        %v5508 = vunpack.c.l.b16 %v4277
        %v5509 = vunpack.c.h.b16 %v4277
        %v5510 = vunpack.c.l.b16 %v4278
        %v5511 = vunpack.c.h.b16 %v4278
        %v5512 = vunpack.c.l.b16 %v4279
        %v5513 = vunpack.c.l.b16 %v4280
        %v5514 = vunpack.c.h.b16 %v4280
        %v5515 = vunpack.c.l.b16 %v4281
        %v5516 = vunpack.c.h.b16 %v4281
        %v5517 = vunpack.c.l.b16 %v4282
        %v5518 = vunpack.c.h.b16 %v4282
        %v5519 = vunpack.c.l.b16 %v4283
        %v5520 = vunpack.c.l.b16 %v4284
        %v5521 = vunpack.c.h.b16 %v4284
        %v5522 = vunpack.c.l.b16 %v4285
        %v5523 = vunpack.c.h.b16 %v4285
        %v5524 = vunpack.c.l.b16 %v4286
        %v5525 = vunpack.c.h.b16 %v4286
        %v5526 = vunpack.c.l.b16 %v4287
        %v5527 = vunpack.c.l.b16 %v4288
        %v5528 = vunpack.c.h.b16 %v4288
        %v5529 = vunpack.c.l.b16 %v4289
        %v5530 = vunpack.c.h.b16 %v4289
        %v5531 = vunpack.c.l.b16 %v4290
        %v5532 = vunpack.c.h.b16 %v4290
        %v5533 = vunpack.c.l.b16 %v4291
        %v5534 = vunpack.c.l.b16 %v4292
        %v5535 = vunpack.c.h.b16 %v4292
        %v5536 = vunpack.c.l.b16 %v4293
        %v5537 = vunpack.c.h.b16 %v4293
        %v5538 = vunpack.c.l.b16 %v4294
        %v5539 = vunpack.c.h.b16 %v4294
        %v5540 = vunpack.c.l.b16 %v4295
        %v5541 = vunpack.c.l.b16 %v4296
        %v5542 = vunpack.c.h.b16 %v4296
        %v5543 = vunpack.c.l.b16 %v4297
        %v5544 = vunpack.c.h.b16 %v4297
        %v5545 = vunpack.c.l.b16 %v4298
        %v5546 = vunpack.c.h.b16 %v4298
        %v5547 = vunpack.c.l.b16 %v4299
        %v5548 = vunpack.c.l.b16 %v4300
        %v5549 = vunpack.c.h.b16 %v4300
        %v5550 = vunpack.c.l.b16 %v4301
        %v5551 = vunpack.c.h.b16 %v4301
        %v5552 = vunpack.c.l.b16 %v4302
        %v5553 = vunpack.c.h.b16 %v4302
        %v5554 = vunpack.c.l.b16 %v4303
        %v5555 = vunpack.c.l.b16 %v4304
        %v5556 = vunpack.c.h.b16 %v4304
        %v5557 = vunpack.c.l.b16 %v4305
        %v5558 = vunpack.c.h.b16 %v4305
        %v5559 = vunpack.c.l.b16 %v4306
        %v5560 = vunpack.c.h.b16 %v4306
        %v5561 = vunpack.c.l.b16 %v4307
        %v5562 = vunpack.c.l.b16 %v4308
        %v5563 = vunpack.c.h.b16 %v4308
        %v5564 = vunpack.c.l.b16 %v4309
        %v5565 = vunpack.c.h.b16 %v4309
        %v5566 = vunpack.c.l.b16 %v4310
        %v5567 = vunpack.c.h.b16 %v4310
        %v5568 = vunpack.c.l.b16 %v4311
        %v5569 = vunpack.c.l.b16 %v4312
        %v5570 = vunpack.c.h.b16 %v4312
        %v5571 = vunpack.c.l.b16 %v4313
        %v5572 = vunpack.c.h.b16 %v4313
        %v5573 = vunpack.c.l.b16 %v4314
        %v5574 = vunpack.c.h.b16 %v4314
        %v5575 = vunpack.c.l.b16 %v4315
        %v5576 = vunpack.c.l.b16 %v4316
        %v5577 = vunpack.c.h.b16 %v4316
        %v5578 = vunpack.c.l.b16 %v4317
        %v5579 = vunpack.c.h.b16 %v4317
        %v5580 = vunpack.c.l.b16 %v4318
        %v5581 = vunpack.c.h.b16 %v4318
        %v5582 = vunpack.c.l.b16 %v4319
        %v5583 = vunpack.c.l.b16 %v4320
        %v5584 = vunpack.c.h.b16 %v4320
        %v5585 = vunpack.c.l.b16 %v4321
        %v5586 = vunpack.c.h.b16 %v4321
        %v5587 = vunpack.c.l.b16 %v4322
        %v5588 = vunpack.c.h.b16 %v4322
        %v5589 = vunpack.c.l.b16 %v4323
        %v5590 = vunpack.c.l.b16 %v4324
        %v5591 = vunpack.c.h.b16 %v4324
        %v5592 = vunpack.c.l.b16 %v4325
        %v5593 = vunpack.c.h.b16 %v4325
        %v5594 = vunpack.c.l.b16 %v4326
        %v5595 = vunpack.c.h.b16 %v4326
        %v5596 = vunpack.c.l.b16 %v4327
        %v5597 = vunpack.c.l.b16 %v4328
        %v5598 = vunpack.c.h.b16 %v4328
        %v5599 = vunpack.c.l.b16 %v4329
        %v5600 = vunpack.c.h.b16 %v4329
        %v5601 = vunpack.c.l.b16 %v4330
        %v5602 = vunpack.c.h.b16 %v4330
        %v5603 = vunpack.c.l.b16 %v4331
        %v5604 = vunpack.c.l.b16 %v4332
        %v5605 = vunpack.c.h.b16 %v4332
        %v5606 = vunpack.c.l.b16 %v4333
        %v5607 = vunpack.c.h.b16 %v4333
        %v5608 = vunpack.c.l.b16 %v4334
        %v5609 = vunpack.c.h.b16 %v4334
        %v5610 = vunpack.c.l.b16 %v4335
        %v5611 = vunpack.c.l.b16 %v4336
        %v5612 = vunpack.c.h.b16 %v4336
        %v5613 = vunpack.c.l.b16 %v4337
        %v5614 = vunpack.c.h.b16 %v4337
        %v5615 = vunpack.c.l.b16 %v4338
        %v5616 = vunpack.c.h.b16 %v4338
        %v5617 = vunpack.c.l.b16 %v4339
        %v5618 = vunpack.c.l.b16 %v4340
        %v5619 = vunpack.c.h.b16 %v4340
        %v5620 = vunpack.c.l.b16 %v4341
        %v5621 = vunpack.c.h.b16 %v4341
        %v5622 = vunpack.c.l.b16 %v4342
        %v5623 = vunpack.c.h.b16 %v4342
        %v5624 = vunpack.c.l.b16 %v4343
        %v5625 = vunpack.c.l.b16 %v4344
        %v5626 = vunpack.c.h.b16 %v4344
        %v5627 = vunpack.c.l.b16 %v4345
        %v5628 = vunpack.c.h.b16 %v4345
        %v5629 = vunpack.c.l.b16 %v4346
        %v5630 = vunpack.c.h.b16 %v4346
        %v5631 = vunpack.c.l.b16 %v4347
        %v5632 = vunpack.c.l.b16 %v4348
        %v5633 = vunpack.c.h.b16 %v4348
        %v5634 = vunpack.c.l.b16 %v4349
        %v5635 = vunpack.c.h.b16 %v4349
        %v5636 = vunpack.c.l.b16 %v4350
        %v5637 = vunpack.c.h.b16 %v4350
        %v5638 = vunpack.c.l.b16 %v4351
        %v5639 = vunpack.c.l.b16 %v4352
        %v5640 = vunpack.c.h.b16 %v4352
        %v5641 = vunpack.c.l.b16 %v4353
        %v5642 = vunpack.c.h.b16 %v4353
        %v5643 = vunpack.c.l.b16 %v4354
        %v5644 = vunpack.c.h.b16 %v4354
        %v5645 = vunpack.c.l.b16 %v4355
        %v5646 = vunpack.c.l.b16 %v4356
        %v5647 = vunpack.c.h.b16 %v4356
        %v5648 = vunpack.c.l.b16 %v4357
        %v5649 = vunpack.c.h.b16 %v4357
        %v5650 = vunpack.c.l.b16 %v4358
        %v5651 = vunpack.c.h.b16 %v4358
        %v5652 = vunpack.c.l.b16 %v4359
        %v5653 = vunpack.c.l.b16 %v4360
        %v5654 = vunpack.c.h.b16 %v4360
        %v5655 = vunpack.c.l.b16 %v4361
        %v5656 = vunpack.c.h.b16 %v4361
        %v5657 = vunpack.c.l.b16 %v4362
        %v5658 = vunpack.c.h.b16 %v4362
        %v5659 = vunpack.c.l.b16 %v4363
        %v5660 = vunpack.c.l.b16 %v4364
        %v5661 = vunpack.c.h.b16 %v4364
        %v5662 = vunpack.c.l.b16 %v4365
        %v5663 = vunpack.c.h.b16 %v4365
        %v5664 = vunpack.c.l.b16 %v4366
        %v5665 = vunpack.c.h.b16 %v4366
        %v5666 = vunpack.c.l.b16 %v4367
        %v5667 = vunpack.c.l.b16 %v4368
        %v5668 = vunpack.c.h.b16 %v4368
        %v5669 = vunpack.c.l.b16 %v4369
        %v5670 = vunpack.c.h.b16 %v4369
        %v5671 = vunpack.c.l.b16 %v4370
        %v5672 = vunpack.c.h.b16 %v4370
        %v5673 = vunpack.c.l.b16 %v4371
        %v5674 = vunpack.c.l.b16 %v4372
        %v5675 = vunpack.c.h.b16 %v4372
        %v5676 = vunpack.c.l.b16 %v4373
        %v5677 = vunpack.c.h.b16 %v4373
        %v5678 = vunpack.c.l.b16 %v4374
        %v5679 = vunpack.c.h.b16 %v4374
        %v5680 = vunpack.c.l.b16 %v4375
        %v5681 = vunpack.c.l.b16 %v4376
        %v5682 = vunpack.c.h.b16 %v4376
        %v5683 = vunpack.c.l.b16 %v4377
        %v5684 = vunpack.c.h.b16 %v4377
        %v5685 = vunpack.c.l.b16 %v4378
        %v5686 = vunpack.c.h.b16 %v4378
        %v5687 = vunpack.c.l.b16 %v4379
        %v5688 = vunpack.c.l.b16 %v4380
        %v5689 = vunpack.c.h.b16 %v4380
        %v5690 = vunpack.c.l.b16 %v4381
        %v5691 = vunpack.c.h.b16 %v4381
        %v5692 = vunpack.c.l.b16 %v4382
        %v5693 = vunpack.c.h.b16 %v4382
        %v5694 = vunpack.c.l.b16 %v4383
        %v5695 = vunpack.c.l.b16 %v4384
        %v5696 = vunpack.c.h.b16 %v4384
        %v5697 = vunpack.c.l.b16 %v4385
        %v5698 = vunpack.c.h.b16 %v4385
        %v5699 = vunpack.c.l.b16 %v4386
        %v5700 = vunpack.c.h.b16 %v4386
        %v5701 = vunpack.c.l.b16 %v4387
        %v5702 = vunpack.c.l.b16 %v4388
        %v5703 = vunpack.c.h.b16 %v4388
        %v5704 = vunpack.c.l.b16 %v4389
        %v5705 = vunpack.c.h.b16 %v4389
        %v5706 = vunpack.c.l.b16 %v4390
        %v5707 = vunpack.c.h.b16 %v4390
        %v5708 = vunpack.c.l.b16 %v4391
        %v5709 = vunpack.c.l.b16 %v4392
        %v5710 = vunpack.c.h.b16 %v4392
        %v5711 = vunpack.c.l.b16 %v4393
        %v5712 = vunpack.c.h.b16 %v4393
        %v5713 = vunpack.c.l.b16 %v4394
        %v5714 = vunpack.c.h.b16 %v4394
        %v5715 = vunpack.c.l.b16 %v4395
        %v5716 = vunpack.c.l.b16 %v4396
        %v5717 = vunpack.c.h.b16 %v4396
        %v5718 = vunpack.c.l.b16 %v4397
        %v5719 = vunpack.c.h.b16 %v4397
        %v5720 = vunpack.c.l.b16 %v4398
        %v5721 = vunpack.c.h.b16 %v4398
        %v5722 = vunpack.c.l.b16 %v4399
        %v5723 = vunpack.c.l.b16 %v4400
        %v5724 = vunpack.c.h.b16 %v4400
        %v5725 = vunpack.c.l.b16 %v4401
        %v5726 = vunpack.c.h.b16 %v4401
        %v5727 = vunpack.c.l.b16 %v4402
        %v5728 = vunpack.c.h.b16 %v4402
        %v5729 = vunpack.c.l.b16 %v4403
        %v5730 = vunpack.c.l.b16 %v4404
        %v5731 = vunpack.c.h.b16 %v4404
        %v5732 = vunpack.c.l.b16 %v4405
        %v5733 = vunpack.c.h.b16 %v4405
        %v5734 = vunpack.c.l.b16 %v4406
        %v5735 = vunpack.c.h.b16 %v4406
        %v5736 = vunpack.c.l.b16 %v4407
        %v5737 = vunpack.c.l.b16 %v4408
        %v5738 = vunpack.c.h.b16 %v4408
        %v5739 = vunpack.c.l.b16 %v4409
        %v5740 = vunpack.c.h.b16 %v4409
        %v5741 = vunpack.c.l.b16 %v4410
        %v5742 = vunpack.c.h.b16 %v4410
        %v5743 = vunpack.c.l.b16 %v4411
        %v5744 = vunpack.c.l.b16 %v4412
        %v5745 = vunpack.c.h.b16 %v4412
        %v5746 = vunpack.c.l.b16 %v4413
        %v5747 = vunpack.c.h.b16 %v4413
        %v5748 = vunpack.c.l.b16 %v4414
        %v5749 = vunpack.c.h.b16 %v4414
        %v5750 = vunpack.c.l.b16 %v4415
        %v5751 = vunpack.c.l.b16 %v4416
        %v5752 = vunpack.c.h.b16 %v4416
        %v5753 = vunpack.c.l.b16 %v4417
        %v5754 = vunpack.c.h.b16 %v4417
        %v5755 = vunpack.c.l.b16 %v4418
        %v5756 = vunpack.c.h.b16 %v4418
        %v5757 = vunpack.c.l.b16 %v4419
        %v5758 = vunpack.c.l.b16 %v4420
        %v5759 = vunpack.c.h.b16 %v4420
        %v5760 = vunpack.c.l.b16 %v4421
        %v5761 = vunpack.c.h.b16 %v4421
        %v5762 = vunpack.c.l.b16 %v4422
        %v5763 = vunpack.c.h.b16 %v4422
        %v5764 = vunpack.c.l.b16 %v4423
        %v5765 = vunpack.c.l.b16 %v4424
        %v5766 = vunpack.c.h.b16 %v4424
        %v5767 = vunpack.c.l.b16 %v4425
        %v5768 = vunpack.c.h.b16 %v4425
        %v5769 = vunpack.c.l.b16 %v4426
        %v5770 = vunpack.c.h.b16 %v4426
        %v5771 = vunpack.c.l.b16 %v4427
        %v5772 = vunpack.c.l.b16 %v4428
        %v5773 = vunpack.c.h.b16 %v4428
        %v5774 = vunpack.c.l.b16 %v4429
        %v5775 = vunpack.c.h.b16 %v4429
        %v5776 = vunpack.c.l.b16 %v4430
        %v5777 = vunpack.c.h.b16 %v4430
        %v5778 = vunpack.c.l.b16 %v4431
        %v5779 = vunpack.c.l.b16 %v4432
        %v5780 = vunpack.c.h.b16 %v4432
        %v5781 = vunpack.c.l.b16 %v4433
        %v5782 = vunpack.c.h.b16 %v4433
        %v5783 = vunpack.c.l.b16 %v4434
        %v5784 = vunpack.c.h.b16 %v4434
        %v5785 = vunpack.c.l.b16 %v4435
        %v5786 = vunpack.c.l.b16 %v4436
        %v5787 = vunpack.c.h.b16 %v4436
        %v5788 = vunpack.c.l.b16 %v4437
        %v5789 = vunpack.c.h.b16 %v4437
        %v5790 = vunpack.c.l.b16 %v4438
        %v5791 = vunpack.c.h.b16 %v4438
        %v5792 = vunpack.c.l.b16 %v4439
        %v5793 = vunpack.c.l.b16 %v4440
        %v5794 = vunpack.c.h.b16 %v4440
        %v5795 = vunpack.c.l.b16 %v4441
        %v5796 = vunpack.c.h.b16 %v4441
        %v5797 = vunpack.c.l.b16 %v4442
        %v5798 = vunpack.c.h.b16 %v4442
        %v5799 = vunpack.c.l.b16 %v4443
        %v5800 = vunpack.c.l.b16 %v4444
        %v5801 = vunpack.c.h.b16 %v4444
        %v5802 = vunpack.c.l.b16 %v4445
        %v5803 = vunpack.c.h.b16 %v4445
        %v5804 = vunpack.c.l.b16 %v4446
        %v5805 = vunpack.c.h.b16 %v4446
        %v5806 = vunpack.c.l.b16 %v4447
        %v5807 = vunpack.c.l.b16 %v4448
        %v5808 = vunpack.c.h.b16 %v4448
        %v5809 = vunpack.c.l.b16 %v4449
        %v5810 = vunpack.c.h.b16 %v4449
        %v5811 = vunpack.c.l.b16 %v4450
        %v5812 = vunpack.c.h.b16 %v4450
        %v5813 = vunpack.c.l.b16 %v4451
        %v5814 = vunpack.c.l.b16 %v4452
        %v5815 = vunpack.c.h.b16 %v4452
        %v5816 = vunpack.c.l.b16 %v4453
        %v5817 = vunpack.c.h.b16 %v4453
        %v5818 = vunpack.c.l.b16 %v4454
        %v5819 = vunpack.c.h.b16 %v4454
        %v5820 = vunpack.c.l.b16 %v4455
        %v5821 = vunpack.c.l.b16 %v4456
        %v5822 = vunpack.c.h.b16 %v4456
        %v5823 = vunpack.c.l.b16 %v4457
        %v5824 = vunpack.c.h.b16 %v4457
        %v5825 = vunpack.c.l.b16 %v4458
        %v5826 = vunpack.c.h.b16 %v4458
        %v5827 = vunpack.c.l.b16 %v4459
        %v5828 = vunpack.c.l.b16 %v4460
        %v5829 = vunpack.c.h.b16 %v4460
        %v5830 = vunpack.c.l.b16 %v4461
        %v5831 = vunpack.c.h.b16 %v4461
        %v5832 = vunpack.c.l.b16 %v4462
        %v5833 = vunpack.c.h.b16 %v4462
        %v5834 = vunpack.c.l.b16 %v4463
        %v5835 = vunpack.c.l.b16 %v4464
        %v5836 = vunpack.c.h.b16 %v4464
        %v5837 = vunpack.c.l.b16 %v4465
        %v5838 = vunpack.c.h.b16 %v4465
        %v5839 = vunpack.c.l.b16 %v4466
        %v5840 = vunpack.c.h.b16 %v4466
        %v5841 = vunpack.c.l.b16 %v4467
        %v5842 = vunpack.c.l.b16 %v4468
        %v5843 = vunpack.c.h.b16 %v4468
        %v5844 = vunpack.c.l.b16 %v4469
        %v5845 = vunpack.c.h.b16 %v4469
        %v5846 = vunpack.c.l.b16 %v4470
        %v5847 = vunpack.c.h.b16 %v4470
        %v5848 = vunpack.c.l.b16 %v4471
        %v5849 = vunpack.c.l.b16 %v4472
        %v5850 = vunpack.c.h.b16 %v4472
        %v5851 = vunpack.c.l.b16 %v4473
        %v5852 = vunpack.c.h.b16 %v4473
        %v5853 = vunpack.c.l.b16 %v4474
        %v5854 = vunpack.c.h.b16 %v4474
        %v5855 = vunpack.c.l.b16 %v4475
        %v5856 = vunpack.c.l.b16 %v4476
        %v5857 = vunpack.c.h.b16 %v4476
        %v5858 = vunpack.c.l.b16 %v4477
        %v5859 = vunpack.c.h.b16 %v4477
        %v5860 = vunpack.c.l.b16 %v4478
        %v5861 = vunpack.c.h.b16 %v4478
        %v5862 = vunpack.c.l.b16 %v4479
        %v5863 = vunpack.c.l.b16 %v4480
        %v5864 = vunpack.c.h.b16 %v4480
        %v5865 = vunpack.c.l.b16 %v4481
        %v5866 = vunpack.c.h.b16 %v4481
        %v5867 = vunpack.c.l.b16 %v4482
        %v5868 = vunpack.c.h.b16 %v4482
        %v5869 = vunpack.c.l.b16 %v4483
        %v5870 = vunpack.c.l.b16 %v4484
        %v5871 = vunpack.c.h.b16 %v4484
        %v5872 = vunpack.c.l.b16 %v4485
        %v5873 = vunpack.c.h.b16 %v4485
        %v5874 = vunpack.c.l.b16 %v4486
        %v5875 = vunpack.c.h.b16 %v4486
        %v5876 = vunpack.c.l.b16 %v4487
        %v5877 = vunpack.c.l.b16 %v4488
        %v5878 = vunpack.c.h.b16 %v4488
        %v5879 = vunpack.c.l.b16 %v4489
        %v5880 = vunpack.c.h.b16 %v4489
        %v5881 = vunpack.c.l.b16 %v4490
        %v5882 = vunpack.c.h.b16 %v4490
        %v5883 = vunpack.c.l.b16 %v4491
        %v5884 = vunpack.c.l.b16 %v4492
        %v5885 = vunpack.c.h.b16 %v4492
        %v5886 = vunpack.c.l.b16 %v4493
        %v5887 = vunpack.c.h.b16 %v4493
        %v5888 = vunpack.c.l.b16 %v4494
        %v5889 = vunpack.c.h.b16 %v4494
        %v5890 = vunpack.c.l.b16 %v4495
        %v5891 = vunpack.c.l.b16 %v4496
        %v5892 = vunpack.c.h.b16 %v4496
        %v5893 = vunpack.c.l.b16 %v4497
        %v5894 = vunpack.c.h.b16 %v4497
        %v5895 = vunpack.c.l.b16 %v4498
        %v5896 = vunpack.c.h.b16 %v4498
        %v5897 = vunpack.c.l.b16 %v4499
        %v5898 = vunpack.c.l.b16 %v4500
        %v5899 = vunpack.c.h.b16 %v4500
        %v5900 = vunpack.c.l.b16 %v4501
        %v5901 = vunpack.c.h.b16 %v4501
        %v5902 = vunpack.c.l.b16 %v4502
        %v5903 = vunpack.c.h.b16 %v4502
        %v5904 = vunpack.c.l.b16 %v4503
        %v5905 = vunpack.c.l.b16 %v4504
        %v5906 = vunpack.c.h.b16 %v4504
        %v5907 = vunpack.c.l.b16 %v4505
        %v5908 = vunpack.c.h.b16 %v4505
        %v5909 = vunpack.c.l.b16 %v4506
        %v5910 = vunpack.c.h.b16 %v4506
        %v5911 = vunpack.c.l.b16 %v4507
        %v5912 = vunpack.c.l.b16 %v4508
        %v5913 = vunpack.c.h.b16 %v4508
        %v5914 = vunpack.c.l.b16 %v4509
        %v5915 = vunpack.c.h.b16 %v4509
        %v5916 = vunpack.c.l.b16 %v4510
        %v5917 = vunpack.c.h.b16 %v4510
        %v5918 = vunpack.c.l.b16 %v4511
        %v5919 = vunpack.c.l.b16 %v4512
        %v5920 = vunpack.c.h.b16 %v4512
        %v5921 = vunpack.c.l.b16 %v4513
        %v5922 = vunpack.c.h.b16 %v4513
        %v5923 = vunpack.c.l.b16 %v4514
        %v5924 = vunpack.c.h.b16 %v4514
        %v5925 = vunpack.c.l.b16 %v4515
        %v5926 = vunpack.c.l.b16 %v4516
        %v5927 = vunpack.c.h.b16 %v4516
        %v5928 = vunpack.c.l.b16 %v4517
        %v5929 = vunpack.c.h.b16 %v4517
        %v5930 = vunpack.c.l.b16 %v4518
        %v5931 = vunpack.c.h.b16 %v4518
        %v5932 = vunpack.c.l.b16 %v4519
        %v5933 = vunpack.c.l.b16 %v4520
        %v5934 = vunpack.c.h.b16 %v4520
        %v5935 = vunpack.c.l.b16 %v4521
        %v5936 = vunpack.c.h.b16 %v4521
        %v5937 = vunpack.c.l.b16 %v4522
        %v5938 = vunpack.c.h.b16 %v4522
        %v5939 = vunpack.c.l.b16 %v4523
        %v5940 = vunpack.c.l.b16 %v4524
        %v5941 = vunpack.c.h.b16 %v4524
        %v5942 = vunpack.c.l.b16 %v4525
        %v5943 = vunpack.c.h.b16 %v4525
        %v5944 = vunpack.c.l.b16 %v4526
        %v5945 = vunpack.c.h.b16 %v4526
        %v5946 = vunpack.c.l.b16 %v4527
        %v5947 = vunpack.c.l.b16 %v4528
        %v5948 = vunpack.c.h.b16 %v4528
        %v5949 = vunpack.c.l.b16 %v4529
        %v5950 = vunpack.c.h.b16 %v4529
        %v5951 = vunpack.c.l.b16 %v4530
        %v5952 = vunpack.c.h.b16 %v4530
        %v5953 = vunpack.c.l.b16 %v4531
        %v5954 = vunpack.c.l.b16 %v4532
        %v5955 = vunpack.c.h.b16 %v4532
        %v5956 = vunpack.c.l.b16 %v4533
        %v5957 = vunpack.c.h.b16 %v4533
        %v5958 = vunpack.c.l.b16 %v4534
        %v5959 = vunpack.c.h.b16 %v4534
        %v5960 = vunpack.c.l.b16 %v4535
        %v5961 = vunpack.c.l.b16 %v4536
        %v5962 = vunpack.c.h.b16 %v4536
        %v5963 = vunpack.c.l.b16 %v4537
        %v5964 = vunpack.c.h.b16 %v4537
        %v5965 = vunpack.c.l.b16 %v4538
        %v5966 = vunpack.c.h.b16 %v4538
        %v5967 = vunpack.c.l.b16 %v4539
        %v5968 = vunpack.c.l.b16 %v4540
        %v5969 = vunpack.c.h.b16 %v4540
        %v5970 = vunpack.c.l.b16 %v4541
        %v5971 = vunpack.c.h.b16 %v4541
        %v5972 = vunpack.c.l.b16 %v4542
        %v5973 = vunpack.c.h.b16 %v4542
        %v5974 = vunpack.c.l.b16 %v4543
        %v5975 = vunpack.c.l.b16 %v4544
        %v5976 = vunpack.c.h.b16 %v4544
        %v5977 = vunpack.c.l.b16 %v4545
        %v5978 = vunpack.c.h.b16 %v4545
        %v5979 = vunpack.c.l.b16 %v4546
        %v5980 = vunpack.c.h.b16 %v4546
        %v5981 = vunpack.c.l.b16 %v4547
        %v5982 = vunpack.c.l.b16 %v4548
        %v5983 = vunpack.c.h.b16 %v4548
        %v5984 = vunpack.c.l.b16 %v4549
        %v5985 = vunpack.c.h.b16 %v4549
        %v5986 = vunpack.c.l.b16 %v4550
        %v5987 = vunpack.c.h.b16 %v4550
        %v5988 = vunpack.c.l.b16 %v4551
        %v5989 = vunpack.c.l.b16 %v4552
        %v5990 = vunpack.c.h.b16 %v4552
        %v5991 = vunpack.c.l.b16 %v4553
        %v5992 = vunpack.c.h.b16 %v4553
        %v5993 = vunpack.c.l.b16 %v4554
        %v5994 = vunpack.c.h.b16 %v4554
        %v5995 = vunpack.c.l.b16 %v4555
        %v5996 = vunpack.c.l.b16 %v4556
        %v5997 = vunpack.c.h.b16 %v4556
        %v5998 = vunpack.c.l.b16 %v4557
        %v5999 = vunpack.c.h.b16 %v4557
        %v6000 = vunpack.c.l.b16 %v4558
        %v6001 = vunpack.c.h.b16 %v4558
        %v6002 = vunpack.c.l.b16 %v4559
        %v6003 = vunpack.c.l.b16 %v4560
        %v6004 = vunpack.c.h.b16 %v4560
        %v6005 = vunpack.c.l.b16 %v4561
        %v6006 = vunpack.c.h.b16 %v4561
        %v6007 = vunpack.c.l.b16 %v4562
        %v6008 = vunpack.c.h.b16 %v4562
        %v6009 = vunpack.c.l.b16 %v4563
        %v6010 = vunpack.c.l.b16 %v4564
        %v6011 = vunpack.c.h.b16 %v4564
        %v6012 = vunpack.c.l.b16 %v4565
        %v6013 = vunpack.c.h.b16 %v4565
        %v6014 = vunpack.c.l.b16 %v4566
        %v6015 = vunpack.c.h.b16 %v4566
        %v6016 = vunpack.c.l.b16 %v4567
        %v6017 = vunpack.c.l.b16 %v4568
        %v6018 = vunpack.c.h.b16 %v4568
        %v6019 = vunpack.c.l.b16 %v4569
        %v6020 = vunpack.c.h.b16 %v4569
        %v6021 = vunpack.c.l.b16 %v4570
        %v6022 = vunpack.c.h.b16 %v4570
        %v6023 = vunpack.c.l.b16 %v4571
        %v6024 = vpack.c.b16 %v5135, %v5128
        %v6025 = vpack.c.b16 %v5136, %v5129
        %v6026 = vpack.c.b16 %v5137, %v5130
        %v6027 = vpack.c.b16 %v5138, %v5131
        %v6028 = vpack.c.b16 %v5139, %v5132
        %v6029 = vpack.c.b16 %v5140, %v5133
        %v6030 = vpack.c.b16 %v5141, %v5134
        %v6031 = vpack.c.b16 %v5149, %v5142
        %v6032 = vpack.c.b16 %v5150, %v5143
        %v6033 = vpack.c.b16 %v5151, %v5144
        %v6034 = vpack.c.b16 %v5152, %v5145
        %v6035 = vpack.c.b16 %v5153, %v5146
        %v6036 = vpack.c.b16 %v5154, %v5147
        %v6037 = vpack.c.b16 %v5155, %v5148
        %v6038 = vpack.c.b16 %v5163, %v5156
        %v6039 = vpack.c.b16 %v5164, %v5157
        %v6040 = vpack.c.b16 %v5165, %v5158
        %v6041 = vpack.c.b16 %v5166, %v5159
        %v6042 = vpack.c.b16 %v5167, %v5160
        %v6043 = vpack.c.b16 %v5168, %v5161
        %v6044 = vpack.c.b16 %v5169, %v5162
        %v6045 = vpack.c.b16 %v5177, %v5170
        %v6046 = vpack.c.b16 %v5178, %v5171
        %v6047 = vpack.c.b16 %v5179, %v5172
        %v6048 = vpack.c.b16 %v5180, %v5173
        %v6049 = vpack.c.b16 %v5181, %v5174
        %v6050 = vpack.c.b16 %v5182, %v5175
        %v6051 = vpack.c.b16 %v5183, %v5176
        %v6052 = vpack.c.b16 %v5191, %v5184
        %v6053 = vpack.c.b16 %v5192, %v5185
        %v6054 = vpack.c.b16 %v5193, %v5186
        %v6055 = vpack.c.b16 %v5194, %v5187
        %v6056 = vpack.c.b16 %v5195, %v5188
        %v6057 = vpack.c.b16 %v5196, %v5189
        %v6058 = vpack.c.b16 %v5197, %v5190
        %v6059 = vpack.c.b16 %v5205, %v5198
        %v6060 = vpack.c.b16 %v5206, %v5199
        %v6061 = vpack.c.b16 %v5207, %v5200
        %v6062 = vpack.c.b16 %v5208, %v5201
        %v6063 = vpack.c.b16 %v5209, %v5202
        %v6064 = vpack.c.b16 %v5210, %v5203
        %v6065 = vpack.c.b16 %v5211, %v5204
        %v6066 = vpack.c.b16 %v5219, %v5212
        %v6067 = vpack.c.b16 %v5220, %v5213
        %v6068 = vpack.c.b16 %v5221, %v5214
        %v6069 = vpack.c.b16 %v5222, %v5215
        %v6070 = vpack.c.b16 %v5223, %v5216
        %v6071 = vpack.c.b16 %v5224, %v5217
        %v6072 = vpack.c.b16 %v5225, %v5218
        %v6073 = vpack.c.b16 %v5233, %v5226
        %v6074 = vpack.c.b16 %v5234, %v5227
        %v6075 = vpack.c.b16 %v5235, %v5228
        %v6076 = vpack.c.b16 %v5236, %v5229
        %v6077 = vpack.c.b16 %v5237, %v5230
        %v6078 = vpack.c.b16 %v5238, %v5231
        %v6079 = vpack.c.b16 %v5239, %v5232
        %v6080 = vpack.c.b16 %v5247, %v5240
        %v6081 = vpack.c.b16 %v5248, %v5241
        %v6082 = vpack.c.b16 %v5249, %v5242
        %v6083 = vpack.c.b16 %v5250, %v5243
        %v6084 = vpack.c.b16 %v5251, %v5244
        %v6085 = vpack.c.b16 %v5252, %v5245
        %v6086 = vpack.c.b16 %v5253, %v5246
        %v6087 = vpack.c.b16 %v5261, %v5254
        %v6088 = vpack.c.b16 %v5262, %v5255
        %v6089 = vpack.c.b16 %v5263, %v5256
        %v6090 = vpack.c.b16 %v5264, %v5257
        %v6091 = vpack.c.b16 %v5265, %v5258
        %v6092 = vpack.c.b16 %v5266, %v5259
        %v6093 = vpack.c.b16 %v5267, %v5260
        %v6094 = vpack.c.b16 %v5275, %v5268
        %v6095 = vpack.c.b16 %v5276, %v5269
        %v6096 = vpack.c.b16 %v5277, %v5270
        %v6097 = vpack.c.b16 %v5278, %v5271
        %v6098 = vpack.c.b16 %v5279, %v5272
        %v6099 = vpack.c.b16 %v5280, %v5273
        %v6100 = vpack.c.b16 %v5281, %v5274
        %v6101 = vpack.c.b16 %v5289, %v5282
        %v6102 = vpack.c.b16 %v5290, %v5283
        %v6103 = vpack.c.b16 %v5291, %v5284
        %v6104 = vpack.c.b16 %v5292, %v5285
        %v6105 = vpack.c.b16 %v5293, %v5286
        %v6106 = vpack.c.b16 %v5294, %v5287
        %v6107 = vpack.c.b16 %v5295, %v5288
        %v6108 = vpack.c.b16 %v5303, %v5296
        %v6109 = vpack.c.b16 %v5304, %v5297
        %v6110 = vpack.c.b16 %v5305, %v5298
        %v6111 = vpack.c.b16 %v5306, %v5299
        %v6112 = vpack.c.b16 %v5307, %v5300
        %v6113 = vpack.c.b16 %v5308, %v5301
        %v6114 = vpack.c.b16 %v5309, %v5302
        %v6115 = vpack.c.b16 %v5317, %v5310
        %v6116 = vpack.c.b16 %v5318, %v5311
        %v6117 = vpack.c.b16 %v5319, %v5312
        %v6118 = vpack.c.b16 %v5320, %v5313
        %v6119 = vpack.c.b16 %v5321, %v5314
        %v6120 = vpack.c.b16 %v5322, %v5315
        %v6121 = vpack.c.b16 %v5323, %v5316
        %v6122 = vpack.c.b16 %v5331, %v5324
        %v6123 = vpack.c.b16 %v5332, %v5325
        %v6124 = vpack.c.b16 %v5333, %v5326
        %v6125 = vpack.c.b16 %v5334, %v5327
        %v6126 = vpack.c.b16 %v5335, %v5328
        %v6127 = vpack.c.b16 %v5336, %v5329
        %v6128 = vpack.c.b16 %v5337, %v5330
        %v6129 = vpack.c.b16 %v5345, %v5338
        %v6130 = vpack.c.b16 %v5346, %v5339
        %v6131 = vpack.c.b16 %v5347, %v5340
        %v6132 = vpack.c.b16 %v5348, %v5341
        %v6133 = vpack.c.b16 %v5349, %v5342
        %v6134 = vpack.c.b16 %v5350, %v5343
        %v6135 = vpack.c.b16 %v5351, %v5344
        %v6136 = vpack.c.b16 %v5359, %v5352
        %v6137 = vpack.c.b16 %v5360, %v5353
        %v6138 = vpack.c.b16 %v5361, %v5354
        %v6139 = vpack.c.b16 %v5362, %v5355
        %v6140 = vpack.c.b16 %v5363, %v5356
        %v6141 = vpack.c.b16 %v5364, %v5357
        %v6142 = vpack.c.b16 %v5365, %v5358
        %v6143 = vpack.c.b16 %v5373, %v5366
        %v6144 = vpack.c.b16 %v5374, %v5367
        %v6145 = vpack.c.b16 %v5375, %v5368
        %v6146 = vpack.c.b16 %v5376, %v5369
        %v6147 = vpack.c.b16 %v5377, %v5370
        %v6148 = vpack.c.b16 %v5378, %v5371
        %v6149 = vpack.c.b16 %v5379, %v5372
        %v6150 = vpack.c.b16 %v5387, %v5380
        %v6151 = vpack.c.b16 %v5388, %v5381
        %v6152 = vpack.c.b16 %v5389, %v5382
        %v6153 = vpack.c.b16 %v5390, %v5383
        %v6154 = vpack.c.b16 %v5391, %v5384
        %v6155 = vpack.c.b16 %v5392, %v5385
        %v6156 = vpack.c.b16 %v5393, %v5386
        %v6157 = vpack.c.b16 %v5401, %v5394
        %v6158 = vpack.c.b16 %v5402, %v5395
        %v6159 = vpack.c.b16 %v5403, %v5396
        %v6160 = vpack.c.b16 %v5404, %v5397
        %v6161 = vpack.c.b16 %v5405, %v5398
        %v6162 = vpack.c.b16 %v5406, %v5399
        %v6163 = vpack.c.b16 %v5407, %v5400
        %v6164 = vpack.c.b16 %v5415, %v5408
        %v6165 = vpack.c.b16 %v5416, %v5409
        %v6166 = vpack.c.b16 %v5417, %v5410
        %v6167 = vpack.c.b16 %v5418, %v5411
        %v6168 = vpack.c.b16 %v5419, %v5412
        %v6169 = vpack.c.b16 %v5420, %v5413
        %v6170 = vpack.c.b16 %v5421, %v5414
        %v6171 = vpack.c.b16 %v5429, %v5422
        %v6172 = vpack.c.b16 %v5430, %v5423
        %v6173 = vpack.c.b16 %v5431, %v5424
        %v6174 = vpack.c.b16 %v5432, %v5425
        %v6175 = vpack.c.b16 %v5433, %v5426
        %v6176 = vpack.c.b16 %v5434, %v5427
        %v6177 = vpack.c.b16 %v5435, %v5428
        %v6178 = vpack.c.b16 %v5443, %v5436
        %v6179 = vpack.c.b16 %v5444, %v5437
        %v6180 = vpack.c.b16 %v5445, %v5438
        %v6181 = vpack.c.b16 %v5446, %v5439
        %v6182 = vpack.c.b16 %v5447, %v5440
        %v6183 = vpack.c.b16 %v5448, %v5441
        %v6184 = vpack.c.b16 %v5449, %v5442
        %v6185 = vpack.c.b16 %v5457, %v5450
        %v6186 = vpack.c.b16 %v5458, %v5451
        %v6187 = vpack.c.b16 %v5459, %v5452
        %v6188 = vpack.c.b16 %v5460, %v5453
        %v6189 = vpack.c.b16 %v5461, %v5454
        %v6190 = vpack.c.b16 %v5462, %v5455
        %v6191 = vpack.c.b16 %v5463, %v5456
        %v6192 = vpack.c.b16 %v5471, %v5464
        %v6193 = vpack.c.b16 %v5472, %v5465
        %v6194 = vpack.c.b16 %v5473, %v5466
        %v6195 = vpack.c.b16 %v5474, %v5467
        %v6196 = vpack.c.b16 %v5475, %v5468
        %v6197 = vpack.c.b16 %v5476, %v5469
        %v6198 = vpack.c.b16 %v5477, %v5470
        %v6199 = vpack.c.b16 %v5485, %v5478
        %v6200 = vpack.c.b16 %v5486, %v5479
        %v6201 = vpack.c.b16 %v5487, %v5480
        %v6202 = vpack.c.b16 %v5488, %v5481
        %v6203 = vpack.c.b16 %v5489, %v5482
        %v6204 = vpack.c.b16 %v5490, %v5483
        %v6205 = vpack.c.b16 %v5491, %v5484
        %v6206 = vpack.c.b16 %v5499, %v5492
        %v6207 = vpack.c.b16 %v5500, %v5493
        %v6208 = vpack.c.b16 %v5501, %v5494
        %v6209 = vpack.c.b16 %v5502, %v5495
        %v6210 = vpack.c.b16 %v5503, %v5496
        %v6211 = vpack.c.b16 %v5504, %v5497
        %v6212 = vpack.c.b16 %v5505, %v5498
        %v6213 = vpack.c.b16 %v5513, %v5506
        %v6214 = vpack.c.b16 %v5514, %v5507
        %v6215 = vpack.c.b16 %v5515, %v5508
        %v6216 = vpack.c.b16 %v5516, %v5509
        %v6217 = vpack.c.b16 %v5517, %v5510
        %v6218 = vpack.c.b16 %v5518, %v5511
        %v6219 = vpack.c.b16 %v5519, %v5512
        %v6220 = vpack.c.b16 %v5527, %v5520
        %v6221 = vpack.c.b16 %v5528, %v5521
        %v6222 = vpack.c.b16 %v5529, %v5522
        %v6223 = vpack.c.b16 %v5530, %v5523
        %v6224 = vpack.c.b16 %v5531, %v5524
        %v6225 = vpack.c.b16 %v5532, %v5525
        %v6226 = vpack.c.b16 %v5533, %v5526
        %v6227 = vpack.c.b16 %v5541, %v5534
        %v6228 = vpack.c.b16 %v5542, %v5535
        %v6229 = vpack.c.b16 %v5543, %v5536
        %v6230 = vpack.c.b16 %v5544, %v5537
        %v6231 = vpack.c.b16 %v5545, %v5538
        %v6232 = vpack.c.b16 %v5546, %v5539
        %v6233 = vpack.c.b16 %v5547, %v5540
        %v6234 = vpack.c.b16 %v5555, %v5548
        %v6235 = vpack.c.b16 %v5556, %v5549
        %v6236 = vpack.c.b16 %v5557, %v5550
        %v6237 = vpack.c.b16 %v5558, %v5551
        %v6238 = vpack.c.b16 %v5559, %v5552
        %v6239 = vpack.c.b16 %v5560, %v5553
        %v6240 = vpack.c.b16 %v5561, %v5554
        %v6241 = vpack.c.b16 %v5569, %v5562
        %v6242 = vpack.c.b16 %v5570, %v5563
        %v6243 = vpack.c.b16 %v5571, %v5564
        %v6244 = vpack.c.b16 %v5572, %v5565
        %v6245 = vpack.c.b16 %v5573, %v5566
        %v6246 = vpack.c.b16 %v5574, %v5567
        %v6247 = vpack.c.b16 %v5575, %v5568
        %v6248 = vpack.c.b16 %v5583, %v5576
        %v6249 = vpack.c.b16 %v5584, %v5577
        %v6250 = vpack.c.b16 %v5585, %v5578
        %v6251 = vpack.c.b16 %v5586, %v5579
        %v6252 = vpack.c.b16 %v5587, %v5580
        %v6253 = vpack.c.b16 %v5588, %v5581
        %v6254 = vpack.c.b16 %v5589, %v5582
        %v6255 = vpack.c.b16 %v5597, %v5590
        %v6256 = vpack.c.b16 %v5598, %v5591
        %v6257 = vpack.c.b16 %v5599, %v5592
        %v6258 = vpack.c.b16 %v5600, %v5593
        %v6259 = vpack.c.b16 %v5601, %v5594
        %v6260 = vpack.c.b16 %v5602, %v5595
        %v6261 = vpack.c.b16 %v5603, %v5596
        %v6262 = vpack.c.b16 %v5611, %v5604
        %v6263 = vpack.c.b16 %v5612, %v5605
        %v6264 = vpack.c.b16 %v5613, %v5606
        %v6265 = vpack.c.b16 %v5614, %v5607
        %v6266 = vpack.c.b16 %v5615, %v5608
        %v6267 = vpack.c.b16 %v5616, %v5609
        %v6268 = vpack.c.b16 %v5617, %v5610
        %v6269 = vpack.c.b16 %v5625, %v5618
        %v6270 = vpack.c.b16 %v5626, %v5619
        %v6271 = vpack.c.b16 %v5627, %v5620
        %v6272 = vpack.c.b16 %v5628, %v5621
        %v6273 = vpack.c.b16 %v5629, %v5622
        %v6274 = vpack.c.b16 %v5630, %v5623
        %v6275 = vpack.c.b16 %v5631, %v5624
        %v6276 = vpack.c.b16 %v5639, %v5632
        %v6277 = vpack.c.b16 %v5640, %v5633
        %v6278 = vpack.c.b16 %v5641, %v5634
        %v6279 = vpack.c.b16 %v5642, %v5635
        %v6280 = vpack.c.b16 %v5643, %v5636
        %v6281 = vpack.c.b16 %v5644, %v5637
        %v6282 = vpack.c.b16 %v5645, %v5638
        %v6283 = vpack.c.b16 %v5653, %v5646
        %v6284 = vpack.c.b16 %v5654, %v5647
        %v6285 = vpack.c.b16 %v5655, %v5648
        %v6286 = vpack.c.b16 %v5656, %v5649
        %v6287 = vpack.c.b16 %v5657, %v5650
        %v6288 = vpack.c.b16 %v5658, %v5651
        %v6289 = vpack.c.b16 %v5659, %v5652
        %v6290 = vpack.c.b16 %v5667, %v5660
        %v6291 = vpack.c.b16 %v5668, %v5661
        %v6292 = vpack.c.b16 %v5669, %v5662
        %v6293 = vpack.c.b16 %v5670, %v5663
        %v6294 = vpack.c.b16 %v5671, %v5664
        %v6295 = vpack.c.b16 %v5672, %v5665
        %v6296 = vpack.c.b16 %v5673, %v5666
        %v6297 = vpack.c.b16 %v5681, %v5674
        %v6298 = vpack.c.b16 %v5682, %v5675
        %v6299 = vpack.c.b16 %v5683, %v5676
        %v6300 = vpack.c.b16 %v5684, %v5677
        %v6301 = vpack.c.b16 %v5685, %v5678
        %v6302 = vpack.c.b16 %v5686, %v5679
        %v6303 = vpack.c.b16 %v5687, %v5680
        %v6304 = vpack.c.b16 %v5695, %v5688
        %v6305 = vpack.c.b16 %v5696, %v5689
        %v6306 = vpack.c.b16 %v5697, %v5690
        %v6307 = vpack.c.b16 %v5698, %v5691
        %v6308 = vpack.c.b16 %v5699, %v5692
        %v6309 = vpack.c.b16 %v5700, %v5693
        %v6310 = vpack.c.b16 %v5701, %v5694
        %v6311 = vpack.c.b16 %v5709, %v5702
        %v6312 = vpack.c.b16 %v5710, %v5703
        %v6313 = vpack.c.b16 %v5711, %v5704
        %v6314 = vpack.c.b16 %v5712, %v5705
        %v6315 = vpack.c.b16 %v5713, %v5706
        %v6316 = vpack.c.b16 %v5714, %v5707
        %v6317 = vpack.c.b16 %v5715, %v5708
        %v6318 = vpack.c.b16 %v5723, %v5716
        %v6319 = vpack.c.b16 %v5724, %v5717
        %v6320 = vpack.c.b16 %v5725, %v5718
        %v6321 = vpack.c.b16 %v5726, %v5719
        %v6322 = vpack.c.b16 %v5727, %v5720
        %v6323 = vpack.c.b16 %v5728, %v5721
        %v6324 = vpack.c.b16 %v5729, %v5722
        %v6325 = vpack.c.b16 %v5737, %v5730
        %v6326 = vpack.c.b16 %v5738, %v5731
        %v6327 = vpack.c.b16 %v5739, %v5732
        %v6328 = vpack.c.b16 %v5740, %v5733
        %v6329 = vpack.c.b16 %v5741, %v5734
        %v6330 = vpack.c.b16 %v5742, %v5735
        %v6331 = vpack.c.b16 %v5743, %v5736
        %v6332 = vpack.c.b16 %v5751, %v5744
        %v6333 = vpack.c.b16 %v5752, %v5745
        %v6334 = vpack.c.b16 %v5753, %v5746
        %v6335 = vpack.c.b16 %v5754, %v5747
        %v6336 = vpack.c.b16 %v5755, %v5748
        %v6337 = vpack.c.b16 %v5756, %v5749
        %v6338 = vpack.c.b16 %v5757, %v5750
        %v6339 = vpack.c.b16 %v5765, %v5758
        %v6340 = vpack.c.b16 %v5766, %v5759
        %v6341 = vpack.c.b16 %v5767, %v5760
        %v6342 = vpack.c.b16 %v5768, %v5761
        %v6343 = vpack.c.b16 %v5769, %v5762
        %v6344 = vpack.c.b16 %v5770, %v5763
        %v6345 = vpack.c.b16 %v5771, %v5764
        %v6346 = vpack.c.b16 %v5779, %v5772
        %v6347 = vpack.c.b16 %v5780, %v5773
        %v6348 = vpack.c.b16 %v5781, %v5774
        %v6349 = vpack.c.b16 %v5782, %v5775
        %v6350 = vpack.c.b16 %v5783, %v5776
        %v6351 = vpack.c.b16 %v5784, %v5777
        %v6352 = vpack.c.b16 %v5785, %v5778
        %v6353 = vpack.c.b16 %v5793, %v5786
        %v6354 = vpack.c.b16 %v5794, %v5787
        %v6355 = vpack.c.b16 %v5795, %v5788
        %v6356 = vpack.c.b16 %v5796, %v5789
        %v6357 = vpack.c.b16 %v5797, %v5790
        %v6358 = vpack.c.b16 %v5798, %v5791
        %v6359 = vpack.c.b16 %v5799, %v5792
        %v6360 = vpack.c.b16 %v5807, %v5800
        %v6361 = vpack.c.b16 %v5808, %v5801
        %v6362 = vpack.c.b16 %v5809, %v5802
        %v6363 = vpack.c.b16 %v5810, %v5803
        %v6364 = vpack.c.b16 %v5811, %v5804
        %v6365 = vpack.c.b16 %v5812, %v5805
        %v6366 = vpack.c.b16 %v5813, %v5806
        %v6367 = vpack.c.b16 %v5821, %v5814
        %v6368 = vpack.c.b16 %v5822, %v5815
        %v6369 = vpack.c.b16 %v5823, %v5816
        %v6370 = vpack.c.b16 %v5824, %v5817
        %v6371 = vpack.c.b16 %v5825, %v5818
        %v6372 = vpack.c.b16 %v5826, %v5819
        %v6373 = vpack.c.b16 %v5827, %v5820
        %v6374 = vpack.c.b16 %v5835, %v5828
        %v6375 = vpack.c.b16 %v5836, %v5829
        %v6376 = vpack.c.b16 %v5837, %v5830
        %v6377 = vpack.c.b16 %v5838, %v5831
        %v6378 = vpack.c.b16 %v5839, %v5832
        %v6379 = vpack.c.b16 %v5840, %v5833
        %v6380 = vpack.c.b16 %v5841, %v5834
        %v6381 = vpack.c.b16 %v5849, %v5842
        %v6382 = vpack.c.b16 %v5850, %v5843
        %v6383 = vpack.c.b16 %v5851, %v5844
        %v6384 = vpack.c.b16 %v5852, %v5845
        %v6385 = vpack.c.b16 %v5853, %v5846
        %v6386 = vpack.c.b16 %v5854, %v5847
        %v6387 = vpack.c.b16 %v5855, %v5848
        %v6388 = vpack.c.b16 %v5863, %v5856
        %v6389 = vpack.c.b16 %v5864, %v5857
        %v6390 = vpack.c.b16 %v5865, %v5858
        %v6391 = vpack.c.b16 %v5866, %v5859
        %v6392 = vpack.c.b16 %v5867, %v5860
        %v6393 = vpack.c.b16 %v5868, %v5861
        %v6394 = vpack.c.b16 %v5869, %v5862
        %v6395 = vpack.c.b16 %v5877, %v5870
        %v6396 = vpack.c.b16 %v5878, %v5871
        %v6397 = vpack.c.b16 %v5879, %v5872
        %v6398 = vpack.c.b16 %v5880, %v5873
        %v6399 = vpack.c.b16 %v5881, %v5874
        %v6400 = vpack.c.b16 %v5882, %v5875
        %v6401 = vpack.c.b16 %v5883, %v5876
        %v6402 = vpack.c.b16 %v5891, %v5884
        %v6403 = vpack.c.b16 %v5892, %v5885
        %v6404 = vpack.c.b16 %v5893, %v5886
        %v6405 = vpack.c.b16 %v5894, %v5887
        %v6406 = vpack.c.b16 %v5895, %v5888
        %v6407 = vpack.c.b16 %v5896, %v5889
        %v6408 = vpack.c.b16 %v5897, %v5890
        %v6409 = vpack.c.b16 %v5905, %v5898
        %v6410 = vpack.c.b16 %v5906, %v5899
        %v6411 = vpack.c.b16 %v5907, %v5900
        %v6412 = vpack.c.b16 %v5908, %v5901
        %v6413 = vpack.c.b16 %v5909, %v5902
        %v6414 = vpack.c.b16 %v5910, %v5903
        %v6415 = vpack.c.b16 %v5911, %v5904
        %v6416 = vpack.c.b16 %v5919, %v5912
        %v6417 = vpack.c.b16 %v5920, %v5913
        %v6418 = vpack.c.b16 %v5921, %v5914
        %v6419 = vpack.c.b16 %v5922, %v5915
        %v6420 = vpack.c.b16 %v5923, %v5916
        %v6421 = vpack.c.b16 %v5924, %v5917
        %v6422 = vpack.c.b16 %v5925, %v5918
        %v6423 = vpack.c.b16 %v5933, %v5926
        %v6424 = vpack.c.b16 %v5934, %v5927
        %v6425 = vpack.c.b16 %v5935, %v5928
        %v6426 = vpack.c.b16 %v5936, %v5929
        %v6427 = vpack.c.b16 %v5937, %v5930
        %v6428 = vpack.c.b16 %v5938, %v5931
        %v6429 = vpack.c.b16 %v5939, %v5932
        %v6430 = vpack.c.b16 %v5947, %v5940
        %v6431 = vpack.c.b16 %v5948, %v5941
        %v6432 = vpack.c.b16 %v5949, %v5942
        %v6433 = vpack.c.b16 %v5950, %v5943
        %v6434 = vpack.c.b16 %v5951, %v5944
        %v6435 = vpack.c.b16 %v5952, %v5945
        %v6436 = vpack.c.b16 %v5953, %v5946
        %v6437 = vpack.c.b16 %v5961, %v5954
        %v6438 = vpack.c.b16 %v5962, %v5955
        %v6439 = vpack.c.b16 %v5963, %v5956
        %v6440 = vpack.c.b16 %v5964, %v5957
        %v6441 = vpack.c.b16 %v5965, %v5958
        %v6442 = vpack.c.b16 %v5966, %v5959
        %v6443 = vpack.c.b16 %v5967, %v5960
        %v6444 = vpack.c.b16 %v5975, %v5968
        %v6445 = vpack.c.b16 %v5976, %v5969
        %v6446 = vpack.c.b16 %v5977, %v5970
        %v6447 = vpack.c.b16 %v5978, %v5971
        %v6448 = vpack.c.b16 %v5979, %v5972
        %v6449 = vpack.c.b16 %v5980, %v5973
        %v6450 = vpack.c.b16 %v5981, %v5974
        %v6451 = vpack.c.b16 %v5989, %v5982
        %v6452 = vpack.c.b16 %v5990, %v5983
        %v6453 = vpack.c.b16 %v5991, %v5984
        %v6454 = vpack.c.b16 %v5992, %v5985
        %v6455 = vpack.c.b16 %v5993, %v5986
        %v6456 = vpack.c.b16 %v5994, %v5987
        %v6457 = vpack.c.b16 %v5995, %v5988
        %v6458 = vpack.c.b16 %v6003, %v5996
        %v6459 = vpack.c.b16 %v6004, %v5997
        %v6460 = vpack.c.b16 %v6005, %v5998
        %v6461 = vpack.c.b16 %v6006, %v5999
        %v6462 = vpack.c.b16 %v6007, %v6000
        %v6463 = vpack.c.b16 %v6008, %v6001
        %v6464 = vpack.c.b16 %v6009, %v6002
        %v6465 = vpack.c.b16 %v6017, %v6010
        %v6466 = vpack.c.b16 %v6018, %v6011
        %v6467 = vpack.c.b16 %v6019, %v6012
        %v6468 = vpack.c.b16 %v6020, %v6013
        %v6469 = vpack.c.b16 %v6021, %v6014
        %v6470 = vpack.c.b16 %v6022, %v6015
        %v6471 = vpack.c.b16 %v6023, %v6016
        %6920 = vmatpush.bf16.msra.mxu0 %v6073
        %6921 = vmatpush.bf16.msra.mxu0 %v6066
        %6922 = vmatpush.bf16.msra.mxu0 %v6059
        %6923 = vmatpush.bf16.msra.mxu0 %v6052
        %6924 = vmatpush.bf16.msra.mxu0 %v6045
        %6925 = vmatpush.bf16.msra.mxu0 %v6038
        %6926 = vmatpush.bf16.msra.mxu0 %v6031
        %6927 = vmatpush.bf16.msra.mxu0 %v6024
        %6928 = vmatmul.bf16.gmra.mxu0 %v4600
        %v6929 = vpop.f32.mrf.mxu0
        %v6930 = vadd.f32 %v4574, %v6929
        %v6931 = vpop.f32.mrf.mxu0
        %6932 = vdwg.mxu0
        %6933 = vmatpush.bf16.msra.mxu0 %v6129
        %6934 = vmatpush.bf16.msra.mxu0 %v6122
        %6935 = vmatpush.bf16.msra.mxu0 %v6115
        %6936 = vmatpush.bf16.msra.mxu0 %v6108
        %6937 = vmatpush.bf16.msra.mxu0 %v6101
        %6938 = vmatpush.bf16.msra.mxu0 %v6094
        %6939 = vmatpush.bf16.msra.mxu0 %v6087
        %6940 = vmatpush.bf16.msra.mxu0 %v6080
        %6941 = vmatmul.bf16.gmra.mxu0 %v4601
        %v6942 = vpop.f32.mrf.mxu0
        %v6943 = vadd.f32 %v6930, %v6942
        %v6944 = vpop.f32.mrf.mxu0
        %6945 = vdwg.mxu0
        %6946 = vmatpush.bf16.msra.mxu0 %v6185
        %6947 = vmatpush.bf16.msra.mxu0 %v6178
        %6948 = vmatpush.bf16.msra.mxu0 %v6171
        %6949 = vmatpush.bf16.msra.mxu0 %v6164
        %6950 = vmatpush.bf16.msra.mxu0 %v6157
        %6951 = vmatpush.bf16.msra.mxu0 %v6150
        %6952 = vmatpush.bf16.msra.mxu0 %v6143
        %6953 = vmatpush.bf16.msra.mxu0 %v6136
        %6954 = vmatmul.bf16.gmra.mxu0 %v4602
        %v6955 = vpop.f32.mrf.mxu0
        %v6956 = vadd.f32 %v6943, %v6955
        %v6957 = vpop.f32.mrf.mxu0
        %6958 = vdwg.mxu0
        %6959 = vmatpush.bf16.msra.mxu0 %v6241
        %6960 = vmatpush.bf16.msra.mxu0 %v6234
        %6961 = vmatpush.bf16.msra.mxu0 %v6227
        %6962 = vmatpush.bf16.msra.mxu0 %v6220
        %6963 = vmatpush.bf16.msra.mxu0 %v6213
        %6964 = vmatpush.bf16.msra.mxu0 %v6206
        %6965 = vmatpush.bf16.msra.mxu0 %v6199
        %6966 = vmatpush.bf16.msra.mxu0 %v6192
        %6967 = vmatmul.bf16.gmra.mxu0 %v4603
        %v6968 = vpop.f32.mrf.mxu0
        %v6969 = vadd.f32 %v6956, %v6968
        %v6970 = vpop.f32.mrf.mxu0
        %6971 = vdwg.mxu0
        %6972 = vmatpush.bf16.msra.mxu0 %v6297
        %6973 = vmatpush.bf16.msra.mxu0 %v6290
        %6974 = vmatpush.bf16.msra.mxu0 %v6283
        %6975 = vmatpush.bf16.msra.mxu0 %v6276
        %6976 = vmatpush.bf16.msra.mxu0 %v6269
        %6977 = vmatpush.bf16.msra.mxu0 %v6262
        %6978 = vmatpush.bf16.msra.mxu0 %v6255
        %6979 = vmatpush.bf16.msra.mxu0 %v6248
        %6980 = vmatmul.bf16.gmra.mxu0 %v4604
        %v6981 = vpop.f32.mrf.mxu0
        %v6982 = vadd.f32 %v6969, %v6981
        %v6983 = vpop.f32.mrf.mxu0
        %6984 = vdwg.mxu0
        %6985 = vmatpush.bf16.msra.mxu0 %v6353
        %6986 = vmatpush.bf16.msra.mxu0 %v6346
        %6987 = vmatpush.bf16.msra.mxu0 %v6339
        %6988 = vmatpush.bf16.msra.mxu0 %v6332
        %6989 = vmatpush.bf16.msra.mxu0 %v6325
        %6990 = vmatpush.bf16.msra.mxu0 %v6318
        %6991 = vmatpush.bf16.msra.mxu0 %v6311
        %6992 = vmatpush.bf16.msra.mxu0 %v6304
        %6993 = vmatmul.bf16.gmra.mxu0 %v4605
        %v6994 = vpop.f32.mrf.mxu0
        %v6995 = vadd.f32 %v6982, %v6994
        %v6996 = vpop.f32.mrf.mxu0
        %6997 = vdwg.mxu0
        %6998 = vmatpush.bf16.msra.mxu0 %v6409
        %6999 = vmatpush.bf16.msra.mxu0 %v6402
        %7000 = vmatpush.bf16.msra.mxu0 %v6395
        %7001 = vmatpush.bf16.msra.mxu0 %v6388
        %7002 = vmatpush.bf16.msra.mxu0 %v6381
        %7003 = vmatpush.bf16.msra.mxu0 %v6374
        %7004 = vmatpush.bf16.msra.mxu0 %v6367
        %7005 = vmatpush.bf16.msra.mxu0 %v6360
        %7006 = vmatmul.bf16.gmra.mxu0 %v4606
        %v7007 = vpop.f32.mrf.mxu0
        %v7008 = vadd.f32 %v6995, %v7007
        %v7009 = vpop.f32.mrf.mxu0
        %7010 = vdwg.mxu0
        %7011 = vmatpush.bf16.msra.mxu0 %v6465
        %7012 = vmatpush.bf16.msra.mxu0 %v6458
        %7013 = vmatpush.bf16.msra.mxu0 %v6451
        %7014 = vmatpush.bf16.msra.mxu0 %v6444
        %7015 = vmatpush.bf16.msra.mxu0 %v6437
        %7016 = vmatpush.bf16.msra.mxu0 %v6430
        %7017 = vmatpush.bf16.msra.mxu0 %v6423
        %7018 = vmatpush.bf16.msra.mxu0 %v6416
        %7019 = vmatmul.bf16.gmra.mxu0 %v4607
        %v7020 = vpop.f32.mrf.mxu0
        %v7021 = vadd.f32 %v7008, %v7020
        %v7022 = vpop.f32.mrf.mxu0
        %7023 = vdwg.mxu0
        %7024 = vmatpush.bf16.msra.mxu0 %v6074
        %7025 = vmatpush.bf16.msra.mxu0 %v6067
        %7026 = vmatpush.bf16.msra.mxu0 %v6060
        %7027 = vmatpush.bf16.msra.mxu0 %v6053
        %7028 = vmatpush.bf16.msra.mxu0 %v6046
        %7029 = vmatpush.bf16.msra.mxu0 %v6039
        %7030 = vmatpush.bf16.msra.mxu0 %v6032
        %7031 = vmatpush.bf16.msra.mxu0 %v6025
        %7032 = vmatmul.bf16.gmra.mxu0 %v4600
        %v7033 = vpop.f32.mrf.mxu0
        %v7034 = vadd.f32 %v4575, %v7033
        %v7035 = vpop.f32.mrf.mxu0
        %7036 = vdwg.mxu0
        %7037 = vmatpush.bf16.msra.mxu0 %v6130
        %7038 = vmatpush.bf16.msra.mxu0 %v6123
        %7039 = vmatpush.bf16.msra.mxu0 %v6116
        %7040 = vmatpush.bf16.msra.mxu0 %v6109
        %7041 = vmatpush.bf16.msra.mxu0 %v6102
        %7042 = vmatpush.bf16.msra.mxu0 %v6095
        %7043 = vmatpush.bf16.msra.mxu0 %v6088
        %7044 = vmatpush.bf16.msra.mxu0 %v6081
        %7045 = vmatmul.bf16.gmra.mxu0 %v4601
        %v7046 = vpop.f32.mrf.mxu0
        %v7047 = vadd.f32 %v7034, %v7046
        %v7048 = vpop.f32.mrf.mxu0
        %7049 = vdwg.mxu0
        %7050 = vmatpush.bf16.msra.mxu0 %v6186
        %7051 = vmatpush.bf16.msra.mxu0 %v6179
        %7052 = vmatpush.bf16.msra.mxu0 %v6172
        %7053 = vmatpush.bf16.msra.mxu0 %v6165
        %7054 = vmatpush.bf16.msra.mxu0 %v6158
        %7055 = vmatpush.bf16.msra.mxu0 %v6151
        %7056 = vmatpush.bf16.msra.mxu0 %v6144
        %7057 = vmatpush.bf16.msra.mxu0 %v6137
        %7058 = vmatmul.bf16.gmra.mxu0 %v4602
        %v7059 = vpop.f32.mrf.mxu0
        %v7060 = vadd.f32 %v7047, %v7059
        %v7061 = vpop.f32.mrf.mxu0
        %7062 = vdwg.mxu0
        %7063 = vmatpush.bf16.msra.mxu0 %v6242
        %7064 = vmatpush.bf16.msra.mxu0 %v6235
        %7065 = vmatpush.bf16.msra.mxu0 %v6228
        %7066 = vmatpush.bf16.msra.mxu0 %v6221
        %7067 = vmatpush.bf16.msra.mxu0 %v6214
        %7068 = vmatpush.bf16.msra.mxu0 %v6207
        %7069 = vmatpush.bf16.msra.mxu0 %v6200
        %7070 = vmatpush.bf16.msra.mxu0 %v6193
        %7071 = vmatmul.bf16.gmra.mxu0 %v4603
        %v7072 = vpop.f32.mrf.mxu0
        %v7073 = vadd.f32 %v7060, %v7072
        %v7074 = vpop.f32.mrf.mxu0
        %7075 = vdwg.mxu0
        %7076 = vmatpush.bf16.msra.mxu0 %v6298
        %7077 = vmatpush.bf16.msra.mxu0 %v6291
        %7078 = vmatpush.bf16.msra.mxu0 %v6284
        %7079 = vmatpush.bf16.msra.mxu0 %v6277
        %7080 = vmatpush.bf16.msra.mxu0 %v6270
        %7081 = vmatpush.bf16.msra.mxu0 %v6263
        %7082 = vmatpush.bf16.msra.mxu0 %v6256
        %7083 = vmatpush.bf16.msra.mxu0 %v6249
        %7084 = vmatmul.bf16.gmra.mxu0 %v4604
        %v7085 = vpop.f32.mrf.mxu0
        %v7086 = vadd.f32 %v7073, %v7085
        %v7087 = vpop.f32.mrf.mxu0
        %7088 = vdwg.mxu0
        %7089 = vmatpush.bf16.msra.mxu0 %v6354
        %7090 = vmatpush.bf16.msra.mxu0 %v6347
        %7091 = vmatpush.bf16.msra.mxu0 %v6340
        %7092 = vmatpush.bf16.msra.mxu0 %v6333
        %7093 = vmatpush.bf16.msra.mxu0 %v6326
        %7094 = vmatpush.bf16.msra.mxu0 %v6319
        %7095 = vmatpush.bf16.msra.mxu0 %v6312
        %7096 = vmatpush.bf16.msra.mxu0 %v6305
        %7097 = vmatmul.bf16.gmra.mxu0 %v4605
        %v7098 = vpop.f32.mrf.mxu0
        %v7099 = vadd.f32 %v7086, %v7098
        %v7100 = vpop.f32.mrf.mxu0
        %7101 = vdwg.mxu0
        %7102 = vmatpush.bf16.msra.mxu0 %v6410
        %7103 = vmatpush.bf16.msra.mxu0 %v6403
        %7104 = vmatpush.bf16.msra.mxu0 %v6396
        %7105 = vmatpush.bf16.msra.mxu0 %v6389
        %7106 = vmatpush.bf16.msra.mxu0 %v6382
        %7107 = vmatpush.bf16.msra.mxu0 %v6375
        %7108 = vmatpush.bf16.msra.mxu0 %v6368
        %7109 = vmatpush.bf16.msra.mxu0 %v6361
        %7110 = vmatmul.bf16.gmra.mxu0 %v4606
        %v7111 = vpop.f32.mrf.mxu0
        %v7112 = vadd.f32 %v7099, %v7111
        %v7113 = vpop.f32.mrf.mxu0
        %7114 = vdwg.mxu0
        %7115 = vmatpush.bf16.msra.mxu0 %v6466
        %7116 = vmatpush.bf16.msra.mxu0 %v6459
        %7117 = vmatpush.bf16.msra.mxu0 %v6452
        %7118 = vmatpush.bf16.msra.mxu0 %v6445
        %7119 = vmatpush.bf16.msra.mxu0 %v6438
        %7120 = vmatpush.bf16.msra.mxu0 %v6431
        %7121 = vmatpush.bf16.msra.mxu0 %v6424
        %7122 = vmatpush.bf16.msra.mxu0 %v6417
        %7123 = vmatmul.bf16.gmra.mxu0 %v4607
        %v7124 = vpop.f32.mrf.mxu0
        %v7125 = vadd.f32 %v7112, %v7124
        %v7126 = vpop.f32.mrf.mxu0
        %7127 = vdwg.mxu0
        %7128 = vmatpush.bf16.msra.mxu0 %v6075
        %7129 = vmatpush.bf16.msra.mxu0 %v6068
        %7130 = vmatpush.bf16.msra.mxu0 %v6061
        %7131 = vmatpush.bf16.msra.mxu0 %v6054
        %7132 = vmatpush.bf16.msra.mxu0 %v6047
        %7133 = vmatpush.bf16.msra.mxu0 %v6040
        %7134 = vmatpush.bf16.msra.mxu0 %v6033
        %7135 = vmatpush.bf16.msra.mxu0 %v6026
        %7136 = vmatmul.bf16.gmra.mxu0 %v4600
        %v7137 = vpop.f32.mrf.mxu0
        %v7138 = vadd.f32 %v4576, %v7137
        %v7139 = vpop.f32.mrf.mxu0
        %7140 = vdwg.mxu0
        %7141 = vmatpush.bf16.msra.mxu0 %v6131
        %7142 = vmatpush.bf16.msra.mxu0 %v6124
        %7143 = vmatpush.bf16.msra.mxu0 %v6117
        %7144 = vmatpush.bf16.msra.mxu0 %v6110
        %7145 = vmatpush.bf16.msra.mxu0 %v6103
        %7146 = vmatpush.bf16.msra.mxu0 %v6096
        %7147 = vmatpush.bf16.msra.mxu0 %v6089
        %7148 = vmatpush.bf16.msra.mxu0 %v6082
        %7149 = vmatmul.bf16.gmra.mxu0 %v4601
        %v7150 = vpop.f32.mrf.mxu0
        %v7151 = vadd.f32 %v7138, %v7150
        %v7152 = vpop.f32.mrf.mxu0
        %7153 = vdwg.mxu0
        %7154 = vmatpush.bf16.msra.mxu0 %v6187
        %7155 = vmatpush.bf16.msra.mxu0 %v6180
        %7156 = vmatpush.bf16.msra.mxu0 %v6173
        %7157 = vmatpush.bf16.msra.mxu0 %v6166
        %7158 = vmatpush.bf16.msra.mxu0 %v6159
        %7159 = vmatpush.bf16.msra.mxu0 %v6152
        %7160 = vmatpush.bf16.msra.mxu0 %v6145
        %7161 = vmatpush.bf16.msra.mxu0 %v6138
        %7162 = vmatmul.bf16.gmra.mxu0 %v4602
        %v7163 = vpop.f32.mrf.mxu0
        %v7164 = vadd.f32 %v7151, %v7163
        %v7165 = vpop.f32.mrf.mxu0
        %7166 = vdwg.mxu0
        %7167 = vmatpush.bf16.msra.mxu0 %v6243
        %7168 = vmatpush.bf16.msra.mxu0 %v6236
        %7169 = vmatpush.bf16.msra.mxu0 %v6229
        %7170 = vmatpush.bf16.msra.mxu0 %v6222
        %7171 = vmatpush.bf16.msra.mxu0 %v6215
        %7172 = vmatpush.bf16.msra.mxu0 %v6208
        %7173 = vmatpush.bf16.msra.mxu0 %v6201
        %7174 = vmatpush.bf16.msra.mxu0 %v6194
        %7175 = vmatmul.bf16.gmra.mxu0 %v4603
        %v7176 = vpop.f32.mrf.mxu0
        %v7177 = vadd.f32 %v7164, %v7176
        %v7178 = vpop.f32.mrf.mxu0
        %7179 = vdwg.mxu0
        %7180 = vmatpush.bf16.msra.mxu0 %v6299
        %7181 = vmatpush.bf16.msra.mxu0 %v6292
        %7182 = vmatpush.bf16.msra.mxu0 %v6285
        %7183 = vmatpush.bf16.msra.mxu0 %v6278
        %7184 = vmatpush.bf16.msra.mxu0 %v6271
        %7185 = vmatpush.bf16.msra.mxu0 %v6264
        %7186 = vmatpush.bf16.msra.mxu0 %v6257
        %7187 = vmatpush.bf16.msra.mxu0 %v6250
        %7188 = vmatmul.bf16.gmra.mxu0 %v4604
        %v7189 = vpop.f32.mrf.mxu0
        %v7190 = vadd.f32 %v7177, %v7189
        %v7191 = vpop.f32.mrf.mxu0
        %7192 = vdwg.mxu0
        %7193 = vmatpush.bf16.msra.mxu0 %v6355
        %7194 = vmatpush.bf16.msra.mxu0 %v6348
        %7195 = vmatpush.bf16.msra.mxu0 %v6341
        %7196 = vmatpush.bf16.msra.mxu0 %v6334
        %7197 = vmatpush.bf16.msra.mxu0 %v6327
        %7198 = vmatpush.bf16.msra.mxu0 %v6320
        %7199 = vmatpush.bf16.msra.mxu0 %v6313
        %7200 = vmatpush.bf16.msra.mxu0 %v6306
        %7201 = vmatmul.bf16.gmra.mxu0 %v4605
        %v7202 = vpop.f32.mrf.mxu0
        %v7203 = vadd.f32 %v7190, %v7202
        %v7204 = vpop.f32.mrf.mxu0
        %7205 = vdwg.mxu0
        %7206 = vmatpush.bf16.msra.mxu0 %v6411
        %7207 = vmatpush.bf16.msra.mxu0 %v6404
        %7208 = vmatpush.bf16.msra.mxu0 %v6397
        %7209 = vmatpush.bf16.msra.mxu0 %v6390
        %7210 = vmatpush.bf16.msra.mxu0 %v6383
        %7211 = vmatpush.bf16.msra.mxu0 %v6376
        %7212 = vmatpush.bf16.msra.mxu0 %v6369
        %7213 = vmatpush.bf16.msra.mxu0 %v6362
        %7214 = vmatmul.bf16.gmra.mxu0 %v4606
        %v7215 = vpop.f32.mrf.mxu0
        %v7216 = vadd.f32 %v7203, %v7215
        %v7217 = vpop.f32.mrf.mxu0
        %7218 = vdwg.mxu0
        %7219 = vmatpush.bf16.msra.mxu0 %v6467
        %7220 = vmatpush.bf16.msra.mxu0 %v6460
        %7221 = vmatpush.bf16.msra.mxu0 %v6453
        %7222 = vmatpush.bf16.msra.mxu0 %v6446
        %7223 = vmatpush.bf16.msra.mxu0 %v6439
        %7224 = vmatpush.bf16.msra.mxu0 %v6432
        %7225 = vmatpush.bf16.msra.mxu0 %v6425
        %7226 = vmatpush.bf16.msra.mxu0 %v6418
        %7227 = vmatmul.bf16.gmra.mxu0 %v4607
        %v7228 = vpop.f32.mrf.mxu0
        %v7229 = vadd.f32 %v7216, %v7228
        %v7230 = vpop.f32.mrf.mxu0
        %7231 = vdwg.mxu0
        %7232 = vmatpush.bf16.msra.mxu0 %v6076
        %7233 = vmatpush.bf16.msra.mxu0 %v6069
        %7234 = vmatpush.bf16.msra.mxu0 %v6062
        %7235 = vmatpush.bf16.msra.mxu0 %v6055
        %7236 = vmatpush.bf16.msra.mxu0 %v6048
        %7237 = vmatpush.bf16.msra.mxu0 %v6041
        %7238 = vmatpush.bf16.msra.mxu0 %v6034
        %7239 = vmatpush.bf16.msra.mxu0 %v6027
        %7240 = vmatmul.bf16.gmra.mxu0 %v4600
        %v7241 = vpop.f32.mrf.mxu0
        %v7242 = vadd.f32 %v4577, %v7241
        %v7243 = vpop.f32.mrf.mxu0
        %7244 = vdwg.mxu0
        %7245 = vmatpush.bf16.msra.mxu0 %v6132
        %7246 = vmatpush.bf16.msra.mxu0 %v6125
        %7247 = vmatpush.bf16.msra.mxu0 %v6118
        %7248 = vmatpush.bf16.msra.mxu0 %v6111
        %7249 = vmatpush.bf16.msra.mxu0 %v6104
        %7250 = vmatpush.bf16.msra.mxu0 %v6097
        %7251 = vmatpush.bf16.msra.mxu0 %v6090
        %7252 = vmatpush.bf16.msra.mxu0 %v6083
        %7253 = vmatmul.bf16.gmra.mxu0 %v4601
        %v7254 = vpop.f32.mrf.mxu0
        %v7255 = vadd.f32 %v7242, %v7254
        %v7256 = vpop.f32.mrf.mxu0
        %7257 = vdwg.mxu0
        %7258 = vmatpush.bf16.msra.mxu0 %v6188
        %7259 = vmatpush.bf16.msra.mxu0 %v6181
        %7260 = vmatpush.bf16.msra.mxu0 %v6174
        %7261 = vmatpush.bf16.msra.mxu0 %v6167
        %7262 = vmatpush.bf16.msra.mxu0 %v6160
        %7263 = vmatpush.bf16.msra.mxu0 %v6153
        %7264 = vmatpush.bf16.msra.mxu0 %v6146
        %7265 = vmatpush.bf16.msra.mxu0 %v6139
        %7266 = vmatmul.bf16.gmra.mxu0 %v4602
        %v7267 = vpop.f32.mrf.mxu0
        %v7268 = vadd.f32 %v7255, %v7267
        %v7269 = vpop.f32.mrf.mxu0
        %7270 = vdwg.mxu0
        %7271 = vmatpush.bf16.msra.mxu0 %v6244
        %7272 = vmatpush.bf16.msra.mxu0 %v6237
        %7273 = vmatpush.bf16.msra.mxu0 %v6230
        %7274 = vmatpush.bf16.msra.mxu0 %v6223
        %7275 = vmatpush.bf16.msra.mxu0 %v6216
        %7276 = vmatpush.bf16.msra.mxu0 %v6209
        %7277 = vmatpush.bf16.msra.mxu0 %v6202
        %7278 = vmatpush.bf16.msra.mxu0 %v6195
        %7279 = vmatmul.bf16.gmra.mxu0 %v4603
        %v7280 = vpop.f32.mrf.mxu0
        %v7281 = vadd.f32 %v7268, %v7280
        %v7282 = vpop.f32.mrf.mxu0
        %7283 = vdwg.mxu0
        %7284 = vmatpush.bf16.msra.mxu0 %v6300
        %7285 = vmatpush.bf16.msra.mxu0 %v6293
        %7286 = vmatpush.bf16.msra.mxu0 %v6286
        %7287 = vmatpush.bf16.msra.mxu0 %v6279
        %7288 = vmatpush.bf16.msra.mxu0 %v6272
        %7289 = vmatpush.bf16.msra.mxu0 %v6265
        %7290 = vmatpush.bf16.msra.mxu0 %v6258
        %7291 = vmatpush.bf16.msra.mxu0 %v6251
        %7292 = vmatmul.bf16.gmra.mxu0 %v4604
        %v7293 = vpop.f32.mrf.mxu0
        %v7294 = vadd.f32 %v7281, %v7293
        %v7295 = vpop.f32.mrf.mxu0
        %7296 = vdwg.mxu0
        %7297 = vmatpush.bf16.msra.mxu0 %v6356
        %7298 = vmatpush.bf16.msra.mxu0 %v6349
        %7299 = vmatpush.bf16.msra.mxu0 %v6342
        %7300 = vmatpush.bf16.msra.mxu0 %v6335
        %7301 = vmatpush.bf16.msra.mxu0 %v6328
        %7302 = vmatpush.bf16.msra.mxu0 %v6321
        %7303 = vmatpush.bf16.msra.mxu0 %v6314
        %7304 = vmatpush.bf16.msra.mxu0 %v6307
        %7305 = vmatmul.bf16.gmra.mxu0 %v4605
        %v7306 = vpop.f32.mrf.mxu0
        %v7307 = vadd.f32 %v7294, %v7306
        %v7308 = vpop.f32.mrf.mxu0
        %7309 = vdwg.mxu0
        %7310 = vmatpush.bf16.msra.mxu0 %v6412
        %7311 = vmatpush.bf16.msra.mxu0 %v6405
        %7312 = vmatpush.bf16.msra.mxu0 %v6398
        %7313 = vmatpush.bf16.msra.mxu0 %v6391
        %7314 = vmatpush.bf16.msra.mxu0 %v6384
        %7315 = vmatpush.bf16.msra.mxu0 %v6377
        %7316 = vmatpush.bf16.msra.mxu0 %v6370
        %7317 = vmatpush.bf16.msra.mxu0 %v6363
        %7318 = vmatmul.bf16.gmra.mxu0 %v4606
        %v7319 = vpop.f32.mrf.mxu0
        %v7320 = vadd.f32 %v7307, %v7319
        %v7321 = vpop.f32.mrf.mxu0
        %7322 = vdwg.mxu0
        %7323 = vmatpush.bf16.msra.mxu0 %v6468
        %7324 = vmatpush.bf16.msra.mxu0 %v6461
        %7325 = vmatpush.bf16.msra.mxu0 %v6454
        %7326 = vmatpush.bf16.msra.mxu0 %v6447
        %7327 = vmatpush.bf16.msra.mxu0 %v6440
        %7328 = vmatpush.bf16.msra.mxu0 %v6433
        %7329 = vmatpush.bf16.msra.mxu0 %v6426
        %7330 = vmatpush.bf16.msra.mxu0 %v6419
        %7331 = vmatmul.bf16.gmra.mxu0 %v4607
        %v7332 = vpop.f32.mrf.mxu0
        %v7333 = vadd.f32 %v7320, %v7332
        %v7334 = vpop.f32.mrf.mxu0
        %7335 = vdwg.mxu0
        %7336 = vmatpush.bf16.msra.mxu0 %v6077
        %7337 = vmatpush.bf16.msra.mxu0 %v6070
        %7338 = vmatpush.bf16.msra.mxu0 %v6063
        %7339 = vmatpush.bf16.msra.mxu0 %v6056
        %7340 = vmatpush.bf16.msra.mxu0 %v6049
        %7341 = vmatpush.bf16.msra.mxu0 %v6042
        %7342 = vmatpush.bf16.msra.mxu0 %v6035
        %7343 = vmatpush.bf16.msra.mxu0 %v6028
        %7344 = vmatmul.bf16.gmra.mxu0 %v4600
        %v7345 = vpop.f32.mrf.mxu0
        %v7346 = vadd.f32 %v4578, %v7345
        %v7347 = vpop.f32.mrf.mxu0
        %7348 = vdwg.mxu0
        %7349 = vmatpush.bf16.msra.mxu0 %v6133
        %7350 = vmatpush.bf16.msra.mxu0 %v6126
        %7351 = vmatpush.bf16.msra.mxu0 %v6119
        %7352 = vmatpush.bf16.msra.mxu0 %v6112
        %7353 = vmatpush.bf16.msra.mxu0 %v6105
        %7354 = vmatpush.bf16.msra.mxu0 %v6098
        %7355 = vmatpush.bf16.msra.mxu0 %v6091
        %7356 = vmatpush.bf16.msra.mxu0 %v6084
        %7357 = vmatmul.bf16.gmra.mxu0 %v4601
        %v7358 = vpop.f32.mrf.mxu0
        %v7359 = vadd.f32 %v7346, %v7358
        %v7360 = vpop.f32.mrf.mxu0
        %7361 = vdwg.mxu0
        %7362 = vmatpush.bf16.msra.mxu0 %v6189
        %7363 = vmatpush.bf16.msra.mxu0 %v6182
        %7364 = vmatpush.bf16.msra.mxu0 %v6175
        %7365 = vmatpush.bf16.msra.mxu0 %v6168
        %7366 = vmatpush.bf16.msra.mxu0 %v6161
        %7367 = vmatpush.bf16.msra.mxu0 %v6154
        %7368 = vmatpush.bf16.msra.mxu0 %v6147
        %7369 = vmatpush.bf16.msra.mxu0 %v6140
        %7370 = vmatmul.bf16.gmra.mxu0 %v4602
        %v7371 = vpop.f32.mrf.mxu0
        %v7372 = vadd.f32 %v7359, %v7371
        %v7373 = vpop.f32.mrf.mxu0
        %7374 = vdwg.mxu0
        %7375 = vmatpush.bf16.msra.mxu0 %v6245
        %7376 = vmatpush.bf16.msra.mxu0 %v6238
        %7377 = vmatpush.bf16.msra.mxu0 %v6231
        %7378 = vmatpush.bf16.msra.mxu0 %v6224
        %7379 = vmatpush.bf16.msra.mxu0 %v6217
        %7380 = vmatpush.bf16.msra.mxu0 %v6210
        %7381 = vmatpush.bf16.msra.mxu0 %v6203
        %7382 = vmatpush.bf16.msra.mxu0 %v6196
        %7383 = vmatmul.bf16.gmra.mxu0 %v4603
        %v7384 = vpop.f32.mrf.mxu0
        %v7385 = vadd.f32 %v7372, %v7384
        %v7386 = vpop.f32.mrf.mxu0
        %7387 = vdwg.mxu0
        %7388 = vmatpush.bf16.msra.mxu0 %v6301
        %7389 = vmatpush.bf16.msra.mxu0 %v6294
        %7390 = vmatpush.bf16.msra.mxu0 %v6287
        %7391 = vmatpush.bf16.msra.mxu0 %v6280
        %7392 = vmatpush.bf16.msra.mxu0 %v6273
        %7393 = vmatpush.bf16.msra.mxu0 %v6266
        %7394 = vmatpush.bf16.msra.mxu0 %v6259
        %7395 = vmatpush.bf16.msra.mxu0 %v6252
        %7396 = vmatmul.bf16.gmra.mxu0 %v4604
        %v7397 = vpop.f32.mrf.mxu0
        %v7398 = vadd.f32 %v7385, %v7397
        %v7399 = vpop.f32.mrf.mxu0
        %7400 = vdwg.mxu0
        %7401 = vmatpush.bf16.msra.mxu0 %v6357
        %7402 = vmatpush.bf16.msra.mxu0 %v6350
        %7403 = vmatpush.bf16.msra.mxu0 %v6343
        %7404 = vmatpush.bf16.msra.mxu0 %v6336
        %7405 = vmatpush.bf16.msra.mxu0 %v6329
        %7406 = vmatpush.bf16.msra.mxu0 %v6322
        %7407 = vmatpush.bf16.msra.mxu0 %v6315
        %7408 = vmatpush.bf16.msra.mxu0 %v6308
        %7409 = vmatmul.bf16.gmra.mxu0 %v4605
        %v7410 = vpop.f32.mrf.mxu0
        %v7411 = vadd.f32 %v7398, %v7410
        %v7412 = vpop.f32.mrf.mxu0
        %7413 = vdwg.mxu0
        %7414 = vmatpush.bf16.msra.mxu0 %v6413
        %7415 = vmatpush.bf16.msra.mxu0 %v6406
        %7416 = vmatpush.bf16.msra.mxu0 %v6399
        %7417 = vmatpush.bf16.msra.mxu0 %v6392
        %7418 = vmatpush.bf16.msra.mxu0 %v6385
        %7419 = vmatpush.bf16.msra.mxu0 %v6378
        %7420 = vmatpush.bf16.msra.mxu0 %v6371
        %7421 = vmatpush.bf16.msra.mxu0 %v6364
        %7422 = vmatmul.bf16.gmra.mxu0 %v4606
        %v7423 = vpop.f32.mrf.mxu0
        %v7424 = vadd.f32 %v7411, %v7423
        %v7425 = vpop.f32.mrf.mxu0
        %7426 = vdwg.mxu0
        %7427 = vmatpush.bf16.msra.mxu0 %v6469
        %7428 = vmatpush.bf16.msra.mxu0 %v6462
        %7429 = vmatpush.bf16.msra.mxu0 %v6455
        %7430 = vmatpush.bf16.msra.mxu0 %v6448
        %7431 = vmatpush.bf16.msra.mxu0 %v6441
        %7432 = vmatpush.bf16.msra.mxu0 %v6434
        %7433 = vmatpush.bf16.msra.mxu0 %v6427
        %7434 = vmatpush.bf16.msra.mxu0 %v6420
        %7435 = vmatmul.bf16.gmra.mxu0 %v4607
        %v7436 = vpop.f32.mrf.mxu0
        %v7437 = vadd.f32 %v7424, %v7436
        %v7438 = vpop.f32.mrf.mxu0
        %7439 = vdwg.mxu0
        %7440 = vmatpush.bf16.msra.mxu0 %v6078
        %7441 = vmatpush.bf16.msra.mxu0 %v6071
        %7442 = vmatpush.bf16.msra.mxu0 %v6064
        %7443 = vmatpush.bf16.msra.mxu0 %v6057
        %7444 = vmatpush.bf16.msra.mxu0 %v6050
        %7445 = vmatpush.bf16.msra.mxu0 %v6043
        %7446 = vmatpush.bf16.msra.mxu0 %v6036
        %7447 = vmatpush.bf16.msra.mxu0 %v6029
        %7448 = vmatmul.bf16.gmra.mxu0 %v4600
        %v7449 = vpop.f32.mrf.mxu0
        %v7450 = vadd.f32 %v4579, %v7449
        %v7451 = vpop.f32.mrf.mxu0
        %7452 = vdwg.mxu0
        %7453 = vmatpush.bf16.msra.mxu0 %v6134
        %7454 = vmatpush.bf16.msra.mxu0 %v6127
        %7455 = vmatpush.bf16.msra.mxu0 %v6120
        %7456 = vmatpush.bf16.msra.mxu0 %v6113
        %7457 = vmatpush.bf16.msra.mxu0 %v6106
        %7458 = vmatpush.bf16.msra.mxu0 %v6099
        %7459 = vmatpush.bf16.msra.mxu0 %v6092
        %7460 = vmatpush.bf16.msra.mxu0 %v6085
        %7461 = vmatmul.bf16.gmra.mxu0 %v4601
        %v7462 = vpop.f32.mrf.mxu0
        %v7463 = vadd.f32 %v7450, %v7462
        %v7464 = vpop.f32.mrf.mxu0
        %7465 = vdwg.mxu0
        %7466 = vmatpush.bf16.msra.mxu0 %v6190
        %7467 = vmatpush.bf16.msra.mxu0 %v6183
        %7468 = vmatpush.bf16.msra.mxu0 %v6176
        %7469 = vmatpush.bf16.msra.mxu0 %v6169
        %7470 = vmatpush.bf16.msra.mxu0 %v6162
        %7471 = vmatpush.bf16.msra.mxu0 %v6155
        %7472 = vmatpush.bf16.msra.mxu0 %v6148
        %7473 = vmatpush.bf16.msra.mxu0 %v6141
        %7474 = vmatmul.bf16.gmra.mxu0 %v4602
        %v7475 = vpop.f32.mrf.mxu0
        %v7476 = vadd.f32 %v7463, %v7475
        %v7477 = vpop.f32.mrf.mxu0
        %7478 = vdwg.mxu0
        %7479 = vmatpush.bf16.msra.mxu0 %v6246
        %7480 = vmatpush.bf16.msra.mxu0 %v6239
        %7481 = vmatpush.bf16.msra.mxu0 %v6232
        %7482 = vmatpush.bf16.msra.mxu0 %v6225
        %7483 = vmatpush.bf16.msra.mxu0 %v6218
        %7484 = vmatpush.bf16.msra.mxu0 %v6211
        %7485 = vmatpush.bf16.msra.mxu0 %v6204
        %7486 = vmatpush.bf16.msra.mxu0 %v6197
        %7487 = vmatmul.bf16.gmra.mxu0 %v4603
        %v7488 = vpop.f32.mrf.mxu0
        %v7489 = vadd.f32 %v7476, %v7488
        %v7490 = vpop.f32.mrf.mxu0
        %7491 = vdwg.mxu0
        %7492 = vmatpush.bf16.msra.mxu0 %v6302
        %7493 = vmatpush.bf16.msra.mxu0 %v6295
        %7494 = vmatpush.bf16.msra.mxu0 %v6288
        %7495 = vmatpush.bf16.msra.mxu0 %v6281
        %7496 = vmatpush.bf16.msra.mxu0 %v6274
        %7497 = vmatpush.bf16.msra.mxu0 %v6267
        %7498 = vmatpush.bf16.msra.mxu0 %v6260
        %7499 = vmatpush.bf16.msra.mxu0 %v6253
        %7500 = vmatmul.bf16.gmra.mxu0 %v4604
        %v7501 = vpop.f32.mrf.mxu0
        %v7502 = vadd.f32 %v7489, %v7501
        %v7503 = vpop.f32.mrf.mxu0
        %7504 = vdwg.mxu0
        %7505 = vmatpush.bf16.msra.mxu0 %v6358
        %7506 = vmatpush.bf16.msra.mxu0 %v6351
        %7507 = vmatpush.bf16.msra.mxu0 %v6344
        %7508 = vmatpush.bf16.msra.mxu0 %v6337
        %7509 = vmatpush.bf16.msra.mxu0 %v6330
        %7510 = vmatpush.bf16.msra.mxu0 %v6323
        %7511 = vmatpush.bf16.msra.mxu0 %v6316
        %7512 = vmatpush.bf16.msra.mxu0 %v6309
        %7513 = vmatmul.bf16.gmra.mxu0 %v4605
        %v7514 = vpop.f32.mrf.mxu0
        %v7515 = vadd.f32 %v7502, %v7514
        %v7516 = vpop.f32.mrf.mxu0
        %7517 = vdwg.mxu0
        %7518 = vmatpush.bf16.msra.mxu0 %v6414
        %7519 = vmatpush.bf16.msra.mxu0 %v6407
        %7520 = vmatpush.bf16.msra.mxu0 %v6400
        %7521 = vmatpush.bf16.msra.mxu0 %v6393
        %7522 = vmatpush.bf16.msra.mxu0 %v6386
        %7523 = vmatpush.bf16.msra.mxu0 %v6379
        %7524 = vmatpush.bf16.msra.mxu0 %v6372
        %7525 = vmatpush.bf16.msra.mxu0 %v6365
        %7526 = vmatmul.bf16.gmra.mxu0 %v4606
        %v7527 = vpop.f32.mrf.mxu0
        %v7528 = vadd.f32 %v7515, %v7527
        %v7529 = vpop.f32.mrf.mxu0
        %7530 = vdwg.mxu0
        %7531 = vmatpush.bf16.msra.mxu0 %v6470
        %7532 = vmatpush.bf16.msra.mxu0 %v6463
        %7533 = vmatpush.bf16.msra.mxu0 %v6456
        %7534 = vmatpush.bf16.msra.mxu0 %v6449
        %7535 = vmatpush.bf16.msra.mxu0 %v6442
        %7536 = vmatpush.bf16.msra.mxu0 %v6435
        %7537 = vmatpush.bf16.msra.mxu0 %v6428
        %7538 = vmatpush.bf16.msra.mxu0 %v6421
        %7539 = vmatmul.bf16.gmra.mxu0 %v4607
        %v7540 = vpop.f32.mrf.mxu0
        %v7541 = vadd.f32 %v7528, %v7540
        %v7542 = vpop.f32.mrf.mxu0
        %7543 = vdwg.mxu0
        %7544 = vmatpush.bf16.msra.mxu0 %v6079
        %7545 = vmatpush.bf16.msra.mxu0 %v6072
        %7546 = vmatpush.bf16.msra.mxu0 %v6065
        %7547 = vmatpush.bf16.msra.mxu0 %v6058
        %7548 = vmatpush.bf16.msra.mxu0 %v6051
        %7549 = vmatpush.bf16.msra.mxu0 %v6044
        %7550 = vmatpush.bf16.msra.mxu0 %v6037
        %7551 = vmatpush.bf16.msra.mxu0 %v6030
        %7552 = vmatmul.bf16.gmra.mxu0 %v4600
        %v7553 = vpop.f32.mrf.mxu0
        %v7554 = vadd.f32 %v4580, %v7553
        %v7555 = vpop.f32.mrf.mxu0
        %7556 = vdwg.mxu0
        %7557 = vmatpush.bf16.msra.mxu0 %v6135
        %7558 = vmatpush.bf16.msra.mxu0 %v6128
        %7559 = vmatpush.bf16.msra.mxu0 %v6121
        %7560 = vmatpush.bf16.msra.mxu0 %v6114
        %7561 = vmatpush.bf16.msra.mxu0 %v6107
        %7562 = vmatpush.bf16.msra.mxu0 %v6100
        %7563 = vmatpush.bf16.msra.mxu0 %v6093
        %7564 = vmatpush.bf16.msra.mxu0 %v6086
        %7565 = vmatmul.bf16.gmra.mxu0 %v4601
        %v7566 = vpop.f32.mrf.mxu0
        %v7567 = vadd.f32 %v7554, %v7566
        %v7568 = vpop.f32.mrf.mxu0
        %7569 = vdwg.mxu0
        %7570 = vmatpush.bf16.msra.mxu0 %v6191
        %7571 = vmatpush.bf16.msra.mxu0 %v6184
        %7572 = vmatpush.bf16.msra.mxu0 %v6177
        %7573 = vmatpush.bf16.msra.mxu0 %v6170
        %7574 = vmatpush.bf16.msra.mxu0 %v6163
        %7575 = vmatpush.bf16.msra.mxu0 %v6156
        %7576 = vmatpush.bf16.msra.mxu0 %v6149
        %7577 = vmatpush.bf16.msra.mxu0 %v6142
        %7578 = vmatmul.bf16.gmra.mxu0 %v4602
        %v7579 = vpop.f32.mrf.mxu0
        %v7580 = vadd.f32 %v7567, %v7579
        %v7581 = vpop.f32.mrf.mxu0
        %7582 = vdwg.mxu0
        %7583 = vmatpush.bf16.msra.mxu0 %v6247
        %7584 = vmatpush.bf16.msra.mxu0 %v6240
        %7585 = vmatpush.bf16.msra.mxu0 %v6233
        %7586 = vmatpush.bf16.msra.mxu0 %v6226
        %7587 = vmatpush.bf16.msra.mxu0 %v6219
        %7588 = vmatpush.bf16.msra.mxu0 %v6212
        %7589 = vmatpush.bf16.msra.mxu0 %v6205
        %7590 = vmatpush.bf16.msra.mxu0 %v6198
        %7591 = vmatmul.bf16.gmra.mxu0 %v4603
        %v7592 = vpop.f32.mrf.mxu0
        %v7593 = vadd.f32 %v7580, %v7592
        %v7594 = vpop.f32.mrf.mxu0
        %7595 = vdwg.mxu0
        %7596 = vmatpush.bf16.msra.mxu0 %v6303
        %7597 = vmatpush.bf16.msra.mxu0 %v6296
        %7598 = vmatpush.bf16.msra.mxu0 %v6289
        %7599 = vmatpush.bf16.msra.mxu0 %v6282
        %7600 = vmatpush.bf16.msra.mxu0 %v6275
        %7601 = vmatpush.bf16.msra.mxu0 %v6268
        %7602 = vmatpush.bf16.msra.mxu0 %v6261
        %7603 = vmatpush.bf16.msra.mxu0 %v6254
        %7604 = vmatmul.bf16.gmra.mxu0 %v4604
        %v7605 = vpop.f32.mrf.mxu0
        %v7606 = vadd.f32 %v7593, %v7605
        %v7607 = vpop.f32.mrf.mxu0
        %7608 = vdwg.mxu0
        %7609 = vmatpush.bf16.msra.mxu0 %v6359
        %7610 = vmatpush.bf16.msra.mxu0 %v6352
        %7611 = vmatpush.bf16.msra.mxu0 %v6345
        %7612 = vmatpush.bf16.msra.mxu0 %v6338
        %7613 = vmatpush.bf16.msra.mxu0 %v6331
        %7614 = vmatpush.bf16.msra.mxu0 %v6324
        %7615 = vmatpush.bf16.msra.mxu0 %v6317
        %7616 = vmatpush.bf16.msra.mxu0 %v6310
        %7617 = vmatmul.bf16.gmra.mxu0 %v4605
        %v7618 = vpop.f32.mrf.mxu0
        %v7619 = vadd.f32 %v7606, %v7618
        %v7620 = vpop.f32.mrf.mxu0
        %7621 = vdwg.mxu0
        %7622 = vmatpush.bf16.msra.mxu0 %v6415
        %7623 = vmatpush.bf16.msra.mxu0 %v6408
        %7624 = vmatpush.bf16.msra.mxu0 %v6401
        %7625 = vmatpush.bf16.msra.mxu0 %v6394
        %7626 = vmatpush.bf16.msra.mxu0 %v6387
        %7627 = vmatpush.bf16.msra.mxu0 %v6380
        %7628 = vmatpush.bf16.msra.mxu0 %v6373
        %7629 = vmatpush.bf16.msra.mxu0 %v6366
        %7630 = vmatmul.bf16.gmra.mxu0 %v4606
        %v7631 = vpop.f32.mrf.mxu0
        %v7632 = vadd.f32 %v7619, %v7631
        %v7633 = vpop.f32.mrf.mxu0
        %7634 = vdwg.mxu0
        %7635 = vmatpush.bf16.msra.mxu0 %v6471
        %7636 = vmatpush.bf16.msra.mxu0 %v6464
        %7637 = vmatpush.bf16.msra.mxu0 %v6457
        %7638 = vmatpush.bf16.msra.mxu0 %v6450
        %7639 = vmatpush.bf16.msra.mxu0 %v6443
        %7640 = vmatpush.bf16.msra.mxu0 %v6436
        %7641 = vmatpush.bf16.msra.mxu0 %v6429
        %7642 = vmatpush.bf16.msra.mxu0 %v6422
        %7643 = vmatmul.bf16.gmra.mxu0 %v4607
        %v7644 = vpop.f32.mrf.mxu0
        %v7645 = vadd.f32 %v7632, %v7644
        %v7646 = vpop.f32.mrf.mxu0
        %7647 = vdwg.mxu0
        %v7648 = vtanh.pop %v7021
        %v7649 = vtanh.pop %v7125
        %v7650 = vtanh.pop %v7229
        %v7651 = vtanh.pop %v7333
        %v7652 = vtanh.pop %v7437
        %v7653 = vtanh.pop %v7541
        %v7654 = vtanh.pop %v7645
        %7655 = vst [vmem:[%s834] sm:$0xff] %v7648
        %7656 = vst [vmem:[%s834 + $0x8] sm:$0xff] %v7649
        %7657 = vst [vmem:[%s834 + $0x10] sm:$0xff] %v7650
        %7658 = vst [vmem:[%s834 + $0x18] sm:$0xff] %v7651
        %7659 = vst [vmem:[%s834 + $0x20] sm:$0xff] %v7652
        %7660 = vst [vmem:[%s834 + $0x28] sm:$0xff] %v7653
        %7661 = vst [vmem:[%s834 + $0x30] sm:$0xff] %v7654
        %s7662 = smul.u32 7, %s39
        %p7663 = scmp.lt.s32.totalorder %s7662, 13
        %s7664 = scalar_select %p7663, %s7662, 13
        %s7665 = smul.addr %s7664, 8
        %s7666 = scalar_lea.vmem %s17, %s7665
        // Predicated region
        $region161: #{generator_forward.1} parent=87 // pred_check
          %p7667 = pneg %p424
        $region162: #{generator_forward.1} parent=87 // pred_check_branch
          %7669 = sbr.rel (%p7667) target = $region164
        $region163: #{generator_forward.1} parent=87 // pred_region
          %s7670 = smul.u32 7, %s39
        $region164: #{generator_forward.1} parent=87 // pred_fallthru
          _
      $region88: #{generator_forward.1} parent=5 // pred_fallthru
        _
      %p7671 = scmp.le.s32.totalorder 2, %s34
      // Predicated region
      $region165: #{generator_forward.1} parent=5 // pred_check
        %p7672 = pneg %p7671
      $region166: #{generator_forward.1} parent=5 // pred_check_branch
        %7674 = sbr.rel (%p7672) target = $region168
      $region167: #{generator_forward.1} parent=5 // pred_region
        %s7675 = ssub.s32 %s34, 2
        // Predicated region
        $region169: #{generator_forward.1} parent=167 // pred_check
          %p7676 = pneg %p430
        $region170: #{generator_forward.1} parent=167 // pred_check_branch
          %7678 = sbr.rel (%p7676) target = $region172
        $region171: #{generator_forward.1} parent=167 // pred_region
          %s7679 = smul.u32 7, %s40
          %p7680 = scmp.lt.s32.totalorder %s7679, 13
          %s7681 = scalar_select %p7680, %s7679, 13
          %s7682 = smul.addr %s7681, 8
          %s7683 = scalar_lea.vmem %s17, %s7682
        $region172: #{generator_forward.1} parent=167 // pred_fallthru
          _
      $region168: #{generator_forward.1} parent=5 // pred_fallthru
        _
    $region6: #{generator_forward.1} parent=1 // loop_footer
      %s38 = sadd.s32 1, %s34
    $region7: #{generator_forward.1} parent=1 // loop_footer_branch
      %33 = sbr.rel target = $region3
    $region8: #{generator_forward.1} parent=1 // loop_exit
      _
    %7684 = vsyncpa [#allocation4], 1
    %s7685 = scalar_lea.sflag [#allocation4], 1
    %7686 = vsyncpa %s7685, 1
    %7687 = vsyncpa [#allocation6], 1
    %7688 = vsyncpa [#allocation9], 1
    %7689 = vsyncpa [#allocation12], 1
    %7690 = vsyncpa [#allocation15], 1
    %7691 = vsyncpa [#allocation18], 1
    %7692 = vsyncpa [#allocation21], 1
    %7693 = vsyncpa [#allocation24], 1
    %7694 = vsyncpa [#allocation27], 1
    %s7695 = scalar_lea.sflag [#allocation27], 1
    %7696 = vsyncpa %s7695, 1

</llo_original>
